<compile_context>
chip_gen: v7x
topology: tpu7x:2x2x1
jax: 0.10.0
libtpu: 0.0.40
codegen_flags: <defaults>
</compile_context>

<pallas_src>
import functools

import jax
import jax.numpy as jnp
from jax.experimental import pallas as pl
from jax.experimental.pallas import tpu as pltpu

# ------------------------- config (mirrors c2f config) -----------------------
INPUT_DIM = 32          # source vocab size
OUTPUT_DIM = 32         # config.OUTPUT_DIM (target vocab size)
ENC_EMB_DIM = 16
DEC_EMB_DIM = 16
ENC_HID_DIM = 32        # H  (4H = 128 -> gates fill one lane-dense vreg row)
DEC_HID_DIM = 32        # Hd (4Hd = 128)
SRC_PAD_IDX = 0         # config.SRC_PAD_IDX
TEACHER_FORCING_RATIO = 1.0  # deterministic: always teacher-force

V_PAD = 128             # logits padded to a lane-dense 128-wide tile
SUBLANE = 8             # batch padded to a multiple of the sublane width
NEG_BIG = -1e10         # additive attention mask value for pad positions


# ------------------------------ kernel helpers --------------------------------
def _gate_mask(b, nh):
    """Static lane mask selecting the 'g' gate block of a [B, 4*nh] gate tile.
    Computed ONCE outside the recurrences (broadcast_in_dim is not CSE'd)."""
    lane = jax.lax.broadcasted_iota(jnp.int32, (b, 4 * nh), 1)
    return jnp.logical_and(lane >= 2 * nh, lane < 3 * nh)


def _lstm_act(gates, c_prev, nh, g_mask):
    """One full-tile sigmoid + one full-tile tanh over [B, 4*nh] combined with a
    precomputed static lane mask. Gate order is PyTorch's (i, f, g, o)."""
    act = jnp.where(g_mask, jnp.tanh(gates), jax.nn.sigmoid(gates))
    i_g = act[:, 0 * nh:1 * nh]
    f_g = act[:, 1 * nh:2 * nh]
    g_g = act[:, 2 * nh:3 * nh]
    o_g = act[:, 3 * nh:4 * nh]
    c_new = f_g * c_prev + i_g * g_g
    h_new = o_g * jnp.tanh(c_new)
    return h_new, c_new


# ------------------------------ fused kernel ----------------------------------
def seq2seq_kernel(mask_ref,                      # [S*B, 1] additive attn mask
                   src_emb_ref,                   # [S*B, Ee]
                   trg_emb_ref,                   # [T*B, De]
                   wih_f_ref, whh_f_ref, bf_ref,  # fwd encoder LSTM
                   wih_b_ref, whh_b_ref, bb_ref,  # bwd encoder LSTM
                   fch_w_ref, fch_b_ref,          # fc -> decoder hidden init
                   fcc_w_ref, fcc_b_ref,          # fc -> decoder cell init
                   wah_ref, wae_ref, ba_ref, va_ref,         # attention
                   wih_e_ref, wih_w_ref, whh_d_ref, bl_ref,  # decoder LSTM
                   woh_ref, wow_ref, woe_ref, bo_ref,        # fc_out (lane-padded)
                   out_ref):                      # [T, B, V_PAD]
    T, B, Vp = out_ref.shape
    S = src_emb_ref.shape[0] // B
    H = whh_f_ref.shape[0]
    Hd = whh_d_ref.shape[0]
    f32 = jnp.float32
    dot = functools.partial(jnp.dot, preferred_element_type=jnp.float32)

    # =============================== encoder ==================================
    # Hoisted time-invariant input projections for BOTH directions: one big
    # [S*B, Ee] x [Ee, 4H] matmul each (off the recurrence critical path).
    src_emb = src_emb_ref[...]                              # [S*B, Ee]
    xg_f = dot(src_emb, wih_f_ref[...]) + bf_ref[...]       # [S*B, 4H]
    xg_b = dot(src_emb, wih_b_ref[...]) + bb_ref[...]       # [S*B, 4H]

    whh_f = whh_f_ref[...]
    whh_b = whh_b_ref[...]
    gm_e = _gate_mask(B, H)                                 # hoisted lane mask

    zero_bh = jnp.zeros((B, H), f32)
    h_f, c_f, h_b, c_b = zero_bh, zero_bh, zero_bh, zero_bh
    hs_f = [None] * S
    hs_b = [None] * S

    # The two directions are independent recurrences; interleaving them in the
    # same statically-unrolled step lets the scheduler hide one direction's
    # MXU/EUP latency under the other's work.
    for s in range(S):
        gates_f = xg_f[s * B:(s + 1) * B, :] + dot(h_f, whh_f)
        h_f, c_f = _lstm_act(gates_f, c_f, H, gm_e)
        hs_f[s] = h_f

        sb = S - 1 - s
        gates_b = xg_b[sb * B:(sb + 1) * B, :] + dot(h_b, whh_b)
        h_b, c_b = _lstm_act(gates_b, c_b, H, gm_e)
        hs_b[sb] = h_b

    # decoder init states: tanh(fc(cat(h_fwd, h_bwd))) done as split matmuls
    fch_w = fch_w_ref[...]
    fcc_w = fcc_w_ref[...]
    h = jnp.tanh(dot(h_f, fch_w[:H, :]) + dot(h_b, fch_w[H:, :]) + fch_b_ref[...])
    c = jnp.tanh(dot(c_f, fcc_w[:H, :]) + dot(c_b, fcc_w[H:, :]) + fcc_b_ref[...])

    # Encoder outputs stay on-chip, flat [S*B, H] per direction.
    ef = jnp.concatenate(hs_f, axis=0)                      # [S*B, H]
    eb = jnp.concatenate(hs_b, axis=0)                      # [S*B, H]

    # ================= hoisted decoder-invariant projections ===================
    # By linearity, every per-step use of the attention-weighted encoder state
    # (decoder-LSTM input gates and fc_out) can consume a softmax-weighted sum
    # of these PRE-PROJECTED encoder tiles, so no per-step encoder matmuls.
    wae = wae_ref[...]                                      # [2H, Hd]
    wih_w = wih_w_ref[...]                                  # [2H, 4Hd]
    wow = wow_ref[...]                                      # [2H, Vp]
    encp = dot(ef, wae[:H, :]) + dot(eb, wae[H:, :])        # [S*B, Hd]  (energy)
    encg = dot(ef, wih_w[:H, :]) + dot(eb, wih_w[H:, :])    # [S*B, 4Hd] (gates)
    enco = dot(ef, wow[:H, :]) + dot(eb, wow[H:, :])        # [S*B, Vp]  (fc_out)

    # Hoisted time-invariant decoder input projections (teacher forcing ratio is
    # 1.0, so step t always consumes trg[t-1]): one flat matmul each.
    trg_emb = trg_emb_ref[...]                              # [T*B, De]
    xg_d = dot(trg_emb, wih_e_ref[...]) + bl_ref[...]       # [T*B, 4Hd]
    xo_e = dot(trg_emb, woe_ref[...]) + bo_ref[...]         # [T*B, Vp]

    # Loop-invariant weights / masks read once, outside the recurrence.
    wah = wah_ref[...]
    ba = ba_ref[...]
    va = va_ref[...]
    whh_d = whh_d_ref[...]
    woh = woh_ref[...]
    gm_d = _gate_mask(B, Hd)

    mask_all = mask_ref[...]                                # [S*B, 1]
    mcols = [mask_all[s * B:(s + 1) * B, :] for s in range(S)]   # S x [B, 1]

    # =============================== decoder ==================================
    out_ref[0] = jnp.zeros((B, Vp), f32)                    # outputs[0] stays zeros

    for t in range(1, T):
        # ---- Bahdanau attention scores over the (masked) encoder positions ----
        h_proj = dot(h, wah) + ba                           # [B, Hd]
        sc = [None] * S
        for s in range(S):
            e_s = jnp.tanh(encp[s * B:(s + 1) * B, :] + h_proj)        # [B, Hd]
            sc[s] = jnp.sum(e_s * va, axis=-1, keepdims=True) + mcols[s]  # [B, 1]
        m = sc[0]
        for s in range(1, S):
            m = jnp.maximum(m, sc[s])
        exps = [jnp.exp(x - m) for x in sc]                 # S x [B, 1]
        denom = exps[0]
        for s in range(1, S):
            denom = denom + exps[s]
        inv = pl.reciprocal(denom, approx=True)             # [B, 1]

        # Un-normalized weighted sums of the pre-projected encoder tiles,
        # normalized once by `inv` (softmax applied via linearity).
        ctx_g = exps[0] * encg[0:B, :]                      # [B, 4Hd]
        ctx_o = exps[0] * enco[0:B, :]                      # [B, Vp]
        for s in range(1, S):
            ctx_g = ctx_g + exps[s] * encg[s * B:(s + 1) * B, :]
            ctx_o = ctx_o + exps[s] * enco[s * B:(s + 1) * B, :]

        # ---- decoder LSTM cell (embedded + context projections precomputed) ----
        gates = xg_d[(t - 1) * B:t * B, :] + ctx_g * inv + dot(h, whh_d)
        h, c = _lstm_act(gates, c, Hd, gm_d)

        # ---- fc_out(cat(output, weighted, embedded)), lane-dense (Vp=128) ----
        logits = xo_e[(t - 1) * B:t * B, :] + ctx_o * inv + dot(h, woh)
        out_ref[t] = logits                                 # full-vreg store


# ------------------------------ JAX wrapper -----------------------------------
def _round_up(x, m):
    return ((x + m - 1) // m) * m


def _pad_lanes(w, width):
    return jnp.pad(w, [(0, 0)] * (w.ndim - 1) + [(0, width - w.shape[-1])])


def seq2seq_call(attn_mask, src_emb_flat, trg_emb_flat, p, T, Bp):
    vmem = lambda: pl.BlockSpec(memory_space=pltpu.MemorySpace.VMEM)
    return pl.pallas_call(
        seq2seq_kernel,
        out_shape=jax.ShapeDtypeStruct((T, Bp, V_PAD), jnp.float32),
        in_specs=[vmem() for _ in range(25)],
        out_specs=vmem(),
    )(attn_mask, src_emb_flat, trg_emb_flat,
      p['enc_wih_f'], p['enc_whh_f'], p['enc_b_f'],
      p['enc_wih_b'], p['enc_whh_b'], p['enc_b_b'],
      p['fc_h_w'], p['fc_h_b'], p['fc_c_w'], p['fc_c_b'],
      p['attn_wh'], p['attn_we'], p['attn_b'], p['attn_v'],
      p['dec_wih_e'], p['dec_wih_w'], p['dec_whh'], p['dec_b'],
      p['out_wh_p'], p['out_ww_p'], p['out_we_p'], p['out_b_p'])


def seq2seq_forward(params, src, src_len, trg):
    """src: [S, B] int32, src_len: [B] int32, trg: [T, B] int32
       returns outputs: [T, B, OUTPUT_DIM] float32 (outputs[0] == 0)."""
    del src_len  # TODO(synk): pack_padded_sequence / variable src_len not modeled
    S, B = src.shape
    T = trg.shape[0]
    Bp = _round_up(max(B, SUBLANE), SUBLANE)

    # Pad batch to the sublane width (free at vreg granularity; keeps every
    # in-kernel tile 8-row aligned). Padded columns are masked / sliced away.
    src_p = jnp.pad(src, ((0, 0), (0, Bp - B)), constant_values=SRC_PAD_IDX)
    trg_p = jnp.pad(trg, ((0, 0), (0, Bp - B)), constant_values=0)

    # create_mask(src) hoisted to the wrapper as an ADDITIVE f32 mask column
    # per (s, b) so the kernel's inner loop is pure adds (no int compares).
    attn_mask = jnp.where(src_p != SRC_PAD_IDX, 0.0, NEG_BIG).astype(jnp.float32)
    attn_mask = attn_mask.reshape(S * Bp, 1)

    # Embedding lookups stay as XLA gathers (glue); everything else runs inside
    # the single fused kernel. Flatten time x batch so the kernel's hoisted
    # input projections are single 2-D matmuls.
    src_emb = jnp.take(params['enc_emb'], src_p, axis=0).reshape(S * Bp, ENC_EMB_DIM)
    trg_emb = jnp.take(params['dec_emb'], trg_p, axis=0).reshape(T * Bp, DEC_EMB_DIM)

    out_p = seq2seq_call(attn_mask, src_emb, trg_emb, params, T, Bp)  # [T, Bp, V_PAD]
    return out_p[:, :B, :OUTPUT_DIM]


# ------------------------------ parameters -----------------------------------
def init_params(key):
    H, Hd, Ee, De, V = ENC_HID_DIM, DEC_HID_DIM, ENC_EMB_DIM, DEC_EMB_DIM, OUTPUT_DIM
    shapes = {
        'enc_emb':   (INPUT_DIM, Ee),
        'dec_emb':   (V, De),
        # encoder bidirectional LSTM
        'enc_wih_f': (Ee, 4 * H), 'enc_whh_f': (H, 4 * H), 'enc_b_f': (1, 4 * H),
        'enc_wih_b': (Ee, 4 * H), 'enc_whh_b': (H, 4 * H), 'enc_b_b': (1, 4 * H),
        # encoder -> decoder init fcs
        'fc_h_w': (2 * H, Hd), 'fc_h_b': (1, Hd),
        'fc_c_w': (2 * H, Hd), 'fc_c_b': (1, Hd),
        # attention
        'attn_wh': (Hd, Hd), 'attn_we': (2 * H, Hd), 'attn_b': (1, Hd), 'attn_v': (1, Hd),
        # decoder LSTM (input = [embedded ; weighted])
        'dec_wih_e': (De, 4 * Hd), 'dec_wih_w': (2 * H, 4 * Hd),
        'dec_whh': (Hd, 4 * Hd), 'dec_b': (1, 4 * Hd),
        # fc_out (input = [output ; weighted ; embedded])
        'out_wh': (Hd, V), 'out_ww': (2 * H, V), 'out_we': (De, V), 'out_b': (1, V),
    }
    keys = jax.random.split(key, len(shapes))
    params = {}
    for (name, shp), k in zip(shapes.items(), keys):
        params[name] = (0.1 * jax.random.normal(k, shp)).astype(jnp.float32)
    # Lane-dense (128-wide) padded copies of the fc_out weights so every
    # decoder logits tile is a full, unmasked vreg store in-kernel.
    params['out_wh_p'] = _pad_lanes(params['out_wh'], V_PAD)
    params['out_ww_p'] = _pad_lanes(params['out_ww'], V_PAD)
    params['out_we_p'] = _pad_lanes(params['out_we'], V_PAD)
    params['out_b_p'] = _pad_lanes(params['out_b'], V_PAD)
    return params


# ---------------------------------- main --------------------------------------
if __name__ == "__main__":
    key = jax.random.PRNGKey(0)
    k_params, k_src, k_trg = jax.random.split(key, 3)

    S, T, B = 8, 8, 2
    params = init_params(k_params)

    # no pad tokens -> mask is all True and full-length LSTM matches packed semantics
    src = jax.random.randint(k_src, (S, B), 1, INPUT_DIM, dtype=jnp.int32)
    trg = jax.random.randint(k_trg, (T, B), 0, OUTPUT_DIM, dtype=jnp.int32)
    src_len = jnp.full((B,), S, dtype=jnp.int32)

    fwd = jax.jit(seq2seq_forward)
    outputs = fwd(params, src, src_len, trg)
    outputs = jax.block_until_ready(outputs)

    assert outputs.shape == (T, B, OUTPUT_DIM)
    assert bool(jnp.all(jnp.isfinite(outputs)))
    assert bool(jnp.all(outputs[0] == 0.0))  # outputs[0] stays zeros as in the PyTorch loop
    print("KERNEL_OK")
</pallas_src>

<mosaic_0001>
module attributes {stable_mosaic.version = 11 : i64} {
  func.func @seq2seq_kernel(%arg0: memref<64x1xf32, #tpu.memory_space<vmem>>, %arg1: memref<64x16xf32, #tpu.memory_space<vmem>>, %arg2: memref<64x16xf32, #tpu.memory_space<vmem>>, %arg3: memref<16x128xf32, #tpu.memory_space<vmem>>, %arg4: memref<32x128xf32, #tpu.memory_space<vmem>>, %arg5: memref<1x128xf32, #tpu.memory_space<vmem>>, %arg6: memref<16x128xf32, #tpu.memory_space<vmem>>, %arg7: memref<32x128xf32, #tpu.memory_space<vmem>>, %arg8: memref<1x128xf32, #tpu.memory_space<vmem>>, %arg9: memref<64x32xf32, #tpu.memory_space<vmem>>, %arg10: memref<1x32xf32, #tpu.memory_space<vmem>>, %arg11: memref<64x32xf32, #tpu.memory_space<vmem>>, %arg12: memref<1x32xf32, #tpu.memory_space<vmem>>, %arg13: memref<32x32xf32, #tpu.memory_space<vmem>>, %arg14: memref<64x32xf32, #tpu.memory_space<vmem>>, %arg15: memref<1x32xf32, #tpu.memory_space<vmem>>, %arg16: memref<1x32xf32, #tpu.memory_space<vmem>>, %arg17: memref<16x128xf32, #tpu.memory_space<vmem>>, %arg18: memref<64x128xf32, #tpu.memory_space<vmem>>, %arg19: memref<32x128xf32, #tpu.memory_space<vmem>>, %arg20: memref<1x128xf32, #tpu.memory_space<vmem>>, %arg21: memref<32x128xf32, #tpu.memory_space<vmem>>, %arg22: memref<64x128xf32, #tpu.memory_space<vmem>>, %arg23: memref<16x128xf32, #tpu.memory_space<vmem>>, %arg24: memref<1x128xf32, #tpu.memory_space<vmem>>, %arg25: memref<8x8x128xf32, #tpu.memory_space<vmem>>) attributes {dimension_semantics = [], scalar_prefetch = 0 : i64, scratch_operands = 0 : i64, tpu.core_type = #tpu.core_type<tc>} {
    %c0 = arith.constant 0 : index
    %c0_0 = arith.constant 0 : index
    %0 = vector.load %arg1[%c0, %c0_0] : memref<64x16xf32, #tpu.memory_space<vmem>>, vector<64x16xf32>
    %c0_1 = arith.constant 0 : index
    %c0_2 = arith.constant 0 : index
    %1 = vector.load %arg3[%c0_1, %c0_2] : memref<16x128xf32, #tpu.memory_space<vmem>>, vector<16x128xf32>
    %cst = arith.constant dense<0.000000e+00> : vector<64x128xf32>
    %2 = tpu.matmul %0, %1, %cst {dimension_numbers = #tpu.dot_dimension_numbers<[1], [0], [0], [1], [0, 0, 1, 1], [], []>} : vector<64x16xf32>, vector<16x128xf32>, vector<64x128xf32> -> vector<64x128xf32>
    %c0_3 = arith.constant 0 : index
    %c0_4 = arith.constant 0 : index
    %3 = vector.load %arg5[%c0_3, %c0_4] : memref<1x128xf32, #tpu.memory_space<vmem>>, vector<1x128xf32>
    %4 = vector.broadcast %3 : vector<1x128xf32> to vector<64x128xf32>
    %5 = arith.addf %2, %4 : vector<64x128xf32>
    %c0_5 = arith.constant 0 : index
    %c0_6 = arith.constant 0 : index
    %6 = vector.load %arg6[%c0_5, %c0_6] : memref<16x128xf32, #tpu.memory_space<vmem>>, vector<16x128xf32>
    %cst_7 = arith.constant dense<0.000000e+00> : vector<64x128xf32>
    %7 = tpu.matmul %0, %6, %cst_7 {dimension_numbers = #tpu.dot_dimension_numbers<[1], [0], [0], [1], [0, 0, 1, 1], [], []>} : vector<64x16xf32>, vector<16x128xf32>, vector<64x128xf32> -> vector<64x128xf32>
    %c0_8 = arith.constant 0 : index
    %c0_9 = arith.constant 0 : index
    %8 = vector.load %arg8[%c0_8, %c0_9] : memref<1x128xf32, #tpu.memory_space<vmem>>, vector<1x128xf32>
    %9 = vector.broadcast %8 : vector<1x128xf32> to vector<64x128xf32>
    %10 = arith.addf %7, %9 : vector<64x128xf32>
    %c0_10 = arith.constant 0 : index
    %c0_11 = arith.constant 0 : index
    %11 = vector.load %arg4[%c0_10, %c0_11] : memref<32x128xf32, #tpu.memory_space<vmem>>, vector<32x128xf32>
    %c0_12 = arith.constant 0 : index
    %c0_13 = arith.constant 0 : index
    %12 = vector.load %arg7[%c0_12, %c0_13] : memref<32x128xf32, #tpu.memory_space<vmem>>, vector<32x128xf32>
    %13 = tpu.iota {dimensions = array<i32: 1>} : vector<8x128xi32>
    %c64_i32 = arith.constant 64 : i32
    %14 = vector.broadcast %c64_i32 : i32 to vector<8x128xi32>
    %15 = arith.cmpi sge, %13, %14 : vector<8x128xi32>
    %c96_i32 = arith.constant 96 : i32
    %16 = vector.broadcast %c96_i32 : i32 to vector<8x128xi32>
    %17 = arith.cmpi slt, %13, %16 : vector<8x128xi32>
    %18 = arith.andi %15, %17 : vector<8x128xi1>
    %cst_14 = arith.constant 0.000000e+00 : f32
    %19 = vector.broadcast %cst_14 : f32 to vector<8x32xf32>
    %20 = vector.extract_strided_slice %5 {offsets = [0, 0], sizes = [8, 128], strides = [1, 1]} : vector<64x128xf32> to vector<8x128xf32>
    %cst_15 = arith.constant dense<0.000000e+00> : vector<8x128xf32>
    %21 = tpu.matmul %19, %11, %cst_15 {dimension_numbers = #tpu.dot_dimension_numbers<[1], [0], [0], [1], [0, 0, 1, 1], [], []>} : vector<8x32xf32>, vector<32x128xf32>, vector<8x128xf32> -> vector<8x128xf32>
    %22 = arith.addf %20, %21 : vector<8x128xf32>
    %23 = math.tanh %22 : vector<8x128xf32>
    %24 = arith.negf %22 : vector<8x128xf32>
    %25 = math.exp %24 : vector<8x128xf32>
    %cst_16 = arith.constant 1.000000e+00 : f32
    %26 = vector.broadcast %cst_16 : f32 to vector<8x128xf32>
    %27 = arith.addf %26, %25 : vector<8x128xf32>
    %28 = arith.divf %26, %27 : vector<8x128xf32>
    %29 = arith.select %18, %23, %28 : vector<8x128xi1>, vector<8x128xf32>
    %30 = vector.extract_strided_slice %29 {offsets = [0, 0], sizes = [8, 32], strides = [1, 1]} : vector<8x128xf32> to vector<8x32xf32>
    %31 = vector.extract_strided_slice %29 {offsets = [0, 32], sizes = [8, 32], strides = [1, 1]} : vector<8x128xf32> to vector<8x32xf32>
    %32 = vector.extract_strided_slice %29 {offsets = [0, 64], sizes = [8, 32], strides = [1, 1]} : vector<8x128xf32> to vector<8x32xf32>
    %33 = vector.extract_strided_slice %29 {offsets = [0, 96], sizes = [8, 32], strides = [1, 1]} : vector<8x128xf32> to vector<8x32xf32>
    %34 = arith.mulf %31, %19 : vector<8x32xf32>
    %35 = arith.mulf %30, %32 : vector<8x32xf32>
    %36 = arith.addf %34, %35 : vector<8x32xf32>
    %37 = math.tanh %36 : vector<8x32xf32>
    %38 = arith.mulf %33, %37 : vector<8x32xf32>
    %39 = vector.extract_strided_slice %10 {offsets = [56, 0], sizes = [8, 128], strides = [1, 1]} : vector<64x128xf32> to vector<8x128xf32>
    %cst_17 = arith.constant dense<0.000000e+00> : vector<8x128xf32>
    %40 = tpu.matmul %19, %12, %cst_17 {dimension_numbers = #tpu.dot_dimension_numbers<[1], [0], [0], [1], [0, 0, 1, 1], [], []>} : vector<8x32xf32>, vector<32x128xf32>, vector<8x128xf32> -> vector<8x128xf32>
    %41 = arith.addf %39, %40 : vector<8x128xf32>
    %42 = math.tanh %41 : vector<8x128xf32>
    %43 = arith.negf %41 : vector<8x128xf32>
    %44 = math.exp %43 : vector<8x128xf32>
    %cst_18 = arith.constant 1.000000e+00 : f32
    %45 = vector.broadcast %cst_18 : f32 to vector<8x128xf32>
    %46 = arith.addf %45, %44 : vector<8x128xf32>
    %47 = arith.divf %45, %46 : vector<8x128xf32>
    %48 = arith.select %18, %42, %47 : vector<8x128xi1>, vector<8x128xf32>
    %49 = vector.extract_strided_slice %48 {offsets = [0, 0], sizes = [8, 32], strides = [1, 1]} : vector<8x128xf32> to vector<8x32xf32>
    %50 = vector.extract_strided_slice %48 {offsets = [0, 32], sizes = [8, 32], strides = [1, 1]} : vector<8x128xf32> to vector<8x32xf32>
    %51 = vector.extract_strided_slice %48 {offsets = [0, 64], sizes = [8, 32], strides = [1, 1]} : vector<8x128xf32> to vector<8x32xf32>
    %52 = vector.extract_strided_slice %48 {offsets = [0, 96], sizes = [8, 32], strides = [1, 1]} : vector<8x128xf32> to vector<8x32xf32>
    %53 = arith.mulf %50, %19 : vector<8x32xf32>
    %54 = arith.mulf %49, %51 : vector<8x32xf32>
    %55 = arith.addf %53, %54 : vector<8x32xf32>
    %56 = math.tanh %55 : vector<8x32xf32>
    %57 = arith.mulf %52, %56 : vector<8x32xf32>
    %58 = vector.extract_strided_slice %5 {offsets = [8, 0], sizes = [8, 128], strides = [1, 1]} : vector<64x128xf32> to vector<8x128xf32>
    %cst_19 = arith.constant dense<0.000000e+00> : vector<8x128xf32>
    %59 = tpu.matmul %38, %11, %cst_19 {dimension_numbers = #tpu.dot_dimension_numbers<[1], [0], [0], [1], [0, 0, 1, 1], [], []>} : vector<8x32xf32>, vector<32x128xf32>, vector<8x128xf32> -> vector<8x128xf32>
    %60 = arith.addf %58, %59 : vector<8x128xf32>
    %61 = math.tanh %60 : vector<8x128xf32>
    %62 = arith.negf %60 : vector<8x128xf32>
    %63 = math.exp %62 : vector<8x128xf32>
    %cst_20 = arith.constant 1.000000e+00 : f32
    %64 = vector.broadcast %cst_20 : f32 to vector<8x128xf32>
    %65 = arith.addf %64, %63 : vector<8x128xf32>
    %66 = arith.divf %64, %65 : vector<8x128xf32>
    %67 = arith.select %18, %61, %66 : vector<8x128xi1>, vector<8x128xf32>
    %68 = vector.extract_strided_slice %67 {offsets = [0, 0], sizes = [8, 32], strides = [1, 1]} : vector<8x128xf32> to vector<8x32xf32>
    %69 = vector.extract_strided_slice %67 {offsets = [0, 32], sizes = [8, 32], strides = [1, 1]} : vector<8x128xf32> to vector<8x32xf32>
    %70 = vector.extract_strided_slice %67 {offsets = [0, 64], sizes = [8, 32], strides = [1, 1]} : vector<8x128xf32> to vector<8x32xf32>
    %71 = vector.extract_strided_slice %67 {offsets = [0, 96], sizes = [8, 32], strides = [1, 1]} : vector<8x128xf32> to vector<8x32xf32>
    %72 = arith.mulf %69, %36 : vector<8x32xf32>
    %73 = arith.mulf %68, %70 : vector<8x32xf32>
    %74 = arith.addf %72, %73 : vector<8x32xf32>
    %75 = math.tanh %74 : vector<8x32xf32>
    %76 = arith.mulf %71, %75 : vector<8x32xf32>
    %77 = vector.extract_strided_slice %10 {offsets = [48, 0], sizes = [8, 128], strides = [1, 1]} : vector<64x128xf32> to vector<8x128xf32>
    %cst_21 = arith.constant dense<0.000000e+00> : vector<8x128xf32>
    %78 = tpu.matmul %57, %12, %cst_21 {dimension_numbers = #tpu.dot_dimension_numbers<[1], [0], [0], [1], [0, 0, 1, 1], [], []>} : vector<8x32xf32>, vector<32x128xf32>, vector<8x128xf32> -> vector<8x128xf32>
    %79 = arith.addf %77, %78 : vector<8x128xf32>
    %80 = math.tanh %79 : vector<8x128xf32>
    %81 = arith.negf %79 : vector<8x128xf32>
    %82 = math.exp %81 : vector<8x128xf32>
    %cst_22 = arith.constant 1.000000e+00 : f32
    %83 = vector.broadcast %cst_22 : f32 to vector<8x128xf32>
    %84 = arith.addf %83, %82 : vector<8x128xf32>
    %85 = arith.divf %83, %84 : vector<8x128xf32>
    %86 = arith.select %18, %80, %85 : vector<8x128xi1>, vector<8x128xf32>
    %87 = vector.extract_strided_slice %86 {offsets = [0, 0], sizes = [8, 32], strides = [1, 1]} : vector<8x128xf32> to vector<8x32xf32>
    %88 = vector.extract_strided_slice %86 {offsets = [0, 32], sizes = [8, 32], strides = [1, 1]} : vector<8x128xf32> to vector<8x32xf32>
    %89 = vector.extract_strided_slice %86 {offsets = [0, 64], sizes = [8, 32], strides = [1, 1]} : vector<8x128xf32> to vector<8x32xf32>
    %90 = vector.extract_strided_slice %86 {offsets = [0, 96], sizes = [8, 32], strides = [1, 1]} : vector<8x128xf32> to vector<8x32xf32>
    %91 = arith.mulf %88, %55 : vector<8x32xf32>
    %92 = arith.mulf %87, %89 : vector<8x32xf32>
    %93 = arith.addf %91, %92 : vector<8x32xf32>
    %94 = math.tanh %93 : vector<8x32xf32>
    %95 = arith.mulf %90, %94 : vector<8x32xf32>
    %96 = vector.extract_strided_slice %5 {offsets = [16, 0], sizes = [8, 128], strides = [1, 1]} : vector<64x128xf32> to vector<8x128xf32>
    %cst_23 = arith.constant dense<0.000000e+00> : vector<8x128xf32>
    %97 = tpu.matmul %76, %11, %cst_23 {dimension_numbers = #tpu.dot_dimension_numbers<[1], [0], [0], [1], [0, 0, 1, 1], [], []>} : vector<8x32xf32>, vector<32x128xf32>, vector<8x128xf32> -> vector<8x128xf32>
    %98 = arith.addf %96, %97 : vector<8x128xf32>
    %99 = math.tanh %98 : vector<8x128xf32>
    %100 = arith.negf %98 : vector<8x128xf32>
    %101 = math.exp %100 : vector<8x128xf32>
    %cst_24 = arith.constant 1.000000e+00 : f32
    %102 = vector.broadcast %cst_24 : f32 to vector<8x128xf32>
    %103 = arith.addf %102, %101 : vector<8x128xf32>
    %104 = arith.divf %102, %103 : vector<8x128xf32>
    %105 = arith.select %18, %99, %104 : vector<8x128xi1>, vector<8x128xf32>
    %106 = vector.extract_strided_slice %105 {offsets = [0, 0], sizes = [8, 32], strides = [1, 1]} : vector<8x128xf32> to vector<8x32xf32>
    %107 = vector.extract_strided_slice %105 {offsets = [0, 32], sizes = [8, 32], strides = [1, 1]} : vector<8x128xf32> to vector<8x32xf32>
    %108 = vector.extract_strided_slice %105 {offsets = [0, 64], sizes = [8, 32], strides = [1, 1]} : vector<8x128xf32> to vector<8x32xf32>
    %109 = vector.extract_strided_slice %105 {offsets = [0, 96], sizes = [8, 32], strides = [1, 1]} : vector<8x128xf32> to vector<8x32xf32>
    %110 = arith.mulf %107, %74 : vector<8x32xf32>
    %111 = arith.mulf %106, %108 : vector<8x32xf32>
    %112 = arith.addf %110, %111 : vector<8x32xf32>
    %113 = math.tanh %112 : vector<8x32xf32>
    %114 = arith.mulf %109, %113 : vector<8x32xf32>
    %115 = vector.extract_strided_slice %10 {offsets = [40, 0], sizes = [8, 128], strides = [1, 1]} : vector<64x128xf32> to vector<8x128xf32>
    %cst_25 = arith.constant dense<0.000000e+00> : vector<8x128xf32>
    %116 = tpu.matmul %95, %12, %cst_25 {dimension_numbers = #tpu.dot_dimension_numbers<[1], [0], [0], [1], [0, 0, 1, 1], [], []>} : vector<8x32xf32>, vector<32x128xf32>, vector<8x128xf32> -> vector<8x128xf32>
    %117 = arith.addf %115, %116 : vector<8x128xf32>
    %118 = math.tanh %117 : vector<8x128xf32>
    %119 = arith.negf %117 : vector<8x128xf32>
    %120 = math.exp %119 : vector<8x128xf32>
    %cst_26 = arith.constant 1.000000e+00 : f32
    %121 = vector.broadcast %cst_26 : f32 to vector<8x128xf32>
    %122 = arith.addf %121, %120 : vector<8x128xf32>
    %123 = arith.divf %121, %122 : vector<8x128xf32>
    %124 = arith.select %18, %118, %123 : vector<8x128xi1>, vector<8x128xf32>
    %125 = vector.extract_strided_slice %124 {offsets = [0, 0], sizes = [8, 32], strides = [1, 1]} : vector<8x128xf32> to vector<8x32xf32>
    %126 = vector.extract_strided_slice %124 {offsets = [0, 32], sizes = [8, 32], strides = [1, 1]} : vector<8x128xf32> to vector<8x32xf32>
    %127 = vector.extract_strided_slice %124 {offsets = [0, 64], sizes = [8, 32], strides = [1, 1]} : vector<8x128xf32> to vector<8x32xf32>
    %128 = vector.extract_strided_slice %124 {offsets = [0, 96], sizes = [8, 32], strides = [1, 1]} : vector<8x128xf32> to vector<8x32xf32>
    %129 = arith.mulf %126, %93 : vector<8x32xf32>
    %130 = arith.mulf %125, %127 : vector<8x32xf32>
    %131 = arith.addf %129, %130 : vector<8x32xf32>
    %132 = math.tanh %131 : vector<8x32xf32>
    %133 = arith.mulf %128, %132 : vector<8x32xf32>
    %134 = vector.extract_strided_slice %5 {offsets = [24, 0], sizes = [8, 128], strides = [1, 1]} : vector<64x128xf32> to vector<8x128xf32>
    %cst_27 = arith.constant dense<0.000000e+00> : vector<8x128xf32>
    %135 = tpu.matmul %114, %11, %cst_27 {dimension_numbers = #tpu.dot_dimension_numbers<[1], [0], [0], [1], [0, 0, 1, 1], [], []>} : vector<8x32xf32>, vector<32x128xf32>, vector<8x128xf32> -> vector<8x128xf32>
    %136 = arith.addf %134, %135 : vector<8x128xf32>
    %137 = math.tanh %136 : vector<8x128xf32>
    %138 = arith.negf %136 : vector<8x128xf32>
    %139 = math.exp %138 : vector<8x128xf32>
    %cst_28 = arith.constant 1.000000e+00 : f32
    %140 = vector.broadcast %cst_28 : f32 to vector<8x128xf32>
    %141 = arith.addf %140, %139 : vector<8x128xf32>
    %142 = arith.divf %140, %141 : vector<8x128xf32>
    %143 = arith.select %18, %137, %142 : vector<8x128xi1>, vector<8x128xf32>
    %144 = vector.extract_strided_slice %143 {offsets = [0, 0], sizes = [8, 32], strides = [1, 1]} : vector<8x128xf32> to vector<8x32xf32>
    %145 = vector.extract_strided_slice %143 {offsets = [0, 32], sizes = [8, 32], strides = [1, 1]} : vector<8x128xf32> to vector<8x32xf32>
    %146 = vector.extract_strided_slice %143 {offsets = [0, 64], sizes = [8, 32], strides = [1, 1]} : vector<8x128xf32> to vector<8x32xf32>
    %147 = vector.extract_strided_slice %143 {offsets = [0, 96], sizes = [8, 32], strides = [1, 1]} : vector<8x128xf32> to vector<8x32xf32>
    %148 = arith.mulf %145, %112 : vector<8x32xf32>
    %149 = arith.mulf %144, %146 : vector<8x32xf32>
    %150 = arith.addf %148, %149 : vector<8x32xf32>
    %151 = math.tanh %150 : vector<8x32xf32>
    %152 = arith.mulf %147, %151 : vector<8x32xf32>
    %153 = vector.extract_strided_slice %10 {offsets = [32, 0], sizes = [8, 128], strides = [1, 1]} : vector<64x128xf32> to vector<8x128xf32>
    %cst_29 = arith.constant dense<0.000000e+00> : vector<8x128xf32>
    %154 = tpu.matmul %133, %12, %cst_29 {dimension_numbers = #tpu.dot_dimension_numbers<[1], [0], [0], [1], [0, 0, 1, 1], [], []>} : vector<8x32xf32>, vector<32x128xf32>, vector<8x128xf32> -> vector<8x128xf32>
    %155 = arith.addf %153, %154 : vector<8x128xf32>
    %156 = math.tanh %155 : vector<8x128xf32>
    %157 = arith.negf %155 : vector<8x128xf32>
    %158 = math.exp %157 : vector<8x128xf32>
    %cst_30 = arith.constant 1.000000e+00 : f32
    %159 = vector.broadcast %cst_30 : f32 to vector<8x128xf32>
    %160 = arith.addf %159, %158 : vector<8x128xf32>
    %161 = arith.divf %159, %160 : vector<8x128xf32>
    %162 = arith.select %18, %156, %161 : vector<8x128xi1>, vector<8x128xf32>
    %163 = vector.extract_strided_slice %162 {offsets = [0, 0], sizes = [8, 32], strides = [1, 1]} : vector<8x128xf32> to vector<8x32xf32>
    %164 = vector.extract_strided_slice %162 {offsets = [0, 32], sizes = [8, 32], strides = [1, 1]} : vector<8x128xf32> to vector<8x32xf32>
    %165 = vector.extract_strided_slice %162 {offsets = [0, 64], sizes = [8, 32], strides = [1, 1]} : vector<8x128xf32> to vector<8x32xf32>
    %166 = vector.extract_strided_slice %162 {offsets = [0, 96], sizes = [8, 32], strides = [1, 1]} : vector<8x128xf32> to vector<8x32xf32>
    %167 = arith.mulf %164, %131 : vector<8x32xf32>
    %168 = arith.mulf %163, %165 : vector<8x32xf32>
    %169 = arith.addf %167, %168 : vector<8x32xf32>
    %170 = math.tanh %169 : vector<8x32xf32>
    %171 = arith.mulf %166, %170 : vector<8x32xf32>
    %172 = vector.extract_strided_slice %5 {offsets = [32, 0], sizes = [8, 128], strides = [1, 1]} : vector<64x128xf32> to vector<8x128xf32>
    %cst_31 = arith.constant dense<0.000000e+00> : vector<8x128xf32>
    %173 = tpu.matmul %152, %11, %cst_31 {dimension_numbers = #tpu.dot_dimension_numbers<[1], [0], [0], [1], [0, 0, 1, 1], [], []>} : vector<8x32xf32>, vector<32x128xf32>, vector<8x128xf32> -> vector<8x128xf32>
    %174 = arith.addf %172, %173 : vector<8x128xf32>
    %175 = math.tanh %174 : vector<8x128xf32>
    %176 = arith.negf %174 : vector<8x128xf32>
    %177 = math.exp %176 : vector<8x128xf32>
    %cst_32 = arith.constant 1.000000e+00 : f32
    %178 = vector.broadcast %cst_32 : f32 to vector<8x128xf32>
    %179 = arith.addf %178, %177 : vector<8x128xf32>
    %180 = arith.divf %178, %179 : vector<8x128xf32>
    %181 = arith.select %18, %175, %180 : vector<8x128xi1>, vector<8x128xf32>
    %182 = vector.extract_strided_slice %181 {offsets = [0, 0], sizes = [8, 32], strides = [1, 1]} : vector<8x128xf32> to vector<8x32xf32>
    %183 = vector.extract_strided_slice %181 {offsets = [0, 32], sizes = [8, 32], strides = [1, 1]} : vector<8x128xf32> to vector<8x32xf32>
    %184 = vector.extract_strided_slice %181 {offsets = [0, 64], sizes = [8, 32], strides = [1, 1]} : vector<8x128xf32> to vector<8x32xf32>
    %185 = vector.extract_strided_slice %181 {offsets = [0, 96], sizes = [8, 32], strides = [1, 1]} : vector<8x128xf32> to vector<8x32xf32>
    %186 = arith.mulf %183, %150 : vector<8x32xf32>
    %187 = arith.mulf %182, %184 : vector<8x32xf32>
    %188 = arith.addf %186, %187 : vector<8x32xf32>
    %189 = math.tanh %188 : vector<8x32xf32>
    %190 = arith.mulf %185, %189 : vector<8x32xf32>
    %191 = vector.extract_strided_slice %10 {offsets = [24, 0], sizes = [8, 128], strides = [1, 1]} : vector<64x128xf32> to vector<8x128xf32>
    %cst_33 = arith.constant dense<0.000000e+00> : vector<8x128xf32>
    %192 = tpu.matmul %171, %12, %cst_33 {dimension_numbers = #tpu.dot_dimension_numbers<[1], [0], [0], [1], [0, 0, 1, 1], [], []>} : vector<8x32xf32>, vector<32x128xf32>, vector<8x128xf32> -> vector<8x128xf32>
    %193 = arith.addf %191, %192 : vector<8x128xf32>
    %194 = math.tanh %193 : vector<8x128xf32>
    %195 = arith.negf %193 : vector<8x128xf32>
    %196 = math.exp %195 : vector<8x128xf32>
    %cst_34 = arith.constant 1.000000e+00 : f32
    %197 = vector.broadcast %cst_34 : f32 to vector<8x128xf32>
    %198 = arith.addf %197, %196 : vector<8x128xf32>
    %199 = arith.divf %197, %198 : vector<8x128xf32>
    %200 = arith.select %18, %194, %199 : vector<8x128xi1>, vector<8x128xf32>
    %201 = vector.extract_strided_slice %200 {offsets = [0, 0], sizes = [8, 32], strides = [1, 1]} : vector<8x128xf32> to vector<8x32xf32>
    %202 = vector.extract_strided_slice %200 {offsets = [0, 32], sizes = [8, 32], strides = [1, 1]} : vector<8x128xf32> to vector<8x32xf32>
    %203 = vector.extract_strided_slice %200 {offsets = [0, 64], sizes = [8, 32], strides = [1, 1]} : vector<8x128xf32> to vector<8x32xf32>
    %204 = vector.extract_strided_slice %200 {offsets = [0, 96], sizes = [8, 32], strides = [1, 1]} : vector<8x128xf32> to vector<8x32xf32>
    %205 = arith.mulf %202, %169 : vector<8x32xf32>
    %206 = arith.mulf %201, %203 : vector<8x32xf32>
    %207 = arith.addf %205, %206 : vector<8x32xf32>
    %208 = math.tanh %207 : vector<8x32xf32>
    %209 = arith.mulf %204, %208 : vector<8x32xf32>
    %210 = vector.extract_strided_slice %5 {offsets = [40, 0], sizes = [8, 128], strides = [1, 1]} : vector<64x128xf32> to vector<8x128xf32>
    %cst_35 = arith.constant dense<0.000000e+00> : vector<8x128xf32>
    %211 = tpu.matmul %190, %11, %cst_35 {dimension_numbers = #tpu.dot_dimension_numbers<[1], [0], [0], [1], [0, 0, 1, 1], [], []>} : vector<8x32xf32>, vector<32x128xf32>, vector<8x128xf32> -> vector<8x128xf32>
    %212 = arith.addf %210, %211 : vector<8x128xf32>
    %213 = math.tanh %212 : vector<8x128xf32>
    %214 = arith.negf %212 : vector<8x128xf32>
    %215 = math.exp %214 : vector<8x128xf32>
    %cst_36 = arith.constant 1.000000e+00 : f32
    %216 = vector.broadcast %cst_36 : f32 to vector<8x128xf32>
    %217 = arith.addf %216, %215 : vector<8x128xf32>
    %218 = arith.divf %216, %217 : vector<8x128xf32>
    %219 = arith.select %18, %213, %218 : vector<8x128xi1>, vector<8x128xf32>
    %220 = vector.extract_strided_slice %219 {offsets = [0, 0], sizes = [8, 32], strides = [1, 1]} : vector<8x128xf32> to vector<8x32xf32>
    %221 = vector.extract_strided_slice %219 {offsets = [0, 32], sizes = [8, 32], strides = [1, 1]} : vector<8x128xf32> to vector<8x32xf32>
    %222 = vector.extract_strided_slice %219 {offsets = [0, 64], sizes = [8, 32], strides = [1, 1]} : vector<8x128xf32> to vector<8x32xf32>
    %223 = vector.extract_strided_slice %219 {offsets = [0, 96], sizes = [8, 32], strides = [1, 1]} : vector<8x128xf32> to vector<8x32xf32>
    %224 = arith.mulf %221, %188 : vector<8x32xf32>
    %225 = arith.mulf %220, %222 : vector<8x32xf32>
    %226 = arith.addf %224, %225 : vector<8x32xf32>
    %227 = math.tanh %226 : vector<8x32xf32>
    %228 = arith.mulf %223, %227 : vector<8x32xf32>
    %229 = vector.extract_strided_slice %10 {offsets = [16, 0], sizes = [8, 128], strides = [1, 1]} : vector<64x128xf32> to vector<8x128xf32>
    %cst_37 = arith.constant dense<0.000000e+00> : vector<8x128xf32>
    %230 = tpu.matmul %209, %12, %cst_37 {dimension_numbers = #tpu.dot_dimension_numbers<[1], [0], [0], [1], [0, 0, 1, 1], [], []>} : vector<8x32xf32>, vector<32x128xf32>, vector<8x128xf32> -> vector<8x128xf32>
    %231 = arith.addf %229, %230 : vector<8x128xf32>
    %232 = math.tanh %231 : vector<8x128xf32>
    %233 = arith.negf %231 : vector<8x128xf32>
    %234 = math.exp %233 : vector<8x128xf32>
    %cst_38 = arith.constant 1.000000e+00 : f32
    %235 = vector.broadcast %cst_38 : f32 to vector<8x128xf32>
    %236 = arith.addf %235, %234 : vector<8x128xf32>
    %237 = arith.divf %235, %236 : vector<8x128xf32>
    %238 = arith.select %18, %232, %237 : vector<8x128xi1>, vector<8x128xf32>
    %239 = vector.extract_strided_slice %238 {offsets = [0, 0], sizes = [8, 32], strides = [1, 1]} : vector<8x128xf32> to vector<8x32xf32>
    %240 = vector.extract_strided_slice %238 {offsets = [0, 32], sizes = [8, 32], strides = [1, 1]} : vector<8x128xf32> to vector<8x32xf32>
    %241 = vector.extract_strided_slice %238 {offsets = [0, 64], sizes = [8, 32], strides = [1, 1]} : vector<8x128xf32> to vector<8x32xf32>
    %242 = vector.extract_strided_slice %238 {offsets = [0, 96], sizes = [8, 32], strides = [1, 1]} : vector<8x128xf32> to vector<8x32xf32>
    %243 = arith.mulf %240, %207 : vector<8x32xf32>
    %244 = arith.mulf %239, %241 : vector<8x32xf32>
    %245 = arith.addf %243, %244 : vector<8x32xf32>
    %246 = math.tanh %245 : vector<8x32xf32>
    %247 = arith.mulf %242, %246 : vector<8x32xf32>
    %248 = vector.extract_strided_slice %5 {offsets = [48, 0], sizes = [8, 128], strides = [1, 1]} : vector<64x128xf32> to vector<8x128xf32>
    %cst_39 = arith.constant dense<0.000000e+00> : vector<8x128xf32>
    %249 = tpu.matmul %228, %11, %cst_39 {dimension_numbers = #tpu.dot_dimension_numbers<[1], [0], [0], [1], [0, 0, 1, 1], [], []>} : vector<8x32xf32>, vector<32x128xf32>, vector<8x128xf32> -> vector<8x128xf32>
    %250 = arith.addf %248, %249 : vector<8x128xf32>
    %251 = math.tanh %250 : vector<8x128xf32>
    %252 = arith.negf %250 : vector<8x128xf32>
    %253 = math.exp %252 : vector<8x128xf32>
    %cst_40 = arith.constant 1.000000e+00 : f32
    %254 = vector.broadcast %cst_40 : f32 to vector<8x128xf32>
    %255 = arith.addf %254, %253 : vector<8x128xf32>
    %256 = arith.divf %254, %255 : vector<8x128xf32>
    %257 = arith.select %18, %251, %256 : vector<8x128xi1>, vector<8x128xf32>
    %258 = vector.extract_strided_slice %257 {offsets = [0, 0], sizes = [8, 32], strides = [1, 1]} : vector<8x128xf32> to vector<8x32xf32>
    %259 = vector.extract_strided_slice %257 {offsets = [0, 32], sizes = [8, 32], strides = [1, 1]} : vector<8x128xf32> to vector<8x32xf32>
    %260 = vector.extract_strided_slice %257 {offsets = [0, 64], sizes = [8, 32], strides = [1, 1]} : vector<8x128xf32> to vector<8x32xf32>
    %261 = vector.extract_strided_slice %257 {offsets = [0, 96], sizes = [8, 32], strides = [1, 1]} : vector<8x128xf32> to vector<8x32xf32>
    %262 = arith.mulf %259, %226 : vector<8x32xf32>
    %263 = arith.mulf %258, %260 : vector<8x32xf32>
    %264 = arith.addf %262, %263 : vector<8x32xf32>
    %265 = math.tanh %264 : vector<8x32xf32>
    %266 = arith.mulf %261, %265 : vector<8x32xf32>
    %267 = vector.extract_strided_slice %10 {offsets = [8, 0], sizes = [8, 128], strides = [1, 1]} : vector<64x128xf32> to vector<8x128xf32>
    %cst_41 = arith.constant dense<0.000000e+00> : vector<8x128xf32>
    %268 = tpu.matmul %247, %12, %cst_41 {dimension_numbers = #tpu.dot_dimension_numbers<[1], [0], [0], [1], [0, 0, 1, 1], [], []>} : vector<8x32xf32>, vector<32x128xf32>, vector<8x128xf32> -> vector<8x128xf32>
    %269 = arith.addf %267, %268 : vector<8x128xf32>
    %270 = math.tanh %269 : vector<8x128xf32>
    %271 = arith.negf %269 : vector<8x128xf32>
    %272 = math.exp %271 : vector<8x128xf32>
    %cst_42 = arith.constant 1.000000e+00 : f32
    %273 = vector.broadcast %cst_42 : f32 to vector<8x128xf32>
    %274 = arith.addf %273, %272 : vector<8x128xf32>
    %275 = arith.divf %273, %274 : vector<8x128xf32>
    %276 = arith.select %18, %270, %275 : vector<8x128xi1>, vector<8x128xf32>
    %277 = vector.extract_strided_slice %276 {offsets = [0, 0], sizes = [8, 32], strides = [1, 1]} : vector<8x128xf32> to vector<8x32xf32>
    %278 = vector.extract_strided_slice %276 {offsets = [0, 32], sizes = [8, 32], strides = [1, 1]} : vector<8x128xf32> to vector<8x32xf32>
    %279 = vector.extract_strided_slice %276 {offsets = [0, 64], sizes = [8, 32], strides = [1, 1]} : vector<8x128xf32> to vector<8x32xf32>
    %280 = vector.extract_strided_slice %276 {offsets = [0, 96], sizes = [8, 32], strides = [1, 1]} : vector<8x128xf32> to vector<8x32xf32>
    %281 = arith.mulf %278, %245 : vector<8x32xf32>
    %282 = arith.mulf %277, %279 : vector<8x32xf32>
    %283 = arith.addf %281, %282 : vector<8x32xf32>
    %284 = math.tanh %283 : vector<8x32xf32>
    %285 = arith.mulf %280, %284 : vector<8x32xf32>
    %286 = vector.extract_strided_slice %5 {offsets = [56, 0], sizes = [8, 128], strides = [1, 1]} : vector<64x128xf32> to vector<8x128xf32>
    %cst_43 = arith.constant dense<0.000000e+00> : vector<8x128xf32>
    %287 = tpu.matmul %266, %11, %cst_43 {dimension_numbers = #tpu.dot_dimension_numbers<[1], [0], [0], [1], [0, 0, 1, 1], [], []>} : vector<8x32xf32>, vector<32x128xf32>, vector<8x128xf32> -> vector<8x128xf32>
    %288 = arith.addf %286, %287 : vector<8x128xf32>
    %289 = math.tanh %288 : vector<8x128xf32>
    %290 = arith.negf %288 : vector<8x128xf32>
    %291 = math.exp %290 : vector<8x128xf32>
    %cst_44 = arith.constant 1.000000e+00 : f32
    %292 = vector.broadcast %cst_44 : f32 to vector<8x128xf32>
    %293 = arith.addf %292, %291 : vector<8x128xf32>
    %294 = arith.divf %292, %293 : vector<8x128xf32>
    %295 = arith.select %18, %289, %294 : vector<8x128xi1>, vector<8x128xf32>
    %296 = vector.extract_strided_slice %295 {offsets = [0, 0], sizes = [8, 32], strides = [1, 1]} : vector<8x128xf32> to vector<8x32xf32>
    %297 = vector.extract_strided_slice %295 {offsets = [0, 32], sizes = [8, 32], strides = [1, 1]} : vector<8x128xf32> to vector<8x32xf32>
    %298 = vector.extract_strided_slice %295 {offsets = [0, 64], sizes = [8, 32], strides = [1, 1]} : vector<8x128xf32> to vector<8x32xf32>
    %299 = vector.extract_strided_slice %295 {offsets = [0, 96], sizes = [8, 32], strides = [1, 1]} : vector<8x128xf32> to vector<8x32xf32>
    %300 = arith.mulf %297, %264 : vector<8x32xf32>
    %301 = arith.mulf %296, %298 : vector<8x32xf32>
    %302 = arith.addf %300, %301 : vector<8x32xf32>
    %303 = math.tanh %302 : vector<8x32xf32>
    %304 = arith.mulf %299, %303 : vector<8x32xf32>
    %305 = vector.extract_strided_slice %10 {offsets = [0, 0], sizes = [8, 128], strides = [1, 1]} : vector<64x128xf32> to vector<8x128xf32>
    %cst_45 = arith.constant dense<0.000000e+00> : vector<8x128xf32>
    %306 = tpu.matmul %285, %12, %cst_45 {dimension_numbers = #tpu.dot_dimension_numbers<[1], [0], [0], [1], [0, 0, 1, 1], [], []>} : vector<8x32xf32>, vector<32x128xf32>, vector<8x128xf32> -> vector<8x128xf32>
    %307 = arith.addf %305, %306 : vector<8x128xf32>
    %308 = math.tanh %307 : vector<8x128xf32>
    %309 = arith.negf %307 : vector<8x128xf32>
    %310 = math.exp %309 : vector<8x128xf32>
    %cst_46 = arith.constant 1.000000e+00 : f32
    %311 = vector.broadcast %cst_46 : f32 to vector<8x128xf32>
    %312 = arith.addf %311, %310 : vector<8x128xf32>
    %313 = arith.divf %311, %312 : vector<8x128xf32>
    %314 = arith.select %18, %308, %313 : vector<8x128xi1>, vector<8x128xf32>
    %315 = vector.extract_strided_slice %314 {offsets = [0, 0], sizes = [8, 32], strides = [1, 1]} : vector<8x128xf32> to vector<8x32xf32>
    %316 = vector.extract_strided_slice %314 {offsets = [0, 32], sizes = [8, 32], strides = [1, 1]} : vector<8x128xf32> to vector<8x32xf32>
    %317 = vector.extract_strided_slice %314 {offsets = [0, 64], sizes = [8, 32], strides = [1, 1]} : vector<8x128xf32> to vector<8x32xf32>
    %318 = vector.extract_strided_slice %314 {offsets = [0, 96], sizes = [8, 32], strides = [1, 1]} : vector<8x128xf32> to vector<8x32xf32>
    %319 = arith.mulf %316, %283 : vector<8x32xf32>
    %320 = arith.mulf %315, %317 : vector<8x32xf32>
    %321 = arith.addf %319, %320 : vector<8x32xf32>
    %322 = math.tanh %321 : vector<8x32xf32>
    %323 = arith.mulf %318, %322 : vector<8x32xf32>
    %c0_47 = arith.constant 0 : index
    %c0_48 = arith.constant 0 : index
    %324 = vector.load %arg9[%c0_47, %c0_48] : memref<64x32xf32, #tpu.memory_space<vmem>>, vector<64x32xf32>
    %c0_49 = arith.constant 0 : index
    %c0_50 = arith.constant 0 : index
    %325 = vector.load %arg11[%c0_49, %c0_50] : memref<64x32xf32, #tpu.memory_space<vmem>>, vector<64x32xf32>
    %326 = vector.extract_strided_slice %324 {offsets = [0, 0], sizes = [32, 32], strides = [1, 1]} : vector<64x32xf32> to vector<32x32xf32>
    %cst_51 = arith.constant dense<0.000000e+00> : vector<8x32xf32>
    %327 = tpu.matmul %304, %326, %cst_51 {dimension_numbers = #tpu.dot_dimension_numbers<[1], [0], [0], [1], [0, 0, 1, 1], [], []>} : vector<8x32xf32>, vector<32x32xf32>, vector<8x32xf32> -> vector<8x32xf32>
    %328 = vector.extract_strided_slice %324 {offsets = [32, 0], sizes = [32, 32], strides = [1, 1]} : vector<64x32xf32> to vector<32x32xf32>
    %cst_52 = arith.constant dense<0.000000e+00> : vector<8x32xf32>
    %329 = tpu.matmul %323, %328, %cst_52 {dimension_numbers = #tpu.dot_dimension_numbers<[1], [0], [0], [1], [0, 0, 1, 1], [], []>} : vector<8x32xf32>, vector<32x32xf32>, vector<8x32xf32> -> vector<8x32xf32>
    %330 = arith.addf %327, %329 : vector<8x32xf32>
    %c0_53 = arith.constant 0 : index
    %c0_54 = arith.constant 0 : index
    %331 = vector.load %arg10[%c0_53, %c0_54] : memref<1x32xf32, #tpu.memory_space<vmem>>, vector<1x32xf32>
    %332 = vector.broadcast %331 : vector<1x32xf32> to vector<8x32xf32>
    %333 = arith.addf %330, %332 : vector<8x32xf32>
    %334 = math.tanh %333 : vector<8x32xf32>
    %335 = vector.extract_strided_slice %325 {offsets = [0, 0], sizes = [32, 32], strides = [1, 1]} : vector<64x32xf32> to vector<32x32xf32>
    %cst_55 = arith.constant dense<0.000000e+00> : vector<8x32xf32>
    %336 = tpu.matmul %302, %335, %cst_55 {dimension_numbers = #tpu.dot_dimension_numbers<[1], [0], [0], [1], [0, 0, 1, 1], [], []>} : vector<8x32xf32>, vector<32x32xf32>, vector<8x32xf32> -> vector<8x32xf32>
    %337 = vector.extract_strided_slice %325 {offsets = [32, 0], sizes = [32, 32], strides = [1, 1]} : vector<64x32xf32> to vector<32x32xf32>
    %cst_56 = arith.constant dense<0.000000e+00> : vector<8x32xf32>
    %338 = tpu.matmul %321, %337, %cst_56 {dimension_numbers = #tpu.dot_dimension_numbers<[1], [0], [0], [1], [0, 0, 1, 1], [], []>} : vector<8x32xf32>, vector<32x32xf32>, vector<8x32xf32> -> vector<8x32xf32>
    %339 = arith.addf %336, %338 : vector<8x32xf32>
    %c0_57 = arith.constant 0 : index
    %c0_58 = arith.constant 0 : index
    %340 = vector.load %arg12[%c0_57, %c0_58] : memref<1x32xf32, #tpu.memory_space<vmem>>, vector<1x32xf32>
    %341 = vector.broadcast %340 : vector<1x32xf32> to vector<8x32xf32>
    %342 = arith.addf %339, %341 : vector<8x32xf32>
    %343 = math.tanh %342 : vector<8x32xf32>
    %344 = tpu.concatenate %38, %76, %114, %152, %190, %228, %266, %304 in 0 : vector<8x32xf32>, vector<8x32xf32>, vector<8x32xf32>, vector<8x32xf32>, vector<8x32xf32>, vector<8x32xf32>, vector<8x32xf32>, vector<8x32xf32> -> vector<64x32xf32>
    %345 = tpu.concatenate %323, %285, %247, %209, %171, %133, %95, %57 in 0 : vector<8x32xf32>, vector<8x32xf32>, vector<8x32xf32>, vector<8x32xf32>, vector<8x32xf32>, vector<8x32xf32>, vector<8x32xf32>, vector<8x32xf32> -> vector<64x32xf32>
    %c0_59 = arith.constant 0 : index
    %c0_60 = arith.constant 0 : index
    %346 = vector.load %arg14[%c0_59, %c0_60] : memref<64x32xf32, #tpu.memory_space<vmem>>, vector<64x32xf32>
    %c0_61 = arith.constant 0 : index
    %c0_62 = arith.constant 0 : index
    %347 = vector.load %arg18[%c0_61, %c0_62] : memref<64x128xf32, #tpu.memory_space<vmem>>, vector<64x128xf32>
    %c0_63 = arith.constant 0 : index
    %c0_64 = arith.constant 0 : index
    %348 = vector.load %arg22[%c0_63, %c0_64] : memref<64x128xf32, #tpu.memory_space<vmem>>, vector<64x128xf32>
    %349 = vector.extract_strided_slice %346 {offsets = [0, 0], sizes = [32, 32], strides = [1, 1]} : vector<64x32xf32> to vector<32x32xf32>
    %cst_65 = arith.constant dense<0.000000e+00> : vector<64x32xf32>
    %350 = tpu.matmul %344, %349, %cst_65 {dimension_numbers = #tpu.dot_dimension_numbers<[1], [0], [0], [1], [0, 0, 1, 1], [], []>} : vector<64x32xf32>, vector<32x32xf32>, vector<64x32xf32> -> vector<64x32xf32>
    %351 = vector.extract_strided_slice %346 {offsets = [32, 0], sizes = [32, 32], strides = [1, 1]} : vector<64x32xf32> to vector<32x32xf32>
    %cst_66 = arith.constant dense<0.000000e+00> : vector<64x32xf32>
    %352 = tpu.matmul %345, %351, %cst_66 {dimension_numbers = #tpu.dot_dimension_numbers<[1], [0], [0], [1], [0, 0, 1, 1], [], []>} : vector<64x32xf32>, vector<32x32xf32>, vector<64x32xf32> -> vector<64x32xf32>
    %353 = arith.addf %350, %352 : vector<64x32xf32>
    %354 = vector.extract_strided_slice %347 {offsets = [0, 0], sizes = [32, 128], strides = [1, 1]} : vector<64x128xf32> to vector<32x128xf32>
    %cst_67 = arith.constant dense<0.000000e+00> : vector<64x128xf32>
    %355 = tpu.matmul %344, %354, %cst_67 {dimension_numbers = #tpu.dot_dimension_numbers<[1], [0], [0], [1], [0, 0, 1, 1], [], []>} : vector<64x32xf32>, vector<32x128xf32>, vector<64x128xf32> -> vector<64x128xf32>
    %356 = vector.extract_strided_slice %347 {offsets = [32, 0], sizes = [32, 128], strides = [1, 1]} : vector<64x128xf32> to vector<32x128xf32>
    %cst_68 = arith.constant dense<0.000000e+00> : vector<64x128xf32>
    %357 = tpu.matmul %345, %356, %cst_68 {dimension_numbers = #tpu.dot_dimension_numbers<[1], [0], [0], [1], [0, 0, 1, 1], [], []>} : vector<64x32xf32>, vector<32x128xf32>, vector<64x128xf32> -> vector<64x128xf32>
    %358 = arith.addf %355, %357 : vector<64x128xf32>
    %359 = vector.extract_strided_slice %348 {offsets = [0, 0], sizes = [32, 128], strides = [1, 1]} : vector<64x128xf32> to vector<32x128xf32>
    %cst_69 = arith.constant dense<0.000000e+00> : vector<64x128xf32>
    %360 = tpu.matmul %344, %359, %cst_69 {dimension_numbers = #tpu.dot_dimension_numbers<[1], [0], [0], [1], [0, 0, 1, 1], [], []>} : vector<64x32xf32>, vector<32x128xf32>, vector<64x128xf32> -> vector<64x128xf32>
    %361 = vector.extract_strided_slice %348 {offsets = [32, 0], sizes = [32, 128], strides = [1, 1]} : vector<64x128xf32> to vector<32x128xf32>
    %cst_70 = arith.constant dense<0.000000e+00> : vector<64x128xf32>
    %362 = tpu.matmul %345, %361, %cst_70 {dimension_numbers = #tpu.dot_dimension_numbers<[1], [0], [0], [1], [0, 0, 1, 1], [], []>} : vector<64x32xf32>, vector<32x128xf32>, vector<64x128xf32> -> vector<64x128xf32>
    %363 = arith.addf %360, %362 : vector<64x128xf32>
    %c0_71 = arith.constant 0 : index
    %c0_72 = arith.constant 0 : index
    %364 = vector.load %arg2[%c0_71, %c0_72] : memref<64x16xf32, #tpu.memory_space<vmem>>, vector<64x16xf32>
    %c0_73 = arith.constant 0 : index
    %c0_74 = arith.constant 0 : index
    %365 = vector.load %arg17[%c0_73, %c0_74] : memref<16x128xf32, #tpu.memory_space<vmem>>, vector<16x128xf32>
    %cst_75 = arith.constant dense<0.000000e+00> : vector<64x128xf32>
    %366 = tpu.matmul %364, %365, %cst_75 {dimension_numbers = #tpu.dot_dimension_numbers<[1], [0], [0], [1], [0, 0, 1, 1], [], []>} : vector<64x16xf32>, vector<16x128xf32>, vector<64x128xf32> -> vector<64x128xf32>
    %c0_76 = arith.constant 0 : index
    %c0_77 = arith.constant 0 : index
    %367 = vector.load %arg20[%c0_76, %c0_77] : memref<1x128xf32, #tpu.memory_space<vmem>>, vector<1x128xf32>
    %368 = vector.broadcast %367 : vector<1x128xf32> to vector<64x128xf32>
    %369 = arith.addf %366, %368 : vector<64x128xf32>
    %c0_78 = arith.constant 0 : index
    %c0_79 = arith.constant 0 : index
    %370 = vector.load %arg23[%c0_78, %c0_79] : memref<16x128xf32, #tpu.memory_space<vmem>>, vector<16x128xf32>
    %cst_80 = arith.constant dense<0.000000e+00> : vector<64x128xf32>
    %371 = tpu.matmul %364, %370, %cst_80 {dimension_numbers = #tpu.dot_dimension_numbers<[1], [0], [0], [1], [0, 0, 1, 1], [], []>} : vector<64x16xf32>, vector<16x128xf32>, vector<64x128xf32> -> vector<64x128xf32>
    %c0_81 = arith.constant 0 : index
    %c0_82 = arith.constant 0 : index
    %372 = vector.load %arg24[%c0_81, %c0_82] : memref<1x128xf32, #tpu.memory_space<vmem>>, vector<1x128xf32>
    %373 = vector.broadcast %372 : vector<1x128xf32> to vector<64x128xf32>
    %374 = arith.addf %371, %373 : vector<64x128xf32>
    %c0_83 = arith.constant 0 : index
    %c0_84 = arith.constant 0 : index
    %375 = vector.load %arg13[%c0_83, %c0_84] : memref<32x32xf32, #tpu.memory_space<vmem>>, vector<32x32xf32>
    %c0_85 = arith.constant 0 : index
    %c0_86 = arith.constant 0 : index
    %376 = vector.load %arg15[%c0_85, %c0_86] : memref<1x32xf32, #tpu.memory_space<vmem>>, vector<1x32xf32>
    %c0_87 = arith.constant 0 : index
    %c0_88 = arith.constant 0 : index
    %377 = vector.load %arg16[%c0_87, %c0_88] : memref<1x32xf32, #tpu.memory_space<vmem>>, vector<1x32xf32>
    %c0_89 = arith.constant 0 : index
    %c0_90 = arith.constant 0 : index
    %378 = vector.load %arg19[%c0_89, %c0_90] : memref<32x128xf32, #tpu.memory_space<vmem>>, vector<32x128xf32>
    %c0_91 = arith.constant 0 : index
    %c0_92 = arith.constant 0 : index
    %379 = vector.load %arg21[%c0_91, %c0_92] : memref<32x128xf32, #tpu.memory_space<vmem>>, vector<32x128xf32>
    %380 = tpu.iota {dimensions = array<i32: 1>} : vector<8x128xi32>
    %c64_i32_93 = arith.constant 64 : i32
    %381 = vector.broadcast %c64_i32_93 : i32 to vector<8x128xi32>
    %382 = arith.cmpi sge, %380, %381 : vector<8x128xi32>
    %c96_i32_94 = arith.constant 96 : i32
    %383 = vector.broadcast %c96_i32_94 : i32 to vector<8x128xi32>
    %384 = arith.cmpi slt, %380, %383 : vector<8x128xi32>
    %385 = arith.andi %382, %384 : vector<8x128xi1>
    %c0_95 = arith.constant 0 : index
    %c0_96 = arith.constant 0 : index
    %386 = vector.load %arg0[%c0_95, %c0_96] : memref<64x1xf32, #tpu.memory_space<vmem>>, vector<64x1xf32>
    %387 = vector.extract_strided_slice %386 {offsets = [0, 0], sizes = [8, 1], strides = [1, 1]} : vector<64x1xf32> to vector<8x1xf32>
    %388 = vector.extract_strided_slice %386 {offsets = [8, 0], sizes = [8, 1], strides = [1, 1]} : vector<64x1xf32> to vector<8x1xf32>
    %389 = vector.extract_strided_slice %386 {offsets = [16, 0], sizes = [8, 1], strides = [1, 1]} : vector<64x1xf32> to vector<8x1xf32>
    %390 = vector.extract_strided_slice %386 {offsets = [24, 0], sizes = [8, 1], strides = [1, 1]} : vector<64x1xf32> to vector<8x1xf32>
    %391 = vector.extract_strided_slice %386 {offsets = [32, 0], sizes = [8, 1], strides = [1, 1]} : vector<64x1xf32> to vector<8x1xf32>
    %392 = vector.extract_strided_slice %386 {offsets = [40, 0], sizes = [8, 1], strides = [1, 1]} : vector<64x1xf32> to vector<8x1xf32>
    %393 = vector.extract_strided_slice %386 {offsets = [48, 0], sizes = [8, 1], strides = [1, 1]} : vector<64x1xf32> to vector<8x1xf32>
    %394 = vector.extract_strided_slice %386 {offsets = [56, 0], sizes = [8, 1], strides = [1, 1]} : vector<64x1xf32> to vector<8x1xf32>
    %cst_97 = arith.constant 0.000000e+00 : f32
    %395 = vector.broadcast %cst_97 : f32 to vector<8x128xf32>
    %c0_98 = arith.constant 0 : index
    %c0_99 = arith.constant 0 : index
    %c0_100 = arith.constant 0 : index
    %396 = vector.load %arg25[%c0_98, %c0_99, %c0_100] : memref<8x8x128xf32, #tpu.memory_space<vmem>>, vector<1x8x128xf32>
    %397 = vector.shape_cast %396 : vector<1x8x128xf32> to vector<8x128xf32>
    %398 = vector.shape_cast %395 : vector<8x128xf32> to vector<1x8x128xf32>
    tpu.vector_store %arg25[%c0_98, %c0_99, %c0_100], %398 {strides = array<i32>} : memref<8x8x128xf32, #tpu.memory_space<vmem>>, vector<1x8x128xf32>,
    %cst_101 = arith.constant dense<0.000000e+00> : vector<8x32xf32>
    %399 = tpu.matmul %334, %375, %cst_101 {dimension_numbers = #tpu.dot_dimension_numbers<[1], [0], [0], [1], [0, 0, 1, 1], [], []>} : vector<8x32xf32>, vector<32x32xf32>, vector<8x32xf32> -> vector<8x32xf32>
    %400 = vector.broadcast %376 : vector<1x32xf32> to vector<8x32xf32>
    %401 = arith.addf %399, %400 : vector<8x32xf32>
    %402 = vector.extract_strided_slice %353 {offsets = [0, 0], sizes = [8, 32], strides = [1, 1]} : vector<64x32xf32> to vector<8x32xf32>
    %403 = arith.addf %402, %401 : vector<8x32xf32>
    %404 = math.tanh %403 : vector<8x32xf32>
    %405 = vector.broadcast %377 : vector<1x32xf32> to vector<8x32xf32>
    %406 = arith.mulf %404, %405 : vector<8x32xf32>
    %cst_102 = arith.constant dense<0.000000e+00> : vector<8xf32>
    %407 = vector.multi_reduction <add>, %406, %cst_102 [1] : vector<8x32xf32> to vector<8xf32>
    %408 = vector.shape_cast %407 : vector<8xf32> to vector<8x1xf32>
    %409 = arith.addf %408, %387 : vector<8x1xf32>
    %410 = vector.extract_strided_slice %353 {offsets = [8, 0], sizes = [8, 32], strides = [1, 1]} : vector<64x32xf32> to vector<8x32xf32>
    %411 = arith.addf %410, %401 : vector<8x32xf32>
    %412 = math.tanh %411 : vector<8x32xf32>
    %413 = vector.broadcast %377 : vector<1x32xf32> to vector<8x32xf32>
    %414 = arith.mulf %412, %413 : vector<8x32xf32>
    %cst_103 = arith.constant dense<0.000000e+00> : vector<8xf32>
    %415 = vector.multi_reduction <add>, %414, %cst_103 [1] : vector<8x32xf32> to vector<8xf32>
    %416 = vector.shape_cast %415 : vector<8xf32> to vector<8x1xf32>
    %417 = arith.addf %416, %388 : vector<8x1xf32>
    %418 = vector.extract_strided_slice %353 {offsets = [16, 0], sizes = [8, 32], strides = [1, 1]} : vector<64x32xf32> to vector<8x32xf32>
    %419 = arith.addf %418, %401 : vector<8x32xf32>
    %420 = math.tanh %419 : vector<8x32xf32>
    %421 = vector.broadcast %377 : vector<1x32xf32> to vector<8x32xf32>
    %422 = arith.mulf %420, %421 : vector<8x32xf32>
    %cst_104 = arith.constant dense<0.000000e+00> : vector<8xf32>
    %423 = vector.multi_reduction <add>, %422, %cst_104 [1] : vector<8x32xf32> to vector<8xf32>
    %424 = vector.shape_cast %423 : vector<8xf32> to vector<8x1xf32>
    %425 = arith.addf %424, %389 : vector<8x1xf32>
    %426 = vector.extract_strided_slice %353 {offsets = [24, 0], sizes = [8, 32], strides = [1, 1]} : vector<64x32xf32> to vector<8x32xf32>
    %427 = arith.addf %426, %401 : vector<8x32xf32>
    %428 = math.tanh %427 : vector<8x32xf32>
    %429 = vector.broadcast %377 : vector<1x32xf32> to vector<8x32xf32>
    %430 = arith.mulf %428, %429 : vector<8x32xf32>
    %cst_105 = arith.constant dense<0.000000e+00> : vector<8xf32>
    %431 = vector.multi_reduction <add>, %430, %cst_105 [1] : vector<8x32xf32> to vector<8xf32>
    %432 = vector.shape_cast %431 : vector<8xf32> to vector<8x1xf32>
    %433 = arith.addf %432, %390 : vector<8x1xf32>
    %434 = vector.extract_strided_slice %353 {offsets = [32, 0], sizes = [8, 32], strides = [1, 1]} : vector<64x32xf32> to vector<8x32xf32>
    %435 = arith.addf %434, %401 : vector<8x32xf32>
    %436 = math.tanh %435 : vector<8x32xf32>
    %437 = vector.broadcast %377 : vector<1x32xf32> to vector<8x32xf32>
    %438 = arith.mulf %436, %437 : vector<8x32xf32>
    %cst_106 = arith.constant dense<0.000000e+00> : vector<8xf32>
    %439 = vector.multi_reduction <add>, %438, %cst_106 [1] : vector<8x32xf32> to vector<8xf32>
    %440 = vector.shape_cast %439 : vector<8xf32> to vector<8x1xf32>
    %441 = arith.addf %440, %391 : vector<8x1xf32>
    %442 = vector.extract_strided_slice %353 {offsets = [40, 0], sizes = [8, 32], strides = [1, 1]} : vector<64x32xf32> to vector<8x32xf32>
    %443 = arith.addf %442, %401 : vector<8x32xf32>
    %444 = math.tanh %443 : vector<8x32xf32>
    %445 = vector.broadcast %377 : vector<1x32xf32> to vector<8x32xf32>
    %446 = arith.mulf %444, %445 : vector<8x32xf32>
    %cst_107 = arith.constant dense<0.000000e+00> : vector<8xf32>
    %447 = vector.multi_reduction <add>, %446, %cst_107 [1] : vector<8x32xf32> to vector<8xf32>
    %448 = vector.shape_cast %447 : vector<8xf32> to vector<8x1xf32>
    %449 = arith.addf %448, %392 : vector<8x1xf32>
    %450 = vector.extract_strided_slice %353 {offsets = [48, 0], sizes = [8, 32], strides = [1, 1]} : vector<64x32xf32> to vector<8x32xf32>
    %451 = arith.addf %450, %401 : vector<8x32xf32>
    %452 = math.tanh %451 : vector<8x32xf32>
    %453 = vector.broadcast %377 : vector<1x32xf32> to vector<8x32xf32>
    %454 = arith.mulf %452, %453 : vector<8x32xf32>
    %cst_108 = arith.constant dense<0.000000e+00> : vector<8xf32>
    %455 = vector.multi_reduction <add>, %454, %cst_108 [1] : vector<8x32xf32> to vector<8xf32>
    %456 = vector.shape_cast %455 : vector<8xf32> to vector<8x1xf32>
    %457 = arith.addf %456, %393 : vector<8x1xf32>
    %458 = vector.extract_strided_slice %353 {offsets = [56, 0], sizes = [8, 32], strides = [1, 1]} : vector<64x32xf32> to vector<8x32xf32>
    %459 = arith.addf %458, %401 : vector<8x32xf32>
    %460 = math.tanh %459 : vector<8x32xf32>
    %461 = vector.broadcast %377 : vector<1x32xf32> to vector<8x32xf32>
    %462 = arith.mulf %460, %461 : vector<8x32xf32>
    %cst_109 = arith.constant dense<0.000000e+00> : vector<8xf32>
    %463 = vector.multi_reduction <add>, %462, %cst_109 [1] : vector<8x32xf32> to vector<8xf32>
    %464 = vector.shape_cast %463 : vector<8xf32> to vector<8x1xf32>
    %465 = arith.addf %464, %394 : vector<8x1xf32>
    %466 = arith.maximumf %409, %417 : vector<8x1xf32>
    %467 = arith.maximumf %466, %425 : vector<8x1xf32>
    %468 = arith.maximumf %467, %433 : vector<8x1xf32>
    %469 = arith.maximumf %468, %441 : vector<8x1xf32>
    %470 = arith.maximumf %469, %449 : vector<8x1xf32>
    %471 = arith.maximumf %470, %457 : vector<8x1xf32>
    %472 = arith.maximumf %471, %465 : vector<8x1xf32>
    %473 = arith.subf %409, %472 : vector<8x1xf32>
    %474 = math.exp %473 : vector<8x1xf32>
    %475 = arith.subf %417, %472 : vector<8x1xf32>
    %476 = math.exp %475 : vector<8x1xf32>
    %477 = arith.subf %425, %472 : vector<8x1xf32>
    %478 = math.exp %477 : vector<8x1xf32>
    %479 = arith.subf %433, %472 : vector<8x1xf32>
    %480 = math.exp %479 : vector<8x1xf32>
    %481 = arith.subf %441, %472 : vector<8x1xf32>
    %482 = math.exp %481 : vector<8x1xf32>
    %483 = arith.subf %449, %472 : vector<8x1xf32>
    %484 = math.exp %483 : vector<8x1xf32>
    %485 = arith.subf %457, %472 : vector<8x1xf32>
    %486 = math.exp %485 : vector<8x1xf32>
    %487 = arith.subf %465, %472 : vector<8x1xf32>
    %488 = math.exp %487 : vector<8x1xf32>
    %489 = arith.addf %474, %476 : vector<8x1xf32>
    %490 = arith.addf %489, %478 : vector<8x1xf32>
    %491 = arith.addf %490, %480 : vector<8x1xf32>
    %492 = arith.addf %491, %482 : vector<8x1xf32>
    %493 = arith.addf %492, %484 : vector<8x1xf32>
    %494 = arith.addf %493, %486 : vector<8x1xf32>
    %495 = arith.addf %494, %488 : vector<8x1xf32>
    %496 = tpu.reciprocal %495 {approx = true} : vector<8x1xf32> -> vector<8x1xf32>
    %497 = vector.extract_strided_slice %358 {offsets = [0, 0], sizes = [8, 128], strides = [1, 1]} : vector<64x128xf32> to vector<8x128xf32>
    %498 = vector.broadcast %474 : vector<8x1xf32> to vector<8x128xf32>
    %499 = arith.mulf %498, %497 : vector<8x128xf32>
    %500 = vector.extract_strided_slice %363 {offsets = [0, 0], sizes = [8, 128], strides = [1, 1]} : vector<64x128xf32> to vector<8x128xf32>
    %501 = vector.broadcast %474 : vector<8x1xf32> to vector<8x128xf32>
    %502 = arith.mulf %501, %500 : vector<8x128xf32>
    %503 = vector.extract_strided_slice %358 {offsets = [8, 0], sizes = [8, 128], strides = [1, 1]} : vector<64x128xf32> to vector<8x128xf32>
    %504 = vector.broadcast %476 : vector<8x1xf32> to vector<8x128xf32>
    %505 = arith.mulf %504, %503 : vector<8x128xf32>
    %506 = arith.addf %499, %505 : vector<8x128xf32>
    %507 = vector.extract_strided_slice %363 {offsets = [8, 0], sizes = [8, 128], strides = [1, 1]} : vector<64x128xf32> to vector<8x128xf32>
    %508 = vector.broadcast %476 : vector<8x1xf32> to vector<8x128xf32>
    %509 = arith.mulf %508, %507 : vector<8x128xf32>
    %510 = arith.addf %502, %509 : vector<8x128xf32>
    %511 = vector.extract_strided_slice %358 {offsets = [16, 0], sizes = [8, 128], strides = [1, 1]} : vector<64x128xf32> to vector<8x128xf32>
    %512 = vector.broadcast %478 : vector<8x1xf32> to vector<8x128xf32>
    %513 = arith.mulf %512, %511 : vector<8x128xf32>
    %514 = arith.addf %506, %513 : vector<8x128xf32>
    %515 = vector.extract_strided_slice %363 {offsets = [16, 0], sizes = [8, 128], strides = [1, 1]} : vector<64x128xf32> to vector<8x128xf32>
    %516 = vector.broadcast %478 : vector<8x1xf32> to vector<8x128xf32>
    %517 = arith.mulf %516, %515 : vector<8x128xf32>
    %518 = arith.addf %510, %517 : vector<8x128xf32>
    %519 = vector.extract_strided_slice %358 {offsets = [24, 0], sizes = [8, 128], strides = [1, 1]} : vector<64x128xf32> to vector<8x128xf32>
    %520 = vector.broadcast %480 : vector<8x1xf32> to vector<8x128xf32>
    %521 = arith.mulf %520, %519 : vector<8x128xf32>
    %522 = arith.addf %514, %521 : vector<8x128xf32>
    %523 = vector.extract_strided_slice %363 {offsets = [24, 0], sizes = [8, 128], strides = [1, 1]} : vector<64x128xf32> to vector<8x128xf32>
    %524 = vector.broadcast %480 : vector<8x1xf32> to vector<8x128xf32>
    %525 = arith.mulf %524, %523 : vector<8x128xf32>
    %526 = arith.addf %518, %525 : vector<8x128xf32>
    %527 = vector.extract_strided_slice %358 {offsets = [32, 0], sizes = [8, 128], strides = [1, 1]} : vector<64x128xf32> to vector<8x128xf32>
    %528 = vector.broadcast %482 : vector<8x1xf32> to vector<8x128xf32>
    %529 = arith.mulf %528, %527 : vector<8x128xf32>
    %530 = arith.addf %522, %529 : vector<8x128xf32>
    %531 = vector.extract_strided_slice %363 {offsets = [32, 0], sizes = [8, 128], strides = [1, 1]} : vector<64x128xf32> to vector<8x128xf32>
    %532 = vector.broadcast %482 : vector<8x1xf32> to vector<8x128xf32>
    %533 = arith.mulf %532, %531 : vector<8x128xf32>
    %534 = arith.addf %526, %533 : vector<8x128xf32>
    %535 = vector.extract_strided_slice %358 {offsets = [40, 0], sizes = [8, 128], strides = [1, 1]} : vector<64x128xf32> to vector<8x128xf32>
    %536 = vector.broadcast %484 : vector<8x1xf32> to vector<8x128xf32>
    %537 = arith.mulf %536, %535 : vector<8x128xf32>
    %538 = arith.addf %530, %537 : vector<8x128xf32>
    %539 = vector.extract_strided_slice %363 {offsets = [40, 0], sizes = [8, 128], strides = [1, 1]} : vector<64x128xf32> to vector<8x128xf32>
    %540 = vector.broadcast %484 : vector<8x1xf32> to vector<8x128xf32>
    %541 = arith.mulf %540, %539 : vector<8x128xf32>
    %542 = arith.addf %534, %541 : vector<8x128xf32>
    %543 = vector.extract_strided_slice %358 {offsets = [48, 0], sizes = [8, 128], strides = [1, 1]} : vector<64x128xf32> to vector<8x128xf32>
    %544 = vector.broadcast %486 : vector<8x1xf32> to vector<8x128xf32>
    %545 = arith.mulf %544, %543 : vector<8x128xf32>
    %546 = arith.addf %538, %545 : vector<8x128xf32>
    %547 = vector.extract_strided_slice %363 {offsets = [48, 0], sizes = [8, 128], strides = [1, 1]} : vector<64x128xf32> to vector<8x128xf32>
    %548 = vector.broadcast %486 : vector<8x1xf32> to vector<8x128xf32>
    %549 = arith.mulf %548, %547 : vector<8x128xf32>
    %550 = arith.addf %542, %549 : vector<8x128xf32>
    %551 = vector.extract_strided_slice %358 {offsets = [56, 0], sizes = [8, 128], strides = [1, 1]} : vector<64x128xf32> to vector<8x128xf32>
    %552 = vector.broadcast %488 : vector<8x1xf32> to vector<8x128xf32>
    %553 = arith.mulf %552, %551 : vector<8x128xf32>
    %554 = arith.addf %546, %553 : vector<8x128xf32>
    %555 = vector.extract_strided_slice %363 {offsets = [56, 0], sizes = [8, 128], strides = [1, 1]} : vector<64x128xf32> to vector<8x128xf32>
    %556 = vector.broadcast %488 : vector<8x1xf32> to vector<8x128xf32>
    %557 = arith.mulf %556, %555 : vector<8x128xf32>
    %558 = arith.addf %550, %557 : vector<8x128xf32>
    %559 = vector.extract_strided_slice %369 {offsets = [0, 0], sizes = [8, 128], strides = [1, 1]} : vector<64x128xf32> to vector<8x128xf32>
    %560 = vector.broadcast %496 : vector<8x1xf32> to vector<8x128xf32>
    %561 = arith.mulf %554, %560 : vector<8x128xf32>
    %562 = arith.addf %559, %561 : vector<8x128xf32>
    %cst_110 = arith.constant dense<0.000000e+00> : vector<8x128xf32>
    %563 = tpu.matmul %334, %378, %cst_110 {dimension_numbers = #tpu.dot_dimension_numbers<[1], [0], [0], [1], [0, 0, 1, 1], [], []>} : vector<8x32xf32>, vector<32x128xf32>, vector<8x128xf32> -> vector<8x128xf32>
    %564 = arith.addf %562, %563 : vector<8x128xf32>
    %565 = math.tanh %564 : vector<8x128xf32>
    %566 = arith.negf %564 : vector<8x128xf32>
    %567 = math.exp %566 : vector<8x128xf32>
    %cst_111 = arith.constant 1.000000e+00 : f32
    %568 = vector.broadcast %cst_111 : f32 to vector<8x128xf32>
    %569 = arith.addf %568, %567 : vector<8x128xf32>
    %570 = arith.divf %568, %569 : vector<8x128xf32>
    %571 = arith.select %385, %565, %570 : vector<8x128xi1>, vector<8x128xf32>
    %572 = vector.extract_strided_slice %571 {offsets = [0, 0], sizes = [8, 32], strides = [1, 1]} : vector<8x128xf32> to vector<8x32xf32>
    %573 = vector.extract_strided_slice %571 {offsets = [0, 32], sizes = [8, 32], strides = [1, 1]} : vector<8x128xf32> to vector<8x32xf32>
    %574 = vector.extract_strided_slice %571 {offsets = [0, 64], sizes = [8, 32], strides = [1, 1]} : vector<8x128xf32> to vector<8x32xf32>
    %575 = vector.extract_strided_slice %571 {offsets = [0, 96], sizes = [8, 32], strides = [1, 1]} : vector<8x128xf32> to vector<8x32xf32>
    %576 = arith.mulf %573, %343 : vector<8x32xf32>
    %577 = arith.mulf %572, %574 : vector<8x32xf32>
    %578 = arith.addf %576, %577 : vector<8x32xf32>
    %579 = math.tanh %578 : vector<8x32xf32>
    %580 = arith.mulf %575, %579 : vector<8x32xf32>
    %581 = vector.extract_strided_slice %374 {offsets = [0, 0], sizes = [8, 128], strides = [1, 1]} : vector<64x128xf32> to vector<8x128xf32>
    %582 = vector.broadcast %496 : vector<8x1xf32> to vector<8x128xf32>
    %583 = arith.mulf %558, %582 : vector<8x128xf32>
    %584 = arith.addf %581, %583 : vector<8x128xf32>
    %cst_112 = arith.constant dense<0.000000e+00> : vector<8x128xf32>
    %585 = tpu.matmul %580, %379, %cst_112 {dimension_numbers = #tpu.dot_dimension_numbers<[1], [0], [0], [1], [0, 0, 1, 1], [], []>} : vector<8x32xf32>, vector<32x128xf32>, vector<8x128xf32> -> vector<8x128xf32>
    %586 = arith.addf %584, %585 : vector<8x128xf32>
    %c1 = arith.constant 1 : index
    %c0_113 = arith.constant 0 : index
    %c0_114 = arith.constant 0 : index
    %587 = vector.load %arg25[%c1, %c0_113, %c0_114] : memref<8x8x128xf32, #tpu.memory_space<vmem>>, vector<1x8x128xf32>
    %588 = vector.shape_cast %587 : vector<1x8x128xf32> to vector<8x128xf32>
    %589 = vector.shape_cast %586 : vector<8x128xf32> to vector<1x8x128xf32>
    tpu.vector_store %arg25[%c1, %c0_113, %c0_114], %589 {strides = array<i32>} : memref<8x8x128xf32, #tpu.memory_space<vmem>>, vector<1x8x128xf32>,
    %cst_115 = arith.constant dense<0.000000e+00> : vector<8x32xf32>
    %590 = tpu.matmul %580, %375, %cst_115 {dimension_numbers = #tpu.dot_dimension_numbers<[1], [0], [0], [1], [0, 0, 1, 1], [], []>} : vector<8x32xf32>, vector<32x32xf32>, vector<8x32xf32> -> vector<8x32xf32>
    %591 = vector.broadcast %376 : vector<1x32xf32> to vector<8x32xf32>
    %592 = arith.addf %590, %591 : vector<8x32xf32>
    %593 = vector.extract_strided_slice %353 {offsets = [0, 0], sizes = [8, 32], strides = [1, 1]} : vector<64x32xf32> to vector<8x32xf32>
    %594 = arith.addf %593, %592 : vector<8x32xf32>
    %595 = math.tanh %594 : vector<8x32xf32>
    %596 = vector.broadcast %377 : vector<1x32xf32> to vector<8x32xf32>
    %597 = arith.mulf %595, %596 : vector<8x32xf32>
    %cst_116 = arith.constant dense<0.000000e+00> : vector<8xf32>
    %598 = vector.multi_reduction <add>, %597, %cst_116 [1] : vector<8x32xf32> to vector<8xf32>
    %599 = vector.shape_cast %598 : vector<8xf32> to vector<8x1xf32>
    %600 = arith.addf %599, %387 : vector<8x1xf32>
    %601 = vector.extract_strided_slice %353 {offsets = [8, 0], sizes = [8, 32], strides = [1, 1]} : vector<64x32xf32> to vector<8x32xf32>
    %602 = arith.addf %601, %592 : vector<8x32xf32>
    %603 = math.tanh %602 : vector<8x32xf32>
    %604 = vector.broadcast %377 : vector<1x32xf32> to vector<8x32xf32>
    %605 = arith.mulf %603, %604 : vector<8x32xf32>
    %cst_117 = arith.constant dense<0.000000e+00> : vector<8xf32>
    %606 = vector.multi_reduction <add>, %605, %cst_117 [1] : vector<8x32xf32> to vector<8xf32>
    %607 = vector.shape_cast %606 : vector<8xf32> to vector<8x1xf32>
    %608 = arith.addf %607, %388 : vector<8x1xf32>
    %609 = vector.extract_strided_slice %353 {offsets = [16, 0], sizes = [8, 32], strides = [1, 1]} : vector<64x32xf32> to vector<8x32xf32>
    %610 = arith.addf %609, %592 : vector<8x32xf32>
    %611 = math.tanh %610 : vector<8x32xf32>
    %612 = vector.broadcast %377 : vector<1x32xf32> to vector<8x32xf32>
    %613 = arith.mulf %611, %612 : vector<8x32xf32>
    %cst_118 = arith.constant dense<0.000000e+00> : vector<8xf32>
    %614 = vector.multi_reduction <add>, %613, %cst_118 [1] : vector<8x32xf32> to vector<8xf32>
    %615 = vector.shape_cast %614 : vector<8xf32> to vector<8x1xf32>
    %616 = arith.addf %615, %389 : vector<8x1xf32>
    %617 = vector.extract_strided_slice %353 {offsets = [24, 0], sizes = [8, 32], strides = [1, 1]} : vector<64x32xf32> to vector<8x32xf32>
    %618 = arith.addf %617, %592 : vector<8x32xf32>
    %619 = math.tanh %618 : vector<8x32xf32>
    %620 = vector.broadcast %377 : vector<1x32xf32> to vector<8x32xf32>
    %621 = arith.mulf %619, %620 : vector<8x32xf32>
    %cst_119 = arith.constant dense<0.000000e+00> : vector<8xf32>
    %622 = vector.multi_reduction <add>, %621, %cst_119 [1] : vector<8x32xf32> to vector<8xf32>
    %623 = vector.shape_cast %622 : vector<8xf32> to vector<8x1xf32>
    %624 = arith.addf %623, %390 : vector<8x1xf32>
    %625 = vector.extract_strided_slice %353 {offsets = [32, 0], sizes = [8, 32], strides = [1, 1]} : vector<64x32xf32> to vector<8x32xf32>
    %626 = arith.addf %625, %592 : vector<8x32xf32>
    %627 = math.tanh %626 : vector<8x32xf32>
    %628 = vector.broadcast %377 : vector<1x32xf32> to vector<8x32xf32>
    %629 = arith.mulf %627, %628 : vector<8x32xf32>
    %cst_120 = arith.constant dense<0.000000e+00> : vector<8xf32>
    %630 = vector.multi_reduction <add>, %629, %cst_120 [1] : vector<8x32xf32> to vector<8xf32>
    %631 = vector.shape_cast %630 : vector<8xf32> to vector<8x1xf32>
    %632 = arith.addf %631, %391 : vector<8x1xf32>
    %633 = vector.extract_strided_slice %353 {offsets = [40, 0], sizes = [8, 32], strides = [1, 1]} : vector<64x32xf32> to vector<8x32xf32>
    %634 = arith.addf %633, %592 : vector<8x32xf32>
    %635 = math.tanh %634 : vector<8x32xf32>
    %636 = vector.broadcast %377 : vector<1x32xf32> to vector<8x32xf32>
    %637 = arith.mulf %635, %636 : vector<8x32xf32>
    %cst_121 = arith.constant dense<0.000000e+00> : vector<8xf32>
    %638 = vector.multi_reduction <add>, %637, %cst_121 [1] : vector<8x32xf32> to vector<8xf32>
    %639 = vector.shape_cast %638 : vector<8xf32> to vector<8x1xf32>
    %640 = arith.addf %639, %392 : vector<8x1xf32>
    %641 = vector.extract_strided_slice %353 {offsets = [48, 0], sizes = [8, 32], strides = [1, 1]} : vector<64x32xf32> to vector<8x32xf32>
    %642 = arith.addf %641, %592 : vector<8x32xf32>
    %643 = math.tanh %642 : vector<8x32xf32>
    %644 = vector.broadcast %377 : vector<1x32xf32> to vector<8x32xf32>
    %645 = arith.mulf %643, %644 : vector<8x32xf32>
    %cst_122 = arith.constant dense<0.000000e+00> : vector<8xf32>
    %646 = vector.multi_reduction <add>, %645, %cst_122 [1] : vector<8x32xf32> to vector<8xf32>
    %647 = vector.shape_cast %646 : vector<8xf32> to vector<8x1xf32>
    %648 = arith.addf %647, %393 : vector<8x1xf32>
    %649 = vector.extract_strided_slice %353 {offsets = [56, 0], sizes = [8, 32], strides = [1, 1]} : vector<64x32xf32> to vector<8x32xf32>
    %650 = arith.addf %649, %592 : vector<8x32xf32>
    %651 = math.tanh %650 : vector<8x32xf32>
    %652 = vector.broadcast %377 : vector<1x32xf32> to vector<8x32xf32>
    %653 = arith.mulf %651, %652 : vector<8x32xf32>
    %cst_123 = arith.constant dense<0.000000e+00> : vector<8xf32>
    %654 = vector.multi_reduction <add>, %653, %cst_123 [1] : vector<8x32xf32> to vector<8xf32>
    %655 = vector.shape_cast %654 : vector<8xf32> to vector<8x1xf32>
    %656 = arith.addf %655, %394 : vector<8x1xf32>
    %657 = arith.maximumf %600, %608 : vector<8x1xf32>
    %658 = arith.maximumf %657, %616 : vector<8x1xf32>
    %659 = arith.maximumf %658, %624 : vector<8x1xf32>
    %660 = arith.maximumf %659, %632 : vector<8x1xf32>
    %661 = arith.maximumf %660, %640 : vector<8x1xf32>
    %662 = arith.maximumf %661, %648 : vector<8x1xf32>
    %663 = arith.maximumf %662, %656 : vector<8x1xf32>
    %664 = arith.subf %600, %663 : vector<8x1xf32>
    %665 = math.exp %664 : vector<8x1xf32>
    %666 = arith.subf %608, %663 : vector<8x1xf32>
    %667 = math.exp %666 : vector<8x1xf32>
    %668 = arith.subf %616, %663 : vector<8x1xf32>
    %669 = math.exp %668 : vector<8x1xf32>
    %670 = arith.subf %624, %663 : vector<8x1xf32>
    %671 = math.exp %670 : vector<8x1xf32>
    %672 = arith.subf %632, %663 : vector<8x1xf32>
    %673 = math.exp %672 : vector<8x1xf32>
    %674 = arith.subf %640, %663 : vector<8x1xf32>
    %675 = math.exp %674 : vector<8x1xf32>
    %676 = arith.subf %648, %663 : vector<8x1xf32>
    %677 = math.exp %676 : vector<8x1xf32>
    %678 = arith.subf %656, %663 : vector<8x1xf32>
    %679 = math.exp %678 : vector<8x1xf32>
    %680 = arith.addf %665, %667 : vector<8x1xf32>
    %681 = arith.addf %680, %669 : vector<8x1xf32>
    %682 = arith.addf %681, %671 : vector<8x1xf32>
    %683 = arith.addf %682, %673 : vector<8x1xf32>
    %684 = arith.addf %683, %675 : vector<8x1xf32>
    %685 = arith.addf %684, %677 : vector<8x1xf32>
    %686 = arith.addf %685, %679 : vector<8x1xf32>
    %687 = tpu.reciprocal %686 {approx = true} : vector<8x1xf32> -> vector<8x1xf32>
    %688 = vector.extract_strided_slice %358 {offsets = [0, 0], sizes = [8, 128], strides = [1, 1]} : vector<64x128xf32> to vector<8x128xf32>
    %689 = vector.broadcast %665 : vector<8x1xf32> to vector<8x128xf32>
    %690 = arith.mulf %689, %688 : vector<8x128xf32>
    %691 = vector.extract_strided_slice %363 {offsets = [0, 0], sizes = [8, 128], strides = [1, 1]} : vector<64x128xf32> to vector<8x128xf32>
    %692 = vector.broadcast %665 : vector<8x1xf32> to vector<8x128xf32>
    %693 = arith.mulf %692, %691 : vector<8x128xf32>
    %694 = vector.extract_strided_slice %358 {offsets = [8, 0], sizes = [8, 128], strides = [1, 1]} : vector<64x128xf32> to vector<8x128xf32>
    %695 = vector.broadcast %667 : vector<8x1xf32> to vector<8x128xf32>
    %696 = arith.mulf %695, %694 : vector<8x128xf32>
    %697 = arith.addf %690, %696 : vector<8x128xf32>
    %698 = vector.extract_strided_slice %363 {offsets = [8, 0], sizes = [8, 128], strides = [1, 1]} : vector<64x128xf32> to vector<8x128xf32>
    %699 = vector.broadcast %667 : vector<8x1xf32> to vector<8x128xf32>
    %700 = arith.mulf %699, %698 : vector<8x128xf32>
    %701 = arith.addf %693, %700 : vector<8x128xf32>
    %702 = vector.extract_strided_slice %358 {offsets = [16, 0], sizes = [8, 128], strides = [1, 1]} : vector<64x128xf32> to vector<8x128xf32>
    %703 = vector.broadcast %669 : vector<8x1xf32> to vector<8x128xf32>
    %704 = arith.mulf %703, %702 : vector<8x128xf32>
    %705 = arith.addf %697, %704 : vector<8x128xf32>
    %706 = vector.extract_strided_slice %363 {offsets = [16, 0], sizes = [8, 128], strides = [1, 1]} : vector<64x128xf32> to vector<8x128xf32>
    %707 = vector.broadcast %669 : vector<8x1xf32> to vector<8x128xf32>
    %708 = arith.mulf %707, %706 : vector<8x128xf32>
    %709 = arith.addf %701, %708 : vector<8x128xf32>
    %710 = vector.extract_strided_slice %358 {offsets = [24, 0], sizes = [8, 128], strides = [1, 1]} : vector<64x128xf32> to vector<8x128xf32>
    %711 = vector.broadcast %671 : vector<8x1xf32> to vector<8x128xf32>
    %712 = arith.mulf %711, %710 : vector<8x128xf32>
    %713 = arith.addf %705, %712 : vector<8x128xf32>
    %714 = vector.extract_strided_slice %363 {offsets = [24, 0], sizes = [8, 128], strides = [1, 1]} : vector<64x128xf32> to vector<8x128xf32>
    %715 = vector.broadcast %671 : vector<8x1xf32> to vector<8x128xf32>
    %716 = arith.mulf %715, %714 : vector<8x128xf32>
    %717 = arith.addf %709, %716 : vector<8x128xf32>
    %718 = vector.extract_strided_slice %358 {offsets = [32, 0], sizes = [8, 128], strides = [1, 1]} : vector<64x128xf32> to vector<8x128xf32>
    %719 = vector.broadcast %673 : vector<8x1xf32> to vector<8x128xf32>
    %720 = arith.mulf %719, %718 : vector<8x128xf32>
    %721 = arith.addf %713, %720 : vector<8x128xf32>
    %722 = vector.extract_strided_slice %363 {offsets = [32, 0], sizes = [8, 128], strides = [1, 1]} : vector<64x128xf32> to vector<8x128xf32>
    %723 = vector.broadcast %673 : vector<8x1xf32> to vector<8x128xf32>
    %724 = arith.mulf %723, %722 : vector<8x128xf32>
    %725 = arith.addf %717, %724 : vector<8x128xf32>
    %726 = vector.extract_strided_slice %358 {offsets = [40, 0], sizes = [8, 128], strides = [1, 1]} : vector<64x128xf32> to vector<8x128xf32>
    %727 = vector.broadcast %675 : vector<8x1xf32> to vector<8x128xf32>
    %728 = arith.mulf %727, %726 : vector<8x128xf32>
    %729 = arith.addf %721, %728 : vector<8x128xf32>
    %730 = vector.extract_strided_slice %363 {offsets = [40, 0], sizes = [8, 128], strides = [1, 1]} : vector<64x128xf32> to vector<8x128xf32>
    %731 = vector.broadcast %675 : vector<8x1xf32> to vector<8x128xf32>
    %732 = arith.mulf %731, %730 : vector<8x128xf32>
    %733 = arith.addf %725, %732 : vector<8x128xf32>
    %734 = vector.extract_strided_slice %358 {offsets = [48, 0], sizes = [8, 128], strides = [1, 1]} : vector<64x128xf32> to vector<8x128xf32>
    %735 = vector.broadcast %677 : vector<8x1xf32> to vector<8x128xf32>
    %736 = arith.mulf %735, %734 : vector<8x128xf32>
    %737 = arith.addf %729, %736 : vector<8x128xf32>
    %738 = vector.extract_strided_slice %363 {offsets = [48, 0], sizes = [8, 128], strides = [1, 1]} : vector<64x128xf32> to vector<8x128xf32>
    %739 = vector.broadcast %677 : vector<8x1xf32> to vector<8x128xf32>
    %740 = arith.mulf %739, %738 : vector<8x128xf32>
    %741 = arith.addf %733, %740 : vector<8x128xf32>
    %742 = vector.extract_strided_slice %358 {offsets = [56, 0], sizes = [8, 128], strides = [1, 1]} : vector<64x128xf32> to vector<8x128xf32>
    %743 = vector.broadcast %679 : vector<8x1xf32> to vector<8x128xf32>
    %744 = arith.mulf %743, %742 : vector<8x128xf32>
    %745 = arith.addf %737, %744 : vector<8x128xf32>
    %746 = vector.extract_strided_slice %363 {offsets = [56, 0], sizes = [8, 128], strides = [1, 1]} : vector<64x128xf32> to vector<8x128xf32>
    %747 = vector.broadcast %679 : vector<8x1xf32> to vector<8x128xf32>
    %748 = arith.mulf %747, %746 : vector<8x128xf32>
    %749 = arith.addf %741, %748 : vector<8x128xf32>
    %750 = vector.extract_strided_slice %369 {offsets = [8, 0], sizes = [8, 128], strides = [1, 1]} : vector<64x128xf32> to vector<8x128xf32>
    %751 = vector.broadcast %687 : vector<8x1xf32> to vector<8x128xf32>
    %752 = arith.mulf %745, %751 : vector<8x128xf32>
    %753 = arith.addf %750, %752 : vector<8x128xf32>
    %cst_124 = arith.constant dense<0.000000e+00> : vector<8x128xf32>
    %754 = tpu.matmul %580, %378, %cst_124 {dimension_numbers = #tpu.dot_dimension_numbers<[1], [0], [0], [1], [0, 0, 1, 1], [], []>} : vector<8x32xf32>, vector<32x128xf32>, vector<8x128xf32> -> vector<8x128xf32>
    %755 = arith.addf %753, %754 : vector<8x128xf32>
    %756 = math.tanh %755 : vector<8x128xf32>
    %757 = arith.negf %755 : vector<8x128xf32>
    %758 = math.exp %757 : vector<8x128xf32>
    %cst_125 = arith.constant 1.000000e+00 : f32
    %759 = vector.broadcast %cst_125 : f32 to vector<8x128xf32>
    %760 = arith.addf %759, %758 : vector<8x128xf32>
    %761 = arith.divf %759, %760 : vector<8x128xf32>
    %762 = arith.select %385, %756, %761 : vector<8x128xi1>, vector<8x128xf32>
    %763 = vector.extract_strided_slice %762 {offsets = [0, 0], sizes = [8, 32], strides = [1, 1]} : vector<8x128xf32> to vector<8x32xf32>
    %764 = vector.extract_strided_slice %762 {offsets = [0, 32], sizes = [8, 32], strides = [1, 1]} : vector<8x128xf32> to vector<8x32xf32>
    %765 = vector.extract_strided_slice %762 {offsets = [0, 64], sizes = [8, 32], strides = [1, 1]} : vector<8x128xf32> to vector<8x32xf32>
    %766 = vector.extract_strided_slice %762 {offsets = [0, 96], sizes = [8, 32], strides = [1, 1]} : vector<8x128xf32> to vector<8x32xf32>
    %767 = arith.mulf %764, %578 : vector<8x32xf32>
    %768 = arith.mulf %763, %765 : vector<8x32xf32>
    %769 = arith.addf %767, %768 : vector<8x32xf32>
    %770 = math.tanh %769 : vector<8x32xf32>
    %771 = arith.mulf %766, %770 : vector<8x32xf32>
    %772 = vector.extract_strided_slice %374 {offsets = [8, 0], sizes = [8, 128], strides = [1, 1]} : vector<64x128xf32> to vector<8x128xf32>
    %773 = vector.broadcast %687 : vector<8x1xf32> to vector<8x128xf32>
    %774 = arith.mulf %749, %773 : vector<8x128xf32>
    %775 = arith.addf %772, %774 : vector<8x128xf32>
    %cst_126 = arith.constant dense<0.000000e+00> : vector<8x128xf32>
    %776 = tpu.matmul %771, %379, %cst_126 {dimension_numbers = #tpu.dot_dimension_numbers<[1], [0], [0], [1], [0, 0, 1, 1], [], []>} : vector<8x32xf32>, vector<32x128xf32>, vector<8x128xf32> -> vector<8x128xf32>
    %777 = arith.addf %775, %776 : vector<8x128xf32>
    %c2 = arith.constant 2 : index
    %c0_127 = arith.constant 0 : index
    %c0_128 = arith.constant 0 : index
    %778 = vector.load %arg25[%c2, %c0_127, %c0_128] : memref<8x8x128xf32, #tpu.memory_space<vmem>>, vector<1x8x128xf32>
    %779 = vector.shape_cast %778 : vector<1x8x128xf32> to vector<8x128xf32>
    %780 = vector.shape_cast %777 : vector<8x128xf32> to vector<1x8x128xf32>
    tpu.vector_store %arg25[%c2, %c0_127, %c0_128], %780 {strides = array<i32>} : memref<8x8x128xf32, #tpu.memory_space<vmem>>, vector<1x8x128xf32>,
    %cst_129 = arith.constant dense<0.000000e+00> : vector<8x32xf32>
    %781 = tpu.matmul %771, %375, %cst_129 {dimension_numbers = #tpu.dot_dimension_numbers<[1], [0], [0], [1], [0, 0, 1, 1], [], []>} : vector<8x32xf32>, vector<32x32xf32>, vector<8x32xf32> -> vector<8x32xf32>
    %782 = vector.broadcast %376 : vector<1x32xf32> to vector<8x32xf32>
    %783 = arith.addf %781, %782 : vector<8x32xf32>
    %784 = vector.extract_strided_slice %353 {offsets = [0, 0], sizes = [8, 32], strides = [1, 1]} : vector<64x32xf32> to vector<8x32xf32>
    %785 = arith.addf %784, %783 : vector<8x32xf32>
    %786 = math.tanh %785 : vector<8x32xf32>
    %787 = vector.broadcast %377 : vector<1x32xf32> to vector<8x32xf32>
    %788 = arith.mulf %786, %787 : vector<8x32xf32>
    %cst_130 = arith.constant dense<0.000000e+00> : vector<8xf32>
    %789 = vector.multi_reduction <add>, %788, %cst_130 [1] : vector<8x32xf32> to vector<8xf32>
    %790 = vector.shape_cast %789 : vector<8xf32> to vector<8x1xf32>
    %791 = arith.addf %790, %387 : vector<8x1xf32>
    %792 = vector.extract_strided_slice %353 {offsets = [8, 0], sizes = [8, 32], strides = [1, 1]} : vector<64x32xf32> to vector<8x32xf32>
    %793 = arith.addf %792, %783 : vector<8x32xf32>
    %794 = math.tanh %793 : vector<8x32xf32>
    %795 = vector.broadcast %377 : vector<1x32xf32> to vector<8x32xf32>
    %796 = arith.mulf %794, %795 : vector<8x32xf32>
    %cst_131 = arith.constant dense<0.000000e+00> : vector<8xf32>
    %797 = vector.multi_reduction <add>, %796, %cst_131 [1] : vector<8x32xf32> to vector<8xf32>
    %798 = vector.shape_cast %797 : vector<8xf32> to vector<8x1xf32>
    %799 = arith.addf %798, %388 : vector<8x1xf32>
    %800 = vector.extract_strided_slice %353 {offsets = [16, 0], sizes = [8, 32], strides = [1, 1]} : vector<64x32xf32> to vector<8x32xf32>
    %801 = arith.addf %800, %783 : vector<8x32xf32>
    %802 = math.tanh %801 : vector<8x32xf32>
    %803 = vector.broadcast %377 : vector<1x32xf32> to vector<8x32xf32>
    %804 = arith.mulf %802, %803 : vector<8x32xf32>
    %cst_132 = arith.constant dense<0.000000e+00> : vector<8xf32>
    %805 = vector.multi_reduction <add>, %804, %cst_132 [1] : vector<8x32xf32> to vector<8xf32>
    %806 = vector.shape_cast %805 : vector<8xf32> to vector<8x1xf32>
    %807 = arith.addf %806, %389 : vector<8x1xf32>
    %808 = vector.extract_strided_slice %353 {offsets = [24, 0], sizes = [8, 32], strides = [1, 1]} : vector<64x32xf32> to vector<8x32xf32>
    %809 = arith.addf %808, %783 : vector<8x32xf32>
    %810 = math.tanh %809 : vector<8x32xf32>
    %811 = vector.broadcast %377 : vector<1x32xf32> to vector<8x32xf32>
    %812 = arith.mulf %810, %811 : vector<8x32xf32>
    %cst_133 = arith.constant dense<0.000000e+00> : vector<8xf32>
    %813 = vector.multi_reduction <add>, %812, %cst_133 [1] : vector<8x32xf32> to vector<8xf32>
    %814 = vector.shape_cast %813 : vector<8xf32> to vector<8x1xf32>
    %815 = arith.addf %814, %390 : vector<8x1xf32>
    %816 = vector.extract_strided_slice %353 {offsets = [32, 0], sizes = [8, 32], strides = [1, 1]} : vector<64x32xf32> to vector<8x32xf32>
    %817 = arith.addf %816, %783 : vector<8x32xf32>
    %818 = math.tanh %817 : vector<8x32xf32>
    %819 = vector.broadcast %377 : vector<1x32xf32> to vector<8x32xf32>
    %820 = arith.mulf %818, %819 : vector<8x32xf32>
    %cst_134 = arith.constant dense<0.000000e+00> : vector<8xf32>
    %821 = vector.multi_reduction <add>, %820, %cst_134 [1] : vector<8x32xf32> to vector<8xf32>
    %822 = vector.shape_cast %821 : vector<8xf32> to vector<8x1xf32>
    %823 = arith.addf %822, %391 : vector<8x1xf32>
    %824 = vector.extract_strided_slice %353 {offsets = [40, 0], sizes = [8, 32], strides = [1, 1]} : vector<64x32xf32> to vector<8x32xf32>
    %825 = arith.addf %824, %783 : vector<8x32xf32>
    %826 = math.tanh %825 : vector<8x32xf32>
    %827 = vector.broadcast %377 : vector<1x32xf32> to vector<8x32xf32>
    %828 = arith.mulf %826, %827 : vector<8x32xf32>
    %cst_135 = arith.constant dense<0.000000e+00> : vector<8xf32>
    %829 = vector.multi_reduction <add>, %828, %cst_135 [1] : vector<8x32xf32> to vector<8xf32>
    %830 = vector.shape_cast %829 : vector<8xf32> to vector<8x1xf32>
    %831 = arith.addf %830, %392 : vector<8x1xf32>
    %832 = vector.extract_strided_slice %353 {offsets = [48, 0], sizes = [8, 32], strides = [1, 1]} : vector<64x32xf32> to vector<8x32xf32>
    %833 = arith.addf %832, %783 : vector<8x32xf32>
    %834 = math.tanh %833 : vector<8x32xf32>
    %835 = vector.broadcast %377 : vector<1x32xf32> to vector<8x32xf32>
    %836 = arith.mulf %834, %835 : vector<8x32xf32>
    %cst_136 = arith.constant dense<0.000000e+00> : vector<8xf32>
    %837 = vector.multi_reduction <add>, %836, %cst_136 [1] : vector<8x32xf32> to vector<8xf32>
    %838 = vector.shape_cast %837 : vector<8xf32> to vector<8x1xf32>
    %839 = arith.addf %838, %393 : vector<8x1xf32>
    %840 = vector.extract_strided_slice %353 {offsets = [56, 0], sizes = [8, 32], strides = [1, 1]} : vector<64x32xf32> to vector<8x32xf32>
    %841 = arith.addf %840, %783 : vector<8x32xf32>
    %842 = math.tanh %841 : vector<8x32xf32>
    %843 = vector.broadcast %377 : vector<1x32xf32> to vector<8x32xf32>
    %844 = arith.mulf %842, %843 : vector<8x32xf32>
    %cst_137 = arith.constant dense<0.000000e+00> : vector<8xf32>
    %845 = vector.multi_reduction <add>, %844, %cst_137 [1] : vector<8x32xf32> to vector<8xf32>
    %846 = vector.shape_cast %845 : vector<8xf32> to vector<8x1xf32>
    %847 = arith.addf %846, %394 : vector<8x1xf32>
    %848 = arith.maximumf %791, %799 : vector<8x1xf32>
    %849 = arith.maximumf %848, %807 : vector<8x1xf32>
    %850 = arith.maximumf %849, %815 : vector<8x1xf32>
    %851 = arith.maximumf %850, %823 : vector<8x1xf32>
    %852 = arith.maximumf %851, %831 : vector<8x1xf32>
    %853 = arith.maximumf %852, %839 : vector<8x1xf32>
    %854 = arith.maximumf %853, %847 : vector<8x1xf32>
    %855 = arith.subf %791, %854 : vector<8x1xf32>
    %856 = math.exp %855 : vector<8x1xf32>
    %857 = arith.subf %799, %854 : vector<8x1xf32>
    %858 = math.exp %857 : vector<8x1xf32>
    %859 = arith.subf %807, %854 : vector<8x1xf32>
    %860 = math.exp %859 : vector<8x1xf32>
    %861 = arith.subf %815, %854 : vector<8x1xf32>
    %862 = math.exp %861 : vector<8x1xf32>
    %863 = arith.subf %823, %854 : vector<8x1xf32>
    %864 = math.exp %863 : vector<8x1xf32>
    %865 = arith.subf %831, %854 : vector<8x1xf32>
    %866 = math.exp %865 : vector<8x1xf32>
    %867 = arith.subf %839, %854 : vector<8x1xf32>
    %868 = math.exp %867 : vector<8x1xf32>
    %869 = arith.subf %847, %854 : vector<8x1xf32>
    %870 = math.exp %869 : vector<8x1xf32>
    %871 = arith.addf %856, %858 : vector<8x1xf32>
    %872 = arith.addf %871, %860 : vector<8x1xf32>
    %873 = arith.addf %872, %862 : vector<8x1xf32>
    %874 = arith.addf %873, %864 : vector<8x1xf32>
    %875 = arith.addf %874, %866 : vector<8x1xf32>
    %876 = arith.addf %875, %868 : vector<8x1xf32>
    %877 = arith.addf %876, %870 : vector<8x1xf32>
    %878 = tpu.reciprocal %877 {approx = true} : vector<8x1xf32> -> vector<8x1xf32>
    %879 = vector.extract_strided_slice %358 {offsets = [0, 0], sizes = [8, 128], strides = [1, 1]} : vector<64x128xf32> to vector<8x128xf32>
    %880 = vector.broadcast %856 : vector<8x1xf32> to vector<8x128xf32>
    %881 = arith.mulf %880, %879 : vector<8x128xf32>
    %882 = vector.extract_strided_slice %363 {offsets = [0, 0], sizes = [8, 128], strides = [1, 1]} : vector<64x128xf32> to vector<8x128xf32>
    %883 = vector.broadcast %856 : vector<8x1xf32> to vector<8x128xf32>
    %884 = arith.mulf %883, %882 : vector<8x128xf32>
    %885 = vector.extract_strided_slice %358 {offsets = [8, 0], sizes = [8, 128], strides = [1, 1]} : vector<64x128xf32> to vector<8x128xf32>
    %886 = vector.broadcast %858 : vector<8x1xf32> to vector<8x128xf32>
    %887 = arith.mulf %886, %885 : vector<8x128xf32>
    %888 = arith.addf %881, %887 : vector<8x128xf32>
    %889 = vector.extract_strided_slice %363 {offsets = [8, 0], sizes = [8, 128], strides = [1, 1]} : vector<64x128xf32> to vector<8x128xf32>
    %890 = vector.broadcast %858 : vector<8x1xf32> to vector<8x128xf32>
    %891 = arith.mulf %890, %889 : vector<8x128xf32>
    %892 = arith.addf %884, %891 : vector<8x128xf32>
    %893 = vector.extract_strided_slice %358 {offsets = [16, 0], sizes = [8, 128], strides = [1, 1]} : vector<64x128xf32> to vector<8x128xf32>
    %894 = vector.broadcast %860 : vector<8x1xf32> to vector<8x128xf32>
    %895 = arith.mulf %894, %893 : vector<8x128xf32>
    %896 = arith.addf %888, %895 : vector<8x128xf32>
    %897 = vector.extract_strided_slice %363 {offsets = [16, 0], sizes = [8, 128], strides = [1, 1]} : vector<64x128xf32> to vector<8x128xf32>
    %898 = vector.broadcast %860 : vector<8x1xf32> to vector<8x128xf32>
    %899 = arith.mulf %898, %897 : vector<8x128xf32>
    %900 = arith.addf %892, %899 : vector<8x128xf32>
    %901 = vector.extract_strided_slice %358 {offsets = [24, 0], sizes = [8, 128], strides = [1, 1]} : vector<64x128xf32> to vector<8x128xf32>
    %902 = vector.broadcast %862 : vector<8x1xf32> to vector<8x128xf32>
    %903 = arith.mulf %902, %901 : vector<8x128xf32>
    %904 = arith.addf %896, %903 : vector<8x128xf32>
    %905 = vector.extract_strided_slice %363 {offsets = [24, 0], sizes = [8, 128], strides = [1, 1]} : vector<64x128xf32> to vector<8x128xf32>
    %906 = vector.broadcast %862 : vector<8x1xf32> to vector<8x128xf32>
    %907 = arith.mulf %906, %905 : vector<8x128xf32>
    %908 = arith.addf %900, %907 : vector<8x128xf32>
    %909 = vector.extract_strided_slice %358 {offsets = [32, 0], sizes = [8, 128], strides = [1, 1]} : vector<64x128xf32> to vector<8x128xf32>
    %910 = vector.broadcast %864 : vector<8x1xf32> to vector<8x128xf32>
    %911 = arith.mulf %910, %909 : vector<8x128xf32>
    %912 = arith.addf %904, %911 : vector<8x128xf32>
    %913 = vector.extract_strided_slice %363 {offsets = [32, 0], sizes = [8, 128], strides = [1, 1]} : vector<64x128xf32> to vector<8x128xf32>
    %914 = vector.broadcast %864 : vector<8x1xf32> to vector<8x128xf32>
    %915 = arith.mulf %914, %913 : vector<8x128xf32>
    %916 = arith.addf %908, %915 : vector<8x128xf32>
    %917 = vector.extract_strided_slice %358 {offsets = [40, 0], sizes = [8, 128], strides = [1, 1]} : vector<64x128xf32> to vector<8x128xf32>
    %918 = vector.broadcast %866 : vector<8x1xf32> to vector<8x128xf32>
    %919 = arith.mulf %918, %917 : vector<8x128xf32>
    %920 = arith.addf %912, %919 : vector<8x128xf32>
    %921 = vector.extract_strided_slice %363 {offsets = [40, 0], sizes = [8, 128], strides = [1, 1]} : vector<64x128xf32> to vector<8x128xf32>
    %922 = vector.broadcast %866 : vector<8x1xf32> to vector<8x128xf32>
    %923 = arith.mulf %922, %921 : vector<8x128xf32>
    %924 = arith.addf %916, %923 : vector<8x128xf32>
    %925 = vector.extract_strided_slice %358 {offsets = [48, 0], sizes = [8, 128], strides = [1, 1]} : vector<64x128xf32> to vector<8x128xf32>
    %926 = vector.broadcast %868 : vector<8x1xf32> to vector<8x128xf32>
    %927 = arith.mulf %926, %925 : vector<8x128xf32>
    %928 = arith.addf %920, %927 : vector<8x128xf32>
    %929 = vector.extract_strided_slice %363 {offsets = [48, 0], sizes = [8, 128], strides = [1, 1]} : vector<64x128xf32> to vector<8x128xf32>
    %930 = vector.broadcast %868 : vector<8x1xf32> to vector<8x128xf32>
    %931 = arith.mulf %930, %929 : vector<8x128xf32>
    %932 = arith.addf %924, %931 : vector<8x128xf32>
    %933 = vector.extract_strided_slice %358 {offsets = [56, 0], sizes = [8, 128], strides = [1, 1]} : vector<64x128xf32> to vector<8x128xf32>
    %934 = vector.broadcast %870 : vector<8x1xf32> to vector<8x128xf32>
    %935 = arith.mulf %934, %933 : vector<8x128xf32>
    %936 = arith.addf %928, %935 : vector<8x128xf32>
    %937 = vector.extract_strided_slice %363 {offsets = [56, 0], sizes = [8, 128], strides = [1, 1]} : vector<64x128xf32> to vector<8x128xf32>
    %938 = vector.broadcast %870 : vector<8x1xf32> to vector<8x128xf32>
    %939 = arith.mulf %938, %937 : vector<8x128xf32>
    %940 = arith.addf %932, %939 : vector<8x128xf32>
    %941 = vector.extract_strided_slice %369 {offsets = [16, 0], sizes = [8, 128], strides = [1, 1]} : vector<64x128xf32> to vector<8x128xf32>
    %942 = vector.broadcast %878 : vector<8x1xf32> to vector<8x128xf32>
    %943 = arith.mulf %936, %942 : vector<8x128xf32>
    %944 = arith.addf %941, %943 : vector<8x128xf32>
    %cst_138 = arith.constant dense<0.000000e+00> : vector<8x128xf32>
    %945 = tpu.matmul %771, %378, %cst_138 {dimension_numbers = #tpu.dot_dimension_numbers<[1], [0], [0], [1], [0, 0, 1, 1], [], []>} : vector<8x32xf32>, vector<32x128xf32>, vector<8x128xf32> -> vector<8x128xf32>
    %946 = arith.addf %944, %945 : vector<8x128xf32>
    %947 = math.tanh %946 : vector<8x128xf32>
    %948 = arith.negf %946 : vector<8x128xf32>
    %949 = math.exp %948 : vector<8x128xf32>
    %cst_139 = arith.constant 1.000000e+00 : f32
    %950 = vector.broadcast %cst_139 : f32 to vector<8x128xf32>
    %951 = arith.addf %950, %949 : vector<8x128xf32>
    %952 = arith.divf %950, %951 : vector<8x128xf32>
    %953 = arith.select %385, %947, %952 : vector<8x128xi1>, vector<8x128xf32>
    %954 = vector.extract_strided_slice %953 {offsets = [0, 0], sizes = [8, 32], strides = [1, 1]} : vector<8x128xf32> to vector<8x32xf32>
    %955 = vector.extract_strided_slice %953 {offsets = [0, 32], sizes = [8, 32], strides = [1, 1]} : vector<8x128xf32> to vector<8x32xf32>
    %956 = vector.extract_strided_slice %953 {offsets = [0, 64], sizes = [8, 32], strides = [1, 1]} : vector<8x128xf32> to vector<8x32xf32>
    %957 = vector.extract_strided_slice %953 {offsets = [0, 96], sizes = [8, 32], strides = [1, 1]} : vector<8x128xf32> to vector<8x32xf32>
    %958 = arith.mulf %955, %769 : vector<8x32xf32>
    %959 = arith.mulf %954, %956 : vector<8x32xf32>
    %960 = arith.addf %958, %959 : vector<8x32xf32>
    %961 = math.tanh %960 : vector<8x32xf32>
    %962 = arith.mulf %957, %961 : vector<8x32xf32>
    %963 = vector.extract_strided_slice %374 {offsets = [16, 0], sizes = [8, 128], strides = [1, 1]} : vector<64x128xf32> to vector<8x128xf32>
    %964 = vector.broadcast %878 : vector<8x1xf32> to vector<8x128xf32>
    %965 = arith.mulf %940, %964 : vector<8x128xf32>
    %966 = arith.addf %963, %965 : vector<8x128xf32>
    %cst_140 = arith.constant dense<0.000000e+00> : vector<8x128xf32>
    %967 = tpu.matmul %962, %379, %cst_140 {dimension_numbers = #tpu.dot_dimension_numbers<[1], [0], [0], [1], [0, 0, 1, 1], [], []>} : vector<8x32xf32>, vector<32x128xf32>, vector<8x128xf32> -> vector<8x128xf32>
    %968 = arith.addf %966, %967 : vector<8x128xf32>
    %c3 = arith.constant 3 : index
    %c0_141 = arith.constant 0 : index
    %c0_142 = arith.constant 0 : index
    %969 = vector.load %arg25[%c3, %c0_141, %c0_142] : memref<8x8x128xf32, #tpu.memory_space<vmem>>, vector<1x8x128xf32>
    %970 = vector.shape_cast %969 : vector<1x8x128xf32> to vector<8x128xf32>
    %971 = vector.shape_cast %968 : vector<8x128xf32> to vector<1x8x128xf32>
    tpu.vector_store %arg25[%c3, %c0_141, %c0_142], %971 {strides = array<i32>} : memref<8x8x128xf32, #tpu.memory_space<vmem>>, vector<1x8x128xf32>,
    %cst_143 = arith.constant dense<0.000000e+00> : vector<8x32xf32>
    %972 = tpu.matmul %962, %375, %cst_143 {dimension_numbers = #tpu.dot_dimension_numbers<[1], [0], [0], [1], [0, 0, 1, 1], [], []>} : vector<8x32xf32>, vector<32x32xf32>, vector<8x32xf32> -> vector<8x32xf32>
    %973 = vector.broadcast %376 : vector<1x32xf32> to vector<8x32xf32>
    %974 = arith.addf %972, %973 : vector<8x32xf32>
    %975 = vector.extract_strided_slice %353 {offsets = [0, 0], sizes = [8, 32], strides = [1, 1]} : vector<64x32xf32> to vector<8x32xf32>
    %976 = arith.addf %975, %974 : vector<8x32xf32>
    %977 = math.tanh %976 : vector<8x32xf32>
    %978 = vector.broadcast %377 : vector<1x32xf32> to vector<8x32xf32>
    %979 = arith.mulf %977, %978 : vector<8x32xf32>
    %cst_144 = arith.constant dense<0.000000e+00> : vector<8xf32>
    %980 = vector.multi_reduction <add>, %979, %cst_144 [1] : vector<8x32xf32> to vector<8xf32>
    %981 = vector.shape_cast %980 : vector<8xf32> to vector<8x1xf32>
    %982 = arith.addf %981, %387 : vector<8x1xf32>
    %983 = vector.extract_strided_slice %353 {offsets = [8, 0], sizes = [8, 32], strides = [1, 1]} : vector<64x32xf32> to vector<8x32xf32>
    %984 = arith.addf %983, %974 : vector<8x32xf32>
    %985 = math.tanh %984 : vector<8x32xf32>
    %986 = vector.broadcast %377 : vector<1x32xf32> to vector<8x32xf32>
    %987 = arith.mulf %985, %986 : vector<8x32xf32>
    %cst_145 = arith.constant dense<0.000000e+00> : vector<8xf32>
    %988 = vector.multi_reduction <add>, %987, %cst_145 [1] : vector<8x32xf32> to vector<8xf32>
    %989 = vector.shape_cast %988 : vector<8xf32> to vector<8x1xf32>
    %990 = arith.addf %989, %388 : vector<8x1xf32>
    %991 = vector.extract_strided_slice %353 {offsets = [16, 0], sizes = [8, 32], strides = [1, 1]} : vector<64x32xf32> to vector<8x32xf32>
    %992 = arith.addf %991, %974 : vector<8x32xf32>
    %993 = math.tanh %992 : vector<8x32xf32>
    %994 = vector.broadcast %377 : vector<1x32xf32> to vector<8x32xf32>
    %995 = arith.mulf %993, %994 : vector<8x32xf32>
    %cst_146 = arith.constant dense<0.000000e+00> : vector<8xf32>
    %996 = vector.multi_reduction <add>, %995, %cst_146 [1] : vector<8x32xf32> to vector<8xf32>
    %997 = vector.shape_cast %996 : vector<8xf32> to vector<8x1xf32>
    %998 = arith.addf %997, %389 : vector<8x1xf32>
    %999 = vector.extract_strided_slice %353 {offsets = [24, 0], sizes = [8, 32], strides = [1, 1]} : vector<64x32xf32> to vector<8x32xf32>
    %1000 = arith.addf %999, %974 : vector<8x32xf32>
    %1001 = math.tanh %1000 : vector<8x32xf32>
    %1002 = vector.broadcast %377 : vector<1x32xf32> to vector<8x32xf32>
    %1003 = arith.mulf %1001, %1002 : vector<8x32xf32>
    %cst_147 = arith.constant dense<0.000000e+00> : vector<8xf32>
    %1004 = vector.multi_reduction <add>, %1003, %cst_147 [1] : vector<8x32xf32> to vector<8xf32>
    %1005 = vector.shape_cast %1004 : vector<8xf32> to vector<8x1xf32>
    %1006 = arith.addf %1005, %390 : vector<8x1xf32>
    %1007 = vector.extract_strided_slice %353 {offsets = [32, 0], sizes = [8, 32], strides = [1, 1]} : vector<64x32xf32> to vector<8x32xf32>
    %1008 = arith.addf %1007, %974 : vector<8x32xf32>
    %1009 = math.tanh %1008 : vector<8x32xf32>
    %1010 = vector.broadcast %377 : vector<1x32xf32> to vector<8x32xf32>
    %1011 = arith.mulf %1009, %1010 : vector<8x32xf32>
    %cst_148 = arith.constant dense<0.000000e+00> : vector<8xf32>
    %1012 = vector.multi_reduction <add>, %1011, %cst_148 [1] : vector<8x32xf32> to vector<8xf32>
    %1013 = vector.shape_cast %1012 : vector<8xf32> to vector<8x1xf32>
    %1014 = arith.addf %1013, %391 : vector<8x1xf32>
    %1015 = vector.extract_strided_slice %353 {offsets = [40, 0], sizes = [8, 32], strides = [1, 1]} : vector<64x32xf32> to vector<8x32xf32>
    %1016 = arith.addf %1015, %974 : vector<8x32xf32>
    %1017 = math.tanh %1016 : vector<8x32xf32>
    %1018 = vector.broadcast %377 : vector<1x32xf32> to vector<8x32xf32>
    %1019 = arith.mulf %1017, %1018 : vector<8x32xf32>
    %cst_149 = arith.constant dense<0.000000e+00> : vector<8xf32>
    %1020 = vector.multi_reduction <add>, %1019, %cst_149 [1] : vector<8x32xf32> to vector<8xf32>
    %1021 = vector.shape_cast %1020 : vector<8xf32> to vector<8x1xf32>
    %1022 = arith.addf %1021, %392 : vector<8x1xf32>
    %1023 = vector.extract_strided_slice %353 {offsets = [48, 0], sizes = [8, 32], strides = [1, 1]} : vector<64x32xf32> to vector<8x32xf32>
    %1024 = arith.addf %1023, %974 : vector<8x32xf32>
    %1025 = math.tanh %1024 : vector<8x32xf32>
    %1026 = vector.broadcast %377 : vector<1x32xf32> to vector<8x32xf32>
    %1027 = arith.mulf %1025, %1026 : vector<8x32xf32>
    %cst_150 = arith.constant dense<0.000000e+00> : vector<8xf32>
    %1028 = vector.multi_reduction <add>, %1027, %cst_150 [1] : vector<8x32xf32> to vector<8xf32>
    %1029 = vector.shape_cast %1028 : vector<8xf32> to vector<8x1xf32>
    %1030 = arith.addf %1029, %393 : vector<8x1xf32>
    %1031 = vector.extract_strided_slice %353 {offsets = [56, 0], sizes = [8, 32], strides = [1, 1]} : vector<64x32xf32> to vector<8x32xf32>
    %1032 = arith.addf %1031, %974 : vector<8x32xf32>
    %1033 = math.tanh %1032 : vector<8x32xf32>
    %1034 = vector.broadcast %377 : vector<1x32xf32> to vector<8x32xf32>
    %1035 = arith.mulf %1033, %1034 : vector<8x32xf32>
    %cst_151 = arith.constant dense<0.000000e+00> : vector<8xf32>
    %1036 = vector.multi_reduction <add>, %1035, %cst_151 [1] : vector<8x32xf32> to vector<8xf32>
    %1037 = vector.shape_cast %1036 : vector<8xf32> to vector<8x1xf32>
    %1038 = arith.addf %1037, %394 : vector<8x1xf32>
    %1039 = arith.maximumf %982, %990 : vector<8x1xf32>
    %1040 = arith.maximumf %1039, %998 : vector<8x1xf32>
    %1041 = arith.maximumf %1040, %1006 : vector<8x1xf32>
    %1042 = arith.maximumf %1041, %1014 : vector<8x1xf32>
    %1043 = arith.maximumf %1042, %1022 : vector<8x1xf32>
    %1044 = arith.maximumf %1043, %1030 : vector<8x1xf32>
    %1045 = arith.maximumf %1044, %1038 : vector<8x1xf32>
    %1046 = arith.subf %982, %1045 : vector<8x1xf32>
    %1047 = math.exp %1046 : vector<8x1xf32>
    %1048 = arith.subf %990, %1045 : vector<8x1xf32>
    %1049 = math.exp %1048 : vector<8x1xf32>
    %1050 = arith.subf %998, %1045 : vector<8x1xf32>
    %1051 = math.exp %1050 : vector<8x1xf32>
    %1052 = arith.subf %1006, %1045 : vector<8x1xf32>
    %1053 = math.exp %1052 : vector<8x1xf32>
    %1054 = arith.subf %1014, %1045 : vector<8x1xf32>
    %1055 = math.exp %1054 : vector<8x1xf32>
    %1056 = arith.subf %1022, %1045 : vector<8x1xf32>
    %1057 = math.exp %1056 : vector<8x1xf32>
    %1058 = arith.subf %1030, %1045 : vector<8x1xf32>
    %1059 = math.exp %1058 : vector<8x1xf32>
    %1060 = arith.subf %1038, %1045 : vector<8x1xf32>
    %1061 = math.exp %1060 : vector<8x1xf32>
    %1062 = arith.addf %1047, %1049 : vector<8x1xf32>
    %1063 = arith.addf %1062, %1051 : vector<8x1xf32>
    %1064 = arith.addf %1063, %1053 : vector<8x1xf32>
    %1065 = arith.addf %1064, %1055 : vector<8x1xf32>
    %1066 = arith.addf %1065, %1057 : vector<8x1xf32>
    %1067 = arith.addf %1066, %1059 : vector<8x1xf32>
    %1068 = arith.addf %1067, %1061 : vector<8x1xf32>
    %1069 = tpu.reciprocal %1068 {approx = true} : vector<8x1xf32> -> vector<8x1xf32>
    %1070 = vector.extract_strided_slice %358 {offsets = [0, 0], sizes = [8, 128], strides = [1, 1]} : vector<64x128xf32> to vector<8x128xf32>
    %1071 = vector.broadcast %1047 : vector<8x1xf32> to vector<8x128xf32>
    %1072 = arith.mulf %1071, %1070 : vector<8x128xf32>
    %1073 = vector.extract_strided_slice %363 {offsets = [0, 0], sizes = [8, 128], strides = [1, 1]} : vector<64x128xf32> to vector<8x128xf32>
    %1074 = vector.broadcast %1047 : vector<8x1xf32> to vector<8x128xf32>
    %1075 = arith.mulf %1074, %1073 : vector<8x128xf32>
    %1076 = vector.extract_strided_slice %358 {offsets = [8, 0], sizes = [8, 128], strides = [1, 1]} : vector<64x128xf32> to vector<8x128xf32>
    %1077 = vector.broadcast %1049 : vector<8x1xf32> to vector<8x128xf32>
    %1078 = arith.mulf %1077, %1076 : vector<8x128xf32>
    %1079 = arith.addf %1072, %1078 : vector<8x128xf32>
    %1080 = vector.extract_strided_slice %363 {offsets = [8, 0], sizes = [8, 128], strides = [1, 1]} : vector<64x128xf32> to vector<8x128xf32>
    %1081 = vector.broadcast %1049 : vector<8x1xf32> to vector<8x128xf32>
    %1082 = arith.mulf %1081, %1080 : vector<8x128xf32>
    %1083 = arith.addf %1075, %1082 : vector<8x128xf32>
    %1084 = vector.extract_strided_slice %358 {offsets = [16, 0], sizes = [8, 128], strides = [1, 1]} : vector<64x128xf32> to vector<8x128xf32>
    %1085 = vector.broadcast %1051 : vector<8x1xf32> to vector<8x128xf32>
    %1086 = arith.mulf %1085, %1084 : vector<8x128xf32>
    %1087 = arith.addf %1079, %1086 : vector<8x128xf32>
    %1088 = vector.extract_strided_slice %363 {offsets = [16, 0], sizes = [8, 128], strides = [1, 1]} : vector<64x128xf32> to vector<8x128xf32>
    %1089 = vector.broadcast %1051 : vector<8x1xf32> to vector<8x128xf32>
    %1090 = arith.mulf %1089, %1088 : vector<8x128xf32>
    %1091 = arith.addf %1083, %1090 : vector<8x128xf32>
    %1092 = vector.extract_strided_slice %358 {offsets = [24, 0], sizes = [8, 128], strides = [1, 1]} : vector<64x128xf32> to vector<8x128xf32>
    %1093 = vector.broadcast %1053 : vector<8x1xf32> to vector<8x128xf32>
    %1094 = arith.mulf %1093, %1092 : vector<8x128xf32>
    %1095 = arith.addf %1087, %1094 : vector<8x128xf32>
    %1096 = vector.extract_strided_slice %363 {offsets = [24, 0], sizes = [8, 128], strides = [1, 1]} : vector<64x128xf32> to vector<8x128xf32>
    %1097 = vector.broadcast %1053 : vector<8x1xf32> to vector<8x128xf32>
    %1098 = arith.mulf %1097, %1096 : vector<8x128xf32>
    %1099 = arith.addf %1091, %1098 : vector<8x128xf32>
    %1100 = vector.extract_strided_slice %358 {offsets = [32, 0], sizes = [8, 128], strides = [1, 1]} : vector<64x128xf32> to vector<8x128xf32>
    %1101 = vector.broadcast %1055 : vector<8x1xf32> to vector<8x128xf32>
    %1102 = arith.mulf %1101, %1100 : vector<8x128xf32>
    %1103 = arith.addf %1095, %1102 : vector<8x128xf32>
    %1104 = vector.extract_strided_slice %363 {offsets = [32, 0], sizes = [8, 128], strides = [1, 1]} : vector<64x128xf32> to vector<8x128xf32>
    %1105 = vector.broadcast %1055 : vector<8x1xf32> to vector<8x128xf32>
    %1106 = arith.mulf %1105, %1104 : vector<8x128xf32>
    %1107 = arith.addf %1099, %1106 : vector<8x128xf32>
    %1108 = vector.extract_strided_slice %358 {offsets = [40, 0], sizes = [8, 128], strides = [1, 1]} : vector<64x128xf32> to vector<8x128xf32>
    %1109 = vector.broadcast %1057 : vector<8x1xf32> to vector<8x128xf32>
    %1110 = arith.mulf %1109, %1108 : vector<8x128xf32>
    %1111 = arith.addf %1103, %1110 : vector<8x128xf32>
    %1112 = vector.extract_strided_slice %363 {offsets = [40, 0], sizes = [8, 128], strides = [1, 1]} : vector<64x128xf32> to vector<8x128xf32>
    %1113 = vector.broadcast %1057 : vector<8x1xf32> to vector<8x128xf32>
    %1114 = arith.mulf %1113, %1112 : vector<8x128xf32>
    %1115 = arith.addf %1107, %1114 : vector<8x128xf32>
    %1116 = vector.extract_strided_slice %358 {offsets = [48, 0], sizes = [8, 128], strides = [1, 1]} : vector<64x128xf32> to vector<8x128xf32>
    %1117 = vector.broadcast %1059 : vector<8x1xf32> to vector<8x128xf32>
    %1118 = arith.mulf %1117, %1116 : vector<8x128xf32>
    %1119 = arith.addf %1111, %1118 : vector<8x128xf32>
    %1120 = vector.extract_strided_slice %363 {offsets = [48, 0], sizes = [8, 128], strides = [1, 1]} : vector<64x128xf32> to vector<8x128xf32>
    %1121 = vector.broadcast %1059 : vector<8x1xf32> to vector<8x128xf32>
    %1122 = arith.mulf %1121, %1120 : vector<8x128xf32>
    %1123 = arith.addf %1115, %1122 : vector<8x128xf32>
    %1124 = vector.extract_strided_slice %358 {offsets = [56, 0], sizes = [8, 128], strides = [1, 1]} : vector<64x128xf32> to vector<8x128xf32>
    %1125 = vector.broadcast %1061 : vector<8x1xf32> to vector<8x128xf32>
    %1126 = arith.mulf %1125, %1124 : vector<8x128xf32>
    %1127 = arith.addf %1119, %1126 : vector<8x128xf32>
    %1128 = vector.extract_strided_slice %363 {offsets = [56, 0], sizes = [8, 128], strides = [1, 1]} : vector<64x128xf32> to vector<8x128xf32>
    %1129 = vector.broadcast %1061 : vector<8x1xf32> to vector<8x128xf32>
    %1130 = arith.mulf %1129, %1128 : vector<8x128xf32>
    %1131 = arith.addf %1123, %1130 : vector<8x128xf32>
    %1132 = vector.extract_strided_slice %369 {offsets = [24, 0], sizes = [8, 128], strides = [1, 1]} : vector<64x128xf32> to vector<8x128xf32>
    %1133 = vector.broadcast %1069 : vector<8x1xf32> to vector<8x128xf32>
    %1134 = arith.mulf %1127, %1133 : vector<8x128xf32>
    %1135 = arith.addf %1132, %1134 : vector<8x128xf32>
    %cst_152 = arith.constant dense<0.000000e+00> : vector<8x128xf32>
    %1136 = tpu.matmul %962, %378, %cst_152 {dimension_numbers = #tpu.dot_dimension_numbers<[1], [0], [0], [1], [0, 0, 1, 1], [], []>} : vector<8x32xf32>, vector<32x128xf32>, vector<8x128xf32> -> vector<8x128xf32>
    %1137 = arith.addf %1135, %1136 : vector<8x128xf32>
    %1138 = math.tanh %1137 : vector<8x128xf32>
    %1139 = arith.negf %1137 : vector<8x128xf32>
    %1140 = math.exp %1139 : vector<8x128xf32>
    %cst_153 = arith.constant 1.000000e+00 : f32
    %1141 = vector.broadcast %cst_153 : f32 to vector<8x128xf32>
    %1142 = arith.addf %1141, %1140 : vector<8x128xf32>
    %1143 = arith.divf %1141, %1142 : vector<8x128xf32>
    %1144 = arith.select %385, %1138, %1143 : vector<8x128xi1>, vector<8x128xf32>
    %1145 = vector.extract_strided_slice %1144 {offsets = [0, 0], sizes = [8, 32], strides = [1, 1]} : vector<8x128xf32> to vector<8x32xf32>
    %1146 = vector.extract_strided_slice %1144 {offsets = [0, 32], sizes = [8, 32], strides = [1, 1]} : vector<8x128xf32> to vector<8x32xf32>
    %1147 = vector.extract_strided_slice %1144 {offsets = [0, 64], sizes = [8, 32], strides = [1, 1]} : vector<8x128xf32> to vector<8x32xf32>
    %1148 = vector.extract_strided_slice %1144 {offsets = [0, 96], sizes = [8, 32], strides = [1, 1]} : vector<8x128xf32> to vector<8x32xf32>
    %1149 = arith.mulf %1146, %960 : vector<8x32xf32>
    %1150 = arith.mulf %1145, %1147 : vector<8x32xf32>
    %1151 = arith.addf %1149, %1150 : vector<8x32xf32>
    %1152 = math.tanh %1151 : vector<8x32xf32>
    %1153 = arith.mulf %1148, %1152 : vector<8x32xf32>
    %1154 = vector.extract_strided_slice %374 {offsets = [24, 0], sizes = [8, 128], strides = [1, 1]} : vector<64x128xf32> to vector<8x128xf32>
    %1155 = vector.broadcast %1069 : vector<8x1xf32> to vector<8x128xf32>
    %1156 = arith.mulf %1131, %1155 : vector<8x128xf32>
    %1157 = arith.addf %1154, %1156 : vector<8x128xf32>
    %cst_154 = arith.constant dense<0.000000e+00> : vector<8x128xf32>
    %1158 = tpu.matmul %1153, %379, %cst_154 {dimension_numbers = #tpu.dot_dimension_numbers<[1], [0], [0], [1], [0, 0, 1, 1], [], []>} : vector<8x32xf32>, vector<32x128xf32>, vector<8x128xf32> -> vector<8x128xf32>
    %1159 = arith.addf %1157, %1158 : vector<8x128xf32>
    %c4 = arith.constant 4 : index
    %c0_155 = arith.constant 0 : index
    %c0_156 = arith.constant 0 : index
    %1160 = vector.load %arg25[%c4, %c0_155, %c0_156] : memref<8x8x128xf32, #tpu.memory_space<vmem>>, vector<1x8x128xf32>
    %1161 = vector.shape_cast %1160 : vector<1x8x128xf32> to vector<8x128xf32>
    %1162 = vector.shape_cast %1159 : vector<8x128xf32> to vector<1x8x128xf32>
    tpu.vector_store %arg25[%c4, %c0_155, %c0_156], %1162 {strides = array<i32>} : memref<8x8x128xf32, #tpu.memory_space<vmem>>, vector<1x8x128xf32>,
    %cst_157 = arith.constant dense<0.000000e+00> : vector<8x32xf32>
    %1163 = tpu.matmul %1153, %375, %cst_157 {dimension_numbers = #tpu.dot_dimension_numbers<[1], [0], [0], [1], [0, 0, 1, 1], [], []>} : vector<8x32xf32>, vector<32x32xf32>, vector<8x32xf32> -> vector<8x32xf32>
    %1164 = vector.broadcast %376 : vector<1x32xf32> to vector<8x32xf32>
    %1165 = arith.addf %1163, %1164 : vector<8x32xf32>
    %1166 = vector.extract_strided_slice %353 {offsets = [0, 0], sizes = [8, 32], strides = [1, 1]} : vector<64x32xf32> to vector<8x32xf32>
    %1167 = arith.addf %1166, %1165 : vector<8x32xf32>
    %1168 = math.tanh %1167 : vector<8x32xf32>
    %1169 = vector.broadcast %377 : vector<1x32xf32> to vector<8x32xf32>
    %1170 = arith.mulf %1168, %1169 : vector<8x32xf32>
    %cst_158 = arith.constant dense<0.000000e+00> : vector<8xf32>
    %1171 = vector.multi_reduction <add>, %1170, %cst_158 [1] : vector<8x32xf32> to vector<8xf32>
    %1172 = vector.shape_cast %1171 : vector<8xf32> to vector<8x1xf32>
    %1173 = arith.addf %1172, %387 : vector<8x1xf32>
    %1174 = vector.extract_strided_slice %353 {offsets = [8, 0], sizes = [8, 32], strides = [1, 1]} : vector<64x32xf32> to vector<8x32xf32>
    %1175 = arith.addf %1174, %1165 : vector<8x32xf32>
    %1176 = math.tanh %1175 : vector<8x32xf32>
    %1177 = vector.broadcast %377 : vector<1x32xf32> to vector<8x32xf32>
    %1178 = arith.mulf %1176, %1177 : vector<8x32xf32>
    %cst_159 = arith.constant dense<0.000000e+00> : vector<8xf32>
    %1179 = vector.multi_reduction <add>, %1178, %cst_159 [1] : vector<8x32xf32> to vector<8xf32>
    %1180 = vector.shape_cast %1179 : vector<8xf32> to vector<8x1xf32>
    %1181 = arith.addf %1180, %388 : vector<8x1xf32>
    %1182 = vector.extract_strided_slice %353 {offsets = [16, 0], sizes = [8, 32], strides = [1, 1]} : vector<64x32xf32> to vector<8x32xf32>
    %1183 = arith.addf %1182, %1165 : vector<8x32xf32>
    %1184 = math.tanh %1183 : vector<8x32xf32>
    %1185 = vector.broadcast %377 : vector<1x32xf32> to vector<8x32xf32>
    %1186 = arith.mulf %1184, %1185 : vector<8x32xf32>
    %cst_160 = arith.constant dense<0.000000e+00> : vector<8xf32>
    %1187 = vector.multi_reduction <add>, %1186, %cst_160 [1] : vector<8x32xf32> to vector<8xf32>
    %1188 = vector.shape_cast %1187 : vector<8xf32> to vector<8x1xf32>
    %1189 = arith.addf %1188, %389 : vector<8x1xf32>
    %1190 = vector.extract_strided_slice %353 {offsets = [24, 0], sizes = [8, 32], strides = [1, 1]} : vector<64x32xf32> to vector<8x32xf32>
    %1191 = arith.addf %1190, %1165 : vector<8x32xf32>
    %1192 = math.tanh %1191 : vector<8x32xf32>
    %1193 = vector.broadcast %377 : vector<1x32xf32> to vector<8x32xf32>
    %1194 = arith.mulf %1192, %1193 : vector<8x32xf32>
    %cst_161 = arith.constant dense<0.000000e+00> : vector<8xf32>
    %1195 = vector.multi_reduction <add>, %1194, %cst_161 [1] : vector<8x32xf32> to vector<8xf32>
    %1196 = vector.shape_cast %1195 : vector<8xf32> to vector<8x1xf32>
    %1197 = arith.addf %1196, %390 : vector<8x1xf32>
    %1198 = vector.extract_strided_slice %353 {offsets = [32, 0], sizes = [8, 32], strides = [1, 1]} : vector<64x32xf32> to vector<8x32xf32>
    %1199 = arith.addf %1198, %1165 : vector<8x32xf32>
    %1200 = math.tanh %1199 : vector<8x32xf32>
    %1201 = vector.broadcast %377 : vector<1x32xf32> to vector<8x32xf32>
    %1202 = arith.mulf %1200, %1201 : vector<8x32xf32>
    %cst_162 = arith.constant dense<0.000000e+00> : vector<8xf32>
    %1203 = vector.multi_reduction <add>, %1202, %cst_162 [1] : vector<8x32xf32> to vector<8xf32>
    %1204 = vector.shape_cast %1203 : vector<8xf32> to vector<8x1xf32>
    %1205 = arith.addf %1204, %391 : vector<8x1xf32>
    %1206 = vector.extract_strided_slice %353 {offsets = [40, 0], sizes = [8, 32], strides = [1, 1]} : vector<64x32xf32> to vector<8x32xf32>
    %1207 = arith.addf %1206, %1165 : vector<8x32xf32>
    %1208 = math.tanh %1207 : vector<8x32xf32>
    %1209 = vector.broadcast %377 : vector<1x32xf32> to vector<8x32xf32>
    %1210 = arith.mulf %1208, %1209 : vector<8x32xf32>
    %cst_163 = arith.constant dense<0.000000e+00> : vector<8xf32>
    %1211 = vector.multi_reduction <add>, %1210, %cst_163 [1] : vector<8x32xf32> to vector<8xf32>
    %1212 = vector.shape_cast %1211 : vector<8xf32> to vector<8x1xf32>
    %1213 = arith.addf %1212, %392 : vector<8x1xf32>
    %1214 = vector.extract_strided_slice %353 {offsets = [48, 0], sizes = [8, 32], strides = [1, 1]} : vector<64x32xf32> to vector<8x32xf32>
    %1215 = arith.addf %1214, %1165 : vector<8x32xf32>
    %1216 = math.tanh %1215 : vector<8x32xf32>
    %1217 = vector.broadcast %377 : vector<1x32xf32> to vector<8x32xf32>
    %1218 = arith.mulf %1216, %1217 : vector<8x32xf32>
    %cst_164 = arith.constant dense<0.000000e+00> : vector<8xf32>
    %1219 = vector.multi_reduction <add>, %1218, %cst_164 [1] : vector<8x32xf32> to vector<8xf32>
    %1220 = vector.shape_cast %1219 : vector<8xf32> to vector<8x1xf32>
    %1221 = arith.addf %1220, %393 : vector<8x1xf32>
    %1222 = vector.extract_strided_slice %353 {offsets = [56, 0], sizes = [8, 32], strides = [1, 1]} : vector<64x32xf32> to vector<8x32xf32>
    %1223 = arith.addf %1222, %1165 : vector<8x32xf32>
    %1224 = math.tanh %1223 : vector<8x32xf32>
    %1225 = vector.broadcast %377 : vector<1x32xf32> to vector<8x32xf32>
    %1226 = arith.mulf %1224, %1225 : vector<8x32xf32>
    %cst_165 = arith.constant dense<0.000000e+00> : vector<8xf32>
    %1227 = vector.multi_reduction <add>, %1226, %cst_165 [1] : vector<8x32xf32> to vector<8xf32>
    %1228 = vector.shape_cast %1227 : vector<8xf32> to vector<8x1xf32>
    %1229 = arith.addf %1228, %394 : vector<8x1xf32>
    %1230 = arith.maximumf %1173, %1181 : vector<8x1xf32>
    %1231 = arith.maximumf %1230, %1189 : vector<8x1xf32>
    %1232 = arith.maximumf %1231, %1197 : vector<8x1xf32>
    %1233 = arith.maximumf %1232, %1205 : vector<8x1xf32>
    %1234 = arith.maximumf %1233, %1213 : vector<8x1xf32>
    %1235 = arith.maximumf %1234, %1221 : vector<8x1xf32>
    %1236 = arith.maximumf %1235, %1229 : vector<8x1xf32>
    %1237 = arith.subf %1173, %1236 : vector<8x1xf32>
    %1238 = math.exp %1237 : vector<8x1xf32>
    %1239 = arith.subf %1181, %1236 : vector<8x1xf32>
    %1240 = math.exp %1239 : vector<8x1xf32>
    %1241 = arith.subf %1189, %1236 : vector<8x1xf32>
    %1242 = math.exp %1241 : vector<8x1xf32>
    %1243 = arith.subf %1197, %1236 : vector<8x1xf32>
    %1244 = math.exp %1243 : vector<8x1xf32>
    %1245 = arith.subf %1205, %1236 : vector<8x1xf32>
    %1246 = math.exp %1245 : vector<8x1xf32>
    %1247 = arith.subf %1213, %1236 : vector<8x1xf32>
    %1248 = math.exp %1247 : vector<8x1xf32>
    %1249 = arith.subf %1221, %1236 : vector<8x1xf32>
    %1250 = math.exp %1249 : vector<8x1xf32>
    %1251 = arith.subf %1229, %1236 : vector<8x1xf32>
    %1252 = math.exp %1251 : vector<8x1xf32>
    %1253 = arith.addf %1238, %1240 : vector<8x1xf32>
    %1254 = arith.addf %1253, %1242 : vector<8x1xf32>
    %1255 = arith.addf %1254, %1244 : vector<8x1xf32>
    %1256 = arith.addf %1255, %1246 : vector<8x1xf32>
    %1257 = arith.addf %1256, %1248 : vector<8x1xf32>
    %1258 = arith.addf %1257, %1250 : vector<8x1xf32>
    %1259 = arith.addf %1258, %1252 : vector<8x1xf32>
    %1260 = tpu.reciprocal %1259 {approx = true} : vector<8x1xf32> -> vector<8x1xf32>
    %1261 = vector.extract_strided_slice %358 {offsets = [0, 0], sizes = [8, 128], strides = [1, 1]} : vector<64x128xf32> to vector<8x128xf32>
    %1262 = vector.broadcast %1238 : vector<8x1xf32> to vector<8x128xf32>
    %1263 = arith.mulf %1262, %1261 : vector<8x128xf32>
    %1264 = vector.extract_strided_slice %363 {offsets = [0, 0], sizes = [8, 128], strides = [1, 1]} : vector<64x128xf32> to vector<8x128xf32>
    %1265 = vector.broadcast %1238 : vector<8x1xf32> to vector<8x128xf32>
    %1266 = arith.mulf %1265, %1264 : vector<8x128xf32>
    %1267 = vector.extract_strided_slice %358 {offsets = [8, 0], sizes = [8, 128], strides = [1, 1]} : vector<64x128xf32> to vector<8x128xf32>
    %1268 = vector.broadcast %1240 : vector<8x1xf32> to vector<8x128xf32>
    %1269 = arith.mulf %1268, %1267 : vector<8x128xf32>
    %1270 = arith.addf %1263, %1269 : vector<8x128xf32>
    %1271 = vector.extract_strided_slice %363 {offsets = [8, 0], sizes = [8, 128], strides = [1, 1]} : vector<64x128xf32> to vector<8x128xf32>
    %1272 = vector.broadcast %1240 : vector<8x1xf32> to vector<8x128xf32>
    %1273 = arith.mulf %1272, %1271 : vector<8x128xf32>
    %1274 = arith.addf %1266, %1273 : vector<8x128xf32>
    %1275 = vector.extract_strided_slice %358 {offsets = [16, 0], sizes = [8, 128], strides = [1, 1]} : vector<64x128xf32> to vector<8x128xf32>
    %1276 = vector.broadcast %1242 : vector<8x1xf32> to vector<8x128xf32>
    %1277 = arith.mulf %1276, %1275 : vector<8x128xf32>
    %1278 = arith.addf %1270, %1277 : vector<8x128xf32>
    %1279 = vector.extract_strided_slice %363 {offsets = [16, 0], sizes = [8, 128], strides = [1, 1]} : vector<64x128xf32> to vector<8x128xf32>
    %1280 = vector.broadcast %1242 : vector<8x1xf32> to vector<8x128xf32>
    %1281 = arith.mulf %1280, %1279 : vector<8x128xf32>
    %1282 = arith.addf %1274, %1281 : vector<8x128xf32>
    %1283 = vector.extract_strided_slice %358 {offsets = [24, 0], sizes = [8, 128], strides = [1, 1]} : vector<64x128xf32> to vector<8x128xf32>
    %1284 = vector.broadcast %1244 : vector<8x1xf32> to vector<8x128xf32>
    %1285 = arith.mulf %1284, %1283 : vector<8x128xf32>
    %1286 = arith.addf %1278, %1285 : vector<8x128xf32>
    %1287 = vector.extract_strided_slice %363 {offsets = [24, 0], sizes = [8, 128], strides = [1, 1]} : vector<64x128xf32> to vector<8x128xf32>
    %1288 = vector.broadcast %1244 : vector<8x1xf32> to vector<8x128xf32>
    %1289 = arith.mulf %1288, %1287 : vector<8x128xf32>
    %1290 = arith.addf %1282, %1289 : vector<8x128xf32>
    %1291 = vector.extract_strided_slice %358 {offsets = [32, 0], sizes = [8, 128], strides = [1, 1]} : vector<64x128xf32> to vector<8x128xf32>
    %1292 = vector.broadcast %1246 : vector<8x1xf32> to vector<8x128xf32>
    %1293 = arith.mulf %1292, %1291 : vector<8x128xf32>
    %1294 = arith.addf %1286, %1293 : vector<8x128xf32>
    %1295 = vector.extract_strided_slice %363 {offsets = [32, 0], sizes = [8, 128], strides = [1, 1]} : vector<64x128xf32> to vector<8x128xf32>
    %1296 = vector.broadcast %1246 : vector<8x1xf32> to vector<8x128xf32>
    %1297 = arith.mulf %1296, %1295 : vector<8x128xf32>
    %1298 = arith.addf %1290, %1297 : vector<8x128xf32>
    %1299 = vector.extract_strided_slice %358 {offsets = [40, 0], sizes = [8, 128], strides = [1, 1]} : vector<64x128xf32> to vector<8x128xf32>
    %1300 = vector.broadcast %1248 : vector<8x1xf32> to vector<8x128xf32>
    %1301 = arith.mulf %1300, %1299 : vector<8x128xf32>
    %1302 = arith.addf %1294, %1301 : vector<8x128xf32>
    %1303 = vector.extract_strided_slice %363 {offsets = [40, 0], sizes = [8, 128], strides = [1, 1]} : vector<64x128xf32> to vector<8x128xf32>
    %1304 = vector.broadcast %1248 : vector<8x1xf32> to vector<8x128xf32>
    %1305 = arith.mulf %1304, %1303 : vector<8x128xf32>
    %1306 = arith.addf %1298, %1305 : vector<8x128xf32>
    %1307 = vector.extract_strided_slice %358 {offsets = [48, 0], sizes = [8, 128], strides = [1, 1]} : vector<64x128xf32> to vector<8x128xf32>
    %1308 = vector.broadcast %1250 : vector<8x1xf32> to vector<8x128xf32>
    %1309 = arith.mulf %1308, %1307 : vector<8x128xf32>
    %1310 = arith.addf %1302, %1309 : vector<8x128xf32>
    %1311 = vector.extract_strided_slice %363 {offsets = [48, 0], sizes = [8, 128], strides = [1, 1]} : vector<64x128xf32> to vector<8x128xf32>
    %1312 = vector.broadcast %1250 : vector<8x1xf32> to vector<8x128xf32>
    %1313 = arith.mulf %1312, %1311 : vector<8x128xf32>
    %1314 = arith.addf %1306, %1313 : vector<8x128xf32>
    %1315 = vector.extract_strided_slice %358 {offsets = [56, 0], sizes = [8, 128], strides = [1, 1]} : vector<64x128xf32> to vector<8x128xf32>
    %1316 = vector.broadcast %1252 : vector<8x1xf32> to vector<8x128xf32>
    %1317 = arith.mulf %1316, %1315 : vector<8x128xf32>
    %1318 = arith.addf %1310, %1317 : vector<8x128xf32>
    %1319 = vector.extract_strided_slice %363 {offsets = [56, 0], sizes = [8, 128], strides = [1, 1]} : vector<64x128xf32> to vector<8x128xf32>
    %1320 = vector.broadcast %1252 : vector<8x1xf32> to vector<8x128xf32>
    %1321 = arith.mulf %1320, %1319 : vector<8x128xf32>
    %1322 = arith.addf %1314, %1321 : vector<8x128xf32>
    %1323 = vector.extract_strided_slice %369 {offsets = [32, 0], sizes = [8, 128], strides = [1, 1]} : vector<64x128xf32> to vector<8x128xf32>
    %1324 = vector.broadcast %1260 : vector<8x1xf32> to vector<8x128xf32>
    %1325 = arith.mulf %1318, %1324 : vector<8x128xf32>
    %1326 = arith.addf %1323, %1325 : vector<8x128xf32>
    %cst_166 = arith.constant dense<0.000000e+00> : vector<8x128xf32>
    %1327 = tpu.matmul %1153, %378, %cst_166 {dimension_numbers = #tpu.dot_dimension_numbers<[1], [0], [0], [1], [0, 0, 1, 1], [], []>} : vector<8x32xf32>, vector<32x128xf32>, vector<8x128xf32> -> vector<8x128xf32>
    %1328 = arith.addf %1326, %1327 : vector<8x128xf32>
    %1329 = math.tanh %1328 : vector<8x128xf32>
    %1330 = arith.negf %1328 : vector<8x128xf32>
    %1331 = math.exp %1330 : vector<8x128xf32>
    %cst_167 = arith.constant 1.000000e+00 : f32
    %1332 = vector.broadcast %cst_167 : f32 to vector<8x128xf32>
    %1333 = arith.addf %1332, %1331 : vector<8x128xf32>
    %1334 = arith.divf %1332, %1333 : vector<8x128xf32>
    %1335 = arith.select %385, %1329, %1334 : vector<8x128xi1>, vector<8x128xf32>
    %1336 = vector.extract_strided_slice %1335 {offsets = [0, 0], sizes = [8, 32], strides = [1, 1]} : vector<8x128xf32> to vector<8x32xf32>
    %1337 = vector.extract_strided_slice %1335 {offsets = [0, 32], sizes = [8, 32], strides = [1, 1]} : vector<8x128xf32> to vector<8x32xf32>
    %1338 = vector.extract_strided_slice %1335 {offsets = [0, 64], sizes = [8, 32], strides = [1, 1]} : vector<8x128xf32> to vector<8x32xf32>
    %1339 = vector.extract_strided_slice %1335 {offsets = [0, 96], sizes = [8, 32], strides = [1, 1]} : vector<8x128xf32> to vector<8x32xf32>
    %1340 = arith.mulf %1337, %1151 : vector<8x32xf32>
    %1341 = arith.mulf %1336, %1338 : vector<8x32xf32>
    %1342 = arith.addf %1340, %1341 : vector<8x32xf32>
    %1343 = math.tanh %1342 : vector<8x32xf32>
    %1344 = arith.mulf %1339, %1343 : vector<8x32xf32>
    %1345 = vector.extract_strided_slice %374 {offsets = [32, 0], sizes = [8, 128], strides = [1, 1]} : vector<64x128xf32> to vector<8x128xf32>
    %1346 = vector.broadcast %1260 : vector<8x1xf32> to vector<8x128xf32>
    %1347 = arith.mulf %1322, %1346 : vector<8x128xf32>
    %1348 = arith.addf %1345, %1347 : vector<8x128xf32>
    %cst_168 = arith.constant dense<0.000000e+00> : vector<8x128xf32>
    %1349 = tpu.matmul %1344, %379, %cst_168 {dimension_numbers = #tpu.dot_dimension_numbers<[1], [0], [0], [1], [0, 0, 1, 1], [], []>} : vector<8x32xf32>, vector<32x128xf32>, vector<8x128xf32> -> vector<8x128xf32>
    %1350 = arith.addf %1348, %1349 : vector<8x128xf32>
    %c5 = arith.constant 5 : index
    %c0_169 = arith.constant 0 : index
    %c0_170 = arith.constant 0 : index
    %1351 = vector.load %arg25[%c5, %c0_169, %c0_170] : memref<8x8x128xf32, #tpu.memory_space<vmem>>, vector<1x8x128xf32>
    %1352 = vector.shape_cast %1351 : vector<1x8x128xf32> to vector<8x128xf32>
    %1353 = vector.shape_cast %1350 : vector<8x128xf32> to vector<1x8x128xf32>
    tpu.vector_store %arg25[%c5, %c0_169, %c0_170], %1353 {strides = array<i32>} : memref<8x8x128xf32, #tpu.memory_space<vmem>>, vector<1x8x128xf32>,
    %cst_171 = arith.constant dense<0.000000e+00> : vector<8x32xf32>
    %1354 = tpu.matmul %1344, %375, %cst_171 {dimension_numbers = #tpu.dot_dimension_numbers<[1], [0], [0], [1], [0, 0, 1, 1], [], []>} : vector<8x32xf32>, vector<32x32xf32>, vector<8x32xf32> -> vector<8x32xf32>
    %1355 = vector.broadcast %376 : vector<1x32xf32> to vector<8x32xf32>
    %1356 = arith.addf %1354, %1355 : vector<8x32xf32>
    %1357 = vector.extract_strided_slice %353 {offsets = [0, 0], sizes = [8, 32], strides = [1, 1]} : vector<64x32xf32> to vector<8x32xf32>
    %1358 = arith.addf %1357, %1356 : vector<8x32xf32>
    %1359 = math.tanh %1358 : vector<8x32xf32>
    %1360 = vector.broadcast %377 : vector<1x32xf32> to vector<8x32xf32>
    %1361 = arith.mulf %1359, %1360 : vector<8x32xf32>
    %cst_172 = arith.constant dense<0.000000e+00> : vector<8xf32>
    %1362 = vector.multi_reduction <add>, %1361, %cst_172 [1] : vector<8x32xf32> to vector<8xf32>
    %1363 = vector.shape_cast %1362 : vector<8xf32> to vector<8x1xf32>
    %1364 = arith.addf %1363, %387 : vector<8x1xf32>
    %1365 = vector.extract_strided_slice %353 {offsets = [8, 0], sizes = [8, 32], strides = [1, 1]} : vector<64x32xf32> to vector<8x32xf32>
    %1366 = arith.addf %1365, %1356 : vector<8x32xf32>
    %1367 = math.tanh %1366 : vector<8x32xf32>
    %1368 = vector.broadcast %377 : vector<1x32xf32> to vector<8x32xf32>
    %1369 = arith.mulf %1367, %1368 : vector<8x32xf32>
    %cst_173 = arith.constant dense<0.000000e+00> : vector<8xf32>
    %1370 = vector.multi_reduction <add>, %1369, %cst_173 [1] : vector<8x32xf32> to vector<8xf32>
    %1371 = vector.shape_cast %1370 : vector<8xf32> to vector<8x1xf32>
    %1372 = arith.addf %1371, %388 : vector<8x1xf32>
    %1373 = vector.extract_strided_slice %353 {offsets = [16, 0], sizes = [8, 32], strides = [1, 1]} : vector<64x32xf32> to vector<8x32xf32>
    %1374 = arith.addf %1373, %1356 : vector<8x32xf32>
    %1375 = math.tanh %1374 : vector<8x32xf32>
    %1376 = vector.broadcast %377 : vector<1x32xf32> to vector<8x32xf32>
    %1377 = arith.mulf %1375, %1376 : vector<8x32xf32>
    %cst_174 = arith.constant dense<0.000000e+00> : vector<8xf32>
    %1378 = vector.multi_reduction <add>, %1377, %cst_174 [1] : vector<8x32xf32> to vector<8xf32>
    %1379 = vector.shape_cast %1378 : vector<8xf32> to vector<8x1xf32>
    %1380 = arith.addf %1379, %389 : vector<8x1xf32>
    %1381 = vector.extract_strided_slice %353 {offsets = [24, 0], sizes = [8, 32], strides = [1, 1]} : vector<64x32xf32> to vector<8x32xf32>
    %1382 = arith.addf %1381, %1356 : vector<8x32xf32>
    %1383 = math.tanh %1382 : vector<8x32xf32>
    %1384 = vector.broadcast %377 : vector<1x32xf32> to vector<8x32xf32>
    %1385 = arith.mulf %1383, %1384 : vector<8x32xf32>
    %cst_175 = arith.constant dense<0.000000e+00> : vector<8xf32>
    %1386 = vector.multi_reduction <add>, %1385, %cst_175 [1] : vector<8x32xf32> to vector<8xf32>
    %1387 = vector.shape_cast %1386 : vector<8xf32> to vector<8x1xf32>
    %1388 = arith.addf %1387, %390 : vector<8x1xf32>
    %1389 = vector.extract_strided_slice %353 {offsets = [32, 0], sizes = [8, 32], strides = [1, 1]} : vector<64x32xf32> to vector<8x32xf32>
    %1390 = arith.addf %1389, %1356 : vector<8x32xf32>
    %1391 = math.tanh %1390 : vector<8x32xf32>
    %1392 = vector.broadcast %377 : vector<1x32xf32> to vector<8x32xf32>
    %1393 = arith.mulf %1391, %1392 : vector<8x32xf32>
    %cst_176 = arith.constant dense<0.000000e+00> : vector<8xf32>
    %1394 = vector.multi_reduction <add>, %1393, %cst_176 [1] : vector<8x32xf32> to vector<8xf32>
    %1395 = vector.shape_cast %1394 : vector<8xf32> to vector<8x1xf32>
    %1396 = arith.addf %1395, %391 : vector<8x1xf32>
    %1397 = vector.extract_strided_slice %353 {offsets = [40, 0], sizes = [8, 32], strides = [1, 1]} : vector<64x32xf32> to vector<8x32xf32>
    %1398 = arith.addf %1397, %1356 : vector<8x32xf32>
    %1399 = math.tanh %1398 : vector<8x32xf32>
    %1400 = vector.broadcast %377 : vector<1x32xf32> to vector<8x32xf32>
    %1401 = arith.mulf %1399, %1400 : vector<8x32xf32>
    %cst_177 = arith.constant dense<0.000000e+00> : vector<8xf32>
    %1402 = vector.multi_reduction <add>, %1401, %cst_177 [1] : vector<8x32xf32> to vector<8xf32>
    %1403 = vector.shape_cast %1402 : vector<8xf32> to vector<8x1xf32>
    %1404 = arith.addf %1403, %392 : vector<8x1xf32>
    %1405 = vector.extract_strided_slice %353 {offsets = [48, 0], sizes = [8, 32], strides = [1, 1]} : vector<64x32xf32> to vector<8x32xf32>
    %1406 = arith.addf %1405, %1356 : vector<8x32xf32>
    %1407 = math.tanh %1406 : vector<8x32xf32>
    %1408 = vector.broadcast %377 : vector<1x32xf32> to vector<8x32xf32>
    %1409 = arith.mulf %1407, %1408 : vector<8x32xf32>
    %cst_178 = arith.constant dense<0.000000e+00> : vector<8xf32>
    %1410 = vector.multi_reduction <add>, %1409, %cst_178 [1] : vector<8x32xf32> to vector<8xf32>
    %1411 = vector.shape_cast %1410 : vector<8xf32> to vector<8x1xf32>
    %1412 = arith.addf %1411, %393 : vector<8x1xf32>
    %1413 = vector.extract_strided_slice %353 {offsets = [56, 0], sizes = [8, 32], strides = [1, 1]} : vector<64x32xf32> to vector<8x32xf32>
    %1414 = arith.addf %1413, %1356 : vector<8x32xf32>
    %1415 = math.tanh %1414 : vector<8x32xf32>
    %1416 = vector.broadcast %377 : vector<1x32xf32> to vector<8x32xf32>
    %1417 = arith.mulf %1415, %1416 : vector<8x32xf32>
    %cst_179 = arith.constant dense<0.000000e+00> : vector<8xf32>
    %1418 = vector.multi_reduction <add>, %1417, %cst_179 [1] : vector<8x32xf32> to vector<8xf32>
    %1419 = vector.shape_cast %1418 : vector<8xf32> to vector<8x1xf32>
    %1420 = arith.addf %1419, %394 : vector<8x1xf32>
    %1421 = arith.maximumf %1364, %1372 : vector<8x1xf32>
    %1422 = arith.maximumf %1421, %1380 : vector<8x1xf32>
    %1423 = arith.maximumf %1422, %1388 : vector<8x1xf32>
    %1424 = arith.maximumf %1423, %1396 : vector<8x1xf32>
    %1425 = arith.maximumf %1424, %1404 : vector<8x1xf32>
    %1426 = arith.maximumf %1425, %1412 : vector<8x1xf32>
    %1427 = arith.maximumf %1426, %1420 : vector<8x1xf32>
    %1428 = arith.subf %1364, %1427 : vector<8x1xf32>
    %1429 = math.exp %1428 : vector<8x1xf32>
    %1430 = arith.subf %1372, %1427 : vector<8x1xf32>
    %1431 = math.exp %1430 : vector<8x1xf32>
    %1432 = arith.subf %1380, %1427 : vector<8x1xf32>
    %1433 = math.exp %1432 : vector<8x1xf32>
    %1434 = arith.subf %1388, %1427 : vector<8x1xf32>
    %1435 = math.exp %1434 : vector<8x1xf32>
    %1436 = arith.subf %1396, %1427 : vector<8x1xf32>
    %1437 = math.exp %1436 : vector<8x1xf32>
    %1438 = arith.subf %1404, %1427 : vector<8x1xf32>
    %1439 = math.exp %1438 : vector<8x1xf32>
    %1440 = arith.subf %1412, %1427 : vector<8x1xf32>
    %1441 = math.exp %1440 : vector<8x1xf32>
    %1442 = arith.subf %1420, %1427 : vector<8x1xf32>
    %1443 = math.exp %1442 : vector<8x1xf32>
    %1444 = arith.addf %1429, %1431 : vector<8x1xf32>
    %1445 = arith.addf %1444, %1433 : vector<8x1xf32>
    %1446 = arith.addf %1445, %1435 : vector<8x1xf32>
    %1447 = arith.addf %1446, %1437 : vector<8x1xf32>
    %1448 = arith.addf %1447, %1439 : vector<8x1xf32>
    %1449 = arith.addf %1448, %1441 : vector<8x1xf32>
    %1450 = arith.addf %1449, %1443 : vector<8x1xf32>
    %1451 = tpu.reciprocal %1450 {approx = true} : vector<8x1xf32> -> vector<8x1xf32>
    %1452 = vector.extract_strided_slice %358 {offsets = [0, 0], sizes = [8, 128], strides = [1, 1]} : vector<64x128xf32> to vector<8x128xf32>
    %1453 = vector.broadcast %1429 : vector<8x1xf32> to vector<8x128xf32>
    %1454 = arith.mulf %1453, %1452 : vector<8x128xf32>
    %1455 = vector.extract_strided_slice %363 {offsets = [0, 0], sizes = [8, 128], strides = [1, 1]} : vector<64x128xf32> to vector<8x128xf32>
    %1456 = vector.broadcast %1429 : vector<8x1xf32> to vector<8x128xf32>
    %1457 = arith.mulf %1456, %1455 : vector<8x128xf32>
    %1458 = vector.extract_strided_slice %358 {offsets = [8, 0], sizes = [8, 128], strides = [1, 1]} : vector<64x128xf32> to vector<8x128xf32>
    %1459 = vector.broadcast %1431 : vector<8x1xf32> to vector<8x128xf32>
    %1460 = arith.mulf %1459, %1458 : vector<8x128xf32>
    %1461 = arith.addf %1454, %1460 : vector<8x128xf32>
    %1462 = vector.extract_strided_slice %363 {offsets = [8, 0], sizes = [8, 128], strides = [1, 1]} : vector<64x128xf32> to vector<8x128xf32>
    %1463 = vector.broadcast %1431 : vector<8x1xf32> to vector<8x128xf32>
    %1464 = arith.mulf %1463, %1462 : vector<8x128xf32>
    %1465 = arith.addf %1457, %1464 : vector<8x128xf32>
    %1466 = vector.extract_strided_slice %358 {offsets = [16, 0], sizes = [8, 128], strides = [1, 1]} : vector<64x128xf32> to vector<8x128xf32>
    %1467 = vector.broadcast %1433 : vector<8x1xf32> to vector<8x128xf32>
    %1468 = arith.mulf %1467, %1466 : vector<8x128xf32>
    %1469 = arith.addf %1461, %1468 : vector<8x128xf32>
    %1470 = vector.extract_strided_slice %363 {offsets = [16, 0], sizes = [8, 128], strides = [1, 1]} : vector<64x128xf32> to vector<8x128xf32>
    %1471 = vector.broadcast %1433 : vector<8x1xf32> to vector<8x128xf32>
    %1472 = arith.mulf %1471, %1470 : vector<8x128xf32>
    %1473 = arith.addf %1465, %1472 : vector<8x128xf32>
    %1474 = vector.extract_strided_slice %358 {offsets = [24, 0], sizes = [8, 128], strides = [1, 1]} : vector<64x128xf32> to vector<8x128xf32>
    %1475 = vector.broadcast %1435 : vector<8x1xf32> to vector<8x128xf32>
    %1476 = arith.mulf %1475, %1474 : vector<8x128xf32>
    %1477 = arith.addf %1469, %1476 : vector<8x128xf32>
    %1478 = vector.extract_strided_slice %363 {offsets = [24, 0], sizes = [8, 128], strides = [1, 1]} : vector<64x128xf32> to vector<8x128xf32>
    %1479 = vector.broadcast %1435 : vector<8x1xf32> to vector<8x128xf32>
    %1480 = arith.mulf %1479, %1478 : vector<8x128xf32>
    %1481 = arith.addf %1473, %1480 : vector<8x128xf32>
    %1482 = vector.extract_strided_slice %358 {offsets = [32, 0], sizes = [8, 128], strides = [1, 1]} : vector<64x128xf32> to vector<8x128xf32>
    %1483 = vector.broadcast %1437 : vector<8x1xf32> to vector<8x128xf32>
    %1484 = arith.mulf %1483, %1482 : vector<8x128xf32>
    %1485 = arith.addf %1477, %1484 : vector<8x128xf32>
    %1486 = vector.extract_strided_slice %363 {offsets = [32, 0], sizes = [8, 128], strides = [1, 1]} : vector<64x128xf32> to vector<8x128xf32>
    %1487 = vector.broadcast %1437 : vector<8x1xf32> to vector<8x128xf32>
    %1488 = arith.mulf %1487, %1486 : vector<8x128xf32>
    %1489 = arith.addf %1481, %1488 : vector<8x128xf32>
    %1490 = vector.extract_strided_slice %358 {offsets = [40, 0], sizes = [8, 128], strides = [1, 1]} : vector<64x128xf32> to vector<8x128xf32>
    %1491 = vector.broadcast %1439 : vector<8x1xf32> to vector<8x128xf32>
    %1492 = arith.mulf %1491, %1490 : vector<8x128xf32>
    %1493 = arith.addf %1485, %1492 : vector<8x128xf32>
    %1494 = vector.extract_strided_slice %363 {offsets = [40, 0], sizes = [8, 128], strides = [1, 1]} : vector<64x128xf32> to vector<8x128xf32>
    %1495 = vector.broadcast %1439 : vector<8x1xf32> to vector<8x128xf32>
    %1496 = arith.mulf %1495, %1494 : vector<8x128xf32>
    %1497 = arith.addf %1489, %1496 : vector<8x128xf32>
    %1498 = vector.extract_strided_slice %358 {offsets = [48, 0], sizes = [8, 128], strides = [1, 1]} : vector<64x128xf32> to vector<8x128xf32>
    %1499 = vector.broadcast %1441 : vector<8x1xf32> to vector<8x128xf32>
    %1500 = arith.mulf %1499, %1498 : vector<8x128xf32>
    %1501 = arith.addf %1493, %1500 : vector<8x128xf32>
    %1502 = vector.extract_strided_slice %363 {offsets = [48, 0], sizes = [8, 128], strides = [1, 1]} : vector<64x128xf32> to vector<8x128xf32>
    %1503 = vector.broadcast %1441 : vector<8x1xf32> to vector<8x128xf32>
    %1504 = arith.mulf %1503, %1502 : vector<8x128xf32>
    %1505 = arith.addf %1497, %1504 : vector<8x128xf32>
    %1506 = vector.extract_strided_slice %358 {offsets = [56, 0], sizes = [8, 128], strides = [1, 1]} : vector<64x128xf32> to vector<8x128xf32>
    %1507 = vector.broadcast %1443 : vector<8x1xf32> to vector<8x128xf32>
    %1508 = arith.mulf %1507, %1506 : vector<8x128xf32>
    %1509 = arith.addf %1501, %1508 : vector<8x128xf32>
    %1510 = vector.extract_strided_slice %363 {offsets = [56, 0], sizes = [8, 128], strides = [1, 1]} : vector<64x128xf32> to vector<8x128xf32>
    %1511 = vector.broadcast %1443 : vector<8x1xf32> to vector<8x128xf32>
    %1512 = arith.mulf %1511, %1510 : vector<8x128xf32>
    %1513 = arith.addf %1505, %1512 : vector<8x128xf32>
    %1514 = vector.extract_strided_slice %369 {offsets = [40, 0], sizes = [8, 128], strides = [1, 1]} : vector<64x128xf32> to vector<8x128xf32>
    %1515 = vector.broadcast %1451 : vector<8x1xf32> to vector<8x128xf32>
    %1516 = arith.mulf %1509, %1515 : vector<8x128xf32>
    %1517 = arith.addf %1514, %1516 : vector<8x128xf32>
    %cst_180 = arith.constant dense<0.000000e+00> : vector<8x128xf32>
    %1518 = tpu.matmul %1344, %378, %cst_180 {dimension_numbers = #tpu.dot_dimension_numbers<[1], [0], [0], [1], [0, 0, 1, 1], [], []>} : vector<8x32xf32>, vector<32x128xf32>, vector<8x128xf32> -> vector<8x128xf32>
    %1519 = arith.addf %1517, %1518 : vector<8x128xf32>
    %1520 = math.tanh %1519 : vector<8x128xf32>
    %1521 = arith.negf %1519 : vector<8x128xf32>
    %1522 = math.exp %1521 : vector<8x128xf32>
    %cst_181 = arith.constant 1.000000e+00 : f32
    %1523 = vector.broadcast %cst_181 : f32 to vector<8x128xf32>
    %1524 = arith.addf %1523, %1522 : vector<8x128xf32>
    %1525 = arith.divf %1523, %1524 : vector<8x128xf32>
    %1526 = arith.select %385, %1520, %1525 : vector<8x128xi1>, vector<8x128xf32>
    %1527 = vector.extract_strided_slice %1526 {offsets = [0, 0], sizes = [8, 32], strides = [1, 1]} : vector<8x128xf32> to vector<8x32xf32>
    %1528 = vector.extract_strided_slice %1526 {offsets = [0, 32], sizes = [8, 32], strides = [1, 1]} : vector<8x128xf32> to vector<8x32xf32>
    %1529 = vector.extract_strided_slice %1526 {offsets = [0, 64], sizes = [8, 32], strides = [1, 1]} : vector<8x128xf32> to vector<8x32xf32>
    %1530 = vector.extract_strided_slice %1526 {offsets = [0, 96], sizes = [8, 32], strides = [1, 1]} : vector<8x128xf32> to vector<8x32xf32>
    %1531 = arith.mulf %1528, %1342 : vector<8x32xf32>
    %1532 = arith.mulf %1527, %1529 : vector<8x32xf32>
    %1533 = arith.addf %1531, %1532 : vector<8x32xf32>
    %1534 = math.tanh %1533 : vector<8x32xf32>
    %1535 = arith.mulf %1530, %1534 : vector<8x32xf32>
    %1536 = vector.extract_strided_slice %374 {offsets = [40, 0], sizes = [8, 128], strides = [1, 1]} : vector<64x128xf32> to vector<8x128xf32>
    %1537 = vector.broadcast %1451 : vector<8x1xf32> to vector<8x128xf32>
    %1538 = arith.mulf %1513, %1537 : vector<8x128xf32>
    %1539 = arith.addf %1536, %1538 : vector<8x128xf32>
    %cst_182 = arith.constant dense<0.000000e+00> : vector<8x128xf32>
    %1540 = tpu.matmul %1535, %379, %cst_182 {dimension_numbers = #tpu.dot_dimension_numbers<[1], [0], [0], [1], [0, 0, 1, 1], [], []>} : vector<8x32xf32>, vector<32x128xf32>, vector<8x128xf32> -> vector<8x128xf32>
    %1541 = arith.addf %1539, %1540 : vector<8x128xf32>
    %c6 = arith.constant 6 : index
    %c0_183 = arith.constant 0 : index
    %c0_184 = arith.constant 0 : index
    %1542 = vector.load %arg25[%c6, %c0_183, %c0_184] : memref<8x8x128xf32, #tpu.memory_space<vmem>>, vector<1x8x128xf32>
    %1543 = vector.shape_cast %1542 : vector<1x8x128xf32> to vector<8x128xf32>
    %1544 = vector.shape_cast %1541 : vector<8x128xf32> to vector<1x8x128xf32>
    tpu.vector_store %arg25[%c6, %c0_183, %c0_184], %1544 {strides = array<i32>} : memref<8x8x128xf32, #tpu.memory_space<vmem>>, vector<1x8x128xf32>,
    %cst_185 = arith.constant dense<0.000000e+00> : vector<8x32xf32>
    %1545 = tpu.matmul %1535, %375, %cst_185 {dimension_numbers = #tpu.dot_dimension_numbers<[1], [0], [0], [1], [0, 0, 1, 1], [], []>} : vector<8x32xf32>, vector<32x32xf32>, vector<8x32xf32> -> vector<8x32xf32>
    %1546 = vector.broadcast %376 : vector<1x32xf32> to vector<8x32xf32>
    %1547 = arith.addf %1545, %1546 : vector<8x32xf32>
    %1548 = vector.extract_strided_slice %353 {offsets = [0, 0], sizes = [8, 32], strides = [1, 1]} : vector<64x32xf32> to vector<8x32xf32>
    %1549 = arith.addf %1548, %1547 : vector<8x32xf32>
    %1550 = math.tanh %1549 : vector<8x32xf32>
    %1551 = vector.broadcast %377 : vector<1x32xf32> to vector<8x32xf32>
    %1552 = arith.mulf %1550, %1551 : vector<8x32xf32>
    %cst_186 = arith.constant dense<0.000000e+00> : vector<8xf32>
    %1553 = vector.multi_reduction <add>, %1552, %cst_186 [1] : vector<8x32xf32> to vector<8xf32>
    %1554 = vector.shape_cast %1553 : vector<8xf32> to vector<8x1xf32>
    %1555 = arith.addf %1554, %387 : vector<8x1xf32>
    %1556 = vector.extract_strided_slice %353 {offsets = [8, 0], sizes = [8, 32], strides = [1, 1]} : vector<64x32xf32> to vector<8x32xf32>
    %1557 = arith.addf %1556, %1547 : vector<8x32xf32>
    %1558 = math.tanh %1557 : vector<8x32xf32>
    %1559 = vector.broadcast %377 : vector<1x32xf32> to vector<8x32xf32>
    %1560 = arith.mulf %1558, %1559 : vector<8x32xf32>
    %cst_187 = arith.constant dense<0.000000e+00> : vector<8xf32>
    %1561 = vector.multi_reduction <add>, %1560, %cst_187 [1] : vector<8x32xf32> to vector<8xf32>
    %1562 = vector.shape_cast %1561 : vector<8xf32> to vector<8x1xf32>
    %1563 = arith.addf %1562, %388 : vector<8x1xf32>
    %1564 = vector.extract_strided_slice %353 {offsets = [16, 0], sizes = [8, 32], strides = [1, 1]} : vector<64x32xf32> to vector<8x32xf32>
    %1565 = arith.addf %1564, %1547 : vector<8x32xf32>
    %1566 = math.tanh %1565 : vector<8x32xf32>
    %1567 = vector.broadcast %377 : vector<1x32xf32> to vector<8x32xf32>
    %1568 = arith.mulf %1566, %1567 : vector<8x32xf32>
    %cst_188 = arith.constant dense<0.000000e+00> : vector<8xf32>
    %1569 = vector.multi_reduction <add>, %1568, %cst_188 [1] : vector<8x32xf32> to vector<8xf32>
    %1570 = vector.shape_cast %1569 : vector<8xf32> to vector<8x1xf32>
    %1571 = arith.addf %1570, %389 : vector<8x1xf32>
    %1572 = vector.extract_strided_slice %353 {offsets = [24, 0], sizes = [8, 32], strides = [1, 1]} : vector<64x32xf32> to vector<8x32xf32>
    %1573 = arith.addf %1572, %1547 : vector<8x32xf32>
    %1574 = math.tanh %1573 : vector<8x32xf32>
    %1575 = vector.broadcast %377 : vector<1x32xf32> to vector<8x32xf32>
    %1576 = arith.mulf %1574, %1575 : vector<8x32xf32>
    %cst_189 = arith.constant dense<0.000000e+00> : vector<8xf32>
    %1577 = vector.multi_reduction <add>, %1576, %cst_189 [1] : vector<8x32xf32> to vector<8xf32>
    %1578 = vector.shape_cast %1577 : vector<8xf32> to vector<8x1xf32>
    %1579 = arith.addf %1578, %390 : vector<8x1xf32>
    %1580 = vector.extract_strided_slice %353 {offsets = [32, 0], sizes = [8, 32], strides = [1, 1]} : vector<64x32xf32> to vector<8x32xf32>
    %1581 = arith.addf %1580, %1547 : vector<8x32xf32>
    %1582 = math.tanh %1581 : vector<8x32xf32>
    %1583 = vector.broadcast %377 : vector<1x32xf32> to vector<8x32xf32>
    %1584 = arith.mulf %1582, %1583 : vector<8x32xf32>
    %cst_190 = arith.constant dense<0.000000e+00> : vector<8xf32>
    %1585 = vector.multi_reduction <add>, %1584, %cst_190 [1] : vector<8x32xf32> to vector<8xf32>
    %1586 = vector.shape_cast %1585 : vector<8xf32> to vector<8x1xf32>
    %1587 = arith.addf %1586, %391 : vector<8x1xf32>
    %1588 = vector.extract_strided_slice %353 {offsets = [40, 0], sizes = [8, 32], strides = [1, 1]} : vector<64x32xf32> to vector<8x32xf32>
    %1589 = arith.addf %1588, %1547 : vector<8x32xf32>
    %1590 = math.tanh %1589 : vector<8x32xf32>
    %1591 = vector.broadcast %377 : vector<1x32xf32> to vector<8x32xf32>
    %1592 = arith.mulf %1590, %1591 : vector<8x32xf32>
    %cst_191 = arith.constant dense<0.000000e+00> : vector<8xf32>
    %1593 = vector.multi_reduction <add>, %1592, %cst_191 [1] : vector<8x32xf32> to vector<8xf32>
    %1594 = vector.shape_cast %1593 : vector<8xf32> to vector<8x1xf32>
    %1595 = arith.addf %1594, %392 : vector<8x1xf32>
    %1596 = vector.extract_strided_slice %353 {offsets = [48, 0], sizes = [8, 32], strides = [1, 1]} : vector<64x32xf32> to vector<8x32xf32>
    %1597 = arith.addf %1596, %1547 : vector<8x32xf32>
    %1598 = math.tanh %1597 : vector<8x32xf32>
    %1599 = vector.broadcast %377 : vector<1x32xf32> to vector<8x32xf32>
    %1600 = arith.mulf %1598, %1599 : vector<8x32xf32>
    %cst_192 = arith.constant dense<0.000000e+00> : vector<8xf32>
    %1601 = vector.multi_reduction <add>, %1600, %cst_192 [1] : vector<8x32xf32> to vector<8xf32>
    %1602 = vector.shape_cast %1601 : vector<8xf32> to vector<8x1xf32>
    %1603 = arith.addf %1602, %393 : vector<8x1xf32>
    %1604 = vector.extract_strided_slice %353 {offsets = [56, 0], sizes = [8, 32], strides = [1, 1]} : vector<64x32xf32> to vector<8x32xf32>
    %1605 = arith.addf %1604, %1547 : vector<8x32xf32>
    %1606 = math.tanh %1605 : vector<8x32xf32>
    %1607 = vector.broadcast %377 : vector<1x32xf32> to vector<8x32xf32>
    %1608 = arith.mulf %1606, %1607 : vector<8x32xf32>
    %cst_193 = arith.constant dense<0.000000e+00> : vector<8xf32>
    %1609 = vector.multi_reduction <add>, %1608, %cst_193 [1] : vector<8x32xf32> to vector<8xf32>
    %1610 = vector.shape_cast %1609 : vector<8xf32> to vector<8x1xf32>
    %1611 = arith.addf %1610, %394 : vector<8x1xf32>
    %1612 = arith.maximumf %1555, %1563 : vector<8x1xf32>
    %1613 = arith.maximumf %1612, %1571 : vector<8x1xf32>
    %1614 = arith.maximumf %1613, %1579 : vector<8x1xf32>
    %1615 = arith.maximumf %1614, %1587 : vector<8x1xf32>
    %1616 = arith.maximumf %1615, %1595 : vector<8x1xf32>
    %1617 = arith.maximumf %1616, %1603 : vector<8x1xf32>
    %1618 = arith.maximumf %1617, %1611 : vector<8x1xf32>
    %1619 = arith.subf %1555, %1618 : vector<8x1xf32>
    %1620 = math.exp %1619 : vector<8x1xf32>
    %1621 = arith.subf %1563, %1618 : vector<8x1xf32>
    %1622 = math.exp %1621 : vector<8x1xf32>
    %1623 = arith.subf %1571, %1618 : vector<8x1xf32>
    %1624 = math.exp %1623 : vector<8x1xf32>
    %1625 = arith.subf %1579, %1618 : vector<8x1xf32>
    %1626 = math.exp %1625 : vector<8x1xf32>
    %1627 = arith.subf %1587, %1618 : vector<8x1xf32>
    %1628 = math.exp %1627 : vector<8x1xf32>
    %1629 = arith.subf %1595, %1618 : vector<8x1xf32>
    %1630 = math.exp %1629 : vector<8x1xf32>
    %1631 = arith.subf %1603, %1618 : vector<8x1xf32>
    %1632 = math.exp %1631 : vector<8x1xf32>
    %1633 = arith.subf %1611, %1618 : vector<8x1xf32>
    %1634 = math.exp %1633 : vector<8x1xf32>
    %1635 = arith.addf %1620, %1622 : vector<8x1xf32>
    %1636 = arith.addf %1635, %1624 : vector<8x1xf32>
    %1637 = arith.addf %1636, %1626 : vector<8x1xf32>
    %1638 = arith.addf %1637, %1628 : vector<8x1xf32>
    %1639 = arith.addf %1638, %1630 : vector<8x1xf32>
    %1640 = arith.addf %1639, %1632 : vector<8x1xf32>
    %1641 = arith.addf %1640, %1634 : vector<8x1xf32>
    %1642 = tpu.reciprocal %1641 {approx = true} : vector<8x1xf32> -> vector<8x1xf32>
    %1643 = vector.extract_strided_slice %358 {offsets = [0, 0], sizes = [8, 128], strides = [1, 1]} : vector<64x128xf32> to vector<8x128xf32>
    %1644 = vector.broadcast %1620 : vector<8x1xf32> to vector<8x128xf32>
    %1645 = arith.mulf %1644, %1643 : vector<8x128xf32>
    %1646 = vector.extract_strided_slice %363 {offsets = [0, 0], sizes = [8, 128], strides = [1, 1]} : vector<64x128xf32> to vector<8x128xf32>
    %1647 = vector.broadcast %1620 : vector<8x1xf32> to vector<8x128xf32>
    %1648 = arith.mulf %1647, %1646 : vector<8x128xf32>
    %1649 = vector.extract_strided_slice %358 {offsets = [8, 0], sizes = [8, 128], strides = [1, 1]} : vector<64x128xf32> to vector<8x128xf32>
    %1650 = vector.broadcast %1622 : vector<8x1xf32> to vector<8x128xf32>
    %1651 = arith.mulf %1650, %1649 : vector<8x128xf32>
    %1652 = arith.addf %1645, %1651 : vector<8x128xf32>
    %1653 = vector.extract_strided_slice %363 {offsets = [8, 0], sizes = [8, 128], strides = [1, 1]} : vector<64x128xf32> to vector<8x128xf32>
    %1654 = vector.broadcast %1622 : vector<8x1xf32> to vector<8x128xf32>
    %1655 = arith.mulf %1654, %1653 : vector<8x128xf32>
    %1656 = arith.addf %1648, %1655 : vector<8x128xf32>
    %1657 = vector.extract_strided_slice %358 {offsets = [16, 0], sizes = [8, 128], strides = [1, 1]} : vector<64x128xf32> to vector<8x128xf32>
    %1658 = vector.broadcast %1624 : vector<8x1xf32> to vector<8x128xf32>
    %1659 = arith.mulf %1658, %1657 : vector<8x128xf32>
    %1660 = arith.addf %1652, %1659 : vector<8x128xf32>
    %1661 = vector.extract_strided_slice %363 {offsets = [16, 0], sizes = [8, 128], strides = [1, 1]} : vector<64x128xf32> to vector<8x128xf32>
    %1662 = vector.broadcast %1624 : vector<8x1xf32> to vector<8x128xf32>
    %1663 = arith.mulf %1662, %1661 : vector<8x128xf32>
    %1664 = arith.addf %1656, %1663 : vector<8x128xf32>
    %1665 = vector.extract_strided_slice %358 {offsets = [24, 0], sizes = [8, 128], strides = [1, 1]} : vector<64x128xf32> to vector<8x128xf32>
    %1666 = vector.broadcast %1626 : vector<8x1xf32> to vector<8x128xf32>
    %1667 = arith.mulf %1666, %1665 : vector<8x128xf32>
    %1668 = arith.addf %1660, %1667 : vector<8x128xf32>
    %1669 = vector.extract_strided_slice %363 {offsets = [24, 0], sizes = [8, 128], strides = [1, 1]} : vector<64x128xf32> to vector<8x128xf32>
    %1670 = vector.broadcast %1626 : vector<8x1xf32> to vector<8x128xf32>
    %1671 = arith.mulf %1670, %1669 : vector<8x128xf32>
    %1672 = arith.addf %1664, %1671 : vector<8x128xf32>
    %1673 = vector.extract_strided_slice %358 {offsets = [32, 0], sizes = [8, 128], strides = [1, 1]} : vector<64x128xf32> to vector<8x128xf32>
    %1674 = vector.broadcast %1628 : vector<8x1xf32> to vector<8x128xf32>
    %1675 = arith.mulf %1674, %1673 : vector<8x128xf32>
    %1676 = arith.addf %1668, %1675 : vector<8x128xf32>
    %1677 = vector.extract_strided_slice %363 {offsets = [32, 0], sizes = [8, 128], strides = [1, 1]} : vector<64x128xf32> to vector<8x128xf32>
    %1678 = vector.broadcast %1628 : vector<8x1xf32> to vector<8x128xf32>
    %1679 = arith.mulf %1678, %1677 : vector<8x128xf32>
    %1680 = arith.addf %1672, %1679 : vector<8x128xf32>
    %1681 = vector.extract_strided_slice %358 {offsets = [40, 0], sizes = [8, 128], strides = [1, 1]} : vector<64x128xf32> to vector<8x128xf32>
    %1682 = vector.broadcast %1630 : vector<8x1xf32> to vector<8x128xf32>
    %1683 = arith.mulf %1682, %1681 : vector<8x128xf32>
    %1684 = arith.addf %1676, %1683 : vector<8x128xf32>
    %1685 = vector.extract_strided_slice %363 {offsets = [40, 0], sizes = [8, 128], strides = [1, 1]} : vector<64x128xf32> to vector<8x128xf32>
    %1686 = vector.broadcast %1630 : vector<8x1xf32> to vector<8x128xf32>
    %1687 = arith.mulf %1686, %1685 : vector<8x128xf32>
    %1688 = arith.addf %1680, %1687 : vector<8x128xf32>
    %1689 = vector.extract_strided_slice %358 {offsets = [48, 0], sizes = [8, 128], strides = [1, 1]} : vector<64x128xf32> to vector<8x128xf32>
    %1690 = vector.broadcast %1632 : vector<8x1xf32> to vector<8x128xf32>
    %1691 = arith.mulf %1690, %1689 : vector<8x128xf32>
    %1692 = arith.addf %1684, %1691 : vector<8x128xf32>
    %1693 = vector.extract_strided_slice %363 {offsets = [48, 0], sizes = [8, 128], strides = [1, 1]} : vector<64x128xf32> to vector<8x128xf32>
    %1694 = vector.broadcast %1632 : vector<8x1xf32> to vector<8x128xf32>
    %1695 = arith.mulf %1694, %1693 : vector<8x128xf32>
    %1696 = arith.addf %1688, %1695 : vector<8x128xf32>
    %1697 = vector.extract_strided_slice %358 {offsets = [56, 0], sizes = [8, 128], strides = [1, 1]} : vector<64x128xf32> to vector<8x128xf32>
    %1698 = vector.broadcast %1634 : vector<8x1xf32> to vector<8x128xf32>
    %1699 = arith.mulf %1698, %1697 : vector<8x128xf32>
    %1700 = arith.addf %1692, %1699 : vector<8x128xf32>
    %1701 = vector.extract_strided_slice %363 {offsets = [56, 0], sizes = [8, 128], strides = [1, 1]} : vector<64x128xf32> to vector<8x128xf32>
    %1702 = vector.broadcast %1634 : vector<8x1xf32> to vector<8x128xf32>
    %1703 = arith.mulf %1702, %1701 : vector<8x128xf32>
    %1704 = arith.addf %1696, %1703 : vector<8x128xf32>
    %1705 = vector.extract_strided_slice %369 {offsets = [48, 0], sizes = [8, 128], strides = [1, 1]} : vector<64x128xf32> to vector<8x128xf32>
    %1706 = vector.broadcast %1642 : vector<8x1xf32> to vector<8x128xf32>
    %1707 = arith.mulf %1700, %1706 : vector<8x128xf32>
    %1708 = arith.addf %1705, %1707 : vector<8x128xf32>
    %cst_194 = arith.constant dense<0.000000e+00> : vector<8x128xf32>
    %1709 = tpu.matmul %1535, %378, %cst_194 {dimension_numbers = #tpu.dot_dimension_numbers<[1], [0], [0], [1], [0, 0, 1, 1], [], []>} : vector<8x32xf32>, vector<32x128xf32>, vector<8x128xf32> -> vector<8x128xf32>
    %1710 = arith.addf %1708, %1709 : vector<8x128xf32>
    %1711 = math.tanh %1710 : vector<8x128xf32>
    %1712 = arith.negf %1710 : vector<8x128xf32>
    %1713 = math.exp %1712 : vector<8x128xf32>
    %cst_195 = arith.constant 1.000000e+00 : f32
    %1714 = vector.broadcast %cst_195 : f32 to vector<8x128xf32>
    %1715 = arith.addf %1714, %1713 : vector<8x128xf32>
    %1716 = arith.divf %1714, %1715 : vector<8x128xf32>
    %1717 = arith.select %385, %1711, %1716 : vector<8x128xi1>, vector<8x128xf32>
    %1718 = vector.extract_strided_slice %1717 {offsets = [0, 0], sizes = [8, 32], strides = [1, 1]} : vector<8x128xf32> to vector<8x32xf32>
    %1719 = vector.extract_strided_slice %1717 {offsets = [0, 32], sizes = [8, 32], strides = [1, 1]} : vector<8x128xf32> to vector<8x32xf32>
    %1720 = vector.extract_strided_slice %1717 {offsets = [0, 64], sizes = [8, 32], strides = [1, 1]} : vector<8x128xf32> to vector<8x32xf32>
    %1721 = vector.extract_strided_slice %1717 {offsets = [0, 96], sizes = [8, 32], strides = [1, 1]} : vector<8x128xf32> to vector<8x32xf32>
    %1722 = arith.mulf %1719, %1533 : vector<8x32xf32>
    %1723 = arith.mulf %1718, %1720 : vector<8x32xf32>
    %1724 = arith.addf %1722, %1723 : vector<8x32xf32>
    %1725 = math.tanh %1724 : vector<8x32xf32>
    %1726 = arith.mulf %1721, %1725 : vector<8x32xf32>
    %1727 = vector.extract_strided_slice %374 {offsets = [48, 0], sizes = [8, 128], strides = [1, 1]} : vector<64x128xf32> to vector<8x128xf32>
    %1728 = vector.broadcast %1642 : vector<8x1xf32> to vector<8x128xf32>
    %1729 = arith.mulf %1704, %1728 : vector<8x128xf32>
    %1730 = arith.addf %1727, %1729 : vector<8x128xf32>
    %cst_196 = arith.constant dense<0.000000e+00> : vector<8x128xf32>
    %1731 = tpu.matmul %1726, %379, %cst_196 {dimension_numbers = #tpu.dot_dimension_numbers<[1], [0], [0], [1], [0, 0, 1, 1], [], []>} : vector<8x32xf32>, vector<32x128xf32>, vector<8x128xf32> -> vector<8x128xf32>
    %1732 = arith.addf %1730, %1731 : vector<8x128xf32>
    %c7 = arith.constant 7 : index
    %c0_197 = arith.constant 0 : index
    %c0_198 = arith.constant 0 : index
    %1733 = vector.load %arg25[%c7, %c0_197, %c0_198] : memref<8x8x128xf32, #tpu.memory_space<vmem>>, vector<1x8x128xf32>
    %1734 = vector.shape_cast %1733 : vector<1x8x128xf32> to vector<8x128xf32>
    %1735 = vector.shape_cast %1732 : vector<8x128xf32> to vector<1x8x128xf32>
    tpu.vector_store %arg25[%c7, %c0_197, %c0_198], %1735 {strides = array<i32>} : memref<8x8x128xf32, #tpu.memory_space<vmem>>, vector<1x8x128xf32>,
    return
  }
}

</mosaic_0001>

<llo_original>
// kernel: seq2seq_forward.1
$region0: #{seq2seq_forward.1}
  #allocation0 [shape = 'u32[]', space=smem, size = 0x4, offset = 0x4, fixed_abs, tag = 'smem constant byte address 0x4 - core index']
  #allocation1 [shape = 'u32[144,128]{1,0:T(1,128)}', space=vmem, size = 0x12000, scoped, tag = 'internal scratch']
  %s0 = inlined_call_operand.vmem [shape: f32[64,1], index: 0, kind: input, shape index: {}]
  %s1 = inlined_call_operand.vmem [shape: f32[64,16], index: 1, kind: input, shape index: {}]
  %s2 = inlined_call_operand.vmem [shape: f32[64,16], index: 2, kind: input, shape index: {}]
  %s3 = inlined_call_operand.vmem [shape: f32[16,128], index: 3, kind: input, shape index: {}]
  %s4 = inlined_call_operand.vmem [shape: f32[32,128], index: 4, kind: input, shape index: {}]
  %s5 = inlined_call_operand.vmem [shape: f32[1,128], index: 5, kind: input, shape index: {}]
  %s6 = inlined_call_operand.vmem [shape: f32[16,128], index: 6, kind: input, shape index: {}]
  %s7 = inlined_call_operand.vmem [shape: f32[32,128], index: 7, kind: input, shape index: {}]
  %s8 = inlined_call_operand.vmem [shape: f32[1,128], index: 8, kind: input, shape index: {}]
  %s9 = inlined_call_operand.vmem [shape: f32[64,32], index: 9, kind: input, shape index: {}]
  %s10 = inlined_call_operand.vmem [shape: f32[1,32], index: 10, kind: input, shape index: {}]
  %s11 = inlined_call_operand.vmem [shape: f32[64,32], index: 11, kind: input, shape index: {}]
  %s12 = inlined_call_operand.vmem [shape: f32[1,32], index: 12, kind: input, shape index: {}]
  %s13 = inlined_call_operand.vmem [shape: f32[32,32], index: 13, kind: input, shape index: {}]
  %s14 = inlined_call_operand.vmem [shape: f32[64,32], index: 14, kind: input, shape index: {}]
  %s15 = inlined_call_operand.vmem [shape: f32[1,32], index: 15, kind: input, shape index: {}]
  %s16 = inlined_call_operand.vmem [shape: f32[1,32], index: 16, kind: input, shape index: {}]
  %s17 = inlined_call_operand.vmem [shape: f32[16,128], index: 17, kind: input, shape index: {}]
  %s18 = inlined_call_operand.vmem [shape: f32[64,128], index: 18, kind: input, shape index: {}]
  %s19 = inlined_call_operand.vmem [shape: f32[32,128], index: 19, kind: input, shape index: {}]
  %s20 = inlined_call_operand.vmem [shape: f32[1,128], index: 20, kind: input, shape index: {}]
  %s21 = inlined_call_operand.vmem [shape: f32[32,128], index: 21, kind: input, shape index: {}]
  %s22 = inlined_call_operand.vmem [shape: f32[64,128], index: 22, kind: input, shape index: {}]
  %s23 = inlined_call_operand.vmem [shape: f32[16,128], index: 23, kind: input, shape index: {}]
  %s24 = inlined_call_operand.vmem [shape: f32[1,128], index: 24, kind: input, shape index: {}]
  %s25 = inlined_call_operand.vmem [shape: f32[8,8,128], index: 25, kind: output, shape index: {}]
  %s26 = sld [smem:[#allocation0]]
  $region110: #{seq2seq_forward.1} parent=0
    _
  %s28 = ssub.s32 1, %s26
  %s29 = scalar_select 0, %s28, %s26
  // Predicated region
  $region2: #{seq2seq_forward.1} parent=0 // pred_check
    _
  $region3: #{seq2seq_forward.1} parent=0 // pred_check_branch
    %31 = sbr.rel (0) target = $region5
  $region4: #{seq2seq_forward.1} parent=0 // pred_region
    _
  $region5: #{seq2seq_forward.1} parent=0 // pred_fallthru
    _
  // Predicated region
  $region6: #{seq2seq_forward.1} parent=0 // pred_check
    _
  $region7: #{seq2seq_forward.1} parent=0 // pred_check_branch
    %33 = sbr.rel (0) target = $region9
  $region8: #{seq2seq_forward.1} parent=0 // pred_region
    _
  $region9: #{seq2seq_forward.1} parent=0 // pred_fallthru
    _
  // Predicated region
  $region10: #{seq2seq_forward.1} parent=0 // pred_check
    _
  $region11: #{seq2seq_forward.1} parent=0 // pred_check_branch
    %35 = sbr.rel (0) target = $region13
  $region12: #{seq2seq_forward.1} parent=0 // pred_region
    _
  $region13: #{seq2seq_forward.1} parent=0 // pred_fallthru
    _
  // Predicated region
  $region14: #{seq2seq_forward.1} parent=0 // pred_check
    _
  $region15: #{seq2seq_forward.1} parent=0 // pred_check_branch
    %37 = sbr.rel (0) target = $region17
  $region16: #{seq2seq_forward.1} parent=0 // pred_region
    _
  $region17: #{seq2seq_forward.1} parent=0 // pred_fallthru
    _
  // Predicated region
  $region18: #{seq2seq_forward.1} parent=0 // pred_check
    _
  $region19: #{seq2seq_forward.1} parent=0 // pred_check_branch
    %39 = sbr.rel (0) target = $region21
  $region20: #{seq2seq_forward.1} parent=0 // pred_region
    _
  $region21: #{seq2seq_forward.1} parent=0 // pred_fallthru
    _
  // Predicated region
  $region22: #{seq2seq_forward.1} parent=0 // pred_check
    _
  $region23: #{seq2seq_forward.1} parent=0 // pred_check_branch
    %41 = sbr.rel (0) target = $region25
  $region24: #{seq2seq_forward.1} parent=0 // pred_region
    _
  $region25: #{seq2seq_forward.1} parent=0 // pred_fallthru
    _
  // Predicated region
  $region26: #{seq2seq_forward.1} parent=0 // pred_check
    _
  $region27: #{seq2seq_forward.1} parent=0 // pred_check_branch
    %43 = sbr.rel (0) target = $region29
  $region28: #{seq2seq_forward.1} parent=0 // pred_region
    _
  $region29: #{seq2seq_forward.1} parent=0 // pred_fallthru
    _
  // Predicated region
  $region30: #{seq2seq_forward.1} parent=0 // pred_check
    _
  $region31: #{seq2seq_forward.1} parent=0 // pred_check_branch
    %45 = sbr.rel (0) target = $region33
  $region32: #{seq2seq_forward.1} parent=0 // pred_region
    _
  $region33: #{seq2seq_forward.1} parent=0 // pred_fallthru
    _
  // Predicated region
  $region34: #{seq2seq_forward.1} parent=0 // pred_check
    _
  $region35: #{seq2seq_forward.1} parent=0 // pred_check_branch
    %47 = sbr.rel (0) target = $region37
  $region36: #{seq2seq_forward.1} parent=0 // pred_region
    _
  $region37: #{seq2seq_forward.1} parent=0 // pred_fallthru
    _
  // Predicated region
  $region38: #{seq2seq_forward.1} parent=0 // pred_check
    _
  $region39: #{seq2seq_forward.1} parent=0 // pred_check_branch
    %49 = sbr.rel (0) target = $region41
  $region40: #{seq2seq_forward.1} parent=0 // pred_region
    _
  $region41: #{seq2seq_forward.1} parent=0 // pred_fallthru
    _
  // Predicated region
  $region42: #{seq2seq_forward.1} parent=0 // pred_check
    _
  $region43: #{seq2seq_forward.1} parent=0 // pred_check_branch
    %51 = sbr.rel (0) target = $region45
  $region44: #{seq2seq_forward.1} parent=0 // pred_region
    _
  $region45: #{seq2seq_forward.1} parent=0 // pred_fallthru
    _
  // Predicated region
  $region46: #{seq2seq_forward.1} parent=0 // pred_check
    _
  $region47: #{seq2seq_forward.1} parent=0 // pred_check_branch
    %53 = sbr.rel (0) target = $region49
  $region48: #{seq2seq_forward.1} parent=0 // pred_region
    _
  $region49: #{seq2seq_forward.1} parent=0 // pred_fallthru
    _
  // Predicated region
  $region50: #{seq2seq_forward.1} parent=0 // pred_check
    _
  $region51: #{seq2seq_forward.1} parent=0 // pred_check_branch
    %55 = sbr.rel (0) target = $region53
  $region52: #{seq2seq_forward.1} parent=0 // pred_region
    _
  $region53: #{seq2seq_forward.1} parent=0 // pred_fallthru
    _
  // Predicated region
  $region54: #{seq2seq_forward.1} parent=0 // pred_check
    _
  $region55: #{seq2seq_forward.1} parent=0 // pred_check_branch
    %57 = sbr.rel (0) target = $region57
  $region56: #{seq2seq_forward.1} parent=0 // pred_region
    _
  $region57: #{seq2seq_forward.1} parent=0 // pred_fallthru
    _
  // Predicated region
  $region58: #{seq2seq_forward.1} parent=0 // pred_check
    _
  $region59: #{seq2seq_forward.1} parent=0 // pred_check_branch
    %59 = sbr.rel (0) target = $region61
  $region60: #{seq2seq_forward.1} parent=0 // pred_region
    _
  $region61: #{seq2seq_forward.1} parent=0 // pred_fallthru
    _
  // Predicated region
  $region62: #{seq2seq_forward.1} parent=0 // pred_check
    _
  $region63: #{seq2seq_forward.1} parent=0 // pred_check_branch
    %61 = sbr.rel (0) target = $region65
  $region64: #{seq2seq_forward.1} parent=0 // pred_region
    _
  $region65: #{seq2seq_forward.1} parent=0 // pred_fallthru
    _
  // Predicated region
  $region66: #{seq2seq_forward.1} parent=0 // pred_check
    _
  $region67: #{seq2seq_forward.1} parent=0 // pred_check_branch
    %63 = sbr.rel (0) target = $region69
  $region68: #{seq2seq_forward.1} parent=0 // pred_region
    _
  $region69: #{seq2seq_forward.1} parent=0 // pred_fallthru
    _
  // Predicated region
  $region70: #{seq2seq_forward.1} parent=0 // pred_check
    _
  $region71: #{seq2seq_forward.1} parent=0 // pred_check_branch
    %65 = sbr.rel (0) target = $region73
  $region72: #{seq2seq_forward.1} parent=0 // pred_region
    _
  $region73: #{seq2seq_forward.1} parent=0 // pred_fallthru
    _
  // Predicated region
  $region74: #{seq2seq_forward.1} parent=0 // pred_check
    _
  $region75: #{seq2seq_forward.1} parent=0 // pred_check_branch
    %67 = sbr.rel (0) target = $region77
  $region76: #{seq2seq_forward.1} parent=0 // pred_region
    _
  $region77: #{seq2seq_forward.1} parent=0 // pred_fallthru
    _
  // Predicated region
  $region78: #{seq2seq_forward.1} parent=0 // pred_check
    _
  $region79: #{seq2seq_forward.1} parent=0 // pred_check_branch
    %69 = sbr.rel (0) target = $region81
  $region80: #{seq2seq_forward.1} parent=0 // pred_region
    _
  $region81: #{seq2seq_forward.1} parent=0 // pred_fallthru
    _
  // Predicated region
  $region82: #{seq2seq_forward.1} parent=0 // pred_check
    _
  $region83: #{seq2seq_forward.1} parent=0 // pred_check_branch
    %71 = sbr.rel (0) target = $region85
  $region84: #{seq2seq_forward.1} parent=0 // pred_region
    _
  $region85: #{seq2seq_forward.1} parent=0 // pred_fallthru
    _
  // Predicated region
  $region86: #{seq2seq_forward.1} parent=0 // pred_check
    _
  $region87: #{seq2seq_forward.1} parent=0 // pred_check_branch
    %73 = sbr.rel (0) target = $region89
  $region88: #{seq2seq_forward.1} parent=0 // pred_region
    _
  $region89: #{seq2seq_forward.1} parent=0 // pred_fallthru
    _
  // Predicated region
  $region90: #{seq2seq_forward.1} parent=0 // pred_check
    _
  $region91: #{seq2seq_forward.1} parent=0 // pred_check_branch
    %75 = sbr.rel (0) target = $region93
  $region92: #{seq2seq_forward.1} parent=0 // pred_region
    _
  $region93: #{seq2seq_forward.1} parent=0 // pred_fallthru
    _
  // Predicated region
  $region94: #{seq2seq_forward.1} parent=0 // pred_check
    _
  $region95: #{seq2seq_forward.1} parent=0 // pred_check_branch
    %77 = sbr.rel (0) target = $region97
  $region96: #{seq2seq_forward.1} parent=0 // pred_region
    _
  $region97: #{seq2seq_forward.1} parent=0 // pred_fallthru
    _
  // Predicated region
  $region98: #{seq2seq_forward.1} parent=0 // pred_check
    _
  $region99: #{seq2seq_forward.1} parent=0 // pred_check_branch
    %79 = sbr.rel (0) target = $region101
  $region100: #{seq2seq_forward.1} parent=0 // pred_region
    _
  $region101: #{seq2seq_forward.1} parent=0 // pred_fallthru
    _
  %v80 = vld [vmem:[%s1] sm:$0xff]
  %v81 = vld [vmem:[%s1 + $0x8] sm:$0xff]
  %v82 = vld [vmem:[%s1 + $0x10] sm:$0xff]
  %v83 = vld [vmem:[%s1 + $0x18] sm:$0xff]
  %v84 = vld [vmem:[%s1 + $0x20] sm:$0xff]
  %v85 = vld [vmem:[%s1 + $0x28] sm:$0xff]
  %v86 = vld [vmem:[%s1 + $0x30] sm:$0xff]
  %v87 = vld [vmem:[%s1 + $0x38] sm:$0xff]
  %v88 = vld [vmem:[%s3] sm:$0xff]
  %v89 = vld [vmem:[%s3 + $0x8] sm:$0xff]
  %v90 = vld [vmem:[%s5] sm:$0x1]
  %v92 = vlaneseq
  %v93 = vshrl.u32 %v92, 7
  %v94 = vsub.s32 0, %v93
  %v95 = vrot.slane %v90, %v94
  %vm97 = vcmask 130048
  %v99 = vsel %vm97, %v80, 0
  %v102 = vsel %vm97, %v81, 0
  %v105 = vsel %vm97, %v82, 0
  %v108 = vsel %vm97, %v83, 0
  %v111 = vsel %vm97, %v84, 0
  %v114 = vsel %vm97, %v85, 0
  %v117 = vsel %vm97, %v86, 0
  %v120 = vsel %vm97, %v87, 0
  %122 = vmatprep.subr.mxu0 0.0
  %123 = vmatpush1.msra.mxu0 %v88
  %124 = vmatprep.subr.mxu0 0.0
  %125 = vmatpush1.msra.mxu0 %v89
  %126 = vmatprep.subr.mxu0 0.0
  %127 = vmatpush1.msra.mxu0 0.0
  %128 = vmatprep.subr.mxu0 0.0
  %129 = vmatpush1.msra.mxu0 0.0
  %130 = vmatprep.subr.mxu0 0.0
  %131 = vmatpush1.msra.mxu0 0.0
  %132 = vmatprep.subr.mxu0 0.0
  %133 = vmatpush1.msra.mxu0 0.0
  %134 = vmatprep.subr.mxu0 0.0
  %135 = vmatpush1.msra.mxu0 0.0
  %136 = vmatprep.subr.mxu0 0.0
  %137 = vmatpush1.msra.mxu0 0.0
  %138 = vmatprep.subr.mxu0 0.0
  %139 = vmatpush1.msra.mxu0 0.0
  %140 = vmatprep.subr.mxu0 0.0
  %141 = vmatpush1.msra.mxu0 0.0
  %142 = vmatprep.subr.mxu0 0.0
  %143 = vmatpush1.msra.mxu0 0.0
  %144 = vmatprep.subr.mxu0 0.0
  %145 = vmatpush1.msra.mxu0 0.0
  %146 = vmatprep.subr.mxu0 0.0
  %147 = vmatpush1.msra.mxu0 0.0
  %148 = vmatprep.subr.mxu0 0.0
  %149 = vmatpush1.msra.mxu0 0.0
  %150 = vmatprep.subr.mxu0 0.0
  %151 = vmatpush1.msra.mxu0 0.0
  %152 = vmatprep.subr.mxu0 0.0
  %153 = vmatpush1.msra.mxu0 0.0
  %154 = vmatprep.subr.mxu0 0.0
  %155 = vmatpush1.msra.mxu0 0.0
  %156 = vmatprep.subr.mxu0 0.0
  %157 = vmatpush1.msra.mxu0 0.0
  %158 = vmatprep.subr.mxu0 0.0
  %159 = vmatpush1.msra.mxu0 0.0
  %160 = vmatprep.subr.mxu0 0.0
  %161 = vmatpush1.msra.mxu0 0.0
  %162 = vmatprep.subr.mxu0 0.0
  %163 = vmatpush1.msra.mxu0 0.0
  %164 = vmatprep.subr.mxu0 0.0
  %165 = vmatpush1.msra.mxu0 0.0
  %166 = vmatprep.subr.mxu0 0.0
  %167 = vmatpush1.msra.mxu0 0.0
  %168 = vmatprep.subr.mxu0 0.0
  %169 = vmatpush1.msra.mxu0 0.0
  %170 = vmatprep.subr.mxu0 0.0
  %171 = vmatpush1.msra.mxu0 0.0
  %172 = vmatprep.subr.mxu0 0.0
  %173 = vmatpush1.msra.mxu0 0.0
  %174 = vmatprep.subr.mxu0 0.0
  %175 = vmatpush1.msra.mxu0 0.0
  %176 = vmatprep.subr.mxu0 0.0
  %177 = vmatpush1.msra.mxu0 0.0
  %178 = vmatprep.subr.mxu0 0.0
  %179 = vmatpush1.msra.mxu0 0.0
  %180 = vmatprep.subr.mxu0 0.0
  %181 = vmatpush1.msra.mxu0 0.0
  %182 = vmatprep.subr.mxu0 0.0
  %183 = vmatpush1.msra.mxu0 0.0
  %184 = vmatprep.subr.mxu0 0.0
  %185 = vmatpush1.msra.mxu0 0.0
  %186 = vmatprep.mubr.f32.mxu0 0.0
  %187 = vmatmul.mubr.f32.gmra.mrb[0].mxu0 %v99
  %v188 = vpop.f32.mrb[0].mxu0
  %v189 = vadd.f32 %v95, %v188
  %v190 = vpop.f32.mrb[0].mxu0
  %191 = vmatprep.mubr.f32.mxu0 0.0
  %192 = vmatmul.mubr.f32.gmra.mrb[0].mxu0 %v102
  %v193 = vpop.f32.mrb[0].mxu0
  %v194 = vadd.f32 %v95, %v193
  %v195 = vpop.f32.mrb[0].mxu0
  %196 = vmatprep.mubr.f32.mxu0 0.0
  %197 = vmatmul.mubr.f32.gmra.mrb[0].mxu0 %v105
  %v198 = vpop.f32.mrb[0].mxu0
  %v199 = vadd.f32 %v95, %v198
  %v200 = vpop.f32.mrb[0].mxu0
  %201 = vmatprep.mubr.f32.mxu0 0.0
  %202 = vmatmul.mubr.f32.gmra.mrb[0].mxu0 %v108
  %v203 = vpop.f32.mrb[0].mxu0
  %v204 = vadd.f32 %v95, %v203
  %v205 = vpop.f32.mrb[0].mxu0
  %206 = vmatprep.mubr.f32.mxu0 0.0
  %207 = vmatmul.mubr.f32.gmra.mrb[0].mxu0 %v111
  %v208 = vpop.f32.mrb[0].mxu0
  %v209 = vadd.f32 %v95, %v208
  %v210 = vpop.f32.mrb[0].mxu0
  %211 = vmatprep.mubr.f32.mxu0 0.0
  %212 = vmatmul.mubr.f32.gmra.mrb[0].mxu0 %v114
  %v213 = vpop.f32.mrb[0].mxu0
  %v214 = vadd.f32 %v95, %v213
  %v215 = vpop.f32.mrb[0].mxu0
  %216 = vmatprep.mubr.f32.mxu0 0.0
  %217 = vmatmul.mubr.f32.gmra.mrb[0].mxu0 %v117
  %v218 = vpop.f32.mrb[0].mxu0
  %v219 = vadd.f32 %v95, %v218
  %v220 = vpop.f32.mrb[0].mxu0
  %221 = vmatprep.mubr.f32.mxu0 0.0
  %222 = vmatmul.mubr.f32.gmra.mrb[0].mxu0 %v120
  %v223 = vpop.f32.mrb[0].mxu0
  %v224 = vadd.f32 %v95, %v223
  %v225 = vpop.f32.mrb[0].mxu0
  %226 = vdwg.mxu0
  %v227 = vld [vmem:[%s6] sm:$0xff]
  %v228 = vld [vmem:[%s6 + $0x8] sm:$0xff]
  %v229 = vld [vmem:[%s8] sm:$0x1]
  %v231 = vlaneseq
  %v232 = vshrl.u32 %v231, 7
  %v233 = vsub.s32 0, %v232
  %v234 = vrot.slane %v229, %v233
  %236 = vmatprep.subr.mxu0 0.0
  %237 = vmatpush1.msra.mxu0 %v227
  %238 = vmatprep.subr.mxu0 0.0
  %239 = vmatpush1.msra.mxu0 %v228
  %240 = vmatprep.subr.mxu0 0.0
  %241 = vmatpush1.msra.mxu0 0.0
  %242 = vmatprep.subr.mxu0 0.0
  %243 = vmatpush1.msra.mxu0 0.0
  %244 = vmatprep.subr.mxu0 0.0
  %245 = vmatpush1.msra.mxu0 0.0
  %246 = vmatprep.subr.mxu0 0.0
  %247 = vmatpush1.msra.mxu0 0.0
  %248 = vmatprep.subr.mxu0 0.0
  %249 = vmatpush1.msra.mxu0 0.0
  %250 = vmatprep.subr.mxu0 0.0
  %251 = vmatpush1.msra.mxu0 0.0
  %252 = vmatprep.subr.mxu0 0.0
  %253 = vmatpush1.msra.mxu0 0.0
  %254 = vmatprep.subr.mxu0 0.0
  %255 = vmatpush1.msra.mxu0 0.0
  %256 = vmatprep.subr.mxu0 0.0
  %257 = vmatpush1.msra.mxu0 0.0
  %258 = vmatprep.subr.mxu0 0.0
  %259 = vmatpush1.msra.mxu0 0.0
  %260 = vmatprep.subr.mxu0 0.0
  %261 = vmatpush1.msra.mxu0 0.0
  %262 = vmatprep.subr.mxu0 0.0
  %263 = vmatpush1.msra.mxu0 0.0
  %264 = vmatprep.subr.mxu0 0.0
  %265 = vmatpush1.msra.mxu0 0.0
  %266 = vmatprep.subr.mxu0 0.0
  %267 = vmatpush1.msra.mxu0 0.0
  %268 = vmatprep.subr.mxu0 0.0
  %269 = vmatpush1.msra.mxu0 0.0
  %270 = vmatprep.subr.mxu0 0.0
  %271 = vmatpush1.msra.mxu0 0.0
  %272 = vmatprep.subr.mxu0 0.0
  %273 = vmatpush1.msra.mxu0 0.0
  %274 = vmatprep.subr.mxu0 0.0
  %275 = vmatpush1.msra.mxu0 0.0
  %276 = vmatprep.subr.mxu0 0.0
  %277 = vmatpush1.msra.mxu0 0.0
  %278 = vmatprep.subr.mxu0 0.0
  %279 = vmatpush1.msra.mxu0 0.0
  %280 = vmatprep.subr.mxu0 0.0
  %281 = vmatpush1.msra.mxu0 0.0
  %282 = vmatprep.subr.mxu0 0.0
  %283 = vmatpush1.msra.mxu0 0.0
  %284 = vmatprep.subr.mxu0 0.0
  %285 = vmatpush1.msra.mxu0 0.0
  %286 = vmatprep.subr.mxu0 0.0
  %287 = vmatpush1.msra.mxu0 0.0
  %288 = vmatprep.subr.mxu0 0.0
  %289 = vmatpush1.msra.mxu0 0.0
  %290 = vmatprep.subr.mxu0 0.0
  %291 = vmatpush1.msra.mxu0 0.0
  %292 = vmatprep.subr.mxu0 0.0
  %293 = vmatpush1.msra.mxu0 0.0
  %294 = vmatprep.subr.mxu0 0.0
  %295 = vmatpush1.msra.mxu0 0.0
  %296 = vmatprep.subr.mxu0 0.0
  %297 = vmatpush1.msra.mxu0 0.0
  %298 = vmatprep.subr.mxu0 0.0
  %299 = vmatpush1.msra.mxu0 0.0
  %300 = vmatprep.mubr.f32.mxu0 0.0
  %301 = vmatmul.mubr.f32.gmra.mrb[0].mxu0 %v99
  %v302 = vpop.f32.mrb[0].mxu0
  %v303 = vadd.f32 %v234, %v302
  %v304 = vpop.f32.mrb[0].mxu0
  %305 = vmatprep.mubr.f32.mxu0 0.0
  %306 = vmatmul.mubr.f32.gmra.mrb[0].mxu0 %v102
  %v307 = vpop.f32.mrb[0].mxu0
  %v308 = vadd.f32 %v234, %v307
  %v309 = vpop.f32.mrb[0].mxu0
  %310 = vmatprep.mubr.f32.mxu0 0.0
  %311 = vmatmul.mubr.f32.gmra.mrb[0].mxu0 %v105
  %v312 = vpop.f32.mrb[0].mxu0
  %v313 = vadd.f32 %v234, %v312
  %v314 = vpop.f32.mrb[0].mxu0
  %315 = vmatprep.mubr.f32.mxu0 0.0
  %316 = vmatmul.mubr.f32.gmra.mrb[0].mxu0 %v108
  %v317 = vpop.f32.mrb[0].mxu0
  %v318 = vadd.f32 %v234, %v317
  %v319 = vpop.f32.mrb[0].mxu0
  %320 = vmatprep.mubr.f32.mxu0 0.0
  %321 = vmatmul.mubr.f32.gmra.mrb[0].mxu0 %v111
  %v322 = vpop.f32.mrb[0].mxu0
  %v323 = vadd.f32 %v234, %v322
  %v324 = vpop.f32.mrb[0].mxu0
  %325 = vmatprep.mubr.f32.mxu0 0.0
  %326 = vmatmul.mubr.f32.gmra.mrb[0].mxu0 %v114
  %v327 = vpop.f32.mrb[0].mxu0
  %v328 = vadd.f32 %v234, %v327
  %v329 = vpop.f32.mrb[0].mxu0
  %330 = vmatprep.mubr.f32.mxu0 0.0
  %331 = vmatmul.mubr.f32.gmra.mrb[0].mxu0 %v117
  %v332 = vpop.f32.mrb[0].mxu0
  %v333 = vadd.f32 %v234, %v332
  %v334 = vpop.f32.mrb[0].mxu0
  %335 = vmatprep.mubr.f32.mxu0 0.0
  %336 = vmatmul.mubr.f32.gmra.mrb[0].mxu0 %v120
  %v337 = vpop.f32.mrb[0].mxu0
  %v338 = vadd.f32 %v234, %v337
  %v339 = vpop.f32.mrb[0].mxu0
  %340 = vdwg.mxu0
  %v341 = vld [vmem:[%s4] sm:$0xff]
  %v342 = vld [vmem:[%s4 + $0x8] sm:$0xff]
  %v343 = vld [vmem:[%s4 + $0x10] sm:$0xff]
  %v344 = vld [vmem:[%s4 + $0x18] sm:$0xff]
  %v345 = vld [vmem:[%s7] sm:$0xff]
  %v346 = vld [vmem:[%s7 + $0x8] sm:$0xff]
  %v347 = vld [vmem:[%s7 + $0x10] sm:$0xff]
  %v348 = vld [vmem:[%s7 + $0x18] sm:$0xff]
  %v349 = vlaneseq
  %v350 = vand.u32 %v349, 127
  %vm351 = vcmp.ge.s32.totalorder %v350, 64
  %vm352 = vcmp.lt.s32.totalorder %v350, 96
  %vm353 = vmand %vm351, %vm352
  %vm354 = vcmask 261120
  %v356 = vsel %vm354, 0.0, 0
  %358 = vmatprep.subr.mxu0 0.0
  %359 = vmatpush1.msra.mxu0 %v341
  %360 = vmatprep.subr.mxu0 0.0
  %361 = vmatpush1.msra.mxu0 %v342
  %362 = vmatprep.subr.mxu0 0.0
  %363 = vmatpush1.msra.mxu0 %v343
  %364 = vmatprep.subr.mxu0 0.0
  %365 = vmatpush1.msra.mxu0 %v344
  %366 = vmatprep.subr.mxu0 0.0
  %367 = vmatpush1.msra.mxu0 0.0
  %368 = vmatprep.subr.mxu0 0.0
  %369 = vmatpush1.msra.mxu0 0.0
  %370 = vmatprep.subr.mxu0 0.0
  %371 = vmatpush1.msra.mxu0 0.0
  %372 = vmatprep.subr.mxu0 0.0
  %373 = vmatpush1.msra.mxu0 0.0
  %374 = vmatprep.subr.mxu0 0.0
  %375 = vmatpush1.msra.mxu0 0.0
  %376 = vmatprep.subr.mxu0 0.0
  %377 = vmatpush1.msra.mxu0 0.0
  %378 = vmatprep.subr.mxu0 0.0
  %379 = vmatpush1.msra.mxu0 0.0
  %380 = vmatprep.subr.mxu0 0.0
  %381 = vmatpush1.msra.mxu0 0.0
  %382 = vmatprep.subr.mxu0 0.0
  %383 = vmatpush1.msra.mxu0 0.0
  %384 = vmatprep.subr.mxu0 0.0
  %385 = vmatpush1.msra.mxu0 0.0
  %386 = vmatprep.subr.mxu0 0.0
  %387 = vmatpush1.msra.mxu0 0.0
  %388 = vmatprep.subr.mxu0 0.0
  %389 = vmatpush1.msra.mxu0 0.0
  %390 = vmatprep.subr.mxu0 0.0
  %391 = vmatpush1.msra.mxu0 0.0
  %392 = vmatprep.subr.mxu0 0.0
  %393 = vmatpush1.msra.mxu0 0.0
  %394 = vmatprep.subr.mxu0 0.0
  %395 = vmatpush1.msra.mxu0 0.0
  %396 = vmatprep.subr.mxu0 0.0
  %397 = vmatpush1.msra.mxu0 0.0
  %398 = vmatprep.subr.mxu0 0.0
  %399 = vmatpush1.msra.mxu0 0.0
  %400 = vmatprep.subr.mxu0 0.0
  %401 = vmatpush1.msra.mxu0 0.0
  %402 = vmatprep.subr.mxu0 0.0
  %403 = vmatpush1.msra.mxu0 0.0
  %404 = vmatprep.subr.mxu0 0.0
  %405 = vmatpush1.msra.mxu0 0.0
  %406 = vmatprep.subr.mxu0 0.0
  %407 = vmatpush1.msra.mxu0 0.0
  %408 = vmatprep.subr.mxu0 0.0
  %409 = vmatpush1.msra.mxu0 0.0
  %410 = vmatprep.subr.mxu0 0.0
  %411 = vmatpush1.msra.mxu0 0.0
  %412 = vmatprep.subr.mxu0 0.0
  %413 = vmatpush1.msra.mxu0 0.0
  %414 = vmatprep.subr.mxu0 0.0
  %415 = vmatpush1.msra.mxu0 0.0
  %416 = vmatprep.subr.mxu0 0.0
  %417 = vmatpush1.msra.mxu0 0.0
  %418 = vmatprep.subr.mxu0 0.0
  %419 = vmatpush1.msra.mxu0 0.0
  %420 = vmatprep.subr.mxu0 0.0
  %421 = vmatpush1.msra.mxu0 0.0
  %422 = vmatprep.mubr.f32.mxu0 0.0
  %423 = vmatmul.mubr.f32.gmra.mrb[0].mxu0 %v356
  %v424 = vpop.f32.mrb[0].mxu0
  %v425 = vadd.f32 0.0, %v424
  %v426 = vpop.f32.mrb[0].mxu0
  %427 = vdwg.mxu0
  %v428 = vadd.f32 %v189, %v425
  %v429 = vtanh.pop %v428
  %v430 = vxor.u32 %v428, 2147483648
  %v431 = vmul.f32 %v430, 1.442695
  %v432 = vpow.pop %v431
  %v433 = vadd.f32 %v432, 1.0
  %v434 = vrcp.pop %v433
  %v435 = vmul.f32 1.0, %v434
  %v436 = vsel %vm353, %v429, %v435
  %v437 = vmul.f32 %v436, 0.0
  %439 = vrot.lane.b32.xlu0 %v436, 64
  %v440 = vpop.permute.xlu0 %439
  %v442 = vmul.f32 %v436, %v440
  %444 = vrot.lane.b32.xlu0 %v442, 32
  %v445 = vpop.permute.xlu0 %444
  %v447 = vadd.f32 %v437, %v445
  %v448 = vtanh.pop %v447
  %450 = vrot.lane.b32.xlu0 %v448, 64
  %v451 = vpop.permute.xlu0 %450
  %v453 = vmul.f32 %v436, %v451
  %454 = vmatprep.subr.mxu0 0.0
  %455 = vmatpush1.msra.mxu0 %v345
  %456 = vmatprep.subr.mxu0 0.0
  %457 = vmatpush1.msra.mxu0 %v346
  %458 = vmatprep.subr.mxu0 0.0
  %459 = vmatpush1.msra.mxu0 %v347
  %460 = vmatprep.subr.mxu0 0.0
  %461 = vmatpush1.msra.mxu0 %v348
  %462 = vmatprep.subr.mxu0 0.0
  %463 = vmatpush1.msra.mxu0 0.0
  %464 = vmatprep.subr.mxu0 0.0
  %465 = vmatpush1.msra.mxu0 0.0
  %466 = vmatprep.subr.mxu0 0.0
  %467 = vmatpush1.msra.mxu0 0.0
  %468 = vmatprep.subr.mxu0 0.0
  %469 = vmatpush1.msra.mxu0 0.0
  %470 = vmatprep.subr.mxu0 0.0
  %471 = vmatpush1.msra.mxu0 0.0
  %472 = vmatprep.subr.mxu0 0.0
  %473 = vmatpush1.msra.mxu0 0.0
  %474 = vmatprep.subr.mxu0 0.0
  %475 = vmatpush1.msra.mxu0 0.0
  %476 = vmatprep.subr.mxu0 0.0
  %477 = vmatpush1.msra.mxu0 0.0
  %478 = vmatprep.subr.mxu0 0.0
  %479 = vmatpush1.msra.mxu0 0.0
  %480 = vmatprep.subr.mxu0 0.0
  %481 = vmatpush1.msra.mxu0 0.0
  %482 = vmatprep.subr.mxu0 0.0
  %483 = vmatpush1.msra.mxu0 0.0
  %484 = vmatprep.subr.mxu0 0.0
  %485 = vmatpush1.msra.mxu0 0.0
  %486 = vmatprep.subr.mxu0 0.0
  %487 = vmatpush1.msra.mxu0 0.0
  %488 = vmatprep.subr.mxu0 0.0
  %489 = vmatpush1.msra.mxu0 0.0
  %490 = vmatprep.subr.mxu0 0.0
  %491 = vmatpush1.msra.mxu0 0.0
  %492 = vmatprep.subr.mxu0 0.0
  %493 = vmatpush1.msra.mxu0 0.0
  %494 = vmatprep.subr.mxu0 0.0
  %495 = vmatpush1.msra.mxu0 0.0
  %496 = vmatprep.subr.mxu0 0.0
  %497 = vmatpush1.msra.mxu0 0.0
  %498 = vmatprep.subr.mxu0 0.0
  %499 = vmatpush1.msra.mxu0 0.0
  %500 = vmatprep.subr.mxu0 0.0
  %501 = vmatpush1.msra.mxu0 0.0
  %502 = vmatprep.subr.mxu0 0.0
  %503 = vmatpush1.msra.mxu0 0.0
  %504 = vmatprep.subr.mxu0 0.0
  %505 = vmatpush1.msra.mxu0 0.0
  %506 = vmatprep.subr.mxu0 0.0
  %507 = vmatpush1.msra.mxu0 0.0
  %508 = vmatprep.subr.mxu0 0.0
  %509 = vmatpush1.msra.mxu0 0.0
  %510 = vmatprep.subr.mxu0 0.0
  %511 = vmatpush1.msra.mxu0 0.0
  %512 = vmatprep.subr.mxu0 0.0
  %513 = vmatpush1.msra.mxu0 0.0
  %514 = vmatprep.subr.mxu0 0.0
  %515 = vmatpush1.msra.mxu0 0.0
  %516 = vmatprep.subr.mxu0 0.0
  %517 = vmatpush1.msra.mxu0 0.0
  %518 = vmatprep.mubr.f32.mxu0 0.0
  %519 = vmatmul.mubr.f32.gmra.mrb[0].mxu0 %v356
  %v520 = vpop.f32.mrb[0].mxu0
  %v521 = vadd.f32 0.0, %v520
  %v522 = vpop.f32.mrb[0].mxu0
  %523 = vdwg.mxu0
  %v524 = vadd.f32 %v338, %v521
  %v525 = vtanh.pop %v524
  %v526 = vxor.u32 %v524, 2147483648
  %v527 = vmul.f32 %v526, 1.442695
  %v528 = vpow.pop %v527
  %v529 = vadd.f32 %v528, 1.0
  %v530 = vrcp.pop %v529
  %v531 = vmul.f32 1.0, %v530
  %v532 = vsel %vm353, %v525, %v531
  %v533 = vmul.f32 %v532, 0.0
  %535 = vrot.lane.b32.xlu0 %v532, 64
  %v536 = vpop.permute.xlu0 %535
  %v538 = vmul.f32 %v532, %v536
  %540 = vrot.lane.b32.xlu0 %v538, 32
  %v541 = vpop.permute.xlu0 %540
  %v543 = vadd.f32 %v533, %v541
  %v544 = vtanh.pop %v543
  %546 = vrot.lane.b32.xlu0 %v544, 64
  %v547 = vpop.permute.xlu0 %546
  %v549 = vmul.f32 %v532, %v547
  %551 = vrot.lane.b32.xlu0 %v453, 32
  %v552 = vpop.permute.xlu0 %551
  %v553 = vsel %vm354, %v552, 0
  %555 = vmatprep.subr.mxu0 0.0
  %556 = vmatpush1.msra.mxu0 %v341
  %557 = vmatprep.subr.mxu0 0.0
  %558 = vmatpush1.msra.mxu0 %v342
  %559 = vmatprep.subr.mxu0 0.0
  %560 = vmatpush1.msra.mxu0 %v343
  %561 = vmatprep.subr.mxu0 0.0
  %562 = vmatpush1.msra.mxu0 %v344
  %563 = vmatprep.subr.mxu0 0.0
  %564 = vmatpush1.msra.mxu0 0.0
  %565 = vmatprep.subr.mxu0 0.0
  %566 = vmatpush1.msra.mxu0 0.0
  %567 = vmatprep.subr.mxu0 0.0
  %568 = vmatpush1.msra.mxu0 0.0
  %569 = vmatprep.subr.mxu0 0.0
  %570 = vmatpush1.msra.mxu0 0.0
  %571 = vmatprep.subr.mxu0 0.0
  %572 = vmatpush1.msra.mxu0 0.0
  %573 = vmatprep.subr.mxu0 0.0
  %574 = vmatpush1.msra.mxu0 0.0
  %575 = vmatprep.subr.mxu0 0.0
  %576 = vmatpush1.msra.mxu0 0.0
  %577 = vmatprep.subr.mxu0 0.0
  %578 = vmatpush1.msra.mxu0 0.0
  %579 = vmatprep.subr.mxu0 0.0
  %580 = vmatpush1.msra.mxu0 0.0
  %581 = vmatprep.subr.mxu0 0.0
  %582 = vmatpush1.msra.mxu0 0.0
  %583 = vmatprep.subr.mxu0 0.0
  %584 = vmatpush1.msra.mxu0 0.0
  %585 = vmatprep.subr.mxu0 0.0
  %586 = vmatpush1.msra.mxu0 0.0
  %587 = vmatprep.subr.mxu0 0.0
  %588 = vmatpush1.msra.mxu0 0.0
  %589 = vmatprep.subr.mxu0 0.0
  %590 = vmatpush1.msra.mxu0 0.0
  %591 = vmatprep.subr.mxu0 0.0
  %592 = vmatpush1.msra.mxu0 0.0
  %593 = vmatprep.subr.mxu0 0.0
  %594 = vmatpush1.msra.mxu0 0.0
  %595 = vmatprep.subr.mxu0 0.0
  %596 = vmatpush1.msra.mxu0 0.0
  %597 = vmatprep.subr.mxu0 0.0
  %598 = vmatpush1.msra.mxu0 0.0
  %599 = vmatprep.subr.mxu0 0.0
  %600 = vmatpush1.msra.mxu0 0.0
  %601 = vmatprep.subr.mxu0 0.0
  %602 = vmatpush1.msra.mxu0 0.0
  %603 = vmatprep.subr.mxu0 0.0
  %604 = vmatpush1.msra.mxu0 0.0
  %605 = vmatprep.subr.mxu0 0.0
  %606 = vmatpush1.msra.mxu0 0.0
  %607 = vmatprep.subr.mxu0 0.0
  %608 = vmatpush1.msra.mxu0 0.0
  %609 = vmatprep.subr.mxu0 0.0
  %610 = vmatpush1.msra.mxu0 0.0
  %611 = vmatprep.subr.mxu0 0.0
  %612 = vmatpush1.msra.mxu0 0.0
  %613 = vmatprep.subr.mxu0 0.0
  %614 = vmatpush1.msra.mxu0 0.0
  %615 = vmatprep.subr.mxu0 0.0
  %616 = vmatpush1.msra.mxu0 0.0
  %617 = vmatprep.subr.mxu0 0.0
  %618 = vmatpush1.msra.mxu0 0.0
  %619 = vmatprep.mubr.f32.mxu0 0.0
  %620 = vmatmul.mubr.f32.gmra.mrb[0].mxu0 %v553
  %v621 = vpop.f32.mrb[0].mxu0
  %v622 = vadd.f32 0.0, %v621
  %v623 = vpop.f32.mrb[0].mxu0
  %624 = vdwg.mxu0
  %v625 = vadd.f32 %v194, %v622
  %v626 = vtanh.pop %v625
  %v627 = vxor.u32 %v625, 2147483648
  %v628 = vmul.f32 %v627, 1.442695
  %v629 = vpow.pop %v628
  %v630 = vadd.f32 %v629, 1.0
  %v631 = vrcp.pop %v630
  %v632 = vmul.f32 1.0, %v631
  %v633 = vsel %vm353, %v626, %v632
  %v634 = vmul.f32 %v633, %v447
  %636 = vrot.lane.b32.xlu0 %v633, 64
  %v637 = vpop.permute.xlu0 %636
  %v639 = vmul.f32 %v633, %v637
  %641 = vrot.lane.b32.xlu0 %v639, 32
  %v642 = vpop.permute.xlu0 %641
  %v644 = vadd.f32 %v634, %v642
  %v645 = vtanh.pop %v644
  %647 = vrot.lane.b32.xlu0 %v645, 64
  %v648 = vpop.permute.xlu0 %647
  %v650 = vmul.f32 %v633, %v648
  %652 = vrot.lane.b32.xlu0 %v549, 32
  %v653 = vpop.permute.xlu0 %652
  %v654 = vsel %vm354, %v653, 0
  %656 = vmatprep.subr.mxu0 0.0
  %657 = vmatpush1.msra.mxu0 %v345
  %658 = vmatprep.subr.mxu0 0.0
  %659 = vmatpush1.msra.mxu0 %v346
  %660 = vmatprep.subr.mxu0 0.0
  %661 = vmatpush1.msra.mxu0 %v347
  %662 = vmatprep.subr.mxu0 0.0
  %663 = vmatpush1.msra.mxu0 %v348
  %664 = vmatprep.subr.mxu0 0.0
  %665 = vmatpush1.msra.mxu0 0.0
  %666 = vmatprep.subr.mxu0 0.0
  %667 = vmatpush1.msra.mxu0 0.0
  %668 = vmatprep.subr.mxu0 0.0
  %669 = vmatpush1.msra.mxu0 0.0
  %670 = vmatprep.subr.mxu0 0.0
  %671 = vmatpush1.msra.mxu0 0.0
  %672 = vmatprep.subr.mxu0 0.0
  %673 = vmatpush1.msra.mxu0 0.0
  %674 = vmatprep.subr.mxu0 0.0
  %675 = vmatpush1.msra.mxu0 0.0
  %676 = vmatprep.subr.mxu0 0.0
  %677 = vmatpush1.msra.mxu0 0.0
  %678 = vmatprep.subr.mxu0 0.0
  %679 = vmatpush1.msra.mxu0 0.0
  %680 = vmatprep.subr.mxu0 0.0
  %681 = vmatpush1.msra.mxu0 0.0
  %682 = vmatprep.subr.mxu0 0.0
  %683 = vmatpush1.msra.mxu0 0.0
  %684 = vmatprep.subr.mxu0 0.0
  %685 = vmatpush1.msra.mxu0 0.0
  %686 = vmatprep.subr.mxu0 0.0
  %687 = vmatpush1.msra.mxu0 0.0
  %688 = vmatprep.subr.mxu0 0.0
  %689 = vmatpush1.msra.mxu0 0.0
  %690 = vmatprep.subr.mxu0 0.0
  %691 = vmatpush1.msra.mxu0 0.0
  %692 = vmatprep.subr.mxu0 0.0
  %693 = vmatpush1.msra.mxu0 0.0
  %694 = vmatprep.subr.mxu0 0.0
  %695 = vmatpush1.msra.mxu0 0.0
  %696 = vmatprep.subr.mxu0 0.0
  %697 = vmatpush1.msra.mxu0 0.0
  %698 = vmatprep.subr.mxu0 0.0
  %699 = vmatpush1.msra.mxu0 0.0
  %700 = vmatprep.subr.mxu0 0.0
  %701 = vmatpush1.msra.mxu0 0.0
  %702 = vmatprep.subr.mxu0 0.0
  %703 = vmatpush1.msra.mxu0 0.0
  %704 = vmatprep.subr.mxu0 0.0
  %705 = vmatpush1.msra.mxu0 0.0
  %706 = vmatprep.subr.mxu0 0.0
  %707 = vmatpush1.msra.mxu0 0.0
  %708 = vmatprep.subr.mxu0 0.0
  %709 = vmatpush1.msra.mxu0 0.0
  %710 = vmatprep.subr.mxu0 0.0
  %711 = vmatpush1.msra.mxu0 0.0
  %712 = vmatprep.subr.mxu0 0.0
  %713 = vmatpush1.msra.mxu0 0.0
  %714 = vmatprep.subr.mxu0 0.0
  %715 = vmatpush1.msra.mxu0 0.0
  %716 = vmatprep.subr.mxu0 0.0
  %717 = vmatpush1.msra.mxu0 0.0
  %718 = vmatprep.subr.mxu0 0.0
  %719 = vmatpush1.msra.mxu0 0.0
  %720 = vmatprep.mubr.f32.mxu0 0.0
  %721 = vmatmul.mubr.f32.gmra.mrb[0].mxu0 %v654
  %v722 = vpop.f32.mrb[0].mxu0
  %v723 = vadd.f32 0.0, %v722
  %v724 = vpop.f32.mrb[0].mxu0
  %725 = vdwg.mxu0
  %v726 = vadd.f32 %v333, %v723
  %v727 = vtanh.pop %v726
  %v728 = vxor.u32 %v726, 2147483648
  %v729 = vmul.f32 %v728, 1.442695
  %v730 = vpow.pop %v729
  %v731 = vadd.f32 %v730, 1.0
  %v732 = vrcp.pop %v731
  %v733 = vmul.f32 1.0, %v732
  %v734 = vsel %vm353, %v727, %v733
  %v735 = vmul.f32 %v734, %v543
  %737 = vrot.lane.b32.xlu0 %v734, 64
  %v738 = vpop.permute.xlu0 %737
  %v740 = vmul.f32 %v734, %v738
  %742 = vrot.lane.b32.xlu0 %v740, 32
  %v743 = vpop.permute.xlu0 %742
  %v745 = vadd.f32 %v735, %v743
  %v746 = vtanh.pop %v745
  %748 = vrot.lane.b32.xlu0 %v746, 64
  %v749 = vpop.permute.xlu0 %748
  %v751 = vmul.f32 %v734, %v749
  %753 = vrot.lane.b32.xlu0 %v650, 32
  %v754 = vpop.permute.xlu0 %753
  %v755 = vsel %vm354, %v754, 0
  %757 = vmatprep.subr.mxu0 0.0
  %758 = vmatpush1.msra.mxu0 %v341
  %759 = vmatprep.subr.mxu0 0.0
  %760 = vmatpush1.msra.mxu0 %v342
  %761 = vmatprep.subr.mxu0 0.0
  %762 = vmatpush1.msra.mxu0 %v343
  %763 = vmatprep.subr.mxu0 0.0
  %764 = vmatpush1.msra.mxu0 %v344
  %765 = vmatprep.subr.mxu0 0.0
  %766 = vmatpush1.msra.mxu0 0.0
  %767 = vmatprep.subr.mxu0 0.0
  %768 = vmatpush1.msra.mxu0 0.0
  %769 = vmatprep.subr.mxu0 0.0
  %770 = vmatpush1.msra.mxu0 0.0
  %771 = vmatprep.subr.mxu0 0.0
  %772 = vmatpush1.msra.mxu0 0.0
  %773 = vmatprep.subr.mxu0 0.0
  %774 = vmatpush1.msra.mxu0 0.0
  %775 = vmatprep.subr.mxu0 0.0
  %776 = vmatpush1.msra.mxu0 0.0
  %777 = vmatprep.subr.mxu0 0.0
  %778 = vmatpush1.msra.mxu0 0.0
  %779 = vmatprep.subr.mxu0 0.0
  %780 = vmatpush1.msra.mxu0 0.0
  %781 = vmatprep.subr.mxu0 0.0
  %782 = vmatpush1.msra.mxu0 0.0
  %783 = vmatprep.subr.mxu0 0.0
  %784 = vmatpush1.msra.mxu0 0.0
  %785 = vmatprep.subr.mxu0 0.0
  %786 = vmatpush1.msra.mxu0 0.0
  %787 = vmatprep.subr.mxu0 0.0
  %788 = vmatpush1.msra.mxu0 0.0
  %789 = vmatprep.subr.mxu0 0.0
  %790 = vmatpush1.msra.mxu0 0.0
  %791 = vmatprep.subr.mxu0 0.0
  %792 = vmatpush1.msra.mxu0 0.0
  %793 = vmatprep.subr.mxu0 0.0
  %794 = vmatpush1.msra.mxu0 0.0
  %795 = vmatprep.subr.mxu0 0.0
  %796 = vmatpush1.msra.mxu0 0.0
  %797 = vmatprep.subr.mxu0 0.0
  %798 = vmatpush1.msra.mxu0 0.0
  %799 = vmatprep.subr.mxu0 0.0
  %800 = vmatpush1.msra.mxu0 0.0
  %801 = vmatprep.subr.mxu0 0.0
  %802 = vmatpush1.msra.mxu0 0.0
  %803 = vmatprep.subr.mxu0 0.0
  %804 = vmatpush1.msra.mxu0 0.0
  %805 = vmatprep.subr.mxu0 0.0
  %806 = vmatpush1.msra.mxu0 0.0
  %807 = vmatprep.subr.mxu0 0.0
  %808 = vmatpush1.msra.mxu0 0.0
  %809 = vmatprep.subr.mxu0 0.0
  %810 = vmatpush1.msra.mxu0 0.0
  %811 = vmatprep.subr.mxu0 0.0
  %812 = vmatpush1.msra.mxu0 0.0
  %813 = vmatprep.subr.mxu0 0.0
  %814 = vmatpush1.msra.mxu0 0.0
  %815 = vmatprep.subr.mxu0 0.0
  %816 = vmatpush1.msra.mxu0 0.0
  %817 = vmatprep.subr.mxu0 0.0
  %818 = vmatpush1.msra.mxu0 0.0
  %819 = vmatprep.subr.mxu0 0.0
  %820 = vmatpush1.msra.mxu0 0.0
  %821 = vmatprep.mubr.f32.mxu0 0.0
  %822 = vmatmul.mubr.f32.gmra.mrb[0].mxu0 %v755
  %v823 = vpop.f32.mrb[0].mxu0
  %v824 = vadd.f32 0.0, %v823
  %v825 = vpop.f32.mrb[0].mxu0
  %826 = vdwg.mxu0
  %v827 = vadd.f32 %v199, %v824
  %v828 = vtanh.pop %v827
  %v829 = vxor.u32 %v827, 2147483648
  %v830 = vmul.f32 %v829, 1.442695
  %v831 = vpow.pop %v830
  %v832 = vadd.f32 %v831, 1.0
  %v833 = vrcp.pop %v832
  %v834 = vmul.f32 1.0, %v833
  %v835 = vsel %vm353, %v828, %v834
  %v836 = vmul.f32 %v835, %v644
  %838 = vrot.lane.b32.xlu0 %v835, 64
  %v839 = vpop.permute.xlu0 %838
  %v841 = vmul.f32 %v835, %v839
  %843 = vrot.lane.b32.xlu0 %v841, 32
  %v844 = vpop.permute.xlu0 %843
  %v846 = vadd.f32 %v836, %v844
  %v847 = vtanh.pop %v846
  %849 = vrot.lane.b32.xlu0 %v847, 64
  %v850 = vpop.permute.xlu0 %849
  %v852 = vmul.f32 %v835, %v850
  %854 = vrot.lane.b32.xlu0 %v751, 32
  %v855 = vpop.permute.xlu0 %854
  %v856 = vsel %vm354, %v855, 0
  %858 = vmatprep.subr.mxu0 0.0
  %859 = vmatpush1.msra.mxu0 %v345
  %860 = vmatprep.subr.mxu0 0.0
  %861 = vmatpush1.msra.mxu0 %v346
  %862 = vmatprep.subr.mxu0 0.0
  %863 = vmatpush1.msra.mxu0 %v347
  %864 = vmatprep.subr.mxu0 0.0
  %865 = vmatpush1.msra.mxu0 %v348
  %866 = vmatprep.subr.mxu0 0.0
  %867 = vmatpush1.msra.mxu0 0.0
  %868 = vmatprep.subr.mxu0 0.0
  %869 = vmatpush1.msra.mxu0 0.0
  %870 = vmatprep.subr.mxu0 0.0
  %871 = vmatpush1.msra.mxu0 0.0
  %872 = vmatprep.subr.mxu0 0.0
  %873 = vmatpush1.msra.mxu0 0.0
  %874 = vmatprep.subr.mxu0 0.0
  %875 = vmatpush1.msra.mxu0 0.0
  %876 = vmatprep.subr.mxu0 0.0
  %877 = vmatpush1.msra.mxu0 0.0
  %878 = vmatprep.subr.mxu0 0.0
  %879 = vmatpush1.msra.mxu0 0.0
  %880 = vmatprep.subr.mxu0 0.0
  %881 = vmatpush1.msra.mxu0 0.0
  %882 = vmatprep.subr.mxu0 0.0
  %883 = vmatpush1.msra.mxu0 0.0
  %884 = vmatprep.subr.mxu0 0.0
  %885 = vmatpush1.msra.mxu0 0.0
  %886 = vmatprep.subr.mxu0 0.0
  %887 = vmatpush1.msra.mxu0 0.0
  %888 = vmatprep.subr.mxu0 0.0
  %889 = vmatpush1.msra.mxu0 0.0
  %890 = vmatprep.subr.mxu0 0.0
  %891 = vmatpush1.msra.mxu0 0.0
  %892 = vmatprep.subr.mxu0 0.0
  %893 = vmatpush1.msra.mxu0 0.0
  %894 = vmatprep.subr.mxu0 0.0
  %895 = vmatpush1.msra.mxu0 0.0
  %896 = vmatprep.subr.mxu0 0.0
  %897 = vmatpush1.msra.mxu0 0.0
  %898 = vmatprep.subr.mxu0 0.0
  %899 = vmatpush1.msra.mxu0 0.0
  %900 = vmatprep.subr.mxu0 0.0
  %901 = vmatpush1.msra.mxu0 0.0
  %902 = vmatprep.subr.mxu0 0.0
  %903 = vmatpush1.msra.mxu0 0.0
  %904 = vmatprep.subr.mxu0 0.0
  %905 = vmatpush1.msra.mxu0 0.0
  %906 = vmatprep.subr.mxu0 0.0
  %907 = vmatpush1.msra.mxu0 0.0
  %908 = vmatprep.subr.mxu0 0.0
  %909 = vmatpush1.msra.mxu0 0.0
  %910 = vmatprep.subr.mxu0 0.0
  %911 = vmatpush1.msra.mxu0 0.0
  %912 = vmatprep.subr.mxu0 0.0
  %913 = vmatpush1.msra.mxu0 0.0
  %914 = vmatprep.subr.mxu0 0.0
  %915 = vmatpush1.msra.mxu0 0.0
  %916 = vmatprep.subr.mxu0 0.0
  %917 = vmatpush1.msra.mxu0 0.0
  %918 = vmatprep.subr.mxu0 0.0
  %919 = vmatpush1.msra.mxu0 0.0
  %920 = vmatprep.subr.mxu0 0.0
  %921 = vmatpush1.msra.mxu0 0.0
  %922 = vmatprep.mubr.f32.mxu0 0.0
  %923 = vmatmul.mubr.f32.gmra.mrb[0].mxu0 %v856
  %v924 = vpop.f32.mrb[0].mxu0
  %v925 = vadd.f32 0.0, %v924
  %v926 = vpop.f32.mrb[0].mxu0
  %927 = vdwg.mxu0
  %v928 = vadd.f32 %v328, %v925
  %v929 = vtanh.pop %v928
  %v930 = vxor.u32 %v928, 2147483648
  %v931 = vmul.f32 %v930, 1.442695
  %v932 = vpow.pop %v931
  %v933 = vadd.f32 %v932, 1.0
  %v934 = vrcp.pop %v933
  %v935 = vmul.f32 1.0, %v934
  %v936 = vsel %vm353, %v929, %v935
  %v937 = vmul.f32 %v936, %v745
  %939 = vrot.lane.b32.xlu0 %v936, 64
  %v940 = vpop.permute.xlu0 %939
  %v942 = vmul.f32 %v936, %v940
  %944 = vrot.lane.b32.xlu0 %v942, 32
  %v945 = vpop.permute.xlu0 %944
  %v947 = vadd.f32 %v937, %v945
  %v948 = vtanh.pop %v947
  %950 = vrot.lane.b32.xlu0 %v948, 64
  %v951 = vpop.permute.xlu0 %950
  %v953 = vmul.f32 %v936, %v951
  %955 = vrot.lane.b32.xlu0 %v852, 32
  %v956 = vpop.permute.xlu0 %955
  %v957 = vsel %vm354, %v956, 0
  %959 = vmatprep.subr.mxu0 0.0
  %960 = vmatpush1.msra.mxu0 %v341
  %961 = vmatprep.subr.mxu0 0.0
  %962 = vmatpush1.msra.mxu0 %v342
  %963 = vmatprep.subr.mxu0 0.0
  %964 = vmatpush1.msra.mxu0 %v343
  %965 = vmatprep.subr.mxu0 0.0
  %966 = vmatpush1.msra.mxu0 %v344
  %967 = vmatprep.subr.mxu0 0.0
  %968 = vmatpush1.msra.mxu0 0.0
  %969 = vmatprep.subr.mxu0 0.0
  %970 = vmatpush1.msra.mxu0 0.0
  %971 = vmatprep.subr.mxu0 0.0
  %972 = vmatpush1.msra.mxu0 0.0
  %973 = vmatprep.subr.mxu0 0.0
  %974 = vmatpush1.msra.mxu0 0.0
  %975 = vmatprep.subr.mxu0 0.0
  %976 = vmatpush1.msra.mxu0 0.0
  %977 = vmatprep.subr.mxu0 0.0
  %978 = vmatpush1.msra.mxu0 0.0
  %979 = vmatprep.subr.mxu0 0.0
  %980 = vmatpush1.msra.mxu0 0.0
  %981 = vmatprep.subr.mxu0 0.0
  %982 = vmatpush1.msra.mxu0 0.0
  %983 = vmatprep.subr.mxu0 0.0
  %984 = vmatpush1.msra.mxu0 0.0
  %985 = vmatprep.subr.mxu0 0.0
  %986 = vmatpush1.msra.mxu0 0.0
  %987 = vmatprep.subr.mxu0 0.0
  %988 = vmatpush1.msra.mxu0 0.0
  %989 = vmatprep.subr.mxu0 0.0
  %990 = vmatpush1.msra.mxu0 0.0
  %991 = vmatprep.subr.mxu0 0.0
  %992 = vmatpush1.msra.mxu0 0.0
  %993 = vmatprep.subr.mxu0 0.0
  %994 = vmatpush1.msra.mxu0 0.0
  %995 = vmatprep.subr.mxu0 0.0
  %996 = vmatpush1.msra.mxu0 0.0
  %997 = vmatprep.subr.mxu0 0.0
  %998 = vmatpush1.msra.mxu0 0.0
  %999 = vmatprep.subr.mxu0 0.0
  %1000 = vmatpush1.msra.mxu0 0.0
  %1001 = vmatprep.subr.mxu0 0.0
  %1002 = vmatpush1.msra.mxu0 0.0
  %1003 = vmatprep.subr.mxu0 0.0
  %1004 = vmatpush1.msra.mxu0 0.0
  %1005 = vmatprep.subr.mxu0 0.0
  %1006 = vmatpush1.msra.mxu0 0.0
  %1007 = vmatprep.subr.mxu0 0.0
  %1008 = vmatpush1.msra.mxu0 0.0
  %1009 = vmatprep.subr.mxu0 0.0
  %1010 = vmatpush1.msra.mxu0 0.0
  %1011 = vmatprep.subr.mxu0 0.0
  %1012 = vmatpush1.msra.mxu0 0.0
  %1013 = vmatprep.subr.mxu0 0.0
  %1014 = vmatpush1.msra.mxu0 0.0
  %1015 = vmatprep.subr.mxu0 0.0
  %1016 = vmatpush1.msra.mxu0 0.0
  %1017 = vmatprep.subr.mxu0 0.0
  %1018 = vmatpush1.msra.mxu0 0.0
  %1019 = vmatprep.subr.mxu0 0.0
  %1020 = vmatpush1.msra.mxu0 0.0
  %1021 = vmatprep.subr.mxu0 0.0
  %1022 = vmatpush1.msra.mxu0 0.0
  %1023 = vmatprep.mubr.f32.mxu0 0.0
  %1024 = vmatmul.mubr.f32.gmra.mrb[0].mxu0 %v957
  %v1025 = vpop.f32.mrb[0].mxu0
  %v1026 = vadd.f32 0.0, %v1025
  %v1027 = vpop.f32.mrb[0].mxu0
  %1028 = vdwg.mxu0
  %v1029 = vadd.f32 %v204, %v1026
  %v1030 = vtanh.pop %v1029
  %v1031 = vxor.u32 %v1029, 2147483648
  %v1032 = vmul.f32 %v1031, 1.442695
  %v1033 = vpow.pop %v1032
  %v1034 = vadd.f32 %v1033, 1.0
  %v1035 = vrcp.pop %v1034
  %v1036 = vmul.f32 1.0, %v1035
  %v1037 = vsel %vm353, %v1030, %v1036
  %v1038 = vmul.f32 %v1037, %v846
  %1040 = vrot.lane.b32.xlu0 %v1037, 64
  %v1041 = vpop.permute.xlu0 %1040
  %v1043 = vmul.f32 %v1037, %v1041
  %1045 = vrot.lane.b32.xlu0 %v1043, 32
  %v1046 = vpop.permute.xlu0 %1045
  %v1048 = vadd.f32 %v1038, %v1046
  %v1049 = vtanh.pop %v1048
  %1051 = vrot.lane.b32.xlu0 %v1049, 64
  %v1052 = vpop.permute.xlu0 %1051
  %v1054 = vmul.f32 %v1037, %v1052
  %1056 = vrot.lane.b32.xlu0 %v953, 32
  %v1057 = vpop.permute.xlu0 %1056
  %v1058 = vsel %vm354, %v1057, 0
  %1060 = vmatprep.subr.mxu0 0.0
  %1061 = vmatpush1.msra.mxu0 %v345
  %1062 = vmatprep.subr.mxu0 0.0
  %1063 = vmatpush1.msra.mxu0 %v346
  %1064 = vmatprep.subr.mxu0 0.0
  %1065 = vmatpush1.msra.mxu0 %v347
  %1066 = vmatprep.subr.mxu0 0.0
  %1067 = vmatpush1.msra.mxu0 %v348
  %1068 = vmatprep.subr.mxu0 0.0
  %1069 = vmatpush1.msra.mxu0 0.0
  %1070 = vmatprep.subr.mxu0 0.0
  %1071 = vmatpush1.msra.mxu0 0.0
  %1072 = vmatprep.subr.mxu0 0.0
  %1073 = vmatpush1.msra.mxu0 0.0
  %1074 = vmatprep.subr.mxu0 0.0
  %1075 = vmatpush1.msra.mxu0 0.0
  %1076 = vmatprep.subr.mxu0 0.0
  %1077 = vmatpush1.msra.mxu0 0.0
  %1078 = vmatprep.subr.mxu0 0.0
  %1079 = vmatpush1.msra.mxu0 0.0
  %1080 = vmatprep.subr.mxu0 0.0
  %1081 = vmatpush1.msra.mxu0 0.0
  %1082 = vmatprep.subr.mxu0 0.0
  %1083 = vmatpush1.msra.mxu0 0.0
  %1084 = vmatprep.subr.mxu0 0.0
  %1085 = vmatpush1.msra.mxu0 0.0
  %1086 = vmatprep.subr.mxu0 0.0
  %1087 = vmatpush1.msra.mxu0 0.0
  %1088 = vmatprep.subr.mxu0 0.0
  %1089 = vmatpush1.msra.mxu0 0.0
  %1090 = vmatprep.subr.mxu0 0.0
  %1091 = vmatpush1.msra.mxu0 0.0
  %1092 = vmatprep.subr.mxu0 0.0
  %1093 = vmatpush1.msra.mxu0 0.0
  %1094 = vmatprep.subr.mxu0 0.0
  %1095 = vmatpush1.msra.mxu0 0.0
  %1096 = vmatprep.subr.mxu0 0.0
  %1097 = vmatpush1.msra.mxu0 0.0
  %1098 = vmatprep.subr.mxu0 0.0
  %1099 = vmatpush1.msra.mxu0 0.0
  %1100 = vmatprep.subr.mxu0 0.0
  %1101 = vmatpush1.msra.mxu0 0.0
  %1102 = vmatprep.subr.mxu0 0.0
  %1103 = vmatpush1.msra.mxu0 0.0
  %1104 = vmatprep.subr.mxu0 0.0
  %1105 = vmatpush1.msra.mxu0 0.0
  %1106 = vmatprep.subr.mxu0 0.0
  %1107 = vmatpush1.msra.mxu0 0.0
  %1108 = vmatprep.subr.mxu0 0.0
  %1109 = vmatpush1.msra.mxu0 0.0
  %1110 = vmatprep.subr.mxu0 0.0
  %1111 = vmatpush1.msra.mxu0 0.0
  %1112 = vmatprep.subr.mxu0 0.0
  %1113 = vmatpush1.msra.mxu0 0.0
  %1114 = vmatprep.subr.mxu0 0.0
  %1115 = vmatpush1.msra.mxu0 0.0
  %1116 = vmatprep.subr.mxu0 0.0
  %1117 = vmatpush1.msra.mxu0 0.0
  %1118 = vmatprep.subr.mxu0 0.0
  %1119 = vmatpush1.msra.mxu0 0.0
  %1120 = vmatprep.subr.mxu0 0.0
  %1121 = vmatpush1.msra.mxu0 0.0
  %1122 = vmatprep.subr.mxu0 0.0
  %1123 = vmatpush1.msra.mxu0 0.0
  %1124 = vmatprep.mubr.f32.mxu0 0.0
  %1125 = vmatmul.mubr.f32.gmra.mrb[0].mxu0 %v1058
  %v1126 = vpop.f32.mrb[0].mxu0
  %v1127 = vadd.f32 0.0, %v1126
  %v1128 = vpop.f32.mrb[0].mxu0
  %1129 = vdwg.mxu0
  %v1130 = vadd.f32 %v323, %v1127
  %v1131 = vtanh.pop %v1130
  %v1132 = vxor.u32 %v1130, 2147483648
  %v1133 = vmul.f32 %v1132, 1.442695
  %v1134 = vpow.pop %v1133
  %v1135 = vadd.f32 %v1134, 1.0
  %v1136 = vrcp.pop %v1135
  %v1137 = vmul.f32 1.0, %v1136
  %v1138 = vsel %vm353, %v1131, %v1137
  %v1139 = vmul.f32 %v1138, %v947
  %1141 = vrot.lane.b32.xlu0 %v1138, 64
  %v1142 = vpop.permute.xlu0 %1141
  %v1144 = vmul.f32 %v1138, %v1142
  %1146 = vrot.lane.b32.xlu0 %v1144, 32
  %v1147 = vpop.permute.xlu0 %1146
  %v1149 = vadd.f32 %v1139, %v1147
  %v1150 = vtanh.pop %v1149
  %1152 = vrot.lane.b32.xlu0 %v1150, 64
  %v1153 = vpop.permute.xlu0 %1152
  %v1155 = vmul.f32 %v1138, %v1153
  %1157 = vrot.lane.b32.xlu0 %v1054, 32
  %v1158 = vpop.permute.xlu0 %1157
  %v1159 = vsel %vm354, %v1158, 0
  %1161 = vmatprep.subr.mxu0 0.0
  %1162 = vmatpush1.msra.mxu0 %v341
  %1163 = vmatprep.subr.mxu0 0.0
  %1164 = vmatpush1.msra.mxu0 %v342
  %1165 = vmatprep.subr.mxu0 0.0
  %1166 = vmatpush1.msra.mxu0 %v343
  %1167 = vmatprep.subr.mxu0 0.0
  %1168 = vmatpush1.msra.mxu0 %v344
  %1169 = vmatprep.subr.mxu0 0.0
  %1170 = vmatpush1.msra.mxu0 0.0
  %1171 = vmatprep.subr.mxu0 0.0
  %1172 = vmatpush1.msra.mxu0 0.0
  %1173 = vmatprep.subr.mxu0 0.0
  %1174 = vmatpush1.msra.mxu0 0.0
  %1175 = vmatprep.subr.mxu0 0.0
  %1176 = vmatpush1.msra.mxu0 0.0
  %1177 = vmatprep.subr.mxu0 0.0
  %1178 = vmatpush1.msra.mxu0 0.0
  %1179 = vmatprep.subr.mxu0 0.0
  %1180 = vmatpush1.msra.mxu0 0.0
  %1181 = vmatprep.subr.mxu0 0.0
  %1182 = vmatpush1.msra.mxu0 0.0
  %1183 = vmatprep.subr.mxu0 0.0
  %1184 = vmatpush1.msra.mxu0 0.0
  %1185 = vmatprep.subr.mxu0 0.0
  %1186 = vmatpush1.msra.mxu0 0.0
  %1187 = vmatprep.subr.mxu0 0.0
  %1188 = vmatpush1.msra.mxu0 0.0
  %1189 = vmatprep.subr.mxu0 0.0
  %1190 = vmatpush1.msra.mxu0 0.0
  %1191 = vmatprep.subr.mxu0 0.0
  %1192 = vmatpush1.msra.mxu0 0.0
  %1193 = vmatprep.subr.mxu0 0.0
  %1194 = vmatpush1.msra.mxu0 0.0
  %1195 = vmatprep.subr.mxu0 0.0
  %1196 = vmatpush1.msra.mxu0 0.0
  %1197 = vmatprep.subr.mxu0 0.0
  %1198 = vmatpush1.msra.mxu0 0.0
  %1199 = vmatprep.subr.mxu0 0.0
  %1200 = vmatpush1.msra.mxu0 0.0
  %1201 = vmatprep.subr.mxu0 0.0
  %1202 = vmatpush1.msra.mxu0 0.0
  %1203 = vmatprep.subr.mxu0 0.0
  %1204 = vmatpush1.msra.mxu0 0.0
  %1205 = vmatprep.subr.mxu0 0.0
  %1206 = vmatpush1.msra.mxu0 0.0
  %1207 = vmatprep.subr.mxu0 0.0
  %1208 = vmatpush1.msra.mxu0 0.0
  %1209 = vmatprep.subr.mxu0 0.0
  %1210 = vmatpush1.msra.mxu0 0.0
  %1211 = vmatprep.subr.mxu0 0.0
  %1212 = vmatpush1.msra.mxu0 0.0
  %1213 = vmatprep.subr.mxu0 0.0
  %1214 = vmatpush1.msra.mxu0 0.0
  %1215 = vmatprep.subr.mxu0 0.0
  %1216 = vmatpush1.msra.mxu0 0.0
  %1217 = vmatprep.subr.mxu0 0.0
  %1218 = vmatpush1.msra.mxu0 0.0
  %1219 = vmatprep.subr.mxu0 0.0
  %1220 = vmatpush1.msra.mxu0 0.0
  %1221 = vmatprep.subr.mxu0 0.0
  %1222 = vmatpush1.msra.mxu0 0.0
  %1223 = vmatprep.subr.mxu0 0.0
  %1224 = vmatpush1.msra.mxu0 0.0
  %1225 = vmatprep.mubr.f32.mxu0 0.0
  %1226 = vmatmul.mubr.f32.gmra.mrb[0].mxu0 %v1159
  %v1227 = vpop.f32.mrb[0].mxu0
  %v1228 = vadd.f32 0.0, %v1227
  %v1229 = vpop.f32.mrb[0].mxu0
  %1230 = vdwg.mxu0
  %v1231 = vadd.f32 %v209, %v1228
  %v1232 = vtanh.pop %v1231
  %v1233 = vxor.u32 %v1231, 2147483648
  %v1234 = vmul.f32 %v1233, 1.442695
  %v1235 = vpow.pop %v1234
  %v1236 = vadd.f32 %v1235, 1.0
  %v1237 = vrcp.pop %v1236
  %v1238 = vmul.f32 1.0, %v1237
  %v1239 = vsel %vm353, %v1232, %v1238
  %v1240 = vmul.f32 %v1239, %v1048
  %1242 = vrot.lane.b32.xlu0 %v1239, 64
  %v1243 = vpop.permute.xlu0 %1242
  %v1245 = vmul.f32 %v1239, %v1243
  %1247 = vrot.lane.b32.xlu0 %v1245, 32
  %v1248 = vpop.permute.xlu0 %1247
  %v1250 = vadd.f32 %v1240, %v1248
  %v1251 = vtanh.pop %v1250
  %1253 = vrot.lane.b32.xlu0 %v1251, 64
  %v1254 = vpop.permute.xlu0 %1253
  %v1256 = vmul.f32 %v1239, %v1254
  %1258 = vrot.lane.b32.xlu0 %v1155, 32
  %v1259 = vpop.permute.xlu0 %1258
  %v1260 = vsel %vm354, %v1259, 0
  %1262 = vmatprep.subr.mxu0 0.0
  %1263 = vmatpush1.msra.mxu0 %v345
  %1264 = vmatprep.subr.mxu0 0.0
  %1265 = vmatpush1.msra.mxu0 %v346
  %1266 = vmatprep.subr.mxu0 0.0
  %1267 = vmatpush1.msra.mxu0 %v347
  %1268 = vmatprep.subr.mxu0 0.0
  %1269 = vmatpush1.msra.mxu0 %v348
  %1270 = vmatprep.subr.mxu0 0.0
  %1271 = vmatpush1.msra.mxu0 0.0
  %1272 = vmatprep.subr.mxu0 0.0
  %1273 = vmatpush1.msra.mxu0 0.0
  %1274 = vmatprep.subr.mxu0 0.0
  %1275 = vmatpush1.msra.mxu0 0.0
  %1276 = vmatprep.subr.mxu0 0.0
  %1277 = vmatpush1.msra.mxu0 0.0
  %1278 = vmatprep.subr.mxu0 0.0
  %1279 = vmatpush1.msra.mxu0 0.0
  %1280 = vmatprep.subr.mxu0 0.0
  %1281 = vmatpush1.msra.mxu0 0.0
  %1282 = vmatprep.subr.mxu0 0.0
  %1283 = vmatpush1.msra.mxu0 0.0
  %1284 = vmatprep.subr.mxu0 0.0
  %1285 = vmatpush1.msra.mxu0 0.0
  %1286 = vmatprep.subr.mxu0 0.0
  %1287 = vmatpush1.msra.mxu0 0.0
  %1288 = vmatprep.subr.mxu0 0.0
  %1289 = vmatpush1.msra.mxu0 0.0
  %1290 = vmatprep.subr.mxu0 0.0
  %1291 = vmatpush1.msra.mxu0 0.0
  %1292 = vmatprep.subr.mxu0 0.0
  %1293 = vmatpush1.msra.mxu0 0.0
  %1294 = vmatprep.subr.mxu0 0.0
  %1295 = vmatpush1.msra.mxu0 0.0
  %1296 = vmatprep.subr.mxu0 0.0
  %1297 = vmatpush1.msra.mxu0 0.0
  %1298 = vmatprep.subr.mxu0 0.0
  %1299 = vmatpush1.msra.mxu0 0.0
  %1300 = vmatprep.subr.mxu0 0.0
  %1301 = vmatpush1.msra.mxu0 0.0
  %1302 = vmatprep.subr.mxu0 0.0
  %1303 = vmatpush1.msra.mxu0 0.0
  %1304 = vmatprep.subr.mxu0 0.0
  %1305 = vmatpush1.msra.mxu0 0.0
  %1306 = vmatprep.subr.mxu0 0.0
  %1307 = vmatpush1.msra.mxu0 0.0
  %1308 = vmatprep.subr.mxu0 0.0
  %1309 = vmatpush1.msra.mxu0 0.0
  %1310 = vmatprep.subr.mxu0 0.0
  %1311 = vmatpush1.msra.mxu0 0.0
  %1312 = vmatprep.subr.mxu0 0.0
  %1313 = vmatpush1.msra.mxu0 0.0
  %1314 = vmatprep.subr.mxu0 0.0
  %1315 = vmatpush1.msra.mxu0 0.0
  %1316 = vmatprep.subr.mxu0 0.0
  %1317 = vmatpush1.msra.mxu0 0.0
  %1318 = vmatprep.subr.mxu0 0.0
  %1319 = vmatpush1.msra.mxu0 0.0
  %1320 = vmatprep.subr.mxu0 0.0
  %1321 = vmatpush1.msra.mxu0 0.0
  %1322 = vmatprep.subr.mxu0 0.0
  %1323 = vmatpush1.msra.mxu0 0.0
  %1324 = vmatprep.subr.mxu0 0.0
  %1325 = vmatpush1.msra.mxu0 0.0
  %1326 = vmatprep.mubr.f32.mxu0 0.0
  %1327 = vmatmul.mubr.f32.gmra.mrb[0].mxu0 %v1260
  %v1328 = vpop.f32.mrb[0].mxu0
  %v1329 = vadd.f32 0.0, %v1328
  %v1330 = vpop.f32.mrb[0].mxu0
  %1331 = vdwg.mxu0
  %v1332 = vadd.f32 %v318, %v1329
  %v1333 = vtanh.pop %v1332
  %v1334 = vxor.u32 %v1332, 2147483648
  %v1335 = vmul.f32 %v1334, 1.442695
  %v1336 = vpow.pop %v1335
  %v1337 = vadd.f32 %v1336, 1.0
  %v1338 = vrcp.pop %v1337
  %v1339 = vmul.f32 1.0, %v1338
  %v1340 = vsel %vm353, %v1333, %v1339
  %v1341 = vmul.f32 %v1340, %v1149
  %1343 = vrot.lane.b32.xlu0 %v1340, 64
  %v1344 = vpop.permute.xlu0 %1343
  %v1346 = vmul.f32 %v1340, %v1344
  %1348 = vrot.lane.b32.xlu0 %v1346, 32
  %v1349 = vpop.permute.xlu0 %1348
  %v1351 = vadd.f32 %v1341, %v1349
  %v1352 = vtanh.pop %v1351
  %1354 = vrot.lane.b32.xlu0 %v1352, 64
  %v1355 = vpop.permute.xlu0 %1354
  %v1357 = vmul.f32 %v1340, %v1355
  %1359 = vrot.lane.b32.xlu0 %v1256, 32
  %v1360 = vpop.permute.xlu0 %1359
  %v1361 = vsel %vm354, %v1360, 0
  %1363 = vmatprep.subr.mxu0 0.0
  %1364 = vmatpush1.msra.mxu0 %v341
  %1365 = vmatprep.subr.mxu0 0.0
  %1366 = vmatpush1.msra.mxu0 %v342
  %1367 = vmatprep.subr.mxu0 0.0
  %1368 = vmatpush1.msra.mxu0 %v343
  %1369 = vmatprep.subr.mxu0 0.0
  %1370 = vmatpush1.msra.mxu0 %v344
  %1371 = vmatprep.subr.mxu0 0.0
  %1372 = vmatpush1.msra.mxu0 0.0
  %1373 = vmatprep.subr.mxu0 0.0
  %1374 = vmatpush1.msra.mxu0 0.0
  %1375 = vmatprep.subr.mxu0 0.0
  %1376 = vmatpush1.msra.mxu0 0.0
  %1377 = vmatprep.subr.mxu0 0.0
  %1378 = vmatpush1.msra.mxu0 0.0
  %1379 = vmatprep.subr.mxu0 0.0
  %1380 = vmatpush1.msra.mxu0 0.0
  %1381 = vmatprep.subr.mxu0 0.0
  %1382 = vmatpush1.msra.mxu0 0.0
  %1383 = vmatprep.subr.mxu0 0.0
  %1384 = vmatpush1.msra.mxu0 0.0
  %1385 = vmatprep.subr.mxu0 0.0
  %1386 = vmatpush1.msra.mxu0 0.0
  %1387 = vmatprep.subr.mxu0 0.0
  %1388 = vmatpush1.msra.mxu0 0.0
  %1389 = vmatprep.subr.mxu0 0.0
  %1390 = vmatpush1.msra.mxu0 0.0
  %1391 = vmatprep.subr.mxu0 0.0
  %1392 = vmatpush1.msra.mxu0 0.0
  %1393 = vmatprep.subr.mxu0 0.0
  %1394 = vmatpush1.msra.mxu0 0.0
  %1395 = vmatprep.subr.mxu0 0.0
  %1396 = vmatpush1.msra.mxu0 0.0
  %1397 = vmatprep.subr.mxu0 0.0
  %1398 = vmatpush1.msra.mxu0 0.0
  %1399 = vmatprep.subr.mxu0 0.0
  %1400 = vmatpush1.msra.mxu0 0.0
  %1401 = vmatprep.subr.mxu0 0.0
  %1402 = vmatpush1.msra.mxu0 0.0
  %1403 = vmatprep.subr.mxu0 0.0
  %1404 = vmatpush1.msra.mxu0 0.0
  %1405 = vmatprep.subr.mxu0 0.0
  %1406 = vmatpush1.msra.mxu0 0.0
  %1407 = vmatprep.subr.mxu0 0.0
  %1408 = vmatpush1.msra.mxu0 0.0
  %1409 = vmatprep.subr.mxu0 0.0
  %1410 = vmatpush1.msra.mxu0 0.0
  %1411 = vmatprep.subr.mxu0 0.0
  %1412 = vmatpush1.msra.mxu0 0.0
  %1413 = vmatprep.subr.mxu0 0.0
  %1414 = vmatpush1.msra.mxu0 0.0
  %1415 = vmatprep.subr.mxu0 0.0
  %1416 = vmatpush1.msra.mxu0 0.0
  %1417 = vmatprep.subr.mxu0 0.0
  %1418 = vmatpush1.msra.mxu0 0.0
  %1419 = vmatprep.subr.mxu0 0.0
  %1420 = vmatpush1.msra.mxu0 0.0
  %1421 = vmatprep.subr.mxu0 0.0
  %1422 = vmatpush1.msra.mxu0 0.0
  %1423 = vmatprep.subr.mxu0 0.0
  %1424 = vmatpush1.msra.mxu0 0.0
  %1425 = vmatprep.subr.mxu0 0.0
  %1426 = vmatpush1.msra.mxu0 0.0
  %1427 = vmatprep.mubr.f32.mxu0 0.0
  %1428 = vmatmul.mubr.f32.gmra.mrb[0].mxu0 %v1361
  %v1429 = vpop.f32.mrb[0].mxu0
  %v1430 = vadd.f32 0.0, %v1429
  %v1431 = vpop.f32.mrb[0].mxu0
  %1432 = vdwg.mxu0
  %v1433 = vadd.f32 %v214, %v1430
  %v1434 = vtanh.pop %v1433
  %v1435 = vxor.u32 %v1433, 2147483648
  %v1436 = vmul.f32 %v1435, 1.442695
  %v1437 = vpow.pop %v1436
  %v1438 = vadd.f32 %v1437, 1.0
  %v1439 = vrcp.pop %v1438
  %v1440 = vmul.f32 1.0, %v1439
  %v1441 = vsel %vm353, %v1434, %v1440
  %v1442 = vmul.f32 %v1441, %v1250
  %1444 = vrot.lane.b32.xlu0 %v1441, 64
  %v1445 = vpop.permute.xlu0 %1444
  %v1447 = vmul.f32 %v1441, %v1445
  %1449 = vrot.lane.b32.xlu0 %v1447, 32
  %v1450 = vpop.permute.xlu0 %1449
  %v1452 = vadd.f32 %v1442, %v1450
  %v1453 = vtanh.pop %v1452
  %1455 = vrot.lane.b32.xlu0 %v1453, 64
  %v1456 = vpop.permute.xlu0 %1455
  %v1458 = vmul.f32 %v1441, %v1456
  %1460 = vrot.lane.b32.xlu0 %v1357, 32
  %v1461 = vpop.permute.xlu0 %1460
  %v1462 = vsel %vm354, %v1461, 0
  %1464 = vmatprep.subr.mxu0 0.0
  %1465 = vmatpush1.msra.mxu0 %v345
  %1466 = vmatprep.subr.mxu0 0.0
  %1467 = vmatpush1.msra.mxu0 %v346
  %1468 = vmatprep.subr.mxu0 0.0
  %1469 = vmatpush1.msra.mxu0 %v347
  %1470 = vmatprep.subr.mxu0 0.0
  %1471 = vmatpush1.msra.mxu0 %v348
  %1472 = vmatprep.subr.mxu0 0.0
  %1473 = vmatpush1.msra.mxu0 0.0
  %1474 = vmatprep.subr.mxu0 0.0
  %1475 = vmatpush1.msra.mxu0 0.0
  %1476 = vmatprep.subr.mxu0 0.0
  %1477 = vmatpush1.msra.mxu0 0.0
  %1478 = vmatprep.subr.mxu0 0.0
  %1479 = vmatpush1.msra.mxu0 0.0
  %1480 = vmatprep.subr.mxu0 0.0
  %1481 = vmatpush1.msra.mxu0 0.0
  %1482 = vmatprep.subr.mxu0 0.0
  %1483 = vmatpush1.msra.mxu0 0.0
  %1484 = vmatprep.subr.mxu0 0.0
  %1485 = vmatpush1.msra.mxu0 0.0
  %1486 = vmatprep.subr.mxu0 0.0
  %1487 = vmatpush1.msra.mxu0 0.0
  %1488 = vmatprep.subr.mxu0 0.0
  %1489 = vmatpush1.msra.mxu0 0.0
  %1490 = vmatprep.subr.mxu0 0.0
  %1491 = vmatpush1.msra.mxu0 0.0
  %1492 = vmatprep.subr.mxu0 0.0
  %1493 = vmatpush1.msra.mxu0 0.0
  %1494 = vmatprep.subr.mxu0 0.0
  %1495 = vmatpush1.msra.mxu0 0.0
  %1496 = vmatprep.subr.mxu0 0.0
  %1497 = vmatpush1.msra.mxu0 0.0
  %1498 = vmatprep.subr.mxu0 0.0
  %1499 = vmatpush1.msra.mxu0 0.0
  %1500 = vmatprep.subr.mxu0 0.0
  %1501 = vmatpush1.msra.mxu0 0.0
  %1502 = vmatprep.subr.mxu0 0.0
  %1503 = vmatpush1.msra.mxu0 0.0
  %1504 = vmatprep.subr.mxu0 0.0
  %1505 = vmatpush1.msra.mxu0 0.0
  %1506 = vmatprep.subr.mxu0 0.0
  %1507 = vmatpush1.msra.mxu0 0.0
  %1508 = vmatprep.subr.mxu0 0.0
  %1509 = vmatpush1.msra.mxu0 0.0
  %1510 = vmatprep.subr.mxu0 0.0
  %1511 = vmatpush1.msra.mxu0 0.0
  %1512 = vmatprep.subr.mxu0 0.0
  %1513 = vmatpush1.msra.mxu0 0.0
  %1514 = vmatprep.subr.mxu0 0.0
  %1515 = vmatpush1.msra.mxu0 0.0
  %1516 = vmatprep.subr.mxu0 0.0
  %1517 = vmatpush1.msra.mxu0 0.0
  %1518 = vmatprep.subr.mxu0 0.0
  %1519 = vmatpush1.msra.mxu0 0.0
  %1520 = vmatprep.subr.mxu0 0.0
  %1521 = vmatpush1.msra.mxu0 0.0
  %1522 = vmatprep.subr.mxu0 0.0
  %1523 = vmatpush1.msra.mxu0 0.0
  %1524 = vmatprep.subr.mxu0 0.0
  %1525 = vmatpush1.msra.mxu0 0.0
  %1526 = vmatprep.subr.mxu0 0.0
  %1527 = vmatpush1.msra.mxu0 0.0
  %1528 = vmatprep.mubr.f32.mxu0 0.0
  %1529 = vmatmul.mubr.f32.gmra.mrb[0].mxu0 %v1462
  %v1530 = vpop.f32.mrb[0].mxu0
  %v1531 = vadd.f32 0.0, %v1530
  %v1532 = vpop.f32.mrb[0].mxu0
  %1533 = vdwg.mxu0
  %v1534 = vadd.f32 %v313, %v1531
  %v1535 = vtanh.pop %v1534
  %v1536 = vxor.u32 %v1534, 2147483648
  %v1537 = vmul.f32 %v1536, 1.442695
  %v1538 = vpow.pop %v1537
  %v1539 = vadd.f32 %v1538, 1.0
  %v1540 = vrcp.pop %v1539
  %v1541 = vmul.f32 1.0, %v1540
  %v1542 = vsel %vm353, %v1535, %v1541
  %v1543 = vmul.f32 %v1542, %v1351
  %1545 = vrot.lane.b32.xlu0 %v1542, 64
  %v1546 = vpop.permute.xlu0 %1545
  %v1548 = vmul.f32 %v1542, %v1546
  %1550 = vrot.lane.b32.xlu0 %v1548, 32
  %v1551 = vpop.permute.xlu0 %1550
  %v1553 = vadd.f32 %v1543, %v1551
  %v1554 = vtanh.pop %v1553
  %1556 = vrot.lane.b32.xlu0 %v1554, 64
  %v1557 = vpop.permute.xlu0 %1556
  %v1559 = vmul.f32 %v1542, %v1557
  %1561 = vrot.lane.b32.xlu0 %v1458, 32
  %v1562 = vpop.permute.xlu0 %1561
  %v1563 = vsel %vm354, %v1562, 0
  %1565 = vmatprep.subr.mxu0 0.0
  %1566 = vmatpush1.msra.mxu0 %v341
  %1567 = vmatprep.subr.mxu0 0.0
  %1568 = vmatpush1.msra.mxu0 %v342
  %1569 = vmatprep.subr.mxu0 0.0
  %1570 = vmatpush1.msra.mxu0 %v343
  %1571 = vmatprep.subr.mxu0 0.0
  %1572 = vmatpush1.msra.mxu0 %v344
  %1573 = vmatprep.subr.mxu0 0.0
  %1574 = vmatpush1.msra.mxu0 0.0
  %1575 = vmatprep.subr.mxu0 0.0
  %1576 = vmatpush1.msra.mxu0 0.0
  %1577 = vmatprep.subr.mxu0 0.0
  %1578 = vmatpush1.msra.mxu0 0.0
  %1579 = vmatprep.subr.mxu0 0.0
  %1580 = vmatpush1.msra.mxu0 0.0
  %1581 = vmatprep.subr.mxu0 0.0
  %1582 = vmatpush1.msra.mxu0 0.0
  %1583 = vmatprep.subr.mxu0 0.0
  %1584 = vmatpush1.msra.mxu0 0.0
  %1585 = vmatprep.subr.mxu0 0.0
  %1586 = vmatpush1.msra.mxu0 0.0
  %1587 = vmatprep.subr.mxu0 0.0
  %1588 = vmatpush1.msra.mxu0 0.0
  %1589 = vmatprep.subr.mxu0 0.0
  %1590 = vmatpush1.msra.mxu0 0.0
  %1591 = vmatprep.subr.mxu0 0.0
  %1592 = vmatpush1.msra.mxu0 0.0
  %1593 = vmatprep.subr.mxu0 0.0
  %1594 = vmatpush1.msra.mxu0 0.0
  %1595 = vmatprep.subr.mxu0 0.0
  %1596 = vmatpush1.msra.mxu0 0.0
  %1597 = vmatprep.subr.mxu0 0.0
  %1598 = vmatpush1.msra.mxu0 0.0
  %1599 = vmatprep.subr.mxu0 0.0
  %1600 = vmatpush1.msra.mxu0 0.0
  %1601 = vmatprep.subr.mxu0 0.0
  %1602 = vmatpush1.msra.mxu0 0.0
  %1603 = vmatprep.subr.mxu0 0.0
  %1604 = vmatpush1.msra.mxu0 0.0
  %1605 = vmatprep.subr.mxu0 0.0
  %1606 = vmatpush1.msra.mxu0 0.0
  %1607 = vmatprep.subr.mxu0 0.0
  %1608 = vmatpush1.msra.mxu0 0.0
  %1609 = vmatprep.subr.mxu0 0.0
  %1610 = vmatpush1.msra.mxu0 0.0
  %1611 = vmatprep.subr.mxu0 0.0
  %1612 = vmatpush1.msra.mxu0 0.0
  %1613 = vmatprep.subr.mxu0 0.0
  %1614 = vmatpush1.msra.mxu0 0.0
  %1615 = vmatprep.subr.mxu0 0.0
  %1616 = vmatpush1.msra.mxu0 0.0
  %1617 = vmatprep.subr.mxu0 0.0
  %1618 = vmatpush1.msra.mxu0 0.0
  %1619 = vmatprep.subr.mxu0 0.0
  %1620 = vmatpush1.msra.mxu0 0.0
  %1621 = vmatprep.subr.mxu0 0.0
  %1622 = vmatpush1.msra.mxu0 0.0
  %1623 = vmatprep.subr.mxu0 0.0
  %1624 = vmatpush1.msra.mxu0 0.0
  %1625 = vmatprep.subr.mxu0 0.0
  %1626 = vmatpush1.msra.mxu0 0.0
  %1627 = vmatprep.subr.mxu0 0.0
  %1628 = vmatpush1.msra.mxu0 0.0
  %1629 = vmatprep.mubr.f32.mxu0 0.0
  %1630 = vmatmul.mubr.f32.gmra.mrb[0].mxu0 %v1563
  %v1631 = vpop.f32.mrb[0].mxu0
  %v1632 = vadd.f32 0.0, %v1631
  %v1633 = vpop.f32.mrb[0].mxu0
  %1634 = vdwg.mxu0
  %v1635 = vadd.f32 %v219, %v1632
  %v1636 = vtanh.pop %v1635
  %v1637 = vxor.u32 %v1635, 2147483648
  %v1638 = vmul.f32 %v1637, 1.442695
  %v1639 = vpow.pop %v1638
  %v1640 = vadd.f32 %v1639, 1.0
  %v1641 = vrcp.pop %v1640
  %v1642 = vmul.f32 1.0, %v1641
  %v1643 = vsel %vm353, %v1636, %v1642
  %v1644 = vmul.f32 %v1643, %v1452
  %1646 = vrot.lane.b32.xlu0 %v1643, 64
  %v1647 = vpop.permute.xlu0 %1646
  %v1649 = vmul.f32 %v1643, %v1647
  %1651 = vrot.lane.b32.xlu0 %v1649, 32
  %v1652 = vpop.permute.xlu0 %1651
  %v1654 = vadd.f32 %v1644, %v1652
  %v1655 = vtanh.pop %v1654
  %1657 = vrot.lane.b32.xlu0 %v1655, 64
  %v1658 = vpop.permute.xlu0 %1657
  %v1660 = vmul.f32 %v1643, %v1658
  %1662 = vrot.lane.b32.xlu0 %v1559, 32
  %v1663 = vpop.permute.xlu0 %1662
  %v1664 = vsel %vm354, %v1663, 0
  %1666 = vmatprep.subr.mxu0 0.0
  %1667 = vmatpush1.msra.mxu0 %v345
  %1668 = vmatprep.subr.mxu0 0.0
  %1669 = vmatpush1.msra.mxu0 %v346
  %1670 = vmatprep.subr.mxu0 0.0
  %1671 = vmatpush1.msra.mxu0 %v347
  %1672 = vmatprep.subr.mxu0 0.0
  %1673 = vmatpush1.msra.mxu0 %v348
  %1674 = vmatprep.subr.mxu0 0.0
  %1675 = vmatpush1.msra.mxu0 0.0
  %1676 = vmatprep.subr.mxu0 0.0
  %1677 = vmatpush1.msra.mxu0 0.0
  %1678 = vmatprep.subr.mxu0 0.0
  %1679 = vmatpush1.msra.mxu0 0.0
  %1680 = vmatprep.subr.mxu0 0.0
  %1681 = vmatpush1.msra.mxu0 0.0
  %1682 = vmatprep.subr.mxu0 0.0
  %1683 = vmatpush1.msra.mxu0 0.0
  %1684 = vmatprep.subr.mxu0 0.0
  %1685 = vmatpush1.msra.mxu0 0.0
  %1686 = vmatprep.subr.mxu0 0.0
  %1687 = vmatpush1.msra.mxu0 0.0
  %1688 = vmatprep.subr.mxu0 0.0
  %1689 = vmatpush1.msra.mxu0 0.0
  %1690 = vmatprep.subr.mxu0 0.0
  %1691 = vmatpush1.msra.mxu0 0.0
  %1692 = vmatprep.subr.mxu0 0.0
  %1693 = vmatpush1.msra.mxu0 0.0
  %1694 = vmatprep.subr.mxu0 0.0
  %1695 = vmatpush1.msra.mxu0 0.0
  %1696 = vmatprep.subr.mxu0 0.0
  %1697 = vmatpush1.msra.mxu0 0.0
  %1698 = vmatprep.subr.mxu0 0.0
  %1699 = vmatpush1.msra.mxu0 0.0
  %1700 = vmatprep.subr.mxu0 0.0
  %1701 = vmatpush1.msra.mxu0 0.0
  %1702 = vmatprep.subr.mxu0 0.0
  %1703 = vmatpush1.msra.mxu0 0.0
  %1704 = vmatprep.subr.mxu0 0.0
  %1705 = vmatpush1.msra.mxu0 0.0
  %1706 = vmatprep.subr.mxu0 0.0
  %1707 = vmatpush1.msra.mxu0 0.0
  %1708 = vmatprep.subr.mxu0 0.0
  %1709 = vmatpush1.msra.mxu0 0.0
  %1710 = vmatprep.subr.mxu0 0.0
  %1711 = vmatpush1.msra.mxu0 0.0
  %1712 = vmatprep.subr.mxu0 0.0
  %1713 = vmatpush1.msra.mxu0 0.0
  %1714 = vmatprep.subr.mxu0 0.0
  %1715 = vmatpush1.msra.mxu0 0.0
  %1716 = vmatprep.subr.mxu0 0.0
  %1717 = vmatpush1.msra.mxu0 0.0
  %1718 = vmatprep.subr.mxu0 0.0
  %1719 = vmatpush1.msra.mxu0 0.0
  %1720 = vmatprep.subr.mxu0 0.0
  %1721 = vmatpush1.msra.mxu0 0.0
  %1722 = vmatprep.subr.mxu0 0.0
  %1723 = vmatpush1.msra.mxu0 0.0
  %1724 = vmatprep.subr.mxu0 0.0
  %1725 = vmatpush1.msra.mxu0 0.0
  %1726 = vmatprep.subr.mxu0 0.0
  %1727 = vmatpush1.msra.mxu0 0.0
  %1728 = vmatprep.subr.mxu0 0.0
  %1729 = vmatpush1.msra.mxu0 0.0
  %1730 = vmatprep.mubr.f32.mxu0 0.0
  %1731 = vmatmul.mubr.f32.gmra.mrb[0].mxu0 %v1664
  %v1732 = vpop.f32.mrb[0].mxu0
  %v1733 = vadd.f32 0.0, %v1732
  %v1734 = vpop.f32.mrb[0].mxu0
  %1735 = vdwg.mxu0
  %v1736 = vadd.f32 %v308, %v1733
  %v1737 = vtanh.pop %v1736
  %v1738 = vxor.u32 %v1736, 2147483648
  %v1739 = vmul.f32 %v1738, 1.442695
  %v1740 = vpow.pop %v1739
  %v1741 = vadd.f32 %v1740, 1.0
  %v1742 = vrcp.pop %v1741
  %v1743 = vmul.f32 1.0, %v1742
  %v1744 = vsel %vm353, %v1737, %v1743
  %v1745 = vmul.f32 %v1744, %v1553
  %1747 = vrot.lane.b32.xlu0 %v1744, 64
  %v1748 = vpop.permute.xlu0 %1747
  %v1750 = vmul.f32 %v1744, %v1748
  %1752 = vrot.lane.b32.xlu0 %v1750, 32
  %v1753 = vpop.permute.xlu0 %1752
  %v1755 = vadd.f32 %v1745, %v1753
  %v1756 = vtanh.pop %v1755
  %1758 = vrot.lane.b32.xlu0 %v1756, 64
  %v1759 = vpop.permute.xlu0 %1758
  %v1761 = vmul.f32 %v1744, %v1759
  %1763 = vrot.lane.b32.xlu0 %v1660, 32
  %v1764 = vpop.permute.xlu0 %1763
  %v1765 = vsel %vm354, %v1764, 0
  %1767 = vmatprep.subr.mxu0 0.0
  %1768 = vmatpush1.msra.mxu0 %v341
  %1769 = vmatprep.subr.mxu0 0.0
  %1770 = vmatpush1.msra.mxu0 %v342
  %1771 = vmatprep.subr.mxu0 0.0
  %1772 = vmatpush1.msra.mxu0 %v343
  %1773 = vmatprep.subr.mxu0 0.0
  %1774 = vmatpush1.msra.mxu0 %v344
  %1775 = vmatprep.subr.mxu0 0.0
  %1776 = vmatpush1.msra.mxu0 0.0
  %1777 = vmatprep.subr.mxu0 0.0
  %1778 = vmatpush1.msra.mxu0 0.0
  %1779 = vmatprep.subr.mxu0 0.0
  %1780 = vmatpush1.msra.mxu0 0.0
  %1781 = vmatprep.subr.mxu0 0.0
  %1782 = vmatpush1.msra.mxu0 0.0
  %1783 = vmatprep.subr.mxu0 0.0
  %1784 = vmatpush1.msra.mxu0 0.0
  %1785 = vmatprep.subr.mxu0 0.0
  %1786 = vmatpush1.msra.mxu0 0.0
  %1787 = vmatprep.subr.mxu0 0.0
  %1788 = vmatpush1.msra.mxu0 0.0
  %1789 = vmatprep.subr.mxu0 0.0
  %1790 = vmatpush1.msra.mxu0 0.0
  %1791 = vmatprep.subr.mxu0 0.0
  %1792 = vmatpush1.msra.mxu0 0.0
  %1793 = vmatprep.subr.mxu0 0.0
  %1794 = vmatpush1.msra.mxu0 0.0
  %1795 = vmatprep.subr.mxu0 0.0
  %1796 = vmatpush1.msra.mxu0 0.0
  %1797 = vmatprep.subr.mxu0 0.0
  %1798 = vmatpush1.msra.mxu0 0.0
  %1799 = vmatprep.subr.mxu0 0.0
  %1800 = vmatpush1.msra.mxu0 0.0
  %1801 = vmatprep.subr.mxu0 0.0
  %1802 = vmatpush1.msra.mxu0 0.0
  %1803 = vmatprep.subr.mxu0 0.0
  %1804 = vmatpush1.msra.mxu0 0.0
  %1805 = vmatprep.subr.mxu0 0.0
  %1806 = vmatpush1.msra.mxu0 0.0
  %1807 = vmatprep.subr.mxu0 0.0
  %1808 = vmatpush1.msra.mxu0 0.0
  %1809 = vmatprep.subr.mxu0 0.0
  %1810 = vmatpush1.msra.mxu0 0.0
  %1811 = vmatprep.subr.mxu0 0.0
  %1812 = vmatpush1.msra.mxu0 0.0
  %1813 = vmatprep.subr.mxu0 0.0
  %1814 = vmatpush1.msra.mxu0 0.0
  %1815 = vmatprep.subr.mxu0 0.0
  %1816 = vmatpush1.msra.mxu0 0.0
  %1817 = vmatprep.subr.mxu0 0.0
  %1818 = vmatpush1.msra.mxu0 0.0
  %1819 = vmatprep.subr.mxu0 0.0
  %1820 = vmatpush1.msra.mxu0 0.0
  %1821 = vmatprep.subr.mxu0 0.0
  %1822 = vmatpush1.msra.mxu0 0.0
  %1823 = vmatprep.subr.mxu0 0.0
  %1824 = vmatpush1.msra.mxu0 0.0
  %1825 = vmatprep.subr.mxu0 0.0
  %1826 = vmatpush1.msra.mxu0 0.0
  %1827 = vmatprep.subr.mxu0 0.0
  %1828 = vmatpush1.msra.mxu0 0.0
  %1829 = vmatprep.subr.mxu0 0.0
  %1830 = vmatpush1.msra.mxu0 0.0
  %1831 = vmatprep.mubr.f32.mxu0 0.0
  %1832 = vmatmul.mubr.f32.gmra.mrb[0].mxu0 %v1765
  %v1833 = vpop.f32.mrb[0].mxu0
  %v1834 = vadd.f32 0.0, %v1833
  %v1835 = vpop.f32.mrb[0].mxu0
  %1836 = vdwg.mxu0
  %v1837 = vadd.f32 %v224, %v1834
  %v1838 = vtanh.pop %v1837
  %v1839 = vxor.u32 %v1837, 2147483648
  %v1840 = vmul.f32 %v1839, 1.442695
  %v1841 = vpow.pop %v1840
  %v1842 = vadd.f32 %v1841, 1.0
  %v1843 = vrcp.pop %v1842
  %v1844 = vmul.f32 1.0, %v1843
  %v1845 = vsel %vm353, %v1838, %v1844
  %v1846 = vmul.f32 %v1845, %v1654
  %1848 = vrot.lane.b32.xlu0 %v1845, 64
  %v1849 = vpop.permute.xlu0 %1848
  %v1851 = vmul.f32 %v1845, %v1849
  %1853 = vrot.lane.b32.xlu0 %v1851, 32
  %v1854 = vpop.permute.xlu0 %1853
  %v1856 = vadd.f32 %v1846, %v1854
  %v1857 = vtanh.pop %v1856
  %1859 = vrot.lane.b32.xlu0 %v1857, 64
  %v1860 = vpop.permute.xlu0 %1859
  %v1862 = vmul.f32 %v1845, %v1860
  %1864 = vrot.lane.b32.xlu0 %v1761, 32
  %v1865 = vpop.permute.xlu0 %1864
  %v1866 = vsel %vm354, %v1865, 0
  %1868 = vmatprep.subr.mxu0 0.0
  %1869 = vmatpush1.msra.mxu0 %v345
  %1870 = vmatprep.subr.mxu0 0.0
  %1871 = vmatpush1.msra.mxu0 %v346
  %1872 = vmatprep.subr.mxu0 0.0
  %1873 = vmatpush1.msra.mxu0 %v347
  %1874 = vmatprep.subr.mxu0 0.0
  %1875 = vmatpush1.msra.mxu0 %v348
  %1876 = vmatprep.subr.mxu0 0.0
  %1877 = vmatpush1.msra.mxu0 0.0
  %1878 = vmatprep.subr.mxu0 0.0
  %1879 = vmatpush1.msra.mxu0 0.0
  %1880 = vmatprep.subr.mxu0 0.0
  %1881 = vmatpush1.msra.mxu0 0.0
  %1882 = vmatprep.subr.mxu0 0.0
  %1883 = vmatpush1.msra.mxu0 0.0
  %1884 = vmatprep.subr.mxu0 0.0
  %1885 = vmatpush1.msra.mxu0 0.0
  %1886 = vmatprep.subr.mxu0 0.0
  %1887 = vmatpush1.msra.mxu0 0.0
  %1888 = vmatprep.subr.mxu0 0.0
  %1889 = vmatpush1.msra.mxu0 0.0
  %1890 = vmatprep.subr.mxu0 0.0
  %1891 = vmatpush1.msra.mxu0 0.0
  %1892 = vmatprep.subr.mxu0 0.0
  %1893 = vmatpush1.msra.mxu0 0.0
  %1894 = vmatprep.subr.mxu0 0.0
  %1895 = vmatpush1.msra.mxu0 0.0
  %1896 = vmatprep.subr.mxu0 0.0
  %1897 = vmatpush1.msra.mxu0 0.0
  %1898 = vmatprep.subr.mxu0 0.0
  %1899 = vmatpush1.msra.mxu0 0.0
  %1900 = vmatprep.subr.mxu0 0.0
  %1901 = vmatpush1.msra.mxu0 0.0
  %1902 = vmatprep.subr.mxu0 0.0
  %1903 = vmatpush1.msra.mxu0 0.0
  %1904 = vmatprep.subr.mxu0 0.0
  %1905 = vmatpush1.msra.mxu0 0.0
  %1906 = vmatprep.subr.mxu0 0.0
  %1907 = vmatpush1.msra.mxu0 0.0
  %1908 = vmatprep.subr.mxu0 0.0
  %1909 = vmatpush1.msra.mxu0 0.0
  %1910 = vmatprep.subr.mxu0 0.0
  %1911 = vmatpush1.msra.mxu0 0.0
  %1912 = vmatprep.subr.mxu0 0.0
  %1913 = vmatpush1.msra.mxu0 0.0
  %1914 = vmatprep.subr.mxu0 0.0
  %1915 = vmatpush1.msra.mxu0 0.0
  %1916 = vmatprep.subr.mxu0 0.0
  %1917 = vmatpush1.msra.mxu0 0.0
  %1918 = vmatprep.subr.mxu0 0.0
  %1919 = vmatpush1.msra.mxu0 0.0
  %1920 = vmatprep.subr.mxu0 0.0
  %1921 = vmatpush1.msra.mxu0 0.0
  %1922 = vmatprep.subr.mxu0 0.0
  %1923 = vmatpush1.msra.mxu0 0.0
  %1924 = vmatprep.subr.mxu0 0.0
  %1925 = vmatpush1.msra.mxu0 0.0
  %1926 = vmatprep.subr.mxu0 0.0
  %1927 = vmatpush1.msra.mxu0 0.0
  %1928 = vmatprep.subr.mxu0 0.0
  %1929 = vmatpush1.msra.mxu0 0.0
  %1930 = vmatprep.subr.mxu0 0.0
  %1931 = vmatpush1.msra.mxu0 0.0
  %1932 = vmatprep.mubr.f32.mxu0 0.0
  %1933 = vmatmul.mubr.f32.gmra.mrb[0].mxu0 %v1866
  %v1934 = vpop.f32.mrb[0].mxu0
  %v1935 = vadd.f32 0.0, %v1934
  %v1936 = vpop.f32.mrb[0].mxu0
  %1937 = vdwg.mxu0
  %v1938 = vadd.f32 %v303, %v1935
  %v1939 = vtanh.pop %v1938
  %v1940 = vxor.u32 %v1938, 2147483648
  %v1941 = vmul.f32 %v1940, 1.442695
  %v1942 = vpow.pop %v1941
  %v1943 = vadd.f32 %v1942, 1.0
  %v1944 = vrcp.pop %v1943
  %v1945 = vmul.f32 1.0, %v1944
  %v1946 = vsel %vm353, %v1939, %v1945
  %v1947 = vmul.f32 %v1946, %v1755
  %1949 = vrot.lane.b32.xlu0 %v1946, 64
  %v1950 = vpop.permute.xlu0 %1949
  %v1952 = vmul.f32 %v1946, %v1950
  %1954 = vrot.lane.b32.xlu0 %v1952, 32
  %v1955 = vpop.permute.xlu0 %1954
  %v1957 = vadd.f32 %v1947, %v1955
  %v1958 = vtanh.pop %v1957
  %1960 = vrot.lane.b32.xlu0 %v1958, 64
  %v1961 = vpop.permute.xlu0 %1960
  %v1963 = vmul.f32 %v1946, %v1961
  %v1964 = vld [vmem:[%s9] sm:$0xff]
  %v1965 = vld [vmem:[%s9 + $0x8] sm:$0xff]
  %v1966 = vld [vmem:[%s9 + $0x10] sm:$0xff]
  %v1967 = vld [vmem:[%s9 + $0x18] sm:$0xff]
  %v1968 = vld [vmem:[%s9 + $0x20] sm:$0xff]
  %v1969 = vld [vmem:[%s9 + $0x28] sm:$0xff]
  %v1970 = vld [vmem:[%s9 + $0x30] sm:$0xff]
  %v1971 = vld [vmem:[%s9 + $0x38] sm:$0xff]
  %v1972 = vld [vmem:[%s11] sm:$0xff]
  %v1973 = vld [vmem:[%s11 + $0x8] sm:$0xff]
  %v1974 = vld [vmem:[%s11 + $0x10] sm:$0xff]
  %v1975 = vld [vmem:[%s11 + $0x18] sm:$0xff]
  %v1976 = vld [vmem:[%s11 + $0x20] sm:$0xff]
  %v1977 = vld [vmem:[%s11 + $0x28] sm:$0xff]
  %v1978 = vld [vmem:[%s11 + $0x30] sm:$0xff]
  %v1979 = vld [vmem:[%s11 + $0x38] sm:$0xff]
  %1981 = vrot.lane.b32.xlu0 %v1963, 32
  %v1982 = vpop.permute.xlu0 %1981
  %v1983 = vsel %vm354, %v1982, 0
  %1985 = vmatprep.subr.mxu0 0.0
  %1986 = vmatpush1.msra.mxu0 %v1968
  %1987 = vmatprep.subr.mxu0 0.0
  %1988 = vmatpush1.msra.mxu0 %v1969
  %1989 = vmatprep.subr.mxu0 0.0
  %1990 = vmatpush1.msra.mxu0 %v1970
  %1991 = vmatprep.subr.mxu0 0.0
  %1992 = vmatpush1.msra.mxu0 %v1971
  %1993 = vmatprep.subr.mxu0 0.0
  %1994 = vmatpush1.msra.mxu0 0.0
  %1995 = vmatprep.subr.mxu0 0.0
  %1996 = vmatpush1.msra.mxu0 0.0
  %1997 = vmatprep.subr.mxu0 0.0
  %1998 = vmatpush1.msra.mxu0 0.0
  %1999 = vmatprep.subr.mxu0 0.0
  %2000 = vmatpush1.msra.mxu0 0.0
  %2001 = vmatprep.subr.mxu0 0.0
  %2002 = vmatpush1.msra.mxu0 0.0
  %2003 = vmatprep.subr.mxu0 0.0
  %2004 = vmatpush1.msra.mxu0 0.0
  %2005 = vmatprep.subr.mxu0 0.0
  %2006 = vmatpush1.msra.mxu0 0.0
  %2007 = vmatprep.subr.mxu0 0.0
  %2008 = vmatpush1.msra.mxu0 0.0
  %2009 = vmatprep.subr.mxu0 0.0
  %2010 = vmatpush1.msra.mxu0 0.0
  %2011 = vmatprep.subr.mxu0 0.0
  %2012 = vmatpush1.msra.mxu0 0.0
  %2013 = vmatprep.subr.mxu0 0.0
  %2014 = vmatpush1.msra.mxu0 0.0
  %2015 = vmatprep.subr.mxu0 0.0
  %2016 = vmatpush1.msra.mxu0 0.0
  %2017 = vmatprep.subr.mxu0 0.0
  %2018 = vmatpush1.msra.mxu0 0.0
  %2019 = vmatprep.subr.mxu0 0.0
  %2020 = vmatpush1.msra.mxu0 0.0
  %2021 = vmatprep.subr.mxu0 0.0
  %2022 = vmatpush1.msra.mxu0 0.0
  %2023 = vmatprep.subr.mxu0 0.0
  %2024 = vmatpush1.msra.mxu0 0.0
  %2025 = vmatprep.subr.mxu0 0.0
  %2026 = vmatpush1.msra.mxu0 0.0
  %2027 = vmatprep.subr.mxu0 0.0
  %2028 = vmatpush1.msra.mxu0 0.0
  %2029 = vmatprep.subr.mxu0 0.0
  %2030 = vmatpush1.msra.mxu0 0.0
  %2031 = vmatprep.subr.mxu0 0.0
  %2032 = vmatpush1.msra.mxu0 0.0
  %2033 = vmatprep.subr.mxu0 0.0
  %2034 = vmatpush1.msra.mxu0 0.0
  %2035 = vmatprep.subr.mxu0 0.0
  %2036 = vmatpush1.msra.mxu0 0.0
  %2037 = vmatprep.subr.mxu0 0.0
  %2038 = vmatpush1.msra.mxu0 0.0
  %2039 = vmatprep.subr.mxu0 0.0
  %2040 = vmatpush1.msra.mxu0 0.0
  %2041 = vmatprep.subr.mxu0 0.0
  %2042 = vmatpush1.msra.mxu0 0.0
  %2043 = vmatprep.subr.mxu0 0.0
  %2044 = vmatpush1.msra.mxu0 0.0
  %2045 = vmatprep.subr.mxu0 0.0
  %2046 = vmatpush1.msra.mxu0 0.0
  %2047 = vmatprep.subr.mxu0 0.0
  %2048 = vmatpush1.msra.mxu0 0.0
  %2049 = vmatprep.mubr.f32.mxu0 0.0
  %2050 = vmatmul.mubr.f32.gmra.mrb[0].mxu0 %v1983
  %v2051 = vpop.f32.mrb[0].mxu0
  %v2052 = vadd.f32 0.0, %v2051
  %v2053 = vpop.f32.mrb[0].mxu0
  %2054 = vdwg.mxu0
  %2056 = vrot.lane.b32.xlu0 %v1862, 32
  %v2057 = vpop.permute.xlu0 %2056
  %v2058 = vsel %vm354, %v2057, 0
  %2060 = vmatprep.subr.mxu0 0.0
  %2061 = vmatpush1.msra.mxu0 %v1964
  %2062 = vmatprep.subr.mxu0 0.0
  %2063 = vmatpush1.msra.mxu0 %v1965
  %2064 = vmatprep.subr.mxu0 0.0
  %2065 = vmatpush1.msra.mxu0 %v1966
  %2066 = vmatprep.subr.mxu0 0.0
  %2067 = vmatpush1.msra.mxu0 %v1967
  %2068 = vmatprep.subr.mxu0 0.0
  %2069 = vmatpush1.msra.mxu0 0.0
  %2070 = vmatprep.subr.mxu0 0.0
  %2071 = vmatpush1.msra.mxu0 0.0
  %2072 = vmatprep.subr.mxu0 0.0
  %2073 = vmatpush1.msra.mxu0 0.0
  %2074 = vmatprep.subr.mxu0 0.0
  %2075 = vmatpush1.msra.mxu0 0.0
  %2076 = vmatprep.subr.mxu0 0.0
  %2077 = vmatpush1.msra.mxu0 0.0
  %2078 = vmatprep.subr.mxu0 0.0
  %2079 = vmatpush1.msra.mxu0 0.0
  %2080 = vmatprep.subr.mxu0 0.0
  %2081 = vmatpush1.msra.mxu0 0.0
  %2082 = vmatprep.subr.mxu0 0.0
  %2083 = vmatpush1.msra.mxu0 0.0
  %2084 = vmatprep.subr.mxu0 0.0
  %2085 = vmatpush1.msra.mxu0 0.0
  %2086 = vmatprep.subr.mxu0 0.0
  %2087 = vmatpush1.msra.mxu0 0.0
  %2088 = vmatprep.subr.mxu0 0.0
  %2089 = vmatpush1.msra.mxu0 0.0
  %2090 = vmatprep.subr.mxu0 0.0
  %2091 = vmatpush1.msra.mxu0 0.0
  %2092 = vmatprep.subr.mxu0 0.0
  %2093 = vmatpush1.msra.mxu0 0.0
  %2094 = vmatprep.subr.mxu0 0.0
  %2095 = vmatpush1.msra.mxu0 0.0
  %2096 = vmatprep.subr.mxu0 0.0
  %2097 = vmatpush1.msra.mxu0 0.0
  %2098 = vmatprep.subr.mxu0 0.0
  %2099 = vmatpush1.msra.mxu0 0.0
  %2100 = vmatprep.subr.mxu0 0.0
  %2101 = vmatpush1.msra.mxu0 0.0
  %2102 = vmatprep.subr.mxu0 0.0
  %2103 = vmatpush1.msra.mxu0 0.0
  %2104 = vmatprep.subr.mxu0 0.0
  %2105 = vmatpush1.msra.mxu0 0.0
  %2106 = vmatprep.subr.mxu0 0.0
  %2107 = vmatpush1.msra.mxu0 0.0
  %2108 = vmatprep.subr.mxu0 0.0
  %2109 = vmatpush1.msra.mxu0 0.0
  %2110 = vmatprep.subr.mxu0 0.0
  %2111 = vmatpush1.msra.mxu0 0.0
  %2112 = vmatprep.subr.mxu0 0.0
  %2113 = vmatpush1.msra.mxu0 0.0
  %2114 = vmatprep.subr.mxu0 0.0
  %2115 = vmatpush1.msra.mxu0 0.0
  %2116 = vmatprep.subr.mxu0 0.0
  %2117 = vmatpush1.msra.mxu0 0.0
  %2118 = vmatprep.subr.mxu0 0.0
  %2119 = vmatpush1.msra.mxu0 0.0
  %2120 = vmatprep.subr.mxu0 0.0
  %2121 = vmatpush1.msra.mxu0 0.0
  %2122 = vmatprep.subr.mxu0 0.0
  %2123 = vmatpush1.msra.mxu0 0.0
  %2124 = vmatprep.mubr.f32.mxu0 0.0
  %2125 = vmatmul.mubr.f32.gmra.mrb[0].mxu0 %v2058
  %v2126 = vpop.f32.mrb[0].mxu0
  %v2127 = vadd.f32 %v2052, %v2126
  %v2128 = vpop.f32.mrb[0].mxu0
  %2129 = vdwg.mxu0
  %v2130 = vld [vmem:[%s10] sm:$0x1]
  %v2132 = vlaneseq
  %v2133 = vshrl.u32 %v2132, 7
  %v2134 = vsub.s32 0, %v2133
  %v2135 = vrot.slane %v2130, %v2134
  %v2137 = vadd.f32 %v2127, %v2135
  %v2138 = vtanh.pop %v2137
  %2140 = vrot.lane.b32.xlu0 %v1957, 96
  %v2141 = vpop.permute.xlu0 %2140
  %v2142 = vsel %vm354, %v2141, 0
  %2144 = vmatprep.subr.mxu0 0.0
  %2145 = vmatpush1.msra.mxu0 %v1976
  %2146 = vmatprep.subr.mxu0 0.0
  %2147 = vmatpush1.msra.mxu0 %v1977
  %2148 = vmatprep.subr.mxu0 0.0
  %2149 = vmatpush1.msra.mxu0 %v1978
  %2150 = vmatprep.subr.mxu0 0.0
  %2151 = vmatpush1.msra.mxu0 %v1979
  %2152 = vmatprep.subr.mxu0 0.0
  %2153 = vmatpush1.msra.mxu0 0.0
  %2154 = vmatprep.subr.mxu0 0.0
  %2155 = vmatpush1.msra.mxu0 0.0
  %2156 = vmatprep.subr.mxu0 0.0
  %2157 = vmatpush1.msra.mxu0 0.0
  %2158 = vmatprep.subr.mxu0 0.0
  %2159 = vmatpush1.msra.mxu0 0.0
  %2160 = vmatprep.subr.mxu0 0.0
  %2161 = vmatpush1.msra.mxu0 0.0
  %2162 = vmatprep.subr.mxu0 0.0
  %2163 = vmatpush1.msra.mxu0 0.0
  %2164 = vmatprep.subr.mxu0 0.0
  %2165 = vmatpush1.msra.mxu0 0.0
  %2166 = vmatprep.subr.mxu0 0.0
  %2167 = vmatpush1.msra.mxu0 0.0
  %2168 = vmatprep.subr.mxu0 0.0
  %2169 = vmatpush1.msra.mxu0 0.0
  %2170 = vmatprep.subr.mxu0 0.0
  %2171 = vmatpush1.msra.mxu0 0.0
  %2172 = vmatprep.subr.mxu0 0.0
  %2173 = vmatpush1.msra.mxu0 0.0
  %2174 = vmatprep.subr.mxu0 0.0
  %2175 = vmatpush1.msra.mxu0 0.0
  %2176 = vmatprep.subr.mxu0 0.0
  %2177 = vmatpush1.msra.mxu0 0.0
  %2178 = vmatprep.subr.mxu0 0.0
  %2179 = vmatpush1.msra.mxu0 0.0
  %2180 = vmatprep.subr.mxu0 0.0
  %2181 = vmatpush1.msra.mxu0 0.0
  %2182 = vmatprep.subr.mxu0 0.0
  %2183 = vmatpush1.msra.mxu0 0.0
  %2184 = vmatprep.subr.mxu0 0.0
  %2185 = vmatpush1.msra.mxu0 0.0
  %2186 = vmatprep.subr.mxu0 0.0
  %2187 = vmatpush1.msra.mxu0 0.0
  %2188 = vmatprep.subr.mxu0 0.0
  %2189 = vmatpush1.msra.mxu0 0.0
  %2190 = vmatprep.subr.mxu0 0.0
  %2191 = vmatpush1.msra.mxu0 0.0
  %2192 = vmatprep.subr.mxu0 0.0
  %2193 = vmatpush1.msra.mxu0 0.0
  %2194 = vmatprep.subr.mxu0 0.0
  %2195 = vmatpush1.msra.mxu0 0.0
  %2196 = vmatprep.subr.mxu0 0.0
  %2197 = vmatpush1.msra.mxu0 0.0
  %2198 = vmatprep.subr.mxu0 0.0
  %2199 = vmatpush1.msra.mxu0 0.0
  %2200 = vmatprep.subr.mxu0 0.0
  %2201 = vmatpush1.msra.mxu0 0.0
  %2202 = vmatprep.subr.mxu0 0.0
  %2203 = vmatpush1.msra.mxu0 0.0
  %2204 = vmatprep.subr.mxu0 0.0
  %2205 = vmatpush1.msra.mxu0 0.0
  %2206 = vmatprep.subr.mxu0 0.0
  %2207 = vmatpush1.msra.mxu0 0.0
  %2208 = vmatprep.mubr.f32.mxu0 0.0
  %2209 = vmatmul.mubr.f32.gmra.mrb[0].mxu0 %v2142
  %v2210 = vpop.f32.mrb[0].mxu0
  %v2211 = vadd.f32 0.0, %v2210
  %v2212 = vpop.f32.mrb[0].mxu0
  %2213 = vdwg.mxu0
  %2215 = vrot.lane.b32.xlu0 %v1856, 96
  %v2216 = vpop.permute.xlu0 %2215
  %v2217 = vsel %vm354, %v2216, 0
  %2219 = vmatprep.subr.mxu0 0.0
  %2220 = vmatpush1.msra.mxu0 %v1972
  %2221 = vmatprep.subr.mxu0 0.0
  %2222 = vmatpush1.msra.mxu0 %v1973
  %2223 = vmatprep.subr.mxu0 0.0
  %2224 = vmatpush1.msra.mxu0 %v1974
  %2225 = vmatprep.subr.mxu0 0.0
  %2226 = vmatpush1.msra.mxu0 %v1975
  %2227 = vmatprep.subr.mxu0 0.0
  %2228 = vmatpush1.msra.mxu0 0.0
  %2229 = vmatprep.subr.mxu0 0.0
  %2230 = vmatpush1.msra.mxu0 0.0
  %2231 = vmatprep.subr.mxu0 0.0
  %2232 = vmatpush1.msra.mxu0 0.0
  %2233 = vmatprep.subr.mxu0 0.0
  %2234 = vmatpush1.msra.mxu0 0.0
  %2235 = vmatprep.subr.mxu0 0.0
  %2236 = vmatpush1.msra.mxu0 0.0
  %2237 = vmatprep.subr.mxu0 0.0
  %2238 = vmatpush1.msra.mxu0 0.0
  %2239 = vmatprep.subr.mxu0 0.0
  %2240 = vmatpush1.msra.mxu0 0.0
  %2241 = vmatprep.subr.mxu0 0.0
  %2242 = vmatpush1.msra.mxu0 0.0
  %2243 = vmatprep.subr.mxu0 0.0
  %2244 = vmatpush1.msra.mxu0 0.0
  %2245 = vmatprep.subr.mxu0 0.0
  %2246 = vmatpush1.msra.mxu0 0.0
  %2247 = vmatprep.subr.mxu0 0.0
  %2248 = vmatpush1.msra.mxu0 0.0
  %2249 = vmatprep.subr.mxu0 0.0
  %2250 = vmatpush1.msra.mxu0 0.0
  %2251 = vmatprep.subr.mxu0 0.0
  %2252 = vmatpush1.msra.mxu0 0.0
  %2253 = vmatprep.subr.mxu0 0.0
  %2254 = vmatpush1.msra.mxu0 0.0
  %2255 = vmatprep.subr.mxu0 0.0
  %2256 = vmatpush1.msra.mxu0 0.0
  %2257 = vmatprep.subr.mxu0 0.0
  %2258 = vmatpush1.msra.mxu0 0.0
  %2259 = vmatprep.subr.mxu0 0.0
  %2260 = vmatpush1.msra.mxu0 0.0
  %2261 = vmatprep.subr.mxu0 0.0
  %2262 = vmatpush1.msra.mxu0 0.0
  %2263 = vmatprep.subr.mxu0 0.0
  %2264 = vmatpush1.msra.mxu0 0.0
  %2265 = vmatprep.subr.mxu0 0.0
  %2266 = vmatpush1.msra.mxu0 0.0
  %2267 = vmatprep.subr.mxu0 0.0
  %2268 = vmatpush1.msra.mxu0 0.0
  %2269 = vmatprep.subr.mxu0 0.0
  %2270 = vmatpush1.msra.mxu0 0.0
  %2271 = vmatprep.subr.mxu0 0.0
  %2272 = vmatpush1.msra.mxu0 0.0
  %2273 = vmatprep.subr.mxu0 0.0
  %2274 = vmatpush1.msra.mxu0 0.0
  %2275 = vmatprep.subr.mxu0 0.0
  %2276 = vmatpush1.msra.mxu0 0.0
  %2277 = vmatprep.subr.mxu0 0.0
  %2278 = vmatpush1.msra.mxu0 0.0
  %2279 = vmatprep.subr.mxu0 0.0
  %2280 = vmatpush1.msra.mxu0 0.0
  %2281 = vmatprep.subr.mxu0 0.0
  %2282 = vmatpush1.msra.mxu0 0.0
  %2283 = vmatprep.mubr.f32.mxu0 0.0
  %2284 = vmatmul.mubr.f32.gmra.mrb[0].mxu0 %v2217
  %v2285 = vpop.f32.mrb[0].mxu0
  %v2286 = vadd.f32 %v2211, %v2285
  %v2287 = vpop.f32.mrb[0].mxu0
  %2288 = vdwg.mxu0
  %v2289 = vld [vmem:[%s12] sm:$0x1]
  %v2291 = vlaneseq
  %v2292 = vshrl.u32 %v2291, 7
  %v2293 = vsub.s32 0, %v2292
  %v2294 = vrot.slane %v2289, %v2293
  %v2296 = vadd.f32 %v2286, %v2294
  %v2297 = vtanh.pop %v2296
  %v2298 = vld [vmem:[%s14] sm:$0xff]
  %v2299 = vld [vmem:[%s14 + $0x8] sm:$0xff]
  %v2300 = vld [vmem:[%s14 + $0x10] sm:$0xff]
  %v2301 = vld [vmem:[%s14 + $0x18] sm:$0xff]
  %v2302 = vld [vmem:[%s14 + $0x20] sm:$0xff]
  %v2303 = vld [vmem:[%s14 + $0x28] sm:$0xff]
  %v2304 = vld [vmem:[%s14 + $0x30] sm:$0xff]
  %v2305 = vld [vmem:[%s14 + $0x38] sm:$0xff]
  %v2306 = vld [vmem:[%s18] sm:$0xff]
  %v2307 = vld [vmem:[%s18 + $0x8] sm:$0xff]
  %v2308 = vld [vmem:[%s18 + $0x10] sm:$0xff]
  %v2309 = vld [vmem:[%s18 + $0x18] sm:$0xff]
  %v2310 = vld [vmem:[%s18 + $0x20] sm:$0xff]
  %v2311 = vld [vmem:[%s18 + $0x28] sm:$0xff]
  %v2312 = vld [vmem:[%s18 + $0x30] sm:$0xff]
  %v2313 = vld [vmem:[%s18 + $0x38] sm:$0xff]
  %v2314 = vld [vmem:[%s22] sm:$0xff]
  %v2315 = vld [vmem:[%s22 + $0x8] sm:$0xff]
  %v2316 = vld [vmem:[%s22 + $0x10] sm:$0xff]
  %v2317 = vld [vmem:[%s22 + $0x18] sm:$0xff]
  %v2318 = vld [vmem:[%s22 + $0x20] sm:$0xff]
  %v2319 = vld [vmem:[%s22 + $0x28] sm:$0xff]
  %v2320 = vld [vmem:[%s22 + $0x30] sm:$0xff]
  %v2321 = vld [vmem:[%s22 + $0x38] sm:$0xff]
  %2322 = vmatprep.subr.mxu0 0.0
  %2323 = vmatpush1.msra.mxu0 %v2302
  %2324 = vmatprep.subr.mxu0 0.0
  %2325 = vmatpush1.msra.mxu0 %v2303
  %2326 = vmatprep.subr.mxu0 0.0
  %2327 = vmatpush1.msra.mxu0 %v2304
  %2328 = vmatprep.subr.mxu0 0.0
  %2329 = vmatpush1.msra.mxu0 %v2305
  %2330 = vmatprep.subr.mxu0 0.0
  %2331 = vmatpush1.msra.mxu0 0.0
  %2332 = vmatprep.subr.mxu0 0.0
  %2333 = vmatpush1.msra.mxu0 0.0
  %2334 = vmatprep.subr.mxu0 0.0
  %2335 = vmatpush1.msra.mxu0 0.0
  %2336 = vmatprep.subr.mxu0 0.0
  %2337 = vmatpush1.msra.mxu0 0.0
  %2338 = vmatprep.subr.mxu0 0.0
  %2339 = vmatpush1.msra.mxu0 0.0
  %2340 = vmatprep.subr.mxu0 0.0
  %2341 = vmatpush1.msra.mxu0 0.0
  %2342 = vmatprep.subr.mxu0 0.0
  %2343 = vmatpush1.msra.mxu0 0.0
  %2344 = vmatprep.subr.mxu0 0.0
  %2345 = vmatpush1.msra.mxu0 0.0
  %2346 = vmatprep.subr.mxu0 0.0
  %2347 = vmatpush1.msra.mxu0 0.0
  %2348 = vmatprep.subr.mxu0 0.0
  %2349 = vmatpush1.msra.mxu0 0.0
  %2350 = vmatprep.subr.mxu0 0.0
  %2351 = vmatpush1.msra.mxu0 0.0
  %2352 = vmatprep.subr.mxu0 0.0
  %2353 = vmatpush1.msra.mxu0 0.0
  %2354 = vmatprep.subr.mxu0 0.0
  %2355 = vmatpush1.msra.mxu0 0.0
  %2356 = vmatprep.subr.mxu0 0.0
  %2357 = vmatpush1.msra.mxu0 0.0
  %2358 = vmatprep.subr.mxu0 0.0
  %2359 = vmatpush1.msra.mxu0 0.0
  %2360 = vmatprep.subr.mxu0 0.0
  %2361 = vmatpush1.msra.mxu0 0.0
  %2362 = vmatprep.subr.mxu0 0.0
  %2363 = vmatpush1.msra.mxu0 0.0
  %2364 = vmatprep.subr.mxu0 0.0
  %2365 = vmatpush1.msra.mxu0 0.0
  %2366 = vmatprep.subr.mxu0 0.0
  %2367 = vmatpush1.msra.mxu0 0.0
  %2368 = vmatprep.subr.mxu0 0.0
  %2369 = vmatpush1.msra.mxu0 0.0
  %2370 = vmatprep.subr.mxu0 0.0
  %2371 = vmatpush1.msra.mxu0 0.0
  %2372 = vmatprep.subr.mxu0 0.0
  %2373 = vmatpush1.msra.mxu0 0.0
  %2374 = vmatprep.subr.mxu0 0.0
  %2375 = vmatpush1.msra.mxu0 0.0
  %2376 = vmatprep.subr.mxu0 0.0
  %2377 = vmatpush1.msra.mxu0 0.0
  %2378 = vmatprep.subr.mxu0 0.0
  %2379 = vmatpush1.msra.mxu0 0.0
  %2380 = vmatprep.subr.mxu0 0.0
  %2381 = vmatpush1.msra.mxu0 0.0
  %2382 = vmatprep.subr.mxu0 0.0
  %2383 = vmatpush1.msra.mxu0 0.0
  %2384 = vmatprep.subr.mxu0 0.0
  %2385 = vmatpush1.msra.mxu0 0.0
  %2386 = vmatprep.mubr.f32.mxu0 0.0
  %2387 = vmatmul.mubr.f32.gmra.mrb[0].mxu0 %v1983
  %v2388 = vpop.f32.mrb[0].mxu0
  %v2389 = vadd.f32 0.0, %v2388
  %v2390 = vpop.f32.mrb[0].mxu0
  %2391 = vmatprep.mubr.f32.mxu0 0.0
  %2392 = vmatmul.mubr.f32.gmra.mrb[0].mxu0 %v1866
  %v2393 = vpop.f32.mrb[0].mxu0
  %v2394 = vadd.f32 0.0, %v2393
  %v2395 = vpop.f32.mrb[0].mxu0
  %2396 = vmatprep.mubr.f32.mxu0 0.0
  %2397 = vmatmul.mubr.f32.gmra.mrb[0].mxu0 %v1664
  %v2398 = vpop.f32.mrb[0].mxu0
  %v2399 = vadd.f32 0.0, %v2398
  %v2400 = vpop.f32.mrb[0].mxu0
  %2401 = vmatprep.mubr.f32.mxu0 0.0
  %2402 = vmatmul.mubr.f32.gmra.mrb[0].mxu0 %v1462
  %v2403 = vpop.f32.mrb[0].mxu0
  %v2404 = vadd.f32 0.0, %v2403
  %v2405 = vpop.f32.mrb[0].mxu0
  %2406 = vmatprep.mubr.f32.mxu0 0.0
  %2407 = vmatmul.mubr.f32.gmra.mrb[0].mxu0 %v1260
  %v2408 = vpop.f32.mrb[0].mxu0
  %v2409 = vadd.f32 0.0, %v2408
  %v2410 = vpop.f32.mrb[0].mxu0
  %2411 = vmatprep.mubr.f32.mxu0 0.0
  %2412 = vmatmul.mubr.f32.gmra.mrb[0].mxu0 %v1058
  %v2413 = vpop.f32.mrb[0].mxu0
  %v2414 = vadd.f32 0.0, %v2413
  %v2415 = vpop.f32.mrb[0].mxu0
  %2416 = vmatprep.mubr.f32.mxu0 0.0
  %2417 = vmatmul.mubr.f32.gmra.mrb[0].mxu0 %v856
  %v2418 = vpop.f32.mrb[0].mxu0
  %v2419 = vadd.f32 0.0, %v2418
  %v2420 = vpop.f32.mrb[0].mxu0
  %2421 = vmatprep.mubr.f32.mxu0 0.0
  %2422 = vmatmul.mubr.f32.gmra.mrb[0].mxu0 %v654
  %v2423 = vpop.f32.mrb[0].mxu0
  %v2424 = vadd.f32 0.0, %v2423
  %v2425 = vpop.f32.mrb[0].mxu0
  %2426 = vdwg.mxu0
  %2427 = vmatprep.subr.mxu0 0.0
  %2428 = vmatpush1.msra.mxu0 %v2298
  %2429 = vmatprep.subr.mxu0 0.0
  %2430 = vmatpush1.msra.mxu0 %v2299
  %2431 = vmatprep.subr.mxu0 0.0
  %2432 = vmatpush1.msra.mxu0 %v2300
  %2433 = vmatprep.subr.mxu0 0.0
  %2434 = vmatpush1.msra.mxu0 %v2301
  %2435 = vmatprep.subr.mxu0 0.0
  %2436 = vmatpush1.msra.mxu0 0.0
  %2437 = vmatprep.subr.mxu0 0.0
  %2438 = vmatpush1.msra.mxu0 0.0
  %2439 = vmatprep.subr.mxu0 0.0
  %2440 = vmatpush1.msra.mxu0 0.0
  %2441 = vmatprep.subr.mxu0 0.0
  %2442 = vmatpush1.msra.mxu0 0.0
  %2443 = vmatprep.subr.mxu0 0.0
  %2444 = vmatpush1.msra.mxu0 0.0
  %2445 = vmatprep.subr.mxu0 0.0
  %2446 = vmatpush1.msra.mxu0 0.0
  %2447 = vmatprep.subr.mxu0 0.0
  %2448 = vmatpush1.msra.mxu0 0.0
  %2449 = vmatprep.subr.mxu0 0.0
  %2450 = vmatpush1.msra.mxu0 0.0
  %2451 = vmatprep.subr.mxu0 0.0
  %2452 = vmatpush1.msra.mxu0 0.0
  %2453 = vmatprep.subr.mxu0 0.0
  %2454 = vmatpush1.msra.mxu0 0.0
  %2455 = vmatprep.subr.mxu0 0.0
  %2456 = vmatpush1.msra.mxu0 0.0
  %2457 = vmatprep.subr.mxu0 0.0
  %2458 = vmatpush1.msra.mxu0 0.0
  %2459 = vmatprep.subr.mxu0 0.0
  %2460 = vmatpush1.msra.mxu0 0.0
  %2461 = vmatprep.subr.mxu0 0.0
  %2462 = vmatpush1.msra.mxu0 0.0
  %2463 = vmatprep.subr.mxu0 0.0
  %2464 = vmatpush1.msra.mxu0 0.0
  %2465 = vmatprep.subr.mxu0 0.0
  %2466 = vmatpush1.msra.mxu0 0.0
  %2467 = vmatprep.subr.mxu0 0.0
  %2468 = vmatpush1.msra.mxu0 0.0
  %2469 = vmatprep.subr.mxu0 0.0
  %2470 = vmatpush1.msra.mxu0 0.0
  %2471 = vmatprep.subr.mxu0 0.0
  %2472 = vmatpush1.msra.mxu0 0.0
  %2473 = vmatprep.subr.mxu0 0.0
  %2474 = vmatpush1.msra.mxu0 0.0
  %2475 = vmatprep.subr.mxu0 0.0
  %2476 = vmatpush1.msra.mxu0 0.0
  %2477 = vmatprep.subr.mxu0 0.0
  %2478 = vmatpush1.msra.mxu0 0.0
  %2479 = vmatprep.subr.mxu0 0.0
  %2480 = vmatpush1.msra.mxu0 0.0
  %2481 = vmatprep.subr.mxu0 0.0
  %2482 = vmatpush1.msra.mxu0 0.0
  %2483 = vmatprep.subr.mxu0 0.0
  %2484 = vmatpush1.msra.mxu0 0.0
  %2485 = vmatprep.subr.mxu0 0.0
  %2486 = vmatpush1.msra.mxu0 0.0
  %2487 = vmatprep.subr.mxu0 0.0
  %2488 = vmatpush1.msra.mxu0 0.0
  %2489 = vmatprep.subr.mxu0 0.0
  %2490 = vmatpush1.msra.mxu0 0.0
  %2491 = vmatprep.mubr.f32.mxu0 0.0
  %2492 = vmatmul.mubr.f32.gmra.mrb[0].mxu0 %v553
  %v2493 = vpop.f32.mrb[0].mxu0
  %v2494 = vadd.f32 %v2389, %v2493
  %v2495 = vpop.f32.mrb[0].mxu0
  %2496 = vmatprep.mubr.f32.mxu0 0.0
  %2497 = vmatmul.mubr.f32.gmra.mrb[0].mxu0 %v755
  %v2498 = vpop.f32.mrb[0].mxu0
  %v2499 = vadd.f32 %v2394, %v2498
  %v2500 = vpop.f32.mrb[0].mxu0
  %2501 = vmatprep.mubr.f32.mxu0 0.0
  %2502 = vmatmul.mubr.f32.gmra.mrb[0].mxu0 %v957
  %v2503 = vpop.f32.mrb[0].mxu0
  %v2504 = vadd.f32 %v2399, %v2503
  %v2505 = vpop.f32.mrb[0].mxu0
  %2506 = vmatprep.mubr.f32.mxu0 0.0
  %2507 = vmatmul.mubr.f32.gmra.mrb[0].mxu0 %v1159
  %v2508 = vpop.f32.mrb[0].mxu0
  %v2509 = vadd.f32 %v2404, %v2508
  %v2510 = vpop.f32.mrb[0].mxu0
  %2511 = vmatprep.mubr.f32.mxu0 0.0
  %2512 = vmatmul.mubr.f32.gmra.mrb[0].mxu0 %v1361
  %v2513 = vpop.f32.mrb[0].mxu0
  %v2514 = vadd.f32 %v2409, %v2513
  %v2515 = vpop.f32.mrb[0].mxu0
  %2516 = vmatprep.mubr.f32.mxu0 0.0
  %2517 = vmatmul.mubr.f32.gmra.mrb[0].mxu0 %v1563
  %v2518 = vpop.f32.mrb[0].mxu0
  %v2519 = vadd.f32 %v2414, %v2518
  %v2520 = vpop.f32.mrb[0].mxu0
  %2521 = vmatprep.mubr.f32.mxu0 0.0
  %2522 = vmatmul.mubr.f32.gmra.mrb[0].mxu0 %v1765
  %v2523 = vpop.f32.mrb[0].mxu0
  %v2524 = vadd.f32 %v2419, %v2523
  %v2525 = vpop.f32.mrb[0].mxu0
  %2526 = vmatprep.mubr.f32.mxu0 0.0
  %2527 = vmatmul.mubr.f32.gmra.mrb[0].mxu0 %v2058
  %v2528 = vpop.f32.mrb[0].mxu0
  %v2529 = vadd.f32 %v2424, %v2528
  %v2530 = vpop.f32.mrb[0].mxu0
  %2531 = vdwg.mxu0
  %2532 = vmatprep.subr.mxu0 0.0
  %2533 = vmatpush1.msra.mxu0 %v2310
  %2534 = vmatprep.subr.mxu0 0.0
  %2535 = vmatpush1.msra.mxu0 %v2311
  %2536 = vmatprep.subr.mxu0 0.0
  %2537 = vmatpush1.msra.mxu0 %v2312
  %2538 = vmatprep.subr.mxu0 0.0
  %2539 = vmatpush1.msra.mxu0 %v2313
  %2540 = vmatprep.subr.mxu0 0.0
  %2541 = vmatpush1.msra.mxu0 0.0
  %2542 = vmatprep.subr.mxu0 0.0
  %2543 = vmatpush1.msra.mxu0 0.0
  %2544 = vmatprep.subr.mxu0 0.0
  %2545 = vmatpush1.msra.mxu0 0.0
  %2546 = vmatprep.subr.mxu0 0.0
  %2547 = vmatpush1.msra.mxu0 0.0
  %2548 = vmatprep.subr.mxu0 0.0
  %2549 = vmatpush1.msra.mxu0 0.0
  %2550 = vmatprep.subr.mxu0 0.0
  %2551 = vmatpush1.msra.mxu0 0.0
  %2552 = vmatprep.subr.mxu0 0.0
  %2553 = vmatpush1.msra.mxu0 0.0
  %2554 = vmatprep.subr.mxu0 0.0
  %2555 = vmatpush1.msra.mxu0 0.0
  %2556 = vmatprep.subr.mxu0 0.0
  %2557 = vmatpush1.msra.mxu0 0.0
  %2558 = vmatprep.subr.mxu0 0.0
  %2559 = vmatpush1.msra.mxu0 0.0
  %2560 = vmatprep.subr.mxu0 0.0
  %2561 = vmatpush1.msra.mxu0 0.0
  %2562 = vmatprep.subr.mxu0 0.0
  %2563 = vmatpush1.msra.mxu0 0.0
  %2564 = vmatprep.subr.mxu0 0.0
  %2565 = vmatpush1.msra.mxu0 0.0
  %2566 = vmatprep.subr.mxu0 0.0
  %2567 = vmatpush1.msra.mxu0 0.0
  %2568 = vmatprep.subr.mxu0 0.0
  %2569 = vmatpush1.msra.mxu0 0.0
  %2570 = vmatprep.subr.mxu0 0.0
  %2571 = vmatpush1.msra.mxu0 0.0
  %2572 = vmatprep.subr.mxu0 0.0
  %2573 = vmatpush1.msra.mxu0 0.0
  %2574 = vmatprep.subr.mxu0 0.0
  %2575 = vmatpush1.msra.mxu0 0.0
  %2576 = vmatprep.subr.mxu0 0.0
  %2577 = vmatpush1.msra.mxu0 0.0
  %2578 = vmatprep.subr.mxu0 0.0
  %2579 = vmatpush1.msra.mxu0 0.0
  %2580 = vmatprep.subr.mxu0 0.0
  %2581 = vmatpush1.msra.mxu0 0.0
  %2582 = vmatprep.subr.mxu0 0.0
  %2583 = vmatpush1.msra.mxu0 0.0
  %2584 = vmatprep.subr.mxu0 0.0
  %2585 = vmatpush1.msra.mxu0 0.0
  %2586 = vmatprep.subr.mxu0 0.0
  %2587 = vmatpush1.msra.mxu0 0.0
  %2588 = vmatprep.subr.mxu0 0.0
  %2589 = vmatpush1.msra.mxu0 0.0
  %2590 = vmatprep.subr.mxu0 0.0
  %2591 = vmatpush1.msra.mxu0 0.0
  %2592 = vmatprep.subr.mxu0 0.0
  %2593 = vmatpush1.msra.mxu0 0.0
  %2594 = vmatprep.subr.mxu0 0.0
  %2595 = vmatpush1.msra.mxu0 0.0
  %2596 = vmatprep.mubr.f32.mxu0 0.0
  %2597 = vmatmul.mubr.f32.gmra.mrb[0].mxu0 %v1983
  %v2598 = vpop.f32.mrb[0].mxu0
  %v2599 = vadd.f32 0.0, %v2598
  %v2600 = vpop.f32.mrb[0].mxu0
  %2601 = vmatprep.mubr.f32.mxu0 0.0
  %2602 = vmatmul.mubr.f32.gmra.mrb[0].mxu0 %v1866
  %v2603 = vpop.f32.mrb[0].mxu0
  %v2604 = vadd.f32 0.0, %v2603
  %v2605 = vpop.f32.mrb[0].mxu0
  %2606 = vmatprep.mubr.f32.mxu0 0.0
  %2607 = vmatmul.mubr.f32.gmra.mrb[0].mxu0 %v1664
  %v2608 = vpop.f32.mrb[0].mxu0
  %v2609 = vadd.f32 0.0, %v2608
  %v2610 = vpop.f32.mrb[0].mxu0
  %2611 = vmatprep.mubr.f32.mxu0 0.0
  %2612 = vmatmul.mubr.f32.gmra.mrb[0].mxu0 %v1462
  %v2613 = vpop.f32.mrb[0].mxu0
  %v2614 = vadd.f32 0.0, %v2613
  %v2615 = vpop.f32.mrb[0].mxu0
  %2616 = vmatprep.mubr.f32.mxu0 0.0
  %2617 = vmatmul.mubr.f32.gmra.mrb[0].mxu0 %v1260
  %v2618 = vpop.f32.mrb[0].mxu0
  %v2619 = vadd.f32 0.0, %v2618
  %v2620 = vpop.f32.mrb[0].mxu0
  %2621 = vmatprep.mubr.f32.mxu0 0.0
  %2622 = vmatmul.mubr.f32.gmra.mrb[0].mxu0 %v1058
  %v2623 = vpop.f32.mrb[0].mxu0
  %v2624 = vadd.f32 0.0, %v2623
  %v2625 = vpop.f32.mrb[0].mxu0
  %2626 = vmatprep.mubr.f32.mxu0 0.0
  %2627 = vmatmul.mubr.f32.gmra.mrb[0].mxu0 %v856
  %v2628 = vpop.f32.mrb[0].mxu0
  %v2629 = vadd.f32 0.0, %v2628
  %v2630 = vpop.f32.mrb[0].mxu0
  %2631 = vmatprep.mubr.f32.mxu0 0.0
  %2632 = vmatmul.mubr.f32.gmra.mrb[0].mxu0 %v654
  %v2633 = vpop.f32.mrb[0].mxu0
  %v2634 = vadd.f32 0.0, %v2633
  %v2635 = vpop.f32.mrb[0].mxu0
  %2636 = vdwg.mxu0
  %2637 = vmatprep.subr.mxu0 0.0
  %2638 = vmatpush1.msra.mxu0 %v2306
  %2639 = vmatprep.subr.mxu0 0.0
  %2640 = vmatpush1.msra.mxu0 %v2307
  %2641 = vmatprep.subr.mxu0 0.0
  %2642 = vmatpush1.msra.mxu0 %v2308
  %2643 = vmatprep.subr.mxu0 0.0
  %2644 = vmatpush1.msra.mxu0 %v2309
  %2645 = vmatprep.subr.mxu0 0.0
  %2646 = vmatpush1.msra.mxu0 0.0
  %2647 = vmatprep.subr.mxu0 0.0
  %2648 = vmatpush1.msra.mxu0 0.0
  %2649 = vmatprep.subr.mxu0 0.0
  %2650 = vmatpush1.msra.mxu0 0.0
  %2651 = vmatprep.subr.mxu0 0.0
  %2652 = vmatpush1.msra.mxu0 0.0
  %2653 = vmatprep.subr.mxu0 0.0
  %2654 = vmatpush1.msra.mxu0 0.0
  %2655 = vmatprep.subr.mxu0 0.0
  %2656 = vmatpush1.msra.mxu0 0.0
  %2657 = vmatprep.subr.mxu0 0.0
  %2658 = vmatpush1.msra.mxu0 0.0
  %2659 = vmatprep.subr.mxu0 0.0
  %2660 = vmatpush1.msra.mxu0 0.0
  %2661 = vmatprep.subr.mxu0 0.0
  %2662 = vmatpush1.msra.mxu0 0.0
  %2663 = vmatprep.subr.mxu0 0.0
  %2664 = vmatpush1.msra.mxu0 0.0
  %2665 = vmatprep.subr.mxu0 0.0
  %2666 = vmatpush1.msra.mxu0 0.0
  %2667 = vmatprep.subr.mxu0 0.0
  %2668 = vmatpush1.msra.mxu0 0.0
  %2669 = vmatprep.subr.mxu0 0.0
  %2670 = vmatpush1.msra.mxu0 0.0
  %2671 = vmatprep.subr.mxu0 0.0
  %2672 = vmatpush1.msra.mxu0 0.0
  %2673 = vmatprep.subr.mxu0 0.0
  %2674 = vmatpush1.msra.mxu0 0.0
  %2675 = vmatprep.subr.mxu0 0.0
  %2676 = vmatpush1.msra.mxu0 0.0
  %2677 = vmatprep.subr.mxu0 0.0
  %2678 = vmatpush1.msra.mxu0 0.0
  %2679 = vmatprep.subr.mxu0 0.0
  %2680 = vmatpush1.msra.mxu0 0.0
  %2681 = vmatprep.subr.mxu0 0.0
  %2682 = vmatpush1.msra.mxu0 0.0
  %2683 = vmatprep.subr.mxu0 0.0
  %2684 = vmatpush1.msra.mxu0 0.0
  %2685 = vmatprep.subr.mxu0 0.0
  %2686 = vmatpush1.msra.mxu0 0.0
  %2687 = vmatprep.subr.mxu0 0.0
  %2688 = vmatpush1.msra.mxu0 0.0
  %2689 = vmatprep.subr.mxu0 0.0
  %2690 = vmatpush1.msra.mxu0 0.0
  %2691 = vmatprep.subr.mxu0 0.0
  %2692 = vmatpush1.msra.mxu0 0.0
  %2693 = vmatprep.subr.mxu0 0.0
  %2694 = vmatpush1.msra.mxu0 0.0
  %2695 = vmatprep.subr.mxu0 0.0
  %2696 = vmatpush1.msra.mxu0 0.0
  %2697 = vmatprep.subr.mxu0 0.0
  %2698 = vmatpush1.msra.mxu0 0.0
  %2699 = vmatprep.subr.mxu0 0.0
  %2700 = vmatpush1.msra.mxu0 0.0
  %2701 = vmatprep.mubr.f32.mxu0 0.0
  %2702 = vmatmul.mubr.f32.gmra.mrb[0].mxu0 %v553
  %v2703 = vpop.f32.mrb[0].mxu0
  %v2704 = vadd.f32 %v2599, %v2703
  %v2705 = vpop.f32.mrb[0].mxu0
  %2706 = vmatprep.mubr.f32.mxu0 0.0
  %2707 = vmatmul.mubr.f32.gmra.mrb[0].mxu0 %v755
  %v2708 = vpop.f32.mrb[0].mxu0
  %v2709 = vadd.f32 %v2604, %v2708
  %v2710 = vpop.f32.mrb[0].mxu0
  %2711 = vmatprep.mubr.f32.mxu0 0.0
  %2712 = vmatmul.mubr.f32.gmra.mrb[0].mxu0 %v957
  %v2713 = vpop.f32.mrb[0].mxu0
  %v2714 = vadd.f32 %v2609, %v2713
  %v2715 = vpop.f32.mrb[0].mxu0
  %2716 = vmatprep.mubr.f32.mxu0 0.0
  %2717 = vmatmul.mubr.f32.gmra.mrb[0].mxu0 %v1159
  %v2718 = vpop.f32.mrb[0].mxu0
  %v2719 = vadd.f32 %v2614, %v2718
  %v2720 = vpop.f32.mrb[0].mxu0
  %2721 = vmatprep.mubr.f32.mxu0 0.0
  %2722 = vmatmul.mubr.f32.gmra.mrb[0].mxu0 %v1361
  %v2723 = vpop.f32.mrb[0].mxu0
  %v2724 = vadd.f32 %v2619, %v2723
  %v2725 = vpop.f32.mrb[0].mxu0
  %2726 = vmatprep.mubr.f32.mxu0 0.0
  %2727 = vmatmul.mubr.f32.gmra.mrb[0].mxu0 %v1563
  %v2728 = vpop.f32.mrb[0].mxu0
  %v2729 = vadd.f32 %v2624, %v2728
  %v2730 = vpop.f32.mrb[0].mxu0
  %2731 = vmatprep.mubr.f32.mxu0 0.0
  %2732 = vmatmul.mubr.f32.gmra.mrb[0].mxu0 %v1765
  %v2733 = vpop.f32.mrb[0].mxu0
  %v2734 = vadd.f32 %v2629, %v2733
  %v2735 = vpop.f32.mrb[0].mxu0
  %2736 = vmatprep.mubr.f32.mxu0 0.0
  %2737 = vmatmul.mubr.f32.gmra.mrb[0].mxu0 %v2058
  %v2738 = vpop.f32.mrb[0].mxu0
  %v2739 = vadd.f32 %v2634, %v2738
  %v2740 = vpop.f32.mrb[0].mxu0
  %2741 = vdwg.mxu0
  %2742 = vmatprep.subr.mxu0 0.0
  %2743 = vmatpush1.msra.mxu0 %v2318
  %2744 = vmatprep.subr.mxu0 0.0
  %2745 = vmatpush1.msra.mxu0 %v2319
  %2746 = vmatprep.subr.mxu0 0.0
  %2747 = vmatpush1.msra.mxu0 %v2320
  %2748 = vmatprep.subr.mxu0 0.0
  %2749 = vmatpush1.msra.mxu0 %v2321
  %2750 = vmatprep.subr.mxu0 0.0
  %2751 = vmatpush1.msra.mxu0 0.0
  %2752 = vmatprep.subr.mxu0 0.0
  %2753 = vmatpush1.msra.mxu0 0.0
  %2754 = vmatprep.subr.mxu0 0.0
  %2755 = vmatpush1.msra.mxu0 0.0
  %2756 = vmatprep.subr.mxu0 0.0
  %2757 = vmatpush1.msra.mxu0 0.0
  %2758 = vmatprep.subr.mxu0 0.0
  %2759 = vmatpush1.msra.mxu0 0.0
  %2760 = vmatprep.subr.mxu0 0.0
  %2761 = vmatpush1.msra.mxu0 0.0
  %2762 = vmatprep.subr.mxu0 0.0
  %2763 = vmatpush1.msra.mxu0 0.0
  %2764 = vmatprep.subr.mxu0 0.0
  %2765 = vmatpush1.msra.mxu0 0.0
  %2766 = vmatprep.subr.mxu0 0.0
  %2767 = vmatpush1.msra.mxu0 0.0
  %2768 = vmatprep.subr.mxu0 0.0
  %2769 = vmatpush1.msra.mxu0 0.0
  %2770 = vmatprep.subr.mxu0 0.0
  %2771 = vmatpush1.msra.mxu0 0.0
  %2772 = vmatprep.subr.mxu0 0.0
  %2773 = vmatpush1.msra.mxu0 0.0
  %2774 = vmatprep.subr.mxu0 0.0
  %2775 = vmatpush1.msra.mxu0 0.0
  %2776 = vmatprep.subr.mxu0 0.0
  %2777 = vmatpush1.msra.mxu0 0.0
  %2778 = vmatprep.subr.mxu0 0.0
  %2779 = vmatpush1.msra.mxu0 0.0
  %2780 = vmatprep.subr.mxu0 0.0
  %2781 = vmatpush1.msra.mxu0 0.0
  %2782 = vmatprep.subr.mxu0 0.0
  %2783 = vmatpush1.msra.mxu0 0.0
  %2784 = vmatprep.subr.mxu0 0.0
  %2785 = vmatpush1.msra.mxu0 0.0
  %2786 = vmatprep.subr.mxu0 0.0
  %2787 = vmatpush1.msra.mxu0 0.0
  %2788 = vmatprep.subr.mxu0 0.0
  %2789 = vmatpush1.msra.mxu0 0.0
  %2790 = vmatprep.subr.mxu0 0.0
  %2791 = vmatpush1.msra.mxu0 0.0
  %2792 = vmatprep.subr.mxu0 0.0
  %2793 = vmatpush1.msra.mxu0 0.0
  %2794 = vmatprep.subr.mxu0 0.0
  %2795 = vmatpush1.msra.mxu0 0.0
  %2796 = vmatprep.subr.mxu0 0.0
  %2797 = vmatpush1.msra.mxu0 0.0
  %2798 = vmatprep.subr.mxu0 0.0
  %2799 = vmatpush1.msra.mxu0 0.0
  %2800 = vmatprep.subr.mxu0 0.0
  %2801 = vmatpush1.msra.mxu0 0.0
  %2802 = vmatprep.subr.mxu0 0.0
  %2803 = vmatpush1.msra.mxu0 0.0
  %2804 = vmatprep.subr.mxu0 0.0
  %2805 = vmatpush1.msra.mxu0 0.0
  %2806 = vmatprep.mubr.f32.mxu0 0.0
  %2807 = vmatmul.mubr.f32.gmra.mrb[0].mxu0 %v1983
  %v2808 = vpop.f32.mrb[0].mxu0
  %v2809 = vadd.f32 0.0, %v2808
  %v2810 = vpop.f32.mrb[0].mxu0
  %2811 = vmatprep.mubr.f32.mxu0 0.0
  %2812 = vmatmul.mubr.f32.gmra.mrb[0].mxu0 %v1866
  %v2813 = vpop.f32.mrb[0].mxu0
  %v2814 = vadd.f32 0.0, %v2813
  %v2815 = vpop.f32.mrb[0].mxu0
  %2816 = vmatprep.mubr.f32.mxu0 0.0
  %2817 = vmatmul.mubr.f32.gmra.mrb[0].mxu0 %v1664
  %v2818 = vpop.f32.mrb[0].mxu0
  %v2819 = vadd.f32 0.0, %v2818
  %v2820 = vpop.f32.mrb[0].mxu0
  %2821 = vmatprep.mubr.f32.mxu0 0.0
  %2822 = vmatmul.mubr.f32.gmra.mrb[0].mxu0 %v1462
  %v2823 = vpop.f32.mrb[0].mxu0
  %v2824 = vadd.f32 0.0, %v2823
  %v2825 = vpop.f32.mrb[0].mxu0
  %2826 = vmatprep.mubr.f32.mxu0 0.0
  %2827 = vmatmul.mubr.f32.gmra.mrb[0].mxu0 %v1260
  %v2828 = vpop.f32.mrb[0].mxu0
  %v2829 = vadd.f32 0.0, %v2828
  %v2830 = vpop.f32.mrb[0].mxu0
  %2831 = vmatprep.mubr.f32.mxu0 0.0
  %2832 = vmatmul.mubr.f32.gmra.mrb[0].mxu0 %v1058
  %v2833 = vpop.f32.mrb[0].mxu0
  %v2834 = vadd.f32 0.0, %v2833
  %v2835 = vpop.f32.mrb[0].mxu0
  %2836 = vmatprep.mubr.f32.mxu0 0.0
  %2837 = vmatmul.mubr.f32.gmra.mrb[0].mxu0 %v856
  %v2838 = vpop.f32.mrb[0].mxu0
  %v2839 = vadd.f32 0.0, %v2838
  %v2840 = vpop.f32.mrb[0].mxu0
  %2841 = vmatprep.mubr.f32.mxu0 0.0
  %2842 = vmatmul.mubr.f32.gmra.mrb[0].mxu0 %v654
  %v2843 = vpop.f32.mrb[0].mxu0
  %v2844 = vadd.f32 0.0, %v2843
  %v2845 = vpop.f32.mrb[0].mxu0
  %2846 = vdwg.mxu0
  %2847 = vmatprep.subr.mxu0 0.0
  %2848 = vmatpush1.msra.mxu0 %v2314
  %2849 = vmatprep.subr.mxu0 0.0
  %2850 = vmatpush1.msra.mxu0 %v2315
  %2851 = vmatprep.subr.mxu0 0.0
  %2852 = vmatpush1.msra.mxu0 %v2316
  %2853 = vmatprep.subr.mxu0 0.0
  %2854 = vmatpush1.msra.mxu0 %v2317
  %2855 = vmatprep.subr.mxu0 0.0
  %2856 = vmatpush1.msra.mxu0 0.0
  %2857 = vmatprep.subr.mxu0 0.0
  %2858 = vmatpush1.msra.mxu0 0.0
  %2859 = vmatprep.subr.mxu0 0.0
  %2860 = vmatpush1.msra.mxu0 0.0
  %2861 = vmatprep.subr.mxu0 0.0
  %2862 = vmatpush1.msra.mxu0 0.0
  %2863 = vmatprep.subr.mxu0 0.0
  %2864 = vmatpush1.msra.mxu0 0.0
  %2865 = vmatprep.subr.mxu0 0.0
  %2866 = vmatpush1.msra.mxu0 0.0
  %2867 = vmatprep.subr.mxu0 0.0
  %2868 = vmatpush1.msra.mxu0 0.0
  %2869 = vmatprep.subr.mxu0 0.0
  %2870 = vmatpush1.msra.mxu0 0.0
  %2871 = vmatprep.subr.mxu0 0.0
  %2872 = vmatpush1.msra.mxu0 0.0
  %2873 = vmatprep.subr.mxu0 0.0
  %2874 = vmatpush1.msra.mxu0 0.0
  %2875 = vmatprep.subr.mxu0 0.0
  %2876 = vmatpush1.msra.mxu0 0.0
  %2877 = vmatprep.subr.mxu0 0.0
  %2878 = vmatpush1.msra.mxu0 0.0
  %2879 = vmatprep.subr.mxu0 0.0
  %2880 = vmatpush1.msra.mxu0 0.0
  %2881 = vmatprep.subr.mxu0 0.0
  %2882 = vmatpush1.msra.mxu0 0.0
  %2883 = vmatprep.subr.mxu0 0.0
  %2884 = vmatpush1.msra.mxu0 0.0
  %2885 = vmatprep.subr.mxu0 0.0
  %2886 = vmatpush1.msra.mxu0 0.0
  %2887 = vmatprep.subr.mxu0 0.0
  %2888 = vmatpush1.msra.mxu0 0.0
  %2889 = vmatprep.subr.mxu0 0.0
  %2890 = vmatpush1.msra.mxu0 0.0
  %2891 = vmatprep.subr.mxu0 0.0
  %2892 = vmatpush1.msra.mxu0 0.0
  %2893 = vmatprep.subr.mxu0 0.0
  %2894 = vmatpush1.msra.mxu0 0.0
  %2895 = vmatprep.subr.mxu0 0.0
  %2896 = vmatpush1.msra.mxu0 0.0
  %2897 = vmatprep.subr.mxu0 0.0
  %2898 = vmatpush1.msra.mxu0 0.0
  %2899 = vmatprep.subr.mxu0 0.0
  %2900 = vmatpush1.msra.mxu0 0.0
  %2901 = vmatprep.subr.mxu0 0.0
  %2902 = vmatpush1.msra.mxu0 0.0
  %2903 = vmatprep.subr.mxu0 0.0
  %2904 = vmatpush1.msra.mxu0 0.0
  %2905 = vmatprep.subr.mxu0 0.0
  %2906 = vmatpush1.msra.mxu0 0.0
  %2907 = vmatprep.subr.mxu0 0.0
  %2908 = vmatpush1.msra.mxu0 0.0
  %2909 = vmatprep.subr.mxu0 0.0
  %2910 = vmatpush1.msra.mxu0 0.0
  %2911 = vmatprep.mubr.f32.mxu0 0.0
  %2912 = vmatmul.mubr.f32.gmra.mrb[0].mxu0 %v553
  %v2913 = vpop.f32.mrb[0].mxu0
  %v2914 = vadd.f32 %v2809, %v2913
  %v2915 = vpop.f32.mrb[0].mxu0
  %2916 = vmatprep.mubr.f32.mxu0 0.0
  %2917 = vmatmul.mubr.f32.gmra.mrb[0].mxu0 %v755
  %v2918 = vpop.f32.mrb[0].mxu0
  %v2919 = vadd.f32 %v2814, %v2918
  %v2920 = vpop.f32.mrb[0].mxu0
  %2921 = vmatprep.mubr.f32.mxu0 0.0
  %2922 = vmatmul.mubr.f32.gmra.mrb[0].mxu0 %v957
  %v2923 = vpop.f32.mrb[0].mxu0
  %v2924 = vadd.f32 %v2819, %v2923
  %v2925 = vpop.f32.mrb[0].mxu0
  %2926 = vmatprep.mubr.f32.mxu0 0.0
  %2927 = vmatmul.mubr.f32.gmra.mrb[0].mxu0 %v1159
  %v2928 = vpop.f32.mrb[0].mxu0
  %v2929 = vadd.f32 %v2824, %v2928
  %v2930 = vpop.f32.mrb[0].mxu0
  %2931 = vmatprep.mubr.f32.mxu0 0.0
  %2932 = vmatmul.mubr.f32.gmra.mrb[0].mxu0 %v1361
  %v2933 = vpop.f32.mrb[0].mxu0
  %v2934 = vadd.f32 %v2829, %v2933
  %v2935 = vpop.f32.mrb[0].mxu0
  %2936 = vmatprep.mubr.f32.mxu0 0.0
  %2937 = vmatmul.mubr.f32.gmra.mrb[0].mxu0 %v1563
  %v2938 = vpop.f32.mrb[0].mxu0
  %v2939 = vadd.f32 %v2834, %v2938
  %v2940 = vpop.f32.mrb[0].mxu0
  %2941 = vmatprep.mubr.f32.mxu0 0.0
  %2942 = vmatmul.mubr.f32.gmra.mrb[0].mxu0 %v1765
  %v2943 = vpop.f32.mrb[0].mxu0
  %v2944 = vadd.f32 %v2839, %v2943
  %v2945 = vpop.f32.mrb[0].mxu0
  %2946 = vmatprep.mubr.f32.mxu0 0.0
  %2947 = vmatmul.mubr.f32.gmra.mrb[0].mxu0 %v2058
  %v2948 = vpop.f32.mrb[0].mxu0
  %v2949 = vadd.f32 %v2844, %v2948
  %v2950 = vpop.f32.mrb[0].mxu0
  %2951 = vdwg.mxu0
  %v2952 = vld [vmem:[%s2] sm:$0xff]
  %v2953 = vld [vmem:[%s2 + $0x8] sm:$0xff]
  %v2954 = vld [vmem:[%s2 + $0x10] sm:$0xff]
  %v2955 = vld [vmem:[%s2 + $0x18] sm:$0xff]
  %v2956 = vld [vmem:[%s2 + $0x20] sm:$0xff]
  %v2957 = vld [vmem:[%s2 + $0x28] sm:$0xff]
  %v2958 = vld [vmem:[%s2 + $0x30] sm:$0xff]
  %v2959 = vld [vmem:[%s2 + $0x38] sm:$0xff]
  %v2960 = vld [vmem:[%s17] sm:$0xff]
  %v2961 = vld [vmem:[%s17 + $0x8] sm:$0xff]
  %v2962 = vld [vmem:[%s20] sm:$0x1]
  %v2964 = vlaneseq
  %v2965 = vshrl.u32 %v2964, 7
  %v2966 = vsub.s32 0, %v2965
  %v2967 = vrot.slane %v2962, %v2966
  %v2970 = vsel %vm97, %v2952, 0
  %v2973 = vsel %vm97, %v2953, 0
  %v2976 = vsel %vm97, %v2954, 0
  %v2979 = vsel %vm97, %v2955, 0
  %v2982 = vsel %vm97, %v2956, 0
  %v2985 = vsel %vm97, %v2957, 0
  %v2988 = vsel %vm97, %v2958, 0
  %v2991 = vsel %vm97, %v2959, 0
  %2993 = vmatprep.subr.mxu0 0.0
  %2994 = vmatpush1.msra.mxu0 %v2960
  %2995 = vmatprep.subr.mxu0 0.0
  %2996 = vmatpush1.msra.mxu0 %v2961
  %2997 = vmatprep.subr.mxu0 0.0
  %2998 = vmatpush1.msra.mxu0 0.0
  %2999 = vmatprep.subr.mxu0 0.0
  %3000 = vmatpush1.msra.mxu0 0.0
  %3001 = vmatprep.subr.mxu0 0.0
  %3002 = vmatpush1.msra.mxu0 0.0
  %3003 = vmatprep.subr.mxu0 0.0
  %3004 = vmatpush1.msra.mxu0 0.0
  %3005 = vmatprep.subr.mxu0 0.0
  %3006 = vmatpush1.msra.mxu0 0.0
  %3007 = vmatprep.subr.mxu0 0.0
  %3008 = vmatpush1.msra.mxu0 0.0
  %3009 = vmatprep.subr.mxu0 0.0
  %3010 = vmatpush1.msra.mxu0 0.0
  %3011 = vmatprep.subr.mxu0 0.0
  %3012 = vmatpush1.msra.mxu0 0.0
  %3013 = vmatprep.subr.mxu0 0.0
  %3014 = vmatpush1.msra.mxu0 0.0
  %3015 = vmatprep.subr.mxu0 0.0
  %3016 = vmatpush1.msra.mxu0 0.0
  %3017 = vmatprep.subr.mxu0 0.0
  %3018 = vmatpush1.msra.mxu0 0.0
  %3019 = vmatprep.subr.mxu0 0.0
  %3020 = vmatpush1.msra.mxu0 0.0
  %3021 = vmatprep.subr.mxu0 0.0
  %3022 = vmatpush1.msra.mxu0 0.0
  %3023 = vmatprep.subr.mxu0 0.0
  %3024 = vmatpush1.msra.mxu0 0.0
  %3025 = vmatprep.subr.mxu0 0.0
  %3026 = vmatpush1.msra.mxu0 0.0
  %3027 = vmatprep.subr.mxu0 0.0
  %3028 = vmatpush1.msra.mxu0 0.0
  %3029 = vmatprep.subr.mxu0 0.0
  %3030 = vmatpush1.msra.mxu0 0.0
  %3031 = vmatprep.subr.mxu0 0.0
  %3032 = vmatpush1.msra.mxu0 0.0
  %3033 = vmatprep.subr.mxu0 0.0
  %3034 = vmatpush1.msra.mxu0 0.0
  %3035 = vmatprep.subr.mxu0 0.0
  %3036 = vmatpush1.msra.mxu0 0.0
  %3037 = vmatprep.subr.mxu0 0.0
  %3038 = vmatpush1.msra.mxu0 0.0
  %3039 = vmatprep.subr.mxu0 0.0
  %3040 = vmatpush1.msra.mxu0 0.0
  %3041 = vmatprep.subr.mxu0 0.0
  %3042 = vmatpush1.msra.mxu0 0.0
  %3043 = vmatprep.subr.mxu0 0.0
  %3044 = vmatpush1.msra.mxu0 0.0
  %3045 = vmatprep.subr.mxu0 0.0
  %3046 = vmatpush1.msra.mxu0 0.0
  %3047 = vmatprep.subr.mxu0 0.0
  %3048 = vmatpush1.msra.mxu0 0.0
  %3049 = vmatprep.subr.mxu0 0.0
  %3050 = vmatpush1.msra.mxu0 0.0
  %3051 = vmatprep.subr.mxu0 0.0
  %3052 = vmatpush1.msra.mxu0 0.0
  %3053 = vmatprep.subr.mxu0 0.0
  %3054 = vmatpush1.msra.mxu0 0.0
  %3055 = vmatprep.subr.mxu0 0.0
  %3056 = vmatpush1.msra.mxu0 0.0
  %3057 = vmatprep.mubr.f32.mxu0 0.0
  %3058 = vmatmul.mubr.f32.gmra.mrb[0].mxu0 %v2970
  %v3059 = vpop.f32.mrb[0].mxu0
  %v3060 = vadd.f32 %v2967, %v3059
  %v3061 = vpop.f32.mrb[0].mxu0
  %3062 = vmatprep.mubr.f32.mxu0 0.0
  %3063 = vmatmul.mubr.f32.gmra.mrb[0].mxu0 %v2973
  %v3064 = vpop.f32.mrb[0].mxu0
  %v3065 = vadd.f32 %v2967, %v3064
  %v3066 = vpop.f32.mrb[0].mxu0
  %3067 = vmatprep.mubr.f32.mxu0 0.0
  %3068 = vmatmul.mubr.f32.gmra.mrb[0].mxu0 %v2976
  %v3069 = vpop.f32.mrb[0].mxu0
  %v3070 = vadd.f32 %v2967, %v3069
  %v3071 = vpop.f32.mrb[0].mxu0
  %3072 = vmatprep.mubr.f32.mxu0 0.0
  %3073 = vmatmul.mubr.f32.gmra.mrb[0].mxu0 %v2979
  %v3074 = vpop.f32.mrb[0].mxu0
  %v3075 = vadd.f32 %v2967, %v3074
  %v3076 = vpop.f32.mrb[0].mxu0
  %3077 = vmatprep.mubr.f32.mxu0 0.0
  %3078 = vmatmul.mubr.f32.gmra.mrb[0].mxu0 %v2982
  %v3079 = vpop.f32.mrb[0].mxu0
  %v3080 = vadd.f32 %v2967, %v3079
  %v3081 = vpop.f32.mrb[0].mxu0
  %3082 = vmatprep.mubr.f32.mxu0 0.0
  %3083 = vmatmul.mubr.f32.gmra.mrb[0].mxu0 %v2985
  %v3084 = vpop.f32.mrb[0].mxu0
  %v3085 = vadd.f32 %v2967, %v3084
  %v3086 = vpop.f32.mrb[0].mxu0
  %3087 = vmatprep.mubr.f32.mxu0 0.0
  %3088 = vmatmul.mubr.f32.gmra.mrb[0].mxu0 %v2988
  %v3089 = vpop.f32.mrb[0].mxu0
  %v3090 = vadd.f32 %v2967, %v3089
  %v3091 = vpop.f32.mrb[0].mxu0
  %3092 = vmatprep.mubr.f32.mxu0 0.0
  %3093 = vmatmul.mubr.f32.gmra.mrb[0].mxu0 %v2991
  %v3094 = vpop.f32.mrb[0].mxu0
  %v3095 = vpop.f32.mrb[0].mxu0
  %3096 = vdwg.mxu0
  %v3097 = vld [vmem:[%s23] sm:$0xff]
  %v3098 = vld [vmem:[%s23 + $0x8] sm:$0xff]
  %v3099 = vld [vmem:[%s24] sm:$0x1]
  %v3101 = vlaneseq
  %v3102 = vshrl.u32 %v3101, 7
  %v3103 = vsub.s32 0, %v3102
  %v3104 = vrot.slane %v3099, %v3103
  %3106 = vmatprep.subr.mxu0 0.0
  %3107 = vmatpush1.msra.mxu0 %v3097
  %3108 = vmatprep.subr.mxu0 0.0
  %3109 = vmatpush1.msra.mxu0 %v3098
  %3110 = vmatprep.subr.mxu0 0.0
  %3111 = vmatpush1.msra.mxu0 0.0
  %3112 = vmatprep.subr.mxu0 0.0
  %3113 = vmatpush1.msra.mxu0 0.0
  %3114 = vmatprep.subr.mxu0 0.0
  %3115 = vmatpush1.msra.mxu0 0.0
  %3116 = vmatprep.subr.mxu0 0.0
  %3117 = vmatpush1.msra.mxu0 0.0
  %3118 = vmatprep.subr.mxu0 0.0
  %3119 = vmatpush1.msra.mxu0 0.0
  %3120 = vmatprep.subr.mxu0 0.0
  %3121 = vmatpush1.msra.mxu0 0.0
  %3122 = vmatprep.subr.mxu0 0.0
  %3123 = vmatpush1.msra.mxu0 0.0
  %3124 = vmatprep.subr.mxu0 0.0
  %3125 = vmatpush1.msra.mxu0 0.0
  %3126 = vmatprep.subr.mxu0 0.0
  %3127 = vmatpush1.msra.mxu0 0.0
  %3128 = vmatprep.subr.mxu0 0.0
  %3129 = vmatpush1.msra.mxu0 0.0
  %3130 = vmatprep.subr.mxu0 0.0
  %3131 = vmatpush1.msra.mxu0 0.0
  %3132 = vmatprep.subr.mxu0 0.0
  %3133 = vmatpush1.msra.mxu0 0.0
  %3134 = vmatprep.subr.mxu0 0.0
  %3135 = vmatpush1.msra.mxu0 0.0
  %3136 = vmatprep.subr.mxu0 0.0
  %3137 = vmatpush1.msra.mxu0 0.0
  %3138 = vmatprep.subr.mxu0 0.0
  %3139 = vmatpush1.msra.mxu0 0.0
  %3140 = vmatprep.subr.mxu0 0.0
  %3141 = vmatpush1.msra.mxu0 0.0
  %3142 = vmatprep.subr.mxu0 0.0
  %3143 = vmatpush1.msra.mxu0 0.0
  %3144 = vmatprep.subr.mxu0 0.0
  %3145 = vmatpush1.msra.mxu0 0.0
  %3146 = vmatprep.subr.mxu0 0.0
  %3147 = vmatpush1.msra.mxu0 0.0
  %3148 = vmatprep.subr.mxu0 0.0
  %3149 = vmatpush1.msra.mxu0 0.0
  %3150 = vmatprep.subr.mxu0 0.0
  %3151 = vmatpush1.msra.mxu0 0.0
  %3152 = vmatprep.subr.mxu0 0.0
  %3153 = vmatpush1.msra.mxu0 0.0
  %3154 = vmatprep.subr.mxu0 0.0
  %3155 = vmatpush1.msra.mxu0 0.0
  %3156 = vmatprep.subr.mxu0 0.0
  %3157 = vmatpush1.msra.mxu0 0.0
  %3158 = vmatprep.subr.mxu0 0.0
  %3159 = vmatpush1.msra.mxu0 0.0
  %3160 = vmatprep.subr.mxu0 0.0
  %3161 = vmatpush1.msra.mxu0 0.0
  %3162 = vmatprep.subr.mxu0 0.0
  %3163 = vmatpush1.msra.mxu0 0.0
  %3164 = vmatprep.subr.mxu0 0.0
  %3165 = vmatpush1.msra.mxu0 0.0
  %3166 = vmatprep.subr.mxu0 0.0
  %3167 = vmatpush1.msra.mxu0 0.0
  %3168 = vmatprep.subr.mxu0 0.0
  %3169 = vmatpush1.msra.mxu0 0.0
  %3170 = vmatprep.mubr.f32.mxu0 0.0
  %3171 = vmatmul.mubr.f32.gmra.mrb[0].mxu0 %v2970
  %v3172 = vpop.f32.mrb[0].mxu0
  %v3173 = vadd.f32 %v3104, %v3172
  %v3174 = vpop.f32.mrb[0].mxu0
  %3175 = vmatprep.mubr.f32.mxu0 0.0
  %3176 = vmatmul.mubr.f32.gmra.mrb[0].mxu0 %v2973
  %v3177 = vpop.f32.mrb[0].mxu0
  %v3178 = vadd.f32 %v3104, %v3177
  %v3179 = vpop.f32.mrb[0].mxu0
  %3180 = vmatprep.mubr.f32.mxu0 0.0
  %3181 = vmatmul.mubr.f32.gmra.mrb[0].mxu0 %v2976
  %v3182 = vpop.f32.mrb[0].mxu0
  %v3183 = vadd.f32 %v3104, %v3182
  %v3184 = vpop.f32.mrb[0].mxu0
  %3185 = vmatprep.mubr.f32.mxu0 0.0
  %3186 = vmatmul.mubr.f32.gmra.mrb[0].mxu0 %v2979
  %v3187 = vpop.f32.mrb[0].mxu0
  %v3188 = vadd.f32 %v3104, %v3187
  %v3189 = vpop.f32.mrb[0].mxu0
  %3190 = vmatprep.mubr.f32.mxu0 0.0
  %3191 = vmatmul.mubr.f32.gmra.mrb[0].mxu0 %v2982
  %v3192 = vpop.f32.mrb[0].mxu0
  %v3193 = vadd.f32 %v3104, %v3192
  %v3194 = vpop.f32.mrb[0].mxu0
  %3195 = vmatprep.mubr.f32.mxu0 0.0
  %3196 = vmatmul.mubr.f32.gmra.mrb[0].mxu0 %v2985
  %v3197 = vpop.f32.mrb[0].mxu0
  %v3198 = vadd.f32 %v3104, %v3197
  %v3199 = vpop.f32.mrb[0].mxu0
  %3200 = vmatprep.mubr.f32.mxu0 0.0
  %3201 = vmatmul.mubr.f32.gmra.mrb[0].mxu0 %v2988
  %v3202 = vpop.f32.mrb[0].mxu0
  %v3203 = vadd.f32 %v3104, %v3202
  %v3204 = vpop.f32.mrb[0].mxu0
  %3205 = vmatprep.mubr.f32.mxu0 0.0
  %3206 = vmatmul.mubr.f32.gmra.mrb[0].mxu0 %v2991
  %v3207 = vpop.f32.mrb[0].mxu0
  %v3208 = vpop.f32.mrb[0].mxu0
  %3209 = vdwg.mxu0
  %v3210 = vld [vmem:[%s13] sm:$0xff]
  %v3211 = vld [vmem:[%s13 + $0x8] sm:$0xff]
  %v3212 = vld [vmem:[%s13 + $0x10] sm:$0xff]
  %v3213 = vld [vmem:[%s13 + $0x18] sm:$0xff]
  %v3214 = vld [vmem:[%s15] sm:$0x1]
  %v3215 = vld [vmem:[%s16] sm:$0x1]
  %v3216 = vld [vmem:[%s19] sm:$0xff]
  %v3217 = vld [vmem:[%s19 + $0x8] sm:$0xff]
  %v3218 = vld [vmem:[%s19 + $0x10] sm:$0xff]
  %v3219 = vld [vmem:[%s19 + $0x18] sm:$0xff]
  %v3220 = vld [vmem:[%s21] sm:$0xff]
  %v3221 = vld [vmem:[%s21 + $0x8] sm:$0xff]
  %v3222 = vld [vmem:[%s21 + $0x10] sm:$0xff]
  %v3223 = vld [vmem:[%s21 + $0x18] sm:$0xff]
  %v3224 = vld [vmem:[%s0] sm:$0xff]
  %v3225 = vld [vmem:[%s0 + $0x8] sm:$0xff]
  %v3226 = vld [vmem:[%s0 + $0x10] sm:$0xff]
  %v3227 = vld [vmem:[%s0 + $0x18] sm:$0xff]
  %v3228 = vld [vmem:[%s0 + $0x20] sm:$0xff]
  %v3229 = vld [vmem:[%s0 + $0x28] sm:$0xff]
  %v3230 = vld [vmem:[%s0 + $0x30] sm:$0xff]
  %v3231 = vld [vmem:[%s0 + $0x38] sm:$0xff]
  %3232 = vst [vmem:[%s25] sm:$0xff] 0.0
  %v3234 = vlaneseq
  %v3235 = vshrl.u32 %v3234, 7
  %v3236 = vsub.s32 0, %v3235
  %v3237 = vrot.slane %v3214, %v3236
  %v3240 = vsel %vm354, %v2138, 0
  %3242 = vmatprep.subr.mxu0 0.0
  %3243 = vmatpush1.msra.mxu0 %v3210
  %3244 = vmatprep.subr.mxu0 0.0
  %3245 = vmatpush1.msra.mxu0 %v3211
  %3246 = vmatprep.subr.mxu0 0.0
  %3247 = vmatpush1.msra.mxu0 %v3212
  %3248 = vmatprep.subr.mxu0 0.0
  %3249 = vmatpush1.msra.mxu0 %v3213
  %3250 = vmatprep.subr.mxu0 0.0
  %3251 = vmatpush1.msra.mxu0 0.0
  %3252 = vmatprep.subr.mxu0 0.0
  %3253 = vmatpush1.msra.mxu0 0.0
  %3254 = vmatprep.subr.mxu0 0.0
  %3255 = vmatpush1.msra.mxu0 0.0
  %3256 = vmatprep.subr.mxu0 0.0
  %3257 = vmatpush1.msra.mxu0 0.0
  %3258 = vmatprep.subr.mxu0 0.0
  %3259 = vmatpush1.msra.mxu0 0.0
  %3260 = vmatprep.subr.mxu0 0.0
  %3261 = vmatpush1.msra.mxu0 0.0
  %3262 = vmatprep.subr.mxu0 0.0
  %3263 = vmatpush1.msra.mxu0 0.0
  %3264 = vmatprep.subr.mxu0 0.0
  %3265 = vmatpush1.msra.mxu0 0.0
  %3266 = vmatprep.subr.mxu0 0.0
  %3267 = vmatpush1.msra.mxu0 0.0
  %3268 = vmatprep.subr.mxu0 0.0
  %3269 = vmatpush1.msra.mxu0 0.0
  %3270 = vmatprep.subr.mxu0 0.0
  %3271 = vmatpush1.msra.mxu0 0.0
  %3272 = vmatprep.subr.mxu0 0.0
  %3273 = vmatpush1.msra.mxu0 0.0
  %3274 = vmatprep.subr.mxu0 0.0
  %3275 = vmatpush1.msra.mxu0 0.0
  %3276 = vmatprep.subr.mxu0 0.0
  %3277 = vmatpush1.msra.mxu0 0.0
  %3278 = vmatprep.subr.mxu0 0.0
  %3279 = vmatpush1.msra.mxu0 0.0
  %3280 = vmatprep.subr.mxu0 0.0
  %3281 = vmatpush1.msra.mxu0 0.0
  %3282 = vmatprep.subr.mxu0 0.0
  %3283 = vmatpush1.msra.mxu0 0.0
  %3284 = vmatprep.subr.mxu0 0.0
  %3285 = vmatpush1.msra.mxu0 0.0
  %3286 = vmatprep.subr.mxu0 0.0
  %3287 = vmatpush1.msra.mxu0 0.0
  %3288 = vmatprep.subr.mxu0 0.0
  %3289 = vmatpush1.msra.mxu0 0.0
  %3290 = vmatprep.subr.mxu0 0.0
  %3291 = vmatpush1.msra.mxu0 0.0
  %3292 = vmatprep.subr.mxu0 0.0
  %3293 = vmatpush1.msra.mxu0 0.0
  %3294 = vmatprep.subr.mxu0 0.0
  %3295 = vmatpush1.msra.mxu0 0.0
  %3296 = vmatprep.subr.mxu0 0.0
  %3297 = vmatpush1.msra.mxu0 0.0
  %3298 = vmatprep.subr.mxu0 0.0
  %3299 = vmatpush1.msra.mxu0 0.0
  %3300 = vmatprep.subr.mxu0 0.0
  %3301 = vmatpush1.msra.mxu0 0.0
  %3302 = vmatprep.subr.mxu0 0.0
  %3303 = vmatpush1.msra.mxu0 0.0
  %3304 = vmatprep.subr.mxu0 0.0
  %3305 = vmatpush1.msra.mxu0 0.0
  %3306 = vmatprep.mubr.f32.mxu0 0.0
  %3307 = vmatmul.mubr.f32.gmra.mrb[0].mxu0 %v3240
  %v3308 = vpop.f32.mrb[0].mxu0
  %v3309 = vadd.f32 %v3237, %v3308
  %v3310 = vpop.f32.mrb[0].mxu0
  %3311 = vdwg.mxu0
  %v3312 = vadd.f32 %v2494, %v3309
  %v3313 = vtanh.pop %v3312
  %v3315 = vlaneseq
  %v3316 = vshrl.u32 %v3315, 7
  %v3317 = vsub.s32 0, %v3316
  %v3318 = vrot.slane %v3215, %v3317
  %v3320 = vmul.f32 %v3313, %v3318
  %v3321 = vsel %vm354, %v3320, 0.0
  %3322 = vadd.xlane.f32.xlu0 %v3321
  %v3323 = vpop.xlane.xlu0 %3322
  %v3324 = vadd.f32 %v3323, %v3224
  %v3325 = vadd.f32 %v2499, %v3309
  %v3326 = vtanh.pop %v3325
  %v3327 = vmul.f32 %v3326, %v3318
  %v3328 = vsel %vm354, %v3327, 0.0
  %3329 = vadd.xlane.f32.xlu0 %v3328
  %v3330 = vpop.xlane.xlu0 %3329
  %v3331 = vadd.f32 %v3330, %v3225
  %v3332 = vadd.f32 %v2504, %v3309
  %v3333 = vtanh.pop %v3332
  %v3334 = vmul.f32 %v3333, %v3318
  %v3335 = vsel %vm354, %v3334, 0.0
  %3336 = vadd.xlane.f32.xlu0 %v3335
  %v3337 = vpop.xlane.xlu0 %3336
  %v3338 = vadd.f32 %v3337, %v3226
  %v3339 = vadd.f32 %v2509, %v3309
  %v3340 = vtanh.pop %v3339
  %v3341 = vmul.f32 %v3340, %v3318
  %v3342 = vsel %vm354, %v3341, 0.0
  %3343 = vadd.xlane.f32.xlu0 %v3342
  %v3344 = vpop.xlane.xlu0 %3343
  %v3345 = vadd.f32 %v3344, %v3227
  %v3346 = vadd.f32 %v2514, %v3309
  %v3347 = vtanh.pop %v3346
  %v3348 = vmul.f32 %v3347, %v3318
  %v3349 = vsel %vm354, %v3348, 0.0
  %3350 = vadd.xlane.f32.xlu0 %v3349
  %v3351 = vpop.xlane.xlu0 %3350
  %v3352 = vadd.f32 %v3351, %v3228
  %v3353 = vadd.f32 %v2519, %v3309
  %v3354 = vtanh.pop %v3353
  %v3355 = vmul.f32 %v3354, %v3318
  %v3356 = vsel %vm354, %v3355, 0.0
  %3357 = vadd.xlane.f32.xlu0 %v3356
  %v3358 = vpop.xlane.xlu0 %3357
  %v3359 = vadd.f32 %v3358, %v3229
  %v3360 = vadd.f32 %v2524, %v3309
  %v3361 = vtanh.pop %v3360
  %v3362 = vmul.f32 %v3361, %v3318
  %v3363 = vsel %vm354, %v3362, 0.0
  %3364 = vadd.xlane.f32.xlu0 %v3363
  %v3365 = vpop.xlane.xlu0 %3364
  %v3366 = vadd.f32 %v3365, %v3230
  %v3367 = vadd.f32 %v2529, %v3309
  %v3368 = vtanh.pop %v3367
  %v3369 = vmul.f32 %v3368, %v3318
  %v3370 = vsel %vm354, %v3369, 0.0
  %3371 = vadd.xlane.f32.xlu0 %v3370
  %v3372 = vpop.xlane.xlu0 %3371
  %v3373 = vadd.f32 %v3372, %v3231
  %v3374 = vmax.f32 %v3324, %v3331
  %v3375 = vmax.f32 %v3374, %v3338
  %v3376 = vmax.f32 %v3375, %v3345
  %v3377 = vmax.f32 %v3376, %v3352
  %v3378 = vmax.f32 %v3377, %v3359
  %v3379 = vmax.f32 %v3378, %v3366
  %v3380 = vmax.f32 %v3379, %v3373
  %v3381 = vsub.f32 %v3324, %v3380
  %v3382 = vmul.f32 %v3381, 1.442695
  %v3383 = vpow.pop %v3382
  %v3384 = vsub.f32 %v3331, %v3380
  %v3385 = vmul.f32 %v3384, 1.442695
  %v3386 = vpow.pop %v3385
  %v3387 = vsub.f32 %v3338, %v3380
  %v3388 = vmul.f32 %v3387, 1.442695
  %v3389 = vpow.pop %v3388
  %v3390 = vsub.f32 %v3345, %v3380
  %v3391 = vmul.f32 %v3390, 1.442695
  %v3392 = vpow.pop %v3391
  %v3393 = vsub.f32 %v3352, %v3380
  %v3394 = vmul.f32 %v3393, 1.442695
  %v3395 = vpow.pop %v3394
  %v3396 = vsub.f32 %v3359, %v3380
  %v3397 = vmul.f32 %v3396, 1.442695
  %v3398 = vpow.pop %v3397
  %v3399 = vsub.f32 %v3366, %v3380
  %v3400 = vmul.f32 %v3399, 1.442695
  %v3401 = vpow.pop %v3400
  %v3402 = vsub.f32 %v3373, %v3380
  %v3403 = vmul.f32 %v3402, 1.442695
  %v3404 = vpow.pop %v3403
  %v3405 = vadd.f32 %v3383, %v3386
  %v3406 = vadd.f32 %v3405, %v3389
  %v3407 = vadd.f32 %v3406, %v3392
  %v3408 = vadd.f32 %v3407, %v3395
  %v3409 = vadd.f32 %v3408, %v3398
  %v3410 = vadd.f32 %v3409, %v3401
  %v3411 = vadd.f32 %v3410, %v3404
  %v3412 = vrcp.pop %v3411
  %3414 = vset.pattern.permute.xlu0 0
  %3415 = vperm.xlu0 %3414, %v3383
  %v3416 = vpop.permute.xlu0 %3415
  %v3418 = vmul.f32 %v3416, %v2704
  %v3419 = vmul.f32 %v3416, %v2914
  %3421 = vset.pattern.permute.xlu0 0
  %3422 = vperm.xlu0 %3421, %v3386
  %v3423 = vpop.permute.xlu0 %3422
  %v3425 = vmul.f32 %v3423, %v2709
  %v3426 = vadd.f32 %v3418, %v3425
  %v3427 = vmul.f32 %v3423, %v2919
  %v3428 = vadd.f32 %v3419, %v3427
  %3430 = vset.pattern.permute.xlu0 0
  %3431 = vperm.xlu0 %3430, %v3389
  %v3432 = vpop.permute.xlu0 %3431
  %v3434 = vmul.f32 %v3432, %v2714
  %v3435 = vadd.f32 %v3426, %v3434
  %v3436 = vmul.f32 %v3432, %v2924
  %v3437 = vadd.f32 %v3428, %v3436
  %3439 = vset.pattern.permute.xlu0 0
  %3440 = vperm.xlu0 %3439, %v3392
  %v3441 = vpop.permute.xlu0 %3440
  %v3443 = vmul.f32 %v3441, %v2719
  %v3444 = vadd.f32 %v3435, %v3443
  %v3445 = vmul.f32 %v3441, %v2929
  %v3446 = vadd.f32 %v3437, %v3445
  %3448 = vset.pattern.permute.xlu0 0
  %3449 = vperm.xlu0 %3448, %v3395
  %v3450 = vpop.permute.xlu0 %3449
  %v3452 = vmul.f32 %v3450, %v2724
  %v3453 = vadd.f32 %v3444, %v3452
  %v3454 = vmul.f32 %v3450, %v2934
  %v3455 = vadd.f32 %v3446, %v3454
  %3457 = vset.pattern.permute.xlu0 0
  %3458 = vperm.xlu0 %3457, %v3398
  %v3459 = vpop.permute.xlu0 %3458
  %v3461 = vmul.f32 %v3459, %v2729
  %v3462 = vadd.f32 %v3453, %v3461
  %v3463 = vmul.f32 %v3459, %v2939
  %v3464 = vadd.f32 %v3455, %v3463
  %3466 = vset.pattern.permute.xlu0 0
  %3467 = vperm.xlu0 %3466, %v3401
  %v3468 = vpop.permute.xlu0 %3467
  %v3470 = vmul.f32 %v3468, %v2734
  %v3471 = vadd.f32 %v3462, %v3470
  %v3472 = vmul.f32 %v3468, %v2944
  %v3473 = vadd.f32 %v3464, %v3472
  %3475 = vset.pattern.permute.xlu0 0
  %3476 = vperm.xlu0 %3475, %v3404
  %v3477 = vpop.permute.xlu0 %3476
  %v3479 = vmul.f32 %v3477, %v2739
  %v3480 = vadd.f32 %v3471, %v3479
  %v3481 = vmul.f32 %v3477, %v2949
  %v3482 = vadd.f32 %v3473, %v3481
  %3484 = vset.pattern.permute.xlu0 0
  %3485 = vperm.xlu0 %3484, %v3412
  %v3486 = vpop.permute.xlu0 %3485
  %v3488 = vmul.f32 %v3480, %v3486
  %v3489 = vadd.f32 %v3060, %v3488
  %3490 = vmatprep.subr.mxu0 0.0
  %3491 = vmatpush1.msra.mxu0 %v3216
  %3492 = vmatprep.subr.mxu0 0.0
  %3493 = vmatpush1.msra.mxu0 %v3217
  %3494 = vmatprep.subr.mxu0 0.0
  %3495 = vmatpush1.msra.mxu0 %v3218
  %3496 = vmatprep.subr.mxu0 0.0
  %3497 = vmatpush1.msra.mxu0 %v3219
  %3498 = vmatprep.subr.mxu0 0.0
  %3499 = vmatpush1.msra.mxu0 0.0
  %3500 = vmatprep.subr.mxu0 0.0
  %3501 = vmatpush1.msra.mxu0 0.0
  %3502 = vmatprep.subr.mxu0 0.0
  %3503 = vmatpush1.msra.mxu0 0.0
  %3504 = vmatprep.subr.mxu0 0.0
  %3505 = vmatpush1.msra.mxu0 0.0
  %3506 = vmatprep.subr.mxu0 0.0
  %3507 = vmatpush1.msra.mxu0 0.0
  %3508 = vmatprep.subr.mxu0 0.0
  %3509 = vmatpush1.msra.mxu0 0.0
  %3510 = vmatprep.subr.mxu0 0.0
  %3511 = vmatpush1.msra.mxu0 0.0
  %3512 = vmatprep.subr.mxu0 0.0
  %3513 = vmatpush1.msra.mxu0 0.0
  %3514 = vmatprep.subr.mxu0 0.0
  %3515 = vmatpush1.msra.mxu0 0.0
  %3516 = vmatprep.subr.mxu0 0.0
  %3517 = vmatpush1.msra.mxu0 0.0
  %3518 = vmatprep.subr.mxu0 0.0
  %3519 = vmatpush1.msra.mxu0 0.0
  %3520 = vmatprep.subr.mxu0 0.0
  %3521 = vmatpush1.msra.mxu0 0.0
  %3522 = vmatprep.subr.mxu0 0.0
  %3523 = vmatpush1.msra.mxu0 0.0
  %3524 = vmatprep.subr.mxu0 0.0
  %3525 = vmatpush1.msra.mxu0 0.0
  %3526 = vmatprep.subr.mxu0 0.0
  %3527 = vmatpush1.msra.mxu0 0.0
  %3528 = vmatprep.subr.mxu0 0.0
  %3529 = vmatpush1.msra.mxu0 0.0
  %3530 = vmatprep.subr.mxu0 0.0
  %3531 = vmatpush1.msra.mxu0 0.0
  %3532 = vmatprep.subr.mxu0 0.0
  %3533 = vmatpush1.msra.mxu0 0.0
  %3534 = vmatprep.subr.mxu0 0.0
  %3535 = vmatpush1.msra.mxu0 0.0
  %3536 = vmatprep.subr.mxu0 0.0
  %3537 = vmatpush1.msra.mxu0 0.0
  %3538 = vmatprep.subr.mxu0 0.0
  %3539 = vmatpush1.msra.mxu0 0.0
  %3540 = vmatprep.subr.mxu0 0.0
  %3541 = vmatpush1.msra.mxu0 0.0
  %3542 = vmatprep.subr.mxu0 0.0
  %3543 = vmatpush1.msra.mxu0 0.0
  %3544 = vmatprep.subr.mxu0 0.0
  %3545 = vmatpush1.msra.mxu0 0.0
  %3546 = vmatprep.subr.mxu0 0.0
  %3547 = vmatpush1.msra.mxu0 0.0
  %3548 = vmatprep.subr.mxu0 0.0
  %3549 = vmatpush1.msra.mxu0 0.0
  %3550 = vmatprep.subr.mxu0 0.0
  %3551 = vmatpush1.msra.mxu0 0.0
  %3552 = vmatprep.subr.mxu0 0.0
  %3553 = vmatpush1.msra.mxu0 0.0
  %3554 = vmatprep.mubr.f32.mxu0 0.0
  %3555 = vmatmul.mubr.f32.gmra.mrb[0].mxu0 %v3240
  %v3556 = vpop.f32.mrb[0].mxu0
  %v3557 = vadd.f32 0.0, %v3556
  %v3558 = vpop.f32.mrb[0].mxu0
  %3559 = vdwg.mxu0
  %v3560 = vadd.f32 %v3489, %v3557
  %v3561 = vtanh.pop %v3560
  %v3562 = vxor.u32 %v3560, 2147483648
  %v3563 = vmul.f32 %v3562, 1.442695
  %v3564 = vpow.pop %v3563
  %v3565 = vadd.f32 %v3564, 1.0
  %v3566 = vrcp.pop %v3565
  %v3567 = vmul.f32 1.0, %v3566
  %v3568 = vsel %vm353, %v3561, %v3567
  %3570 = vrot.lane.b32.xlu0 %v2297, 32
  %v3571 = vpop.permute.xlu0 %3570
  %v3573 = vmul.f32 %v3568, %v3571
  %3575 = vrot.lane.b32.xlu0 %v3568, 64
  %v3576 = vpop.permute.xlu0 %3575
  %v3578 = vmul.f32 %v3568, %v3576
  %3580 = vrot.lane.b32.xlu0 %v3578, 32
  %v3581 = vpop.permute.xlu0 %3580
  %v3583 = vadd.f32 %v3573, %v3581
  %v3584 = vtanh.pop %v3583
  %3586 = vrot.lane.b32.xlu0 %v3584, 64
  %v3587 = vpop.permute.xlu0 %3586
  %v3589 = vmul.f32 %v3568, %v3587
  %v3590 = vmul.f32 %v3482, %v3486
  %v3591 = vadd.f32 %v3173, %v3590
  %3593 = vrot.lane.b32.xlu0 %v3589, 32
  %v3594 = vpop.permute.xlu0 %3593
  %v3595 = vsel %vm354, %v3594, 0
  %3597 = vmatprep.subr.mxu0 0.0
  %3598 = vmatpush1.msra.mxu0 %v3220
  %3599 = vmatprep.subr.mxu0 0.0
  %3600 = vmatpush1.msra.mxu0 %v3221
  %3601 = vmatprep.subr.mxu0 0.0
  %3602 = vmatpush1.msra.mxu0 %v3222
  %3603 = vmatprep.subr.mxu0 0.0
  %3604 = vmatpush1.msra.mxu0 %v3223
  %3605 = vmatprep.subr.mxu0 0.0
  %3606 = vmatpush1.msra.mxu0 0.0
  %3607 = vmatprep.subr.mxu0 0.0
  %3608 = vmatpush1.msra.mxu0 0.0
  %3609 = vmatprep.subr.mxu0 0.0
  %3610 = vmatpush1.msra.mxu0 0.0
  %3611 = vmatprep.subr.mxu0 0.0
  %3612 = vmatpush1.msra.mxu0 0.0
  %3613 = vmatprep.subr.mxu0 0.0
  %3614 = vmatpush1.msra.mxu0 0.0
  %3615 = vmatprep.subr.mxu0 0.0
  %3616 = vmatpush1.msra.mxu0 0.0
  %3617 = vmatprep.subr.mxu0 0.0
  %3618 = vmatpush1.msra.mxu0 0.0
  %3619 = vmatprep.subr.mxu0 0.0
  %3620 = vmatpush1.msra.mxu0 0.0
  %3621 = vmatprep.subr.mxu0 0.0
  %3622 = vmatpush1.msra.mxu0 0.0
  %3623 = vmatprep.subr.mxu0 0.0
  %3624 = vmatpush1.msra.mxu0 0.0
  %3625 = vmatprep.subr.mxu0 0.0
  %3626 = vmatpush1.msra.mxu0 0.0
  %3627 = vmatprep.subr.mxu0 0.0
  %3628 = vmatpush1.msra.mxu0 0.0
  %3629 = vmatprep.subr.mxu0 0.0
  %3630 = vmatpush1.msra.mxu0 0.0
  %3631 = vmatprep.subr.mxu0 0.0
  %3632 = vmatpush1.msra.mxu0 0.0
  %3633 = vmatprep.subr.mxu0 0.0
  %3634 = vmatpush1.msra.mxu0 0.0
  %3635 = vmatprep.subr.mxu0 0.0
  %3636 = vmatpush1.msra.mxu0 0.0
  %3637 = vmatprep.subr.mxu0 0.0
  %3638 = vmatpush1.msra.mxu0 0.0
  %3639 = vmatprep.subr.mxu0 0.0
  %3640 = vmatpush1.msra.mxu0 0.0
  %3641 = vmatprep.subr.mxu0 0.0
  %3642 = vmatpush1.msra.mxu0 0.0
  %3643 = vmatprep.subr.mxu0 0.0
  %3644 = vmatpush1.msra.mxu0 0.0
  %3645 = vmatprep.subr.mxu0 0.0
  %3646 = vmatpush1.msra.mxu0 0.0
  %3647 = vmatprep.subr.mxu0 0.0
  %3648 = vmatpush1.msra.mxu0 0.0
  %3649 = vmatprep.subr.mxu0 0.0
  %3650 = vmatpush1.msra.mxu0 0.0
  %3651 = vmatprep.subr.mxu0 0.0
  %3652 = vmatpush1.msra.mxu0 0.0
  %3653 = vmatprep.subr.mxu0 0.0
  %3654 = vmatpush1.msra.mxu0 0.0
  %3655 = vmatprep.subr.mxu0 0.0
  %3656 = vmatpush1.msra.mxu0 0.0
  %3657 = vmatprep.subr.mxu0 0.0
  %3658 = vmatpush1.msra.mxu0 0.0
  %3659 = vmatprep.subr.mxu0 0.0
  %3660 = vmatpush1.msra.mxu0 0.0
  %3661 = vmatprep.mubr.f32.mxu0 0.0
  %3662 = vmatmul.mubr.f32.gmra.mrb[0].mxu0 %v3595
  %v3663 = vpop.f32.mrb[0].mxu0
  %v3664 = vadd.f32 0.0, %v3663
  %v3665 = vpop.f32.mrb[0].mxu0
  %3666 = vdwg.mxu0
  %v3667 = vadd.f32 %v3591, %v3664
  %s3668 = scalar_lea.vmem %s25, 8
  %3669 = vst [vmem:[%s3668] sm:$0xff] %v3667
  %3670 = vmatprep.subr.mxu0 0.0
  %3671 = vmatpush1.msra.mxu0 %v3210
  %3672 = vmatprep.subr.mxu0 0.0
  %3673 = vmatpush1.msra.mxu0 %v3211
  %3674 = vmatprep.subr.mxu0 0.0
  %3675 = vmatpush1.msra.mxu0 %v3212
  %3676 = vmatprep.subr.mxu0 0.0
  %3677 = vmatpush1.msra.mxu0 %v3213
  %3678 = vmatprep.subr.mxu0 0.0
  %3679 = vmatpush1.msra.mxu0 0.0
  %3680 = vmatprep.subr.mxu0 0.0
  %3681 = vmatpush1.msra.mxu0 0.0
  %3682 = vmatprep.subr.mxu0 0.0
  %3683 = vmatpush1.msra.mxu0 0.0
  %3684 = vmatprep.subr.mxu0 0.0
  %3685 = vmatpush1.msra.mxu0 0.0
  %3686 = vmatprep.subr.mxu0 0.0
  %3687 = vmatpush1.msra.mxu0 0.0
  %3688 = vmatprep.subr.mxu0 0.0
  %3689 = vmatpush1.msra.mxu0 0.0
  %3690 = vmatprep.subr.mxu0 0.0
  %3691 = vmatpush1.msra.mxu0 0.0
  %3692 = vmatprep.subr.mxu0 0.0
  %3693 = vmatpush1.msra.mxu0 0.0
  %3694 = vmatprep.subr.mxu0 0.0
  %3695 = vmatpush1.msra.mxu0 0.0
  %3696 = vmatprep.subr.mxu0 0.0
  %3697 = vmatpush1.msra.mxu0 0.0
  %3698 = vmatprep.subr.mxu0 0.0
  %3699 = vmatpush1.msra.mxu0 0.0
  %3700 = vmatprep.subr.mxu0 0.0
  %3701 = vmatpush1.msra.mxu0 0.0
  %3702 = vmatprep.subr.mxu0 0.0
  %3703 = vmatpush1.msra.mxu0 0.0
  %3704 = vmatprep.subr.mxu0 0.0
  %3705 = vmatpush1.msra.mxu0 0.0
  %3706 = vmatprep.subr.mxu0 0.0
  %3707 = vmatpush1.msra.mxu0 0.0
  %3708 = vmatprep.subr.mxu0 0.0
  %3709 = vmatpush1.msra.mxu0 0.0
  %3710 = vmatprep.subr.mxu0 0.0
  %3711 = vmatpush1.msra.mxu0 0.0
  %3712 = vmatprep.subr.mxu0 0.0
  %3713 = vmatpush1.msra.mxu0 0.0
  %3714 = vmatprep.subr.mxu0 0.0
  %3715 = vmatpush1.msra.mxu0 0.0
  %3716 = vmatprep.subr.mxu0 0.0
  %3717 = vmatpush1.msra.mxu0 0.0
  %3718 = vmatprep.subr.mxu0 0.0
  %3719 = vmatpush1.msra.mxu0 0.0
  %3720 = vmatprep.subr.mxu0 0.0
  %3721 = vmatpush1.msra.mxu0 0.0
  %3722 = vmatprep.subr.mxu0 0.0
  %3723 = vmatpush1.msra.mxu0 0.0
  %3724 = vmatprep.subr.mxu0 0.0
  %3725 = vmatpush1.msra.mxu0 0.0
  %3726 = vmatprep.subr.mxu0 0.0
  %3727 = vmatpush1.msra.mxu0 0.0
  %3728 = vmatprep.subr.mxu0 0.0
  %3729 = vmatpush1.msra.mxu0 0.0
  %3730 = vmatprep.subr.mxu0 0.0
  %3731 = vmatpush1.msra.mxu0 0.0
  %3732 = vmatprep.subr.mxu0 0.0
  %3733 = vmatpush1.msra.mxu0 0.0
  %3734 = vmatprep.mubr.f32.mxu0 0.0
  %3735 = vmatmul.mubr.f32.gmra.mrb[0].mxu0 %v3595
  %v3736 = vpop.f32.mrb[0].mxu0
  %v3737 = vadd.f32 %v3237, %v3736
  %v3738 = vpop.f32.mrb[0].mxu0
  %3739 = vdwg.mxu0
  %v3740 = vadd.f32 %v2494, %v3737
  %v3741 = vtanh.pop %v3740
  %v3742 = vmul.f32 %v3741, %v3318
  %v3743 = vsel %vm354, %v3742, 0.0
  %3744 = vadd.xlane.f32.xlu0 %v3743
  %v3745 = vpop.xlane.xlu0 %3744
  %v3746 = vadd.f32 %v3745, %v3224
  %v3747 = vadd.f32 %v2499, %v3737
  %v3748 = vtanh.pop %v3747
  %v3749 = vmul.f32 %v3748, %v3318
  %v3750 = vsel %vm354, %v3749, 0.0
  %3751 = vadd.xlane.f32.xlu0 %v3750
  %v3752 = vpop.xlane.xlu0 %3751
  %v3753 = vadd.f32 %v3752, %v3225
  %v3754 = vadd.f32 %v2504, %v3737
  %v3755 = vtanh.pop %v3754
  %v3756 = vmul.f32 %v3755, %v3318
  %v3757 = vsel %vm354, %v3756, 0.0
  %3758 = vadd.xlane.f32.xlu0 %v3757
  %v3759 = vpop.xlane.xlu0 %3758
  %v3760 = vadd.f32 %v3759, %v3226
  %v3761 = vadd.f32 %v2509, %v3737
  %v3762 = vtanh.pop %v3761
  %v3763 = vmul.f32 %v3762, %v3318
  %v3764 = vsel %vm354, %v3763, 0.0
  %3765 = vadd.xlane.f32.xlu0 %v3764
  %v3766 = vpop.xlane.xlu0 %3765
  %v3767 = vadd.f32 %v3766, %v3227
  %v3768 = vadd.f32 %v2514, %v3737
  %v3769 = vtanh.pop %v3768
  %v3770 = vmul.f32 %v3769, %v3318
  %v3771 = vsel %vm354, %v3770, 0.0
  %3772 = vadd.xlane.f32.xlu0 %v3771
  %v3773 = vpop.xlane.xlu0 %3772
  %v3774 = vadd.f32 %v3773, %v3228
  %v3775 = vadd.f32 %v2519, %v3737
  %v3776 = vtanh.pop %v3775
  %v3777 = vmul.f32 %v3776, %v3318
  %v3778 = vsel %vm354, %v3777, 0.0
  %3779 = vadd.xlane.f32.xlu0 %v3778
  %v3780 = vpop.xlane.xlu0 %3779
  %v3781 = vadd.f32 %v3780, %v3229
  %v3782 = vadd.f32 %v2524, %v3737
  %v3783 = vtanh.pop %v3782
  %v3784 = vmul.f32 %v3783, %v3318
  %v3785 = vsel %vm354, %v3784, 0.0
  %3786 = vadd.xlane.f32.xlu0 %v3785
  %v3787 = vpop.xlane.xlu0 %3786
  %v3788 = vadd.f32 %v3787, %v3230
  %v3789 = vadd.f32 %v2529, %v3737
  %v3790 = vtanh.pop %v3789
  %v3791 = vmul.f32 %v3790, %v3318
  %v3792 = vsel %vm354, %v3791, 0.0
  %3793 = vadd.xlane.f32.xlu0 %v3792
  %v3794 = vpop.xlane.xlu0 %3793
  %v3795 = vadd.f32 %v3794, %v3231
  %v3796 = vmax.f32 %v3746, %v3753
  %v3797 = vmax.f32 %v3796, %v3760
  %v3798 = vmax.f32 %v3797, %v3767
  %v3799 = vmax.f32 %v3798, %v3774
  %v3800 = vmax.f32 %v3799, %v3781
  %v3801 = vmax.f32 %v3800, %v3788
  %v3802 = vmax.f32 %v3801, %v3795
  %v3803 = vsub.f32 %v3746, %v3802
  %v3804 = vmul.f32 %v3803, 1.442695
  %v3805 = vpow.pop %v3804
  %v3806 = vsub.f32 %v3753, %v3802
  %v3807 = vmul.f32 %v3806, 1.442695
  %v3808 = vpow.pop %v3807
  %v3809 = vsub.f32 %v3760, %v3802
  %v3810 = vmul.f32 %v3809, 1.442695
  %v3811 = vpow.pop %v3810
  %v3812 = vsub.f32 %v3767, %v3802
  %v3813 = vmul.f32 %v3812, 1.442695
  %v3814 = vpow.pop %v3813
  %v3815 = vsub.f32 %v3774, %v3802
  %v3816 = vmul.f32 %v3815, 1.442695
  %v3817 = vpow.pop %v3816
  %v3818 = vsub.f32 %v3781, %v3802
  %v3819 = vmul.f32 %v3818, 1.442695
  %v3820 = vpow.pop %v3819
  %v3821 = vsub.f32 %v3788, %v3802
  %v3822 = vmul.f32 %v3821, 1.442695
  %v3823 = vpow.pop %v3822
  %v3824 = vsub.f32 %v3795, %v3802
  %v3825 = vmul.f32 %v3824, 1.442695
  %v3826 = vpow.pop %v3825
  %v3827 = vadd.f32 %v3805, %v3808
  %v3828 = vadd.f32 %v3827, %v3811
  %v3829 = vadd.f32 %v3828, %v3814
  %v3830 = vadd.f32 %v3829, %v3817
  %v3831 = vadd.f32 %v3830, %v3820
  %v3832 = vadd.f32 %v3831, %v3823
  %v3833 = vadd.f32 %v3832, %v3826
  %v3834 = vrcp.pop %v3833
  %3836 = vset.pattern.permute.xlu0 0
  %3837 = vperm.xlu0 %3836, %v3805
  %v3838 = vpop.permute.xlu0 %3837
  %v3840 = vmul.f32 %v3838, %v2704
  %v3841 = vmul.f32 %v3838, %v2914
  %3843 = vset.pattern.permute.xlu0 0
  %3844 = vperm.xlu0 %3843, %v3808
  %v3845 = vpop.permute.xlu0 %3844
  %v3847 = vmul.f32 %v3845, %v2709
  %v3848 = vadd.f32 %v3840, %v3847
  %v3849 = vmul.f32 %v3845, %v2919
  %v3850 = vadd.f32 %v3841, %v3849
  %3852 = vset.pattern.permute.xlu0 0
  %3853 = vperm.xlu0 %3852, %v3811
  %v3854 = vpop.permute.xlu0 %3853
  %v3856 = vmul.f32 %v3854, %v2714
  %v3857 = vadd.f32 %v3848, %v3856
  %v3858 = vmul.f32 %v3854, %v2924
  %v3859 = vadd.f32 %v3850, %v3858
  %3861 = vset.pattern.permute.xlu0 0
  %3862 = vperm.xlu0 %3861, %v3814
  %v3863 = vpop.permute.xlu0 %3862
  %v3865 = vmul.f32 %v3863, %v2719
  %v3866 = vadd.f32 %v3857, %v3865
  %v3867 = vmul.f32 %v3863, %v2929
  %v3868 = vadd.f32 %v3859, %v3867
  %3870 = vset.pattern.permute.xlu0 0
  %3871 = vperm.xlu0 %3870, %v3817
  %v3872 = vpop.permute.xlu0 %3871
  %v3874 = vmul.f32 %v3872, %v2724
  %v3875 = vadd.f32 %v3866, %v3874
  %v3876 = vmul.f32 %v3872, %v2934
  %v3877 = vadd.f32 %v3868, %v3876
  %3879 = vset.pattern.permute.xlu0 0
  %3880 = vperm.xlu0 %3879, %v3820
  %v3881 = vpop.permute.xlu0 %3880
  %v3883 = vmul.f32 %v3881, %v2729
  %v3884 = vadd.f32 %v3875, %v3883
  %v3885 = vmul.f32 %v3881, %v2939
  %v3886 = vadd.f32 %v3877, %v3885
  %3888 = vset.pattern.permute.xlu0 0
  %3889 = vperm.xlu0 %3888, %v3823
  %v3890 = vpop.permute.xlu0 %3889
  %v3892 = vmul.f32 %v3890, %v2734
  %v3893 = vadd.f32 %v3884, %v3892
  %v3894 = vmul.f32 %v3890, %v2944
  %v3895 = vadd.f32 %v3886, %v3894
  %3897 = vset.pattern.permute.xlu0 0
  %3898 = vperm.xlu0 %3897, %v3826
  %v3899 = vpop.permute.xlu0 %3898
  %v3901 = vmul.f32 %v3899, %v2739
  %v3902 = vadd.f32 %v3893, %v3901
  %v3903 = vmul.f32 %v3899, %v2949
  %v3904 = vadd.f32 %v3895, %v3903
  %3906 = vset.pattern.permute.xlu0 0
  %3907 = vperm.xlu0 %3906, %v3834
  %v3908 = vpop.permute.xlu0 %3907
  %v3910 = vmul.f32 %v3902, %v3908
  %v3911 = vadd.f32 %v3065, %v3910
  %3912 = vmatprep.subr.mxu0 0.0
  %3913 = vmatpush1.msra.mxu0 %v3216
  %3914 = vmatprep.subr.mxu0 0.0
  %3915 = vmatpush1.msra.mxu0 %v3217
  %3916 = vmatprep.subr.mxu0 0.0
  %3917 = vmatpush1.msra.mxu0 %v3218
  %3918 = vmatprep.subr.mxu0 0.0
  %3919 = vmatpush1.msra.mxu0 %v3219
  %3920 = vmatprep.subr.mxu0 0.0
  %3921 = vmatpush1.msra.mxu0 0.0
  %3922 = vmatprep.subr.mxu0 0.0
  %3923 = vmatpush1.msra.mxu0 0.0
  %3924 = vmatprep.subr.mxu0 0.0
  %3925 = vmatpush1.msra.mxu0 0.0
  %3926 = vmatprep.subr.mxu0 0.0
  %3927 = vmatpush1.msra.mxu0 0.0
  %3928 = vmatprep.subr.mxu0 0.0
  %3929 = vmatpush1.msra.mxu0 0.0
  %3930 = vmatprep.subr.mxu0 0.0
  %3931 = vmatpush1.msra.mxu0 0.0
  %3932 = vmatprep.subr.mxu0 0.0
  %3933 = vmatpush1.msra.mxu0 0.0
  %3934 = vmatprep.subr.mxu0 0.0
  %3935 = vmatpush1.msra.mxu0 0.0
  %3936 = vmatprep.subr.mxu0 0.0
  %3937 = vmatpush1.msra.mxu0 0.0
  %3938 = vmatprep.subr.mxu0 0.0
  %3939 = vmatpush1.msra.mxu0 0.0
  %3940 = vmatprep.subr.mxu0 0.0
  %3941 = vmatpush1.msra.mxu0 0.0
  %3942 = vmatprep.subr.mxu0 0.0
  %3943 = vmatpush1.msra.mxu0 0.0
  %3944 = vmatprep.subr.mxu0 0.0
  %3945 = vmatpush1.msra.mxu0 0.0
  %3946 = vmatprep.subr.mxu0 0.0
  %3947 = vmatpush1.msra.mxu0 0.0
  %3948 = vmatprep.subr.mxu0 0.0
  %3949 = vmatpush1.msra.mxu0 0.0
  %3950 = vmatprep.subr.mxu0 0.0
  %3951 = vmatpush1.msra.mxu0 0.0
  %3952 = vmatprep.subr.mxu0 0.0
  %3953 = vmatpush1.msra.mxu0 0.0
  %3954 = vmatprep.subr.mxu0 0.0
  %3955 = vmatpush1.msra.mxu0 0.0
  %3956 = vmatprep.subr.mxu0 0.0
  %3957 = vmatpush1.msra.mxu0 0.0
  %3958 = vmatprep.subr.mxu0 0.0
  %3959 = vmatpush1.msra.mxu0 0.0
  %3960 = vmatprep.subr.mxu0 0.0
  %3961 = vmatpush1.msra.mxu0 0.0
  %3962 = vmatprep.subr.mxu0 0.0
  %3963 = vmatpush1.msra.mxu0 0.0
  %3964 = vmatprep.subr.mxu0 0.0
  %3965 = vmatpush1.msra.mxu0 0.0
  %3966 = vmatprep.subr.mxu0 0.0
  %3967 = vmatpush1.msra.mxu0 0.0
  %3968 = vmatprep.subr.mxu0 0.0
  %3969 = vmatpush1.msra.mxu0 0.0
  %3970 = vmatprep.subr.mxu0 0.0
  %3971 = vmatpush1.msra.mxu0 0.0
  %3972 = vmatprep.subr.mxu0 0.0
  %3973 = vmatpush1.msra.mxu0 0.0
  %3974 = vmatprep.subr.mxu0 0.0
  %3975 = vmatpush1.msra.mxu0 0.0
  %3976 = vmatprep.mubr.f32.mxu0 0.0
  %3977 = vmatmul.mubr.f32.gmra.mrb[0].mxu0 %v3595
  %v3978 = vpop.f32.mrb[0].mxu0
  %v3979 = vadd.f32 0.0, %v3978
  %v3980 = vpop.f32.mrb[0].mxu0
  %3981 = vdwg.mxu0
  %v3982 = vadd.f32 %v3911, %v3979
  %v3983 = vtanh.pop %v3982
  %v3984 = vxor.u32 %v3982, 2147483648
  %v3985 = vmul.f32 %v3984, 1.442695
  %v3986 = vpow.pop %v3985
  %v3987 = vadd.f32 %v3986, 1.0
  %v3988 = vrcp.pop %v3987
  %v3989 = vmul.f32 1.0, %v3988
  %v3990 = vsel %vm353, %v3983, %v3989
  %v3991 = vmul.f32 %v3990, %v3583
  %3993 = vrot.lane.b32.xlu0 %v3990, 64
  %v3994 = vpop.permute.xlu0 %3993
  %v3996 = vmul.f32 %v3990, %v3994
  %3998 = vrot.lane.b32.xlu0 %v3996, 32
  %v3999 = vpop.permute.xlu0 %3998
  %v4001 = vadd.f32 %v3991, %v3999
  %v4002 = vtanh.pop %v4001
  %4004 = vrot.lane.b32.xlu0 %v4002, 64
  %v4005 = vpop.permute.xlu0 %4004
  %v4007 = vmul.f32 %v3990, %v4005
  %v4008 = vmul.f32 %v3904, %v3908
  %v4009 = vadd.f32 %v3178, %v4008
  %4011 = vrot.lane.b32.xlu0 %v4007, 32
  %v4012 = vpop.permute.xlu0 %4011
  %v4013 = vsel %vm354, %v4012, 0
  %4015 = vmatprep.subr.mxu0 0.0
  %4016 = vmatpush1.msra.mxu0 %v3220
  %4017 = vmatprep.subr.mxu0 0.0
  %4018 = vmatpush1.msra.mxu0 %v3221
  %4019 = vmatprep.subr.mxu0 0.0
  %4020 = vmatpush1.msra.mxu0 %v3222
  %4021 = vmatprep.subr.mxu0 0.0
  %4022 = vmatpush1.msra.mxu0 %v3223
  %4023 = vmatprep.subr.mxu0 0.0
  %4024 = vmatpush1.msra.mxu0 0.0
  %4025 = vmatprep.subr.mxu0 0.0
  %4026 = vmatpush1.msra.mxu0 0.0
  %4027 = vmatprep.subr.mxu0 0.0
  %4028 = vmatpush1.msra.mxu0 0.0
  %4029 = vmatprep.subr.mxu0 0.0
  %4030 = vmatpush1.msra.mxu0 0.0
  %4031 = vmatprep.subr.mxu0 0.0
  %4032 = vmatpush1.msra.mxu0 0.0
  %4033 = vmatprep.subr.mxu0 0.0
  %4034 = vmatpush1.msra.mxu0 0.0
  %4035 = vmatprep.subr.mxu0 0.0
  %4036 = vmatpush1.msra.mxu0 0.0
  %4037 = vmatprep.subr.mxu0 0.0
  %4038 = vmatpush1.msra.mxu0 0.0
  %4039 = vmatprep.subr.mxu0 0.0
  %4040 = vmatpush1.msra.mxu0 0.0
  %4041 = vmatprep.subr.mxu0 0.0
  %4042 = vmatpush1.msra.mxu0 0.0
  %4043 = vmatprep.subr.mxu0 0.0
  %4044 = vmatpush1.msra.mxu0 0.0
  %4045 = vmatprep.subr.mxu0 0.0
  %4046 = vmatpush1.msra.mxu0 0.0
  %4047 = vmatprep.subr.mxu0 0.0
  %4048 = vmatpush1.msra.mxu0 0.0
  %4049 = vmatprep.subr.mxu0 0.0
  %4050 = vmatpush1.msra.mxu0 0.0
  %4051 = vmatprep.subr.mxu0 0.0
  %4052 = vmatpush1.msra.mxu0 0.0
  %4053 = vmatprep.subr.mxu0 0.0
  %4054 = vmatpush1.msra.mxu0 0.0
  %4055 = vmatprep.subr.mxu0 0.0
  %4056 = vmatpush1.msra.mxu0 0.0
  %4057 = vmatprep.subr.mxu0 0.0
  %4058 = vmatpush1.msra.mxu0 0.0
  %4059 = vmatprep.subr.mxu0 0.0
  %4060 = vmatpush1.msra.mxu0 0.0
  %4061 = vmatprep.subr.mxu0 0.0
  %4062 = vmatpush1.msra.mxu0 0.0
  %4063 = vmatprep.subr.mxu0 0.0
  %4064 = vmatpush1.msra.mxu0 0.0
  %4065 = vmatprep.subr.mxu0 0.0
  %4066 = vmatpush1.msra.mxu0 0.0
  %4067 = vmatprep.subr.mxu0 0.0
  %4068 = vmatpush1.msra.mxu0 0.0
  %4069 = vmatprep.subr.mxu0 0.0
  %4070 = vmatpush1.msra.mxu0 0.0
  %4071 = vmatprep.subr.mxu0 0.0
  %4072 = vmatpush1.msra.mxu0 0.0
  %4073 = vmatprep.subr.mxu0 0.0
  %4074 = vmatpush1.msra.mxu0 0.0
  %4075 = vmatprep.subr.mxu0 0.0
  %4076 = vmatpush1.msra.mxu0 0.0
  %4077 = vmatprep.subr.mxu0 0.0
  %4078 = vmatpush1.msra.mxu0 0.0
  %4079 = vmatprep.mubr.f32.mxu0 0.0
  %4080 = vmatmul.mubr.f32.gmra.mrb[0].mxu0 %v4013
  %v4081 = vpop.f32.mrb[0].mxu0
  %v4082 = vadd.f32 0.0, %v4081
  %v4083 = vpop.f32.mrb[0].mxu0
  %4084 = vdwg.mxu0
  %v4085 = vadd.f32 %v4009, %v4082
  %s4086 = scalar_lea.vmem %s25, 16
  %4087 = vst [vmem:[%s4086] sm:$0xff] %v4085
  %4088 = vmatprep.subr.mxu0 0.0
  %4089 = vmatpush1.msra.mxu0 %v3210
  %4090 = vmatprep.subr.mxu0 0.0
  %4091 = vmatpush1.msra.mxu0 %v3211
  %4092 = vmatprep.subr.mxu0 0.0
  %4093 = vmatpush1.msra.mxu0 %v3212
  %4094 = vmatprep.subr.mxu0 0.0
  %4095 = vmatpush1.msra.mxu0 %v3213
  %4096 = vmatprep.subr.mxu0 0.0
  %4097 = vmatpush1.msra.mxu0 0.0
  %4098 = vmatprep.subr.mxu0 0.0
  %4099 = vmatpush1.msra.mxu0 0.0
  %4100 = vmatprep.subr.mxu0 0.0
  %4101 = vmatpush1.msra.mxu0 0.0
  %4102 = vmatprep.subr.mxu0 0.0
  %4103 = vmatpush1.msra.mxu0 0.0
  %4104 = vmatprep.subr.mxu0 0.0
  %4105 = vmatpush1.msra.mxu0 0.0
  %4106 = vmatprep.subr.mxu0 0.0
  %4107 = vmatpush1.msra.mxu0 0.0
  %4108 = vmatprep.subr.mxu0 0.0
  %4109 = vmatpush1.msra.mxu0 0.0
  %4110 = vmatprep.subr.mxu0 0.0
  %4111 = vmatpush1.msra.mxu0 0.0
  %4112 = vmatprep.subr.mxu0 0.0
  %4113 = vmatpush1.msra.mxu0 0.0
  %4114 = vmatprep.subr.mxu0 0.0
  %4115 = vmatpush1.msra.mxu0 0.0
  %4116 = vmatprep.subr.mxu0 0.0
  %4117 = vmatpush1.msra.mxu0 0.0
  %4118 = vmatprep.subr.mxu0 0.0
  %4119 = vmatpush1.msra.mxu0 0.0
  %4120 = vmatprep.subr.mxu0 0.0
  %4121 = vmatpush1.msra.mxu0 0.0
  %4122 = vmatprep.subr.mxu0 0.0
  %4123 = vmatpush1.msra.mxu0 0.0
  %4124 = vmatprep.subr.mxu0 0.0
  %4125 = vmatpush1.msra.mxu0 0.0
  %4126 = vmatprep.subr.mxu0 0.0
  %4127 = vmatpush1.msra.mxu0 0.0
  %4128 = vmatprep.subr.mxu0 0.0
  %4129 = vmatpush1.msra.mxu0 0.0
  %4130 = vmatprep.subr.mxu0 0.0
  %4131 = vmatpush1.msra.mxu0 0.0
  %4132 = vmatprep.subr.mxu0 0.0
  %4133 = vmatpush1.msra.mxu0 0.0
  %4134 = vmatprep.subr.mxu0 0.0
  %4135 = vmatpush1.msra.mxu0 0.0
  %4136 = vmatprep.subr.mxu0 0.0
  %4137 = vmatpush1.msra.mxu0 0.0
  %4138 = vmatprep.subr.mxu0 0.0
  %4139 = vmatpush1.msra.mxu0 0.0
  %4140 = vmatprep.subr.mxu0 0.0
  %4141 = vmatpush1.msra.mxu0 0.0
  %4142 = vmatprep.subr.mxu0 0.0
  %4143 = vmatpush1.msra.mxu0 0.0
  %4144 = vmatprep.subr.mxu0 0.0
  %4145 = vmatpush1.msra.mxu0 0.0
  %4146 = vmatprep.subr.mxu0 0.0
  %4147 = vmatpush1.msra.mxu0 0.0
  %4148 = vmatprep.subr.mxu0 0.0
  %4149 = vmatpush1.msra.mxu0 0.0
  %4150 = vmatprep.subr.mxu0 0.0
  %4151 = vmatpush1.msra.mxu0 0.0
  %4152 = vmatprep.mubr.f32.mxu0 0.0
  %4153 = vmatmul.mubr.f32.gmra.mrb[0].mxu0 %v4013
  %v4154 = vpop.f32.mrb[0].mxu0
  %v4155 = vadd.f32 %v3237, %v4154
  %v4156 = vpop.f32.mrb[0].mxu0
  %4157 = vdwg.mxu0
  %v4158 = vadd.f32 %v2494, %v4155
  %v4159 = vtanh.pop %v4158
  %v4160 = vmul.f32 %v4159, %v3318
  %v4161 = vsel %vm354, %v4160, 0.0
  %4162 = vadd.xlane.f32.xlu0 %v4161
  %v4163 = vpop.xlane.xlu0 %4162
  %v4164 = vadd.f32 %v4163, %v3224
  %v4165 = vadd.f32 %v2499, %v4155
  %v4166 = vtanh.pop %v4165
  %v4167 = vmul.f32 %v4166, %v3318
  %v4168 = vsel %vm354, %v4167, 0.0
  %4169 = vadd.xlane.f32.xlu0 %v4168
  %v4170 = vpop.xlane.xlu0 %4169
  %v4171 = vadd.f32 %v4170, %v3225
  %v4172 = vadd.f32 %v2504, %v4155
  %v4173 = vtanh.pop %v4172
  %v4174 = vmul.f32 %v4173, %v3318
  %v4175 = vsel %vm354, %v4174, 0.0
  %4176 = vadd.xlane.f32.xlu0 %v4175
  %v4177 = vpop.xlane.xlu0 %4176
  %v4178 = vadd.f32 %v4177, %v3226
  %v4179 = vadd.f32 %v2509, %v4155
  %v4180 = vtanh.pop %v4179
  %v4181 = vmul.f32 %v4180, %v3318
  %v4182 = vsel %vm354, %v4181, 0.0
  %4183 = vadd.xlane.f32.xlu0 %v4182
  %v4184 = vpop.xlane.xlu0 %4183
  %v4185 = vadd.f32 %v4184, %v3227
  %v4186 = vadd.f32 %v2514, %v4155
  %v4187 = vtanh.pop %v4186
  %v4188 = vmul.f32 %v4187, %v3318
  %v4189 = vsel %vm354, %v4188, 0.0
  %4190 = vadd.xlane.f32.xlu0 %v4189
  %v4191 = vpop.xlane.xlu0 %4190
  %v4192 = vadd.f32 %v4191, %v3228
  %v4193 = vadd.f32 %v2519, %v4155
  %v4194 = vtanh.pop %v4193
  %v4195 = vmul.f32 %v4194, %v3318
  %v4196 = vsel %vm354, %v4195, 0.0
  %4197 = vadd.xlane.f32.xlu0 %v4196
  %v4198 = vpop.xlane.xlu0 %4197
  %v4199 = vadd.f32 %v4198, %v3229
  %v4200 = vadd.f32 %v2524, %v4155
  %v4201 = vtanh.pop %v4200
  %v4202 = vmul.f32 %v4201, %v3318
  %v4203 = vsel %vm354, %v4202, 0.0
  %4204 = vadd.xlane.f32.xlu0 %v4203
  %v4205 = vpop.xlane.xlu0 %4204
  %v4206 = vadd.f32 %v4205, %v3230
  %v4207 = vadd.f32 %v2529, %v4155
  %v4208 = vtanh.pop %v4207
  %v4209 = vmul.f32 %v4208, %v3318
  %v4210 = vsel %vm354, %v4209, 0.0
  %4211 = vadd.xlane.f32.xlu0 %v4210
  %v4212 = vpop.xlane.xlu0 %4211
  %v4213 = vadd.f32 %v4212, %v3231
  %v4214 = vmax.f32 %v4164, %v4171
  %v4215 = vmax.f32 %v4214, %v4178
  %v4216 = vmax.f32 %v4215, %v4185
  %v4217 = vmax.f32 %v4216, %v4192
  %v4218 = vmax.f32 %v4217, %v4199
  %v4219 = vmax.f32 %v4218, %v4206
  %v4220 = vmax.f32 %v4219, %v4213
  %v4221 = vsub.f32 %v4164, %v4220
  %v4222 = vmul.f32 %v4221, 1.442695
  %v4223 = vpow.pop %v4222
  %v4224 = vsub.f32 %v4171, %v4220
  %v4225 = vmul.f32 %v4224, 1.442695
  %v4226 = vpow.pop %v4225
  %v4227 = vsub.f32 %v4178, %v4220
  %v4228 = vmul.f32 %v4227, 1.442695
  %v4229 = vpow.pop %v4228
  %v4230 = vsub.f32 %v4185, %v4220
  %v4231 = vmul.f32 %v4230, 1.442695
  %v4232 = vpow.pop %v4231
  %v4233 = vsub.f32 %v4192, %v4220
  %v4234 = vmul.f32 %v4233, 1.442695
  %v4235 = vpow.pop %v4234
  %v4236 = vsub.f32 %v4199, %v4220
  %v4237 = vmul.f32 %v4236, 1.442695
  %v4238 = vpow.pop %v4237
  %v4239 = vsub.f32 %v4206, %v4220
  %v4240 = vmul.f32 %v4239, 1.442695
  %v4241 = vpow.pop %v4240
  %v4242 = vsub.f32 %v4213, %v4220
  %v4243 = vmul.f32 %v4242, 1.442695
  %v4244 = vpow.pop %v4243
  %v4245 = vadd.f32 %v4223, %v4226
  %v4246 = vadd.f32 %v4245, %v4229
  %v4247 = vadd.f32 %v4246, %v4232
  %v4248 = vadd.f32 %v4247, %v4235
  %v4249 = vadd.f32 %v4248, %v4238
  %v4250 = vadd.f32 %v4249, %v4241
  %v4251 = vadd.f32 %v4250, %v4244
  %v4252 = vrcp.pop %v4251
  %4254 = vset.pattern.permute.xlu0 0
  %4255 = vperm.xlu0 %4254, %v4223
  %v4256 = vpop.permute.xlu0 %4255
  %v4258 = vmul.f32 %v4256, %v2704
  %v4259 = vmul.f32 %v4256, %v2914
  %4261 = vset.pattern.permute.xlu0 0
  %4262 = vperm.xlu0 %4261, %v4226
  %v4263 = vpop.permute.xlu0 %4262
  %v4265 = vmul.f32 %v4263, %v2709
  %v4266 = vadd.f32 %v4258, %v4265
  %v4267 = vmul.f32 %v4263, %v2919
  %v4268 = vadd.f32 %v4259, %v4267
  %4270 = vset.pattern.permute.xlu0 0
  %4271 = vperm.xlu0 %4270, %v4229
  %v4272 = vpop.permute.xlu0 %4271
  %v4274 = vmul.f32 %v4272, %v2714
  %v4275 = vadd.f32 %v4266, %v4274
  %v4276 = vmul.f32 %v4272, %v2924
  %v4277 = vadd.f32 %v4268, %v4276
  %4279 = vset.pattern.permute.xlu0 0
  %4280 = vperm.xlu0 %4279, %v4232
  %v4281 = vpop.permute.xlu0 %4280
  %v4283 = vmul.f32 %v4281, %v2719
  %v4284 = vadd.f32 %v4275, %v4283
  %v4285 = vmul.f32 %v4281, %v2929
  %v4286 = vadd.f32 %v4277, %v4285
  %4288 = vset.pattern.permute.xlu0 0
  %4289 = vperm.xlu0 %4288, %v4235
  %v4290 = vpop.permute.xlu0 %4289
  %v4292 = vmul.f32 %v4290, %v2724
  %v4293 = vadd.f32 %v4284, %v4292
  %v4294 = vmul.f32 %v4290, %v2934
  %v4295 = vadd.f32 %v4286, %v4294
  %4297 = vset.pattern.permute.xlu0 0
  %4298 = vperm.xlu0 %4297, %v4238
  %v4299 = vpop.permute.xlu0 %4298
  %v4301 = vmul.f32 %v4299, %v2729
  %v4302 = vadd.f32 %v4293, %v4301
  %v4303 = vmul.f32 %v4299, %v2939
  %v4304 = vadd.f32 %v4295, %v4303
  %4306 = vset.pattern.permute.xlu0 0
  %4307 = vperm.xlu0 %4306, %v4241
  %v4308 = vpop.permute.xlu0 %4307
  %v4310 = vmul.f32 %v4308, %v2734
  %v4311 = vadd.f32 %v4302, %v4310
  %v4312 = vmul.f32 %v4308, %v2944
  %v4313 = vadd.f32 %v4304, %v4312
  %4315 = vset.pattern.permute.xlu0 0
  %4316 = vperm.xlu0 %4315, %v4244
  %v4317 = vpop.permute.xlu0 %4316
  %v4319 = vmul.f32 %v4317, %v2739
  %v4320 = vadd.f32 %v4311, %v4319
  %v4321 = vmul.f32 %v4317, %v2949
  %v4322 = vadd.f32 %v4313, %v4321
  %4324 = vset.pattern.permute.xlu0 0
  %4325 = vperm.xlu0 %4324, %v4252
  %v4326 = vpop.permute.xlu0 %4325
  %v4328 = vmul.f32 %v4320, %v4326
  %v4329 = vadd.f32 %v3070, %v4328
  %4330 = vmatprep.subr.mxu0 0.0
  %4331 = vmatpush1.msra.mxu0 %v3216
  %4332 = vmatprep.subr.mxu0 0.0
  %4333 = vmatpush1.msra.mxu0 %v3217
  %4334 = vmatprep.subr.mxu0 0.0
  %4335 = vmatpush1.msra.mxu0 %v3218
  %4336 = vmatprep.subr.mxu0 0.0
  %4337 = vmatpush1.msra.mxu0 %v3219
  %4338 = vmatprep.subr.mxu0 0.0
  %4339 = vmatpush1.msra.mxu0 0.0
  %4340 = vmatprep.subr.mxu0 0.0
  %4341 = vmatpush1.msra.mxu0 0.0
  %4342 = vmatprep.subr.mxu0 0.0
  %4343 = vmatpush1.msra.mxu0 0.0
  %4344 = vmatprep.subr.mxu0 0.0
  %4345 = vmatpush1.msra.mxu0 0.0
  %4346 = vmatprep.subr.mxu0 0.0
  %4347 = vmatpush1.msra.mxu0 0.0
  %4348 = vmatprep.subr.mxu0 0.0
  %4349 = vmatpush1.msra.mxu0 0.0
  %4350 = vmatprep.subr.mxu0 0.0
  %4351 = vmatpush1.msra.mxu0 0.0
  %4352 = vmatprep.subr.mxu0 0.0
  %4353 = vmatpush1.msra.mxu0 0.0
  %4354 = vmatprep.subr.mxu0 0.0
  %4355 = vmatpush1.msra.mxu0 0.0
  %4356 = vmatprep.subr.mxu0 0.0
  %4357 = vmatpush1.msra.mxu0 0.0
  %4358 = vmatprep.subr.mxu0 0.0
  %4359 = vmatpush1.msra.mxu0 0.0
  %4360 = vmatprep.subr.mxu0 0.0
  %4361 = vmatpush1.msra.mxu0 0.0
  %4362 = vmatprep.subr.mxu0 0.0
  %4363 = vmatpush1.msra.mxu0 0.0
  %4364 = vmatprep.subr.mxu0 0.0
  %4365 = vmatpush1.msra.mxu0 0.0
  %4366 = vmatprep.subr.mxu0 0.0
  %4367 = vmatpush1.msra.mxu0 0.0
  %4368 = vmatprep.subr.mxu0 0.0
  %4369 = vmatpush1.msra.mxu0 0.0
  %4370 = vmatprep.subr.mxu0 0.0
  %4371 = vmatpush1.msra.mxu0 0.0
  %4372 = vmatprep.subr.mxu0 0.0
  %4373 = vmatpush1.msra.mxu0 0.0
  %4374 = vmatprep.subr.mxu0 0.0
  %4375 = vmatpush1.msra.mxu0 0.0
  %4376 = vmatprep.subr.mxu0 0.0
  %4377 = vmatpush1.msra.mxu0 0.0
  %4378 = vmatprep.subr.mxu0 0.0
  %4379 = vmatpush1.msra.mxu0 0.0
  %4380 = vmatprep.subr.mxu0 0.0
  %4381 = vmatpush1.msra.mxu0 0.0
  %4382 = vmatprep.subr.mxu0 0.0
  %4383 = vmatpush1.msra.mxu0 0.0
  %4384 = vmatprep.subr.mxu0 0.0
  %4385 = vmatpush1.msra.mxu0 0.0
  %4386 = vmatprep.subr.mxu0 0.0
  %4387 = vmatpush1.msra.mxu0 0.0
  %4388 = vmatprep.subr.mxu0 0.0
  %4389 = vmatpush1.msra.mxu0 0.0
  %4390 = vmatprep.subr.mxu0 0.0
  %4391 = vmatpush1.msra.mxu0 0.0
  %4392 = vmatprep.subr.mxu0 0.0
  %4393 = vmatpush1.msra.mxu0 0.0
  %4394 = vmatprep.mubr.f32.mxu0 0.0
  %4395 = vmatmul.mubr.f32.gmra.mrb[0].mxu0 %v4013
  %v4396 = vpop.f32.mrb[0].mxu0
  %v4397 = vadd.f32 0.0, %v4396
  %v4398 = vpop.f32.mrb[0].mxu0
  %4399 = vdwg.mxu0
  %v4400 = vadd.f32 %v4329, %v4397
  %v4401 = vtanh.pop %v4400
  %v4402 = vxor.u32 %v4400, 2147483648
  %v4403 = vmul.f32 %v4402, 1.442695
  %v4404 = vpow.pop %v4403
  %v4405 = vadd.f32 %v4404, 1.0
  %v4406 = vrcp.pop %v4405
  %v4407 = vmul.f32 1.0, %v4406
  %v4408 = vsel %vm353, %v4401, %v4407
  %v4409 = vmul.f32 %v4408, %v4001
  %4411 = vrot.lane.b32.xlu0 %v4408, 64
  %v4412 = vpop.permute.xlu0 %4411
  %v4414 = vmul.f32 %v4408, %v4412
  %4416 = vrot.lane.b32.xlu0 %v4414, 32
  %v4417 = vpop.permute.xlu0 %4416
  %v4419 = vadd.f32 %v4409, %v4417
  %v4420 = vtanh.pop %v4419
  %4422 = vrot.lane.b32.xlu0 %v4420, 64
  %v4423 = vpop.permute.xlu0 %4422
  %v4425 = vmul.f32 %v4408, %v4423
  %v4426 = vmul.f32 %v4322, %v4326
  %v4427 = vadd.f32 %v3183, %v4426
  %4429 = vrot.lane.b32.xlu0 %v4425, 32
  %v4430 = vpop.permute.xlu0 %4429
  %v4431 = vsel %vm354, %v4430, 0
  %4433 = vmatprep.subr.mxu0 0.0
  %4434 = vmatpush1.msra.mxu0 %v3220
  %4435 = vmatprep.subr.mxu0 0.0
  %4436 = vmatpush1.msra.mxu0 %v3221
  %4437 = vmatprep.subr.mxu0 0.0
  %4438 = vmatpush1.msra.mxu0 %v3222
  %4439 = vmatprep.subr.mxu0 0.0
  %4440 = vmatpush1.msra.mxu0 %v3223
  %4441 = vmatprep.subr.mxu0 0.0
  %4442 = vmatpush1.msra.mxu0 0.0
  %4443 = vmatprep.subr.mxu0 0.0
  %4444 = vmatpush1.msra.mxu0 0.0
  %4445 = vmatprep.subr.mxu0 0.0
  %4446 = vmatpush1.msra.mxu0 0.0
  %4447 = vmatprep.subr.mxu0 0.0
  %4448 = vmatpush1.msra.mxu0 0.0
  %4449 = vmatprep.subr.mxu0 0.0
  %4450 = vmatpush1.msra.mxu0 0.0
  %4451 = vmatprep.subr.mxu0 0.0
  %4452 = vmatpush1.msra.mxu0 0.0
  %4453 = vmatprep.subr.mxu0 0.0
  %4454 = vmatpush1.msra.mxu0 0.0
  %4455 = vmatprep.subr.mxu0 0.0
  %4456 = vmatpush1.msra.mxu0 0.0
  %4457 = vmatprep.subr.mxu0 0.0
  %4458 = vmatpush1.msra.mxu0 0.0
  %4459 = vmatprep.subr.mxu0 0.0
  %4460 = vmatpush1.msra.mxu0 0.0
  %4461 = vmatprep.subr.mxu0 0.0
  %4462 = vmatpush1.msra.mxu0 0.0
  %4463 = vmatprep.subr.mxu0 0.0
  %4464 = vmatpush1.msra.mxu0 0.0
  %4465 = vmatprep.subr.mxu0 0.0
  %4466 = vmatpush1.msra.mxu0 0.0
  %4467 = vmatprep.subr.mxu0 0.0
  %4468 = vmatpush1.msra.mxu0 0.0
  %4469 = vmatprep.subr.mxu0 0.0
  %4470 = vmatpush1.msra.mxu0 0.0
  %4471 = vmatprep.subr.mxu0 0.0
  %4472 = vmatpush1.msra.mxu0 0.0
  %4473 = vmatprep.subr.mxu0 0.0
  %4474 = vmatpush1.msra.mxu0 0.0
  %4475 = vmatprep.subr.mxu0 0.0
  %4476 = vmatpush1.msra.mxu0 0.0
  %4477 = vmatprep.subr.mxu0 0.0
  %4478 = vmatpush1.msra.mxu0 0.0
  %4479 = vmatprep.subr.mxu0 0.0
  %4480 = vmatpush1.msra.mxu0 0.0
  %4481 = vmatprep.subr.mxu0 0.0
  %4482 = vmatpush1.msra.mxu0 0.0
  %4483 = vmatprep.subr.mxu0 0.0
  %4484 = vmatpush1.msra.mxu0 0.0
  %4485 = vmatprep.subr.mxu0 0.0
  %4486 = vmatpush1.msra.mxu0 0.0
  %4487 = vmatprep.subr.mxu0 0.0
  %4488 = vmatpush1.msra.mxu0 0.0
  %4489 = vmatprep.subr.mxu0 0.0
  %4490 = vmatpush1.msra.mxu0 0.0
  %4491 = vmatprep.subr.mxu0 0.0
  %4492 = vmatpush1.msra.mxu0 0.0
  %4493 = vmatprep.subr.mxu0 0.0
  %4494 = vmatpush1.msra.mxu0 0.0
  %4495 = vmatprep.subr.mxu0 0.0
  %4496 = vmatpush1.msra.mxu0 0.0
  %4497 = vmatprep.mubr.f32.mxu0 0.0
  %4498 = vmatmul.mubr.f32.gmra.mrb[0].mxu0 %v4431
  %v4499 = vpop.f32.mrb[0].mxu0
  %v4500 = vadd.f32 0.0, %v4499
  %v4501 = vpop.f32.mrb[0].mxu0
  %4502 = vdwg.mxu0
  %v4503 = vadd.f32 %v4427, %v4500
  %s4504 = scalar_lea.vmem %s25, 24
  %4505 = vst [vmem:[%s4504] sm:$0xff] %v4503
  %4506 = vmatprep.subr.mxu0 0.0
  %4507 = vmatpush1.msra.mxu0 %v3210
  %4508 = vmatprep.subr.mxu0 0.0
  %4509 = vmatpush1.msra.mxu0 %v3211
  %4510 = vmatprep.subr.mxu0 0.0
  %4511 = vmatpush1.msra.mxu0 %v3212
  %4512 = vmatprep.subr.mxu0 0.0
  %4513 = vmatpush1.msra.mxu0 %v3213
  %4514 = vmatprep.subr.mxu0 0.0
  %4515 = vmatpush1.msra.mxu0 0.0
  %4516 = vmatprep.subr.mxu0 0.0
  %4517 = vmatpush1.msra.mxu0 0.0
  %4518 = vmatprep.subr.mxu0 0.0
  %4519 = vmatpush1.msra.mxu0 0.0
  %4520 = vmatprep.subr.mxu0 0.0
  %4521 = vmatpush1.msra.mxu0 0.0
  %4522 = vmatprep.subr.mxu0 0.0
  %4523 = vmatpush1.msra.mxu0 0.0
  %4524 = vmatprep.subr.mxu0 0.0
  %4525 = vmatpush1.msra.mxu0 0.0
  %4526 = vmatprep.subr.mxu0 0.0
  %4527 = vmatpush1.msra.mxu0 0.0
  %4528 = vmatprep.subr.mxu0 0.0
  %4529 = vmatpush1.msra.mxu0 0.0
  %4530 = vmatprep.subr.mxu0 0.0
  %4531 = vmatpush1.msra.mxu0 0.0
  %4532 = vmatprep.subr.mxu0 0.0
  %4533 = vmatpush1.msra.mxu0 0.0
  %4534 = vmatprep.subr.mxu0 0.0
  %4535 = vmatpush1.msra.mxu0 0.0
  %4536 = vmatprep.subr.mxu0 0.0
  %4537 = vmatpush1.msra.mxu0 0.0
  %4538 = vmatprep.subr.mxu0 0.0
  %4539 = vmatpush1.msra.mxu0 0.0
  %4540 = vmatprep.subr.mxu0 0.0
  %4541 = vmatpush1.msra.mxu0 0.0
  %4542 = vmatprep.subr.mxu0 0.0
  %4543 = vmatpush1.msra.mxu0 0.0
  %4544 = vmatprep.subr.mxu0 0.0
  %4545 = vmatpush1.msra.mxu0 0.0
  %4546 = vmatprep.subr.mxu0 0.0
  %4547 = vmatpush1.msra.mxu0 0.0
  %4548 = vmatprep.subr.mxu0 0.0
  %4549 = vmatpush1.msra.mxu0 0.0
  %4550 = vmatprep.subr.mxu0 0.0
  %4551 = vmatpush1.msra.mxu0 0.0
  %4552 = vmatprep.subr.mxu0 0.0
  %4553 = vmatpush1.msra.mxu0 0.0
  %4554 = vmatprep.subr.mxu0 0.0
  %4555 = vmatpush1.msra.mxu0 0.0
  %4556 = vmatprep.subr.mxu0 0.0
  %4557 = vmatpush1.msra.mxu0 0.0
  %4558 = vmatprep.subr.mxu0 0.0
  %4559 = vmatpush1.msra.mxu0 0.0
  %4560 = vmatprep.subr.mxu0 0.0
  %4561 = vmatpush1.msra.mxu0 0.0
  %4562 = vmatprep.subr.mxu0 0.0
  %4563 = vmatpush1.msra.mxu0 0.0
  %4564 = vmatprep.subr.mxu0 0.0
  %4565 = vmatpush1.msra.mxu0 0.0
  %4566 = vmatprep.subr.mxu0 0.0
  %4567 = vmatpush1.msra.mxu0 0.0
  %4568 = vmatprep.subr.mxu0 0.0
  %4569 = vmatpush1.msra.mxu0 0.0
  %4570 = vmatprep.mubr.f32.mxu0 0.0
  %4571 = vmatmul.mubr.f32.gmra.mrb[0].mxu0 %v4431
  %v4572 = vpop.f32.mrb[0].mxu0
  %v4573 = vadd.f32 %v3237, %v4572
  %v4574 = vpop.f32.mrb[0].mxu0
  %4575 = vdwg.mxu0
  %v4576 = vadd.f32 %v2494, %v4573
  %v4577 = vtanh.pop %v4576
  %v4578 = vmul.f32 %v4577, %v3318
  %v4579 = vsel %vm354, %v4578, 0.0
  %4580 = vadd.xlane.f32.xlu0 %v4579
  %v4581 = vpop.xlane.xlu0 %4580
  %v4582 = vadd.f32 %v4581, %v3224
  %v4583 = vadd.f32 %v2499, %v4573
  %v4584 = vtanh.pop %v4583
  %v4585 = vmul.f32 %v4584, %v3318
  %v4586 = vsel %vm354, %v4585, 0.0
  %4587 = vadd.xlane.f32.xlu0 %v4586
  %v4588 = vpop.xlane.xlu0 %4587
  %v4589 = vadd.f32 %v4588, %v3225
  %v4590 = vadd.f32 %v2504, %v4573
  %v4591 = vtanh.pop %v4590
  %v4592 = vmul.f32 %v4591, %v3318
  %v4593 = vsel %vm354, %v4592, 0.0
  %4594 = vadd.xlane.f32.xlu0 %v4593
  %v4595 = vpop.xlane.xlu0 %4594
  %v4596 = vadd.f32 %v4595, %v3226
  %v4597 = vadd.f32 %v2509, %v4573
  %v4598 = vtanh.pop %v4597
  %v4599 = vmul.f32 %v4598, %v3318
  %v4600 = vsel %vm354, %v4599, 0.0
  %4601 = vadd.xlane.f32.xlu0 %v4600
  %v4602 = vpop.xlane.xlu0 %4601
  %v4603 = vadd.f32 %v4602, %v3227
  %v4604 = vadd.f32 %v2514, %v4573
  %v4605 = vtanh.pop %v4604
  %v4606 = vmul.f32 %v4605, %v3318
  %v4607 = vsel %vm354, %v4606, 0.0
  %4608 = vadd.xlane.f32.xlu0 %v4607
  %v4609 = vpop.xlane.xlu0 %4608
  %v4610 = vadd.f32 %v4609, %v3228
  %v4611 = vadd.f32 %v2519, %v4573
  %v4612 = vtanh.pop %v4611
  %v4613 = vmul.f32 %v4612, %v3318
  %v4614 = vsel %vm354, %v4613, 0.0
  %4615 = vadd.xlane.f32.xlu0 %v4614
  %v4616 = vpop.xlane.xlu0 %4615
  %v4617 = vadd.f32 %v4616, %v3229
  %v4618 = vadd.f32 %v2524, %v4573
  %v4619 = vtanh.pop %v4618
  %v4620 = vmul.f32 %v4619, %v3318
  %v4621 = vsel %vm354, %v4620, 0.0
  %4622 = vadd.xlane.f32.xlu0 %v4621
  %v4623 = vpop.xlane.xlu0 %4622
  %v4624 = vadd.f32 %v4623, %v3230
  %v4625 = vadd.f32 %v2529, %v4573
  %v4626 = vtanh.pop %v4625
  %v4627 = vmul.f32 %v4626, %v3318
  %v4628 = vsel %vm354, %v4627, 0.0
  %4629 = vadd.xlane.f32.xlu0 %v4628
  %v4630 = vpop.xlane.xlu0 %4629
  %v4631 = vadd.f32 %v4630, %v3231
  %v4632 = vmax.f32 %v4582, %v4589
  %v4633 = vmax.f32 %v4632, %v4596
  %v4634 = vmax.f32 %v4633, %v4603
  %v4635 = vmax.f32 %v4634, %v4610
  %v4636 = vmax.f32 %v4635, %v4617
  %v4637 = vmax.f32 %v4636, %v4624
  %v4638 = vmax.f32 %v4637, %v4631
  %v4639 = vsub.f32 %v4582, %v4638
  %v4640 = vmul.f32 %v4639, 1.442695
  %v4641 = vpow.pop %v4640
  %v4642 = vsub.f32 %v4589, %v4638
  %v4643 = vmul.f32 %v4642, 1.442695
  %v4644 = vpow.pop %v4643
  %v4645 = vsub.f32 %v4596, %v4638
  %v4646 = vmul.f32 %v4645, 1.442695
  %v4647 = vpow.pop %v4646
  %v4648 = vsub.f32 %v4603, %v4638
  %v4649 = vmul.f32 %v4648, 1.442695
  %v4650 = vpow.pop %v4649
  %v4651 = vsub.f32 %v4610, %v4638
  %v4652 = vmul.f32 %v4651, 1.442695
  %v4653 = vpow.pop %v4652
  %v4654 = vsub.f32 %v4617, %v4638
  %v4655 = vmul.f32 %v4654, 1.442695
  %v4656 = vpow.pop %v4655
  %v4657 = vsub.f32 %v4624, %v4638
  %v4658 = vmul.f32 %v4657, 1.442695
  %v4659 = vpow.pop %v4658
  %v4660 = vsub.f32 %v4631, %v4638
  %v4661 = vmul.f32 %v4660, 1.442695
  %v4662 = vpow.pop %v4661
  %v4663 = vadd.f32 %v4641, %v4644
  %v4664 = vadd.f32 %v4663, %v4647
  %v4665 = vadd.f32 %v4664, %v4650
  %v4666 = vadd.f32 %v4665, %v4653
  %v4667 = vadd.f32 %v4666, %v4656
  %v4668 = vadd.f32 %v4667, %v4659
  %v4669 = vadd.f32 %v4668, %v4662
  %v4670 = vrcp.pop %v4669
  %4672 = vset.pattern.permute.xlu0 0
  %4673 = vperm.xlu0 %4672, %v4641
  %v4674 = vpop.permute.xlu0 %4673
  %v4676 = vmul.f32 %v4674, %v2704
  %v4677 = vmul.f32 %v4674, %v2914
  %4679 = vset.pattern.permute.xlu0 0
  %4680 = vperm.xlu0 %4679, %v4644
  %v4681 = vpop.permute.xlu0 %4680
  %v4683 = vmul.f32 %v4681, %v2709
  %v4684 = vadd.f32 %v4676, %v4683
  %v4685 = vmul.f32 %v4681, %v2919
  %v4686 = vadd.f32 %v4677, %v4685
  %4688 = vset.pattern.permute.xlu0 0
  %4689 = vperm.xlu0 %4688, %v4647
  %v4690 = vpop.permute.xlu0 %4689
  %v4692 = vmul.f32 %v4690, %v2714
  %v4693 = vadd.f32 %v4684, %v4692
  %v4694 = vmul.f32 %v4690, %v2924
  %v4695 = vadd.f32 %v4686, %v4694
  %4697 = vset.pattern.permute.xlu0 0
  %4698 = vperm.xlu0 %4697, %v4650
  %v4699 = vpop.permute.xlu0 %4698
  %v4701 = vmul.f32 %v4699, %v2719
  %v4702 = vadd.f32 %v4693, %v4701
  %v4703 = vmul.f32 %v4699, %v2929
  %v4704 = vadd.f32 %v4695, %v4703
  %4706 = vset.pattern.permute.xlu0 0
  %4707 = vperm.xlu0 %4706, %v4653
  %v4708 = vpop.permute.xlu0 %4707
  %v4710 = vmul.f32 %v4708, %v2724
  %v4711 = vadd.f32 %v4702, %v4710
  %v4712 = vmul.f32 %v4708, %v2934
  %v4713 = vadd.f32 %v4704, %v4712
  %4715 = vset.pattern.permute.xlu0 0
  %4716 = vperm.xlu0 %4715, %v4656
  %v4717 = vpop.permute.xlu0 %4716
  %v4719 = vmul.f32 %v4717, %v2729
  %v4720 = vadd.f32 %v4711, %v4719
  %v4721 = vmul.f32 %v4717, %v2939
  %v4722 = vadd.f32 %v4713, %v4721
  %4724 = vset.pattern.permute.xlu0 0
  %4725 = vperm.xlu0 %4724, %v4659
  %v4726 = vpop.permute.xlu0 %4725
  %v4728 = vmul.f32 %v4726, %v2734
  %v4729 = vadd.f32 %v4720, %v4728
  %v4730 = vmul.f32 %v4726, %v2944
  %v4731 = vadd.f32 %v4722, %v4730
  %4733 = vset.pattern.permute.xlu0 0
  %4734 = vperm.xlu0 %4733, %v4662
  %v4735 = vpop.permute.xlu0 %4734
  %v4737 = vmul.f32 %v4735, %v2739
  %v4738 = vadd.f32 %v4729, %v4737
  %v4739 = vmul.f32 %v4735, %v2949
  %v4740 = vadd.f32 %v4731, %v4739
  %4742 = vset.pattern.permute.xlu0 0
  %4743 = vperm.xlu0 %4742, %v4670
  %v4744 = vpop.permute.xlu0 %4743
  %v4746 = vmul.f32 %v4738, %v4744
  %v4747 = vadd.f32 %v3075, %v4746
  %4748 = vmatprep.subr.mxu0 0.0
  %4749 = vmatpush1.msra.mxu0 %v3216
  %4750 = vmatprep.subr.mxu0 0.0
  %4751 = vmatpush1.msra.mxu0 %v3217
  %4752 = vmatprep.subr.mxu0 0.0
  %4753 = vmatpush1.msra.mxu0 %v3218
  %4754 = vmatprep.subr.mxu0 0.0
  %4755 = vmatpush1.msra.mxu0 %v3219
  %4756 = vmatprep.subr.mxu0 0.0
  %4757 = vmatpush1.msra.mxu0 0.0
  %4758 = vmatprep.subr.mxu0 0.0
  %4759 = vmatpush1.msra.mxu0 0.0
  %4760 = vmatprep.subr.mxu0 0.0
  %4761 = vmatpush1.msra.mxu0 0.0
  %4762 = vmatprep.subr.mxu0 0.0
  %4763 = vmatpush1.msra.mxu0 0.0
  %4764 = vmatprep.subr.mxu0 0.0
  %4765 = vmatpush1.msra.mxu0 0.0
  %4766 = vmatprep.subr.mxu0 0.0
  %4767 = vmatpush1.msra.mxu0 0.0
  %4768 = vmatprep.subr.mxu0 0.0
  %4769 = vmatpush1.msra.mxu0 0.0
  %4770 = vmatprep.subr.mxu0 0.0
  %4771 = vmatpush1.msra.mxu0 0.0
  %4772 = vmatprep.subr.mxu0 0.0
  %4773 = vmatpush1.msra.mxu0 0.0
  %4774 = vmatprep.subr.mxu0 0.0
  %4775 = vmatpush1.msra.mxu0 0.0
  %4776 = vmatprep.subr.mxu0 0.0
  %4777 = vmatpush1.msra.mxu0 0.0
  %4778 = vmatprep.subr.mxu0 0.0
  %4779 = vmatpush1.msra.mxu0 0.0
  %4780 = vmatprep.subr.mxu0 0.0
  %4781 = vmatpush1.msra.mxu0 0.0
  %4782 = vmatprep.subr.mxu0 0.0
  %4783 = vmatpush1.msra.mxu0 0.0
  %4784 = vmatprep.subr.mxu0 0.0
  %4785 = vmatpush1.msra.mxu0 0.0
  %4786 = vmatprep.subr.mxu0 0.0
  %4787 = vmatpush1.msra.mxu0 0.0
  %4788 = vmatprep.subr.mxu0 0.0
  %4789 = vmatpush1.msra.mxu0 0.0
  %4790 = vmatprep.subr.mxu0 0.0
  %4791 = vmatpush1.msra.mxu0 0.0
  %4792 = vmatprep.subr.mxu0 0.0
  %4793 = vmatpush1.msra.mxu0 0.0
  %4794 = vmatprep.subr.mxu0 0.0
  %4795 = vmatpush1.msra.mxu0 0.0
  %4796 = vmatprep.subr.mxu0 0.0
  %4797 = vmatpush1.msra.mxu0 0.0
  %4798 = vmatprep.subr.mxu0 0.0
  %4799 = vmatpush1.msra.mxu0 0.0
  %4800 = vmatprep.subr.mxu0 0.0
  %4801 = vmatpush1.msra.mxu0 0.0
  %4802 = vmatprep.subr.mxu0 0.0
  %4803 = vmatpush1.msra.mxu0 0.0
  %4804 = vmatprep.subr.mxu0 0.0
  %4805 = vmatpush1.msra.mxu0 0.0
  %4806 = vmatprep.subr.mxu0 0.0
  %4807 = vmatpush1.msra.mxu0 0.0
  %4808 = vmatprep.subr.mxu0 0.0
  %4809 = vmatpush1.msra.mxu0 0.0
  %4810 = vmatprep.subr.mxu0 0.0
  %4811 = vmatpush1.msra.mxu0 0.0
  %4812 = vmatprep.mubr.f32.mxu0 0.0
  %4813 = vmatmul.mubr.f32.gmra.mrb[0].mxu0 %v4431
  %v4814 = vpop.f32.mrb[0].mxu0
  %v4815 = vadd.f32 0.0, %v4814
  %v4816 = vpop.f32.mrb[0].mxu0
  %4817 = vdwg.mxu0
  %v4818 = vadd.f32 %v4747, %v4815
  %v4819 = vtanh.pop %v4818
  %v4820 = vxor.u32 %v4818, 2147483648
  %v4821 = vmul.f32 %v4820, 1.442695
  %v4822 = vpow.pop %v4821
  %v4823 = vadd.f32 %v4822, 1.0
  %v4824 = vrcp.pop %v4823
  %v4825 = vmul.f32 1.0, %v4824
  %v4826 = vsel %vm353, %v4819, %v4825
  %v4827 = vmul.f32 %v4826, %v4419
  %4829 = vrot.lane.b32.xlu0 %v4826, 64
  %v4830 = vpop.permute.xlu0 %4829
  %v4832 = vmul.f32 %v4826, %v4830
  %4834 = vrot.lane.b32.xlu0 %v4832, 32
  %v4835 = vpop.permute.xlu0 %4834
  %v4837 = vadd.f32 %v4827, %v4835
  %v4838 = vtanh.pop %v4837
  %4840 = vrot.lane.b32.xlu0 %v4838, 64
  %v4841 = vpop.permute.xlu0 %4840
  %v4843 = vmul.f32 %v4826, %v4841
  %v4844 = vmul.f32 %v4740, %v4744
  %v4845 = vadd.f32 %v3188, %v4844
  %4847 = vrot.lane.b32.xlu0 %v4843, 32
  %v4848 = vpop.permute.xlu0 %4847
  %v4849 = vsel %vm354, %v4848, 0
  %4851 = vmatprep.subr.mxu0 0.0
  %4852 = vmatpush1.msra.mxu0 %v3220
  %4853 = vmatprep.subr.mxu0 0.0
  %4854 = vmatpush1.msra.mxu0 %v3221
  %4855 = vmatprep.subr.mxu0 0.0
  %4856 = vmatpush1.msra.mxu0 %v3222
  %4857 = vmatprep.subr.mxu0 0.0
  %4858 = vmatpush1.msra.mxu0 %v3223
  %4859 = vmatprep.subr.mxu0 0.0
  %4860 = vmatpush1.msra.mxu0 0.0
  %4861 = vmatprep.subr.mxu0 0.0
  %4862 = vmatpush1.msra.mxu0 0.0
  %4863 = vmatprep.subr.mxu0 0.0
  %4864 = vmatpush1.msra.mxu0 0.0
  %4865 = vmatprep.subr.mxu0 0.0
  %4866 = vmatpush1.msra.mxu0 0.0
  %4867 = vmatprep.subr.mxu0 0.0
  %4868 = vmatpush1.msra.mxu0 0.0
  %4869 = vmatprep.subr.mxu0 0.0
  %4870 = vmatpush1.msra.mxu0 0.0
  %4871 = vmatprep.subr.mxu0 0.0
  %4872 = vmatpush1.msra.mxu0 0.0
  %4873 = vmatprep.subr.mxu0 0.0
  %4874 = vmatpush1.msra.mxu0 0.0
  %4875 = vmatprep.subr.mxu0 0.0
  %4876 = vmatpush1.msra.mxu0 0.0
  %4877 = vmatprep.subr.mxu0 0.0
  %4878 = vmatpush1.msra.mxu0 0.0
  %4879 = vmatprep.subr.mxu0 0.0
  %4880 = vmatpush1.msra.mxu0 0.0
  %4881 = vmatprep.subr.mxu0 0.0
  %4882 = vmatpush1.msra.mxu0 0.0
  %4883 = vmatprep.subr.mxu0 0.0
  %4884 = vmatpush1.msra.mxu0 0.0
  %4885 = vmatprep.subr.mxu0 0.0
  %4886 = vmatpush1.msra.mxu0 0.0
  %4887 = vmatprep.subr.mxu0 0.0
  %4888 = vmatpush1.msra.mxu0 0.0
  %4889 = vmatprep.subr.mxu0 0.0
  %4890 = vmatpush1.msra.mxu0 0.0
  %4891 = vmatprep.subr.mxu0 0.0
  %4892 = vmatpush1.msra.mxu0 0.0
  %4893 = vmatprep.subr.mxu0 0.0
  %4894 = vmatpush1.msra.mxu0 0.0
  %4895 = vmatprep.subr.mxu0 0.0
  %4896 = vmatpush1.msra.mxu0 0.0
  %4897 = vmatprep.subr.mxu0 0.0
  %4898 = vmatpush1.msra.mxu0 0.0
  %4899 = vmatprep.subr.mxu0 0.0
  %4900 = vmatpush1.msra.mxu0 0.0
  %4901 = vmatprep.subr.mxu0 0.0
  %4902 = vmatpush1.msra.mxu0 0.0
  %4903 = vmatprep.subr.mxu0 0.0
  %4904 = vmatpush1.msra.mxu0 0.0
  %4905 = vmatprep.subr.mxu0 0.0
  %4906 = vmatpush1.msra.mxu0 0.0
  %4907 = vmatprep.subr.mxu0 0.0
  %4908 = vmatpush1.msra.mxu0 0.0
  %4909 = vmatprep.subr.mxu0 0.0
  %4910 = vmatpush1.msra.mxu0 0.0
  %4911 = vmatprep.subr.mxu0 0.0
  %4912 = vmatpush1.msra.mxu0 0.0
  %4913 = vmatprep.subr.mxu0 0.0
  %4914 = vmatpush1.msra.mxu0 0.0
  %4915 = vmatprep.mubr.f32.mxu0 0.0
  %4916 = vmatmul.mubr.f32.gmra.mrb[0].mxu0 %v4849
  %v4917 = vpop.f32.mrb[0].mxu0
  %v4918 = vadd.f32 0.0, %v4917
  %v4919 = vpop.f32.mrb[0].mxu0
  %4920 = vdwg.mxu0
  %v4921 = vadd.f32 %v4845, %v4918
  %s4922 = scalar_lea.vmem %s25, 32
  %4923 = vst [vmem:[%s4922] sm:$0xff] %v4921
  %4924 = vmatprep.subr.mxu0 0.0
  %4925 = vmatpush1.msra.mxu0 %v3210
  %4926 = vmatprep.subr.mxu0 0.0
  %4927 = vmatpush1.msra.mxu0 %v3211
  %4928 = vmatprep.subr.mxu0 0.0
  %4929 = vmatpush1.msra.mxu0 %v3212
  %4930 = vmatprep.subr.mxu0 0.0
  %4931 = vmatpush1.msra.mxu0 %v3213
  %4932 = vmatprep.subr.mxu0 0.0
  %4933 = vmatpush1.msra.mxu0 0.0
  %4934 = vmatprep.subr.mxu0 0.0
  %4935 = vmatpush1.msra.mxu0 0.0
  %4936 = vmatprep.subr.mxu0 0.0
  %4937 = vmatpush1.msra.mxu0 0.0
  %4938 = vmatprep.subr.mxu0 0.0
  %4939 = vmatpush1.msra.mxu0 0.0
  %4940 = vmatprep.subr.mxu0 0.0
  %4941 = vmatpush1.msra.mxu0 0.0
  %4942 = vmatprep.subr.mxu0 0.0
  %4943 = vmatpush1.msra.mxu0 0.0
  %4944 = vmatprep.subr.mxu0 0.0
  %4945 = vmatpush1.msra.mxu0 0.0
  %4946 = vmatprep.subr.mxu0 0.0
  %4947 = vmatpush1.msra.mxu0 0.0
  %4948 = vmatprep.subr.mxu0 0.0
  %4949 = vmatpush1.msra.mxu0 0.0
  %4950 = vmatprep.subr.mxu0 0.0
  %4951 = vmatpush1.msra.mxu0 0.0
  %4952 = vmatprep.subr.mxu0 0.0
  %4953 = vmatpush1.msra.mxu0 0.0
  %4954 = vmatprep.subr.mxu0 0.0
  %4955 = vmatpush1.msra.mxu0 0.0
  %4956 = vmatprep.subr.mxu0 0.0
  %4957 = vmatpush1.msra.mxu0 0.0
  %4958 = vmatprep.subr.mxu0 0.0
  %4959 = vmatpush1.msra.mxu0 0.0
  %4960 = vmatprep.subr.mxu0 0.0
  %4961 = vmatpush1.msra.mxu0 0.0
  %4962 = vmatprep.subr.mxu0 0.0
  %4963 = vmatpush1.msra.mxu0 0.0
  %4964 = vmatprep.subr.mxu0 0.0
  %4965 = vmatpush1.msra.mxu0 0.0
  %4966 = vmatprep.subr.mxu0 0.0
  %4967 = vmatpush1.msra.mxu0 0.0
  %4968 = vmatprep.subr.mxu0 0.0
  %4969 = vmatpush1.msra.mxu0 0.0
  %4970 = vmatprep.subr.mxu0 0.0
  %4971 = vmatpush1.msra.mxu0 0.0
  %4972 = vmatprep.subr.mxu0 0.0
  %4973 = vmatpush1.msra.mxu0 0.0
  %4974 = vmatprep.subr.mxu0 0.0
  %4975 = vmatpush1.msra.mxu0 0.0
  %4976 = vmatprep.subr.mxu0 0.0
  %4977 = vmatpush1.msra.mxu0 0.0
  %4978 = vmatprep.subr.mxu0 0.0
  %4979 = vmatpush1.msra.mxu0 0.0
  %4980 = vmatprep.subr.mxu0 0.0
  %4981 = vmatpush1.msra.mxu0 0.0
  %4982 = vmatprep.subr.mxu0 0.0
  %4983 = vmatpush1.msra.mxu0 0.0
  %4984 = vmatprep.subr.mxu0 0.0
  %4985 = vmatpush1.msra.mxu0 0.0
  %4986 = vmatprep.subr.mxu0 0.0
  %4987 = vmatpush1.msra.mxu0 0.0
  %4988 = vmatprep.mubr.f32.mxu0 0.0
  %4989 = vmatmul.mubr.f32.gmra.mrb[0].mxu0 %v4849
  %v4990 = vpop.f32.mrb[0].mxu0
  %v4991 = vadd.f32 %v3237, %v4990
  %v4992 = vpop.f32.mrb[0].mxu0
  %4993 = vdwg.mxu0
  %v4994 = vadd.f32 %v2494, %v4991
  %v4995 = vtanh.pop %v4994
  %v4996 = vmul.f32 %v4995, %v3318
  %v4997 = vsel %vm354, %v4996, 0.0
  %4998 = vadd.xlane.f32.xlu0 %v4997
  %v4999 = vpop.xlane.xlu0 %4998
  %v5000 = vadd.f32 %v4999, %v3224
  %v5001 = vadd.f32 %v2499, %v4991
  %v5002 = vtanh.pop %v5001
  %v5003 = vmul.f32 %v5002, %v3318
  %v5004 = vsel %vm354, %v5003, 0.0
  %5005 = vadd.xlane.f32.xlu0 %v5004
  %v5006 = vpop.xlane.xlu0 %5005
  %v5007 = vadd.f32 %v5006, %v3225
  %v5008 = vadd.f32 %v2504, %v4991
  %v5009 = vtanh.pop %v5008
  %v5010 = vmul.f32 %v5009, %v3318
  %v5011 = vsel %vm354, %v5010, 0.0
  %5012 = vadd.xlane.f32.xlu0 %v5011
  %v5013 = vpop.xlane.xlu0 %5012
  %v5014 = vadd.f32 %v5013, %v3226
  %v5015 = vadd.f32 %v2509, %v4991
  %v5016 = vtanh.pop %v5015
  %v5017 = vmul.f32 %v5016, %v3318
  %v5018 = vsel %vm354, %v5017, 0.0
  %5019 = vadd.xlane.f32.xlu0 %v5018
  %v5020 = vpop.xlane.xlu0 %5019
  %v5021 = vadd.f32 %v5020, %v3227
  %v5022 = vadd.f32 %v2514, %v4991
  %v5023 = vtanh.pop %v5022
  %v5024 = vmul.f32 %v5023, %v3318
  %v5025 = vsel %vm354, %v5024, 0.0
  %5026 = vadd.xlane.f32.xlu0 %v5025
  %v5027 = vpop.xlane.xlu0 %5026
  %v5028 = vadd.f32 %v5027, %v3228
  %v5029 = vadd.f32 %v2519, %v4991
  %v5030 = vtanh.pop %v5029
  %v5031 = vmul.f32 %v5030, %v3318
  %v5032 = vsel %vm354, %v5031, 0.0
  %5033 = vadd.xlane.f32.xlu0 %v5032
  %v5034 = vpop.xlane.xlu0 %5033
  %v5035 = vadd.f32 %v5034, %v3229
  %v5036 = vadd.f32 %v2524, %v4991
  %v5037 = vtanh.pop %v5036
  %v5038 = vmul.f32 %v5037, %v3318
  %v5039 = vsel %vm354, %v5038, 0.0
  %5040 = vadd.xlane.f32.xlu0 %v5039
  %v5041 = vpop.xlane.xlu0 %5040
  %v5042 = vadd.f32 %v5041, %v3230
  %v5043 = vadd.f32 %v2529, %v4991
  %v5044 = vtanh.pop %v5043
  %v5045 = vmul.f32 %v5044, %v3318
  %v5046 = vsel %vm354, %v5045, 0.0
  %5047 = vadd.xlane.f32.xlu0 %v5046
  %v5048 = vpop.xlane.xlu0 %5047
  %v5049 = vadd.f32 %v5048, %v3231
  %v5050 = vmax.f32 %v5000, %v5007
  %v5051 = vmax.f32 %v5050, %v5014
  %v5052 = vmax.f32 %v5051, %v5021
  %v5053 = vmax.f32 %v5052, %v5028
  %v5054 = vmax.f32 %v5053, %v5035
  %v5055 = vmax.f32 %v5054, %v5042
  %v5056 = vmax.f32 %v5055, %v5049
  %v5057 = vsub.f32 %v5000, %v5056
  %v5058 = vmul.f32 %v5057, 1.442695
  %v5059 = vpow.pop %v5058
  %v5060 = vsub.f32 %v5007, %v5056
  %v5061 = vmul.f32 %v5060, 1.442695
  %v5062 = vpow.pop %v5061
  %v5063 = vsub.f32 %v5014, %v5056
  %v5064 = vmul.f32 %v5063, 1.442695
  %v5065 = vpow.pop %v5064
  %v5066 = vsub.f32 %v5021, %v5056
  %v5067 = vmul.f32 %v5066, 1.442695
  %v5068 = vpow.pop %v5067
  %v5069 = vsub.f32 %v5028, %v5056
  %v5070 = vmul.f32 %v5069, 1.442695
  %v5071 = vpow.pop %v5070
  %v5072 = vsub.f32 %v5035, %v5056
  %v5073 = vmul.f32 %v5072, 1.442695
  %v5074 = vpow.pop %v5073
  %v5075 = vsub.f32 %v5042, %v5056
  %v5076 = vmul.f32 %v5075, 1.442695
  %v5077 = vpow.pop %v5076
  %v5078 = vsub.f32 %v5049, %v5056
  %v5079 = vmul.f32 %v5078, 1.442695
  %v5080 = vpow.pop %v5079
  %v5081 = vadd.f32 %v5059, %v5062
  %v5082 = vadd.f32 %v5081, %v5065
  %v5083 = vadd.f32 %v5082, %v5068
  %v5084 = vadd.f32 %v5083, %v5071
  %v5085 = vadd.f32 %v5084, %v5074
  %v5086 = vadd.f32 %v5085, %v5077
  %v5087 = vadd.f32 %v5086, %v5080
  %v5088 = vrcp.pop %v5087
  %5090 = vset.pattern.permute.xlu0 0
  %5091 = vperm.xlu0 %5090, %v5059
  %v5092 = vpop.permute.xlu0 %5091
  %v5094 = vmul.f32 %v5092, %v2704
  %v5095 = vmul.f32 %v5092, %v2914
  %5097 = vset.pattern.permute.xlu0 0
  %5098 = vperm.xlu0 %5097, %v5062
  %v5099 = vpop.permute.xlu0 %5098
  %v5101 = vmul.f32 %v5099, %v2709
  %v5102 = vadd.f32 %v5094, %v5101
  %v5103 = vmul.f32 %v5099, %v2919
  %v5104 = vadd.f32 %v5095, %v5103
  %5106 = vset.pattern.permute.xlu0 0
  %5107 = vperm.xlu0 %5106, %v5065
  %v5108 = vpop.permute.xlu0 %5107
  %v5110 = vmul.f32 %v5108, %v2714
  %v5111 = vadd.f32 %v5102, %v5110
  %v5112 = vmul.f32 %v5108, %v2924
  %v5113 = vadd.f32 %v5104, %v5112
  %5115 = vset.pattern.permute.xlu0 0
  %5116 = vperm.xlu0 %5115, %v5068
  %v5117 = vpop.permute.xlu0 %5116
  %v5119 = vmul.f32 %v5117, %v2719
  %v5120 = vadd.f32 %v5111, %v5119
  %v5121 = vmul.f32 %v5117, %v2929
  %v5122 = vadd.f32 %v5113, %v5121
  %5124 = vset.pattern.permute.xlu0 0
  %5125 = vperm.xlu0 %5124, %v5071
  %v5126 = vpop.permute.xlu0 %5125
  %v5128 = vmul.f32 %v5126, %v2724
  %v5129 = vadd.f32 %v5120, %v5128
  %v5130 = vmul.f32 %v5126, %v2934
  %v5131 = vadd.f32 %v5122, %v5130
  %5133 = vset.pattern.permute.xlu0 0
  %5134 = vperm.xlu0 %5133, %v5074
  %v5135 = vpop.permute.xlu0 %5134
  %v5137 = vmul.f32 %v5135, %v2729
  %v5138 = vadd.f32 %v5129, %v5137
  %v5139 = vmul.f32 %v5135, %v2939
  %v5140 = vadd.f32 %v5131, %v5139
  %5142 = vset.pattern.permute.xlu0 0
  %5143 = vperm.xlu0 %5142, %v5077
  %v5144 = vpop.permute.xlu0 %5143
  %v5146 = vmul.f32 %v5144, %v2734
  %v5147 = vadd.f32 %v5138, %v5146
  %v5148 = vmul.f32 %v5144, %v2944
  %v5149 = vadd.f32 %v5140, %v5148
  %5151 = vset.pattern.permute.xlu0 0
  %5152 = vperm.xlu0 %5151, %v5080
  %v5153 = vpop.permute.xlu0 %5152
  %v5155 = vmul.f32 %v5153, %v2739
  %v5156 = vadd.f32 %v5147, %v5155
  %v5157 = vmul.f32 %v5153, %v2949
  %v5158 = vadd.f32 %v5149, %v5157
  %5160 = vset.pattern.permute.xlu0 0
  %5161 = vperm.xlu0 %5160, %v5088
  %v5162 = vpop.permute.xlu0 %5161
  %v5164 = vmul.f32 %v5156, %v5162
  %v5165 = vadd.f32 %v3080, %v5164
  %5166 = vmatprep.subr.mxu0 0.0
  %5167 = vmatpush1.msra.mxu0 %v3216
  %5168 = vmatprep.subr.mxu0 0.0
  %5169 = vmatpush1.msra.mxu0 %v3217
  %5170 = vmatprep.subr.mxu0 0.0
  %5171 = vmatpush1.msra.mxu0 %v3218
  %5172 = vmatprep.subr.mxu0 0.0
  %5173 = vmatpush1.msra.mxu0 %v3219
  %5174 = vmatprep.subr.mxu0 0.0
  %5175 = vmatpush1.msra.mxu0 0.0
  %5176 = vmatprep.subr.mxu0 0.0
  %5177 = vmatpush1.msra.mxu0 0.0
  %5178 = vmatprep.subr.mxu0 0.0
  %5179 = vmatpush1.msra.mxu0 0.0
  %5180 = vmatprep.subr.mxu0 0.0
  %5181 = vmatpush1.msra.mxu0 0.0
  %5182 = vmatprep.subr.mxu0 0.0
  %5183 = vmatpush1.msra.mxu0 0.0
  %5184 = vmatprep.subr.mxu0 0.0
  %5185 = vmatpush1.msra.mxu0 0.0
  %5186 = vmatprep.subr.mxu0 0.0
  %5187 = vmatpush1.msra.mxu0 0.0
  %5188 = vmatprep.subr.mxu0 0.0
  %5189 = vmatpush1.msra.mxu0 0.0
  %5190 = vmatprep.subr.mxu0 0.0
  %5191 = vmatpush1.msra.mxu0 0.0
  %5192 = vmatprep.subr.mxu0 0.0
  %5193 = vmatpush1.msra.mxu0 0.0
  %5194 = vmatprep.subr.mxu0 0.0
  %5195 = vmatpush1.msra.mxu0 0.0
  %5196 = vmatprep.subr.mxu0 0.0
  %5197 = vmatpush1.msra.mxu0 0.0
  %5198 = vmatprep.subr.mxu0 0.0
  %5199 = vmatpush1.msra.mxu0 0.0
  %5200 = vmatprep.subr.mxu0 0.0
  %5201 = vmatpush1.msra.mxu0 0.0
  %5202 = vmatprep.subr.mxu0 0.0
  %5203 = vmatpush1.msra.mxu0 0.0
  %5204 = vmatprep.subr.mxu0 0.0
  %5205 = vmatpush1.msra.mxu0 0.0
  %5206 = vmatprep.subr.mxu0 0.0
  %5207 = vmatpush1.msra.mxu0 0.0
  %5208 = vmatprep.subr.mxu0 0.0
  %5209 = vmatpush1.msra.mxu0 0.0
  %5210 = vmatprep.subr.mxu0 0.0
  %5211 = vmatpush1.msra.mxu0 0.0
  %5212 = vmatprep.subr.mxu0 0.0
  %5213 = vmatpush1.msra.mxu0 0.0
  %5214 = vmatprep.subr.mxu0 0.0
  %5215 = vmatpush1.msra.mxu0 0.0
  %5216 = vmatprep.subr.mxu0 0.0
  %5217 = vmatpush1.msra.mxu0 0.0
  %5218 = vmatprep.subr.mxu0 0.0
  %5219 = vmatpush1.msra.mxu0 0.0
  %5220 = vmatprep.subr.mxu0 0.0
  %5221 = vmatpush1.msra.mxu0 0.0
  %5222 = vmatprep.subr.mxu0 0.0
  %5223 = vmatpush1.msra.mxu0 0.0
  %5224 = vmatprep.subr.mxu0 0.0
  %5225 = vmatpush1.msra.mxu0 0.0
  %5226 = vmatprep.subr.mxu0 0.0
  %5227 = vmatpush1.msra.mxu0 0.0
  %5228 = vmatprep.subr.mxu0 0.0
  %5229 = vmatpush1.msra.mxu0 0.0
  %5230 = vmatprep.mubr.f32.mxu0 0.0
  %5231 = vmatmul.mubr.f32.gmra.mrb[0].mxu0 %v4849
  %v5232 = vpop.f32.mrb[0].mxu0
  %v5233 = vadd.f32 0.0, %v5232
  %v5234 = vpop.f32.mrb[0].mxu0
  %5235 = vdwg.mxu0
  %v5236 = vadd.f32 %v5165, %v5233
  %v5237 = vtanh.pop %v5236
  %v5238 = vxor.u32 %v5236, 2147483648
  %v5239 = vmul.f32 %v5238, 1.442695
  %v5240 = vpow.pop %v5239
  %v5241 = vadd.f32 %v5240, 1.0
  %v5242 = vrcp.pop %v5241
  %v5243 = vmul.f32 1.0, %v5242
  %v5244 = vsel %vm353, %v5237, %v5243
  %v5245 = vmul.f32 %v5244, %v4837
  %5247 = vrot.lane.b32.xlu0 %v5244, 64
  %v5248 = vpop.permute.xlu0 %5247
  %v5250 = vmul.f32 %v5244, %v5248
  %5252 = vrot.lane.b32.xlu0 %v5250, 32
  %v5253 = vpop.permute.xlu0 %5252
  %v5255 = vadd.f32 %v5245, %v5253
  %v5256 = vtanh.pop %v5255
  %5258 = vrot.lane.b32.xlu0 %v5256, 64
  %v5259 = vpop.permute.xlu0 %5258
  %v5261 = vmul.f32 %v5244, %v5259
  %v5262 = vmul.f32 %v5158, %v5162
  %v5263 = vadd.f32 %v3193, %v5262
  %5265 = vrot.lane.b32.xlu0 %v5261, 32
  %v5266 = vpop.permute.xlu0 %5265
  %v5267 = vsel %vm354, %v5266, 0
  %5269 = vmatprep.subr.mxu0 0.0
  %5270 = vmatpush1.msra.mxu0 %v3220
  %5271 = vmatprep.subr.mxu0 0.0
  %5272 = vmatpush1.msra.mxu0 %v3221
  %5273 = vmatprep.subr.mxu0 0.0
  %5274 = vmatpush1.msra.mxu0 %v3222
  %5275 = vmatprep.subr.mxu0 0.0
  %5276 = vmatpush1.msra.mxu0 %v3223
  %5277 = vmatprep.subr.mxu0 0.0
  %5278 = vmatpush1.msra.mxu0 0.0
  %5279 = vmatprep.subr.mxu0 0.0
  %5280 = vmatpush1.msra.mxu0 0.0
  %5281 = vmatprep.subr.mxu0 0.0
  %5282 = vmatpush1.msra.mxu0 0.0
  %5283 = vmatprep.subr.mxu0 0.0
  %5284 = vmatpush1.msra.mxu0 0.0
  %5285 = vmatprep.subr.mxu0 0.0
  %5286 = vmatpush1.msra.mxu0 0.0
  %5287 = vmatprep.subr.mxu0 0.0
  %5288 = vmatpush1.msra.mxu0 0.0
  %5289 = vmatprep.subr.mxu0 0.0
  %5290 = vmatpush1.msra.mxu0 0.0
  %5291 = vmatprep.subr.mxu0 0.0
  %5292 = vmatpush1.msra.mxu0 0.0
  %5293 = vmatprep.subr.mxu0 0.0
  %5294 = vmatpush1.msra.mxu0 0.0
  %5295 = vmatprep.subr.mxu0 0.0
  %5296 = vmatpush1.msra.mxu0 0.0
  %5297 = vmatprep.subr.mxu0 0.0
  %5298 = vmatpush1.msra.mxu0 0.0
  %5299 = vmatprep.subr.mxu0 0.0
  %5300 = vmatpush1.msra.mxu0 0.0
  %5301 = vmatprep.subr.mxu0 0.0
  %5302 = vmatpush1.msra.mxu0 0.0
  %5303 = vmatprep.subr.mxu0 0.0
  %5304 = vmatpush1.msra.mxu0 0.0
  %5305 = vmatprep.subr.mxu0 0.0
  %5306 = vmatpush1.msra.mxu0 0.0
  %5307 = vmatprep.subr.mxu0 0.0
  %5308 = vmatpush1.msra.mxu0 0.0
  %5309 = vmatprep.subr.mxu0 0.0
  %5310 = vmatpush1.msra.mxu0 0.0
  %5311 = vmatprep.subr.mxu0 0.0
  %5312 = vmatpush1.msra.mxu0 0.0
  %5313 = vmatprep.subr.mxu0 0.0
  %5314 = vmatpush1.msra.mxu0 0.0
  %5315 = vmatprep.subr.mxu0 0.0
  %5316 = vmatpush1.msra.mxu0 0.0
  %5317 = vmatprep.subr.mxu0 0.0
  %5318 = vmatpush1.msra.mxu0 0.0
  %5319 = vmatprep.subr.mxu0 0.0
  %5320 = vmatpush1.msra.mxu0 0.0
  %5321 = vmatprep.subr.mxu0 0.0
  %5322 = vmatpush1.msra.mxu0 0.0
  %5323 = vmatprep.subr.mxu0 0.0
  %5324 = vmatpush1.msra.mxu0 0.0
  %5325 = vmatprep.subr.mxu0 0.0
  %5326 = vmatpush1.msra.mxu0 0.0
  %5327 = vmatprep.subr.mxu0 0.0
  %5328 = vmatpush1.msra.mxu0 0.0
  %5329 = vmatprep.subr.mxu0 0.0
  %5330 = vmatpush1.msra.mxu0 0.0
  %5331 = vmatprep.subr.mxu0 0.0
  %5332 = vmatpush1.msra.mxu0 0.0
  %5333 = vmatprep.mubr.f32.mxu0 0.0
  %5334 = vmatmul.mubr.f32.gmra.mrb[0].mxu0 %v5267
  %v5335 = vpop.f32.mrb[0].mxu0
  %v5336 = vadd.f32 0.0, %v5335
  %v5337 = vpop.f32.mrb[0].mxu0
  %5338 = vdwg.mxu0
  %v5339 = vadd.f32 %v5263, %v5336
  %s5340 = scalar_lea.vmem %s25, 40
  %5341 = vst [vmem:[%s5340] sm:$0xff] %v5339
  %5342 = vmatprep.subr.mxu0 0.0
  %5343 = vmatpush1.msra.mxu0 %v3210
  %5344 = vmatprep.subr.mxu0 0.0
  %5345 = vmatpush1.msra.mxu0 %v3211
  %5346 = vmatprep.subr.mxu0 0.0
  %5347 = vmatpush1.msra.mxu0 %v3212
  %5348 = vmatprep.subr.mxu0 0.0
  %5349 = vmatpush1.msra.mxu0 %v3213
  %5350 = vmatprep.subr.mxu0 0.0
  %5351 = vmatpush1.msra.mxu0 0.0
  %5352 = vmatprep.subr.mxu0 0.0
  %5353 = vmatpush1.msra.mxu0 0.0
  %5354 = vmatprep.subr.mxu0 0.0
  %5355 = vmatpush1.msra.mxu0 0.0
  %5356 = vmatprep.subr.mxu0 0.0
  %5357 = vmatpush1.msra.mxu0 0.0
  %5358 = vmatprep.subr.mxu0 0.0
  %5359 = vmatpush1.msra.mxu0 0.0
  %5360 = vmatprep.subr.mxu0 0.0
  %5361 = vmatpush1.msra.mxu0 0.0
  %5362 = vmatprep.subr.mxu0 0.0
  %5363 = vmatpush1.msra.mxu0 0.0
  %5364 = vmatprep.subr.mxu0 0.0
  %5365 = vmatpush1.msra.mxu0 0.0
  %5366 = vmatprep.subr.mxu0 0.0
  %5367 = vmatpush1.msra.mxu0 0.0
  %5368 = vmatprep.subr.mxu0 0.0
  %5369 = vmatpush1.msra.mxu0 0.0
  %5370 = vmatprep.subr.mxu0 0.0
  %5371 = vmatpush1.msra.mxu0 0.0
  %5372 = vmatprep.subr.mxu0 0.0
  %5373 = vmatpush1.msra.mxu0 0.0
  %5374 = vmatprep.subr.mxu0 0.0
  %5375 = vmatpush1.msra.mxu0 0.0
  %5376 = vmatprep.subr.mxu0 0.0
  %5377 = vmatpush1.msra.mxu0 0.0
  %5378 = vmatprep.subr.mxu0 0.0
  %5379 = vmatpush1.msra.mxu0 0.0
  %5380 = vmatprep.subr.mxu0 0.0
  %5381 = vmatpush1.msra.mxu0 0.0
  %5382 = vmatprep.subr.mxu0 0.0
  %5383 = vmatpush1.msra.mxu0 0.0
  %5384 = vmatprep.subr.mxu0 0.0
  %5385 = vmatpush1.msra.mxu0 0.0
  %5386 = vmatprep.subr.mxu0 0.0
  %5387 = vmatpush1.msra.mxu0 0.0
  %5388 = vmatprep.subr.mxu0 0.0
  %5389 = vmatpush1.msra.mxu0 0.0
  %5390 = vmatprep.subr.mxu0 0.0
  %5391 = vmatpush1.msra.mxu0 0.0
  %5392 = vmatprep.subr.mxu0 0.0
  %5393 = vmatpush1.msra.mxu0 0.0
  %5394 = vmatprep.subr.mxu0 0.0
  %5395 = vmatpush1.msra.mxu0 0.0
  %5396 = vmatprep.subr.mxu0 0.0
  %5397 = vmatpush1.msra.mxu0 0.0
  %5398 = vmatprep.subr.mxu0 0.0
  %5399 = vmatpush1.msra.mxu0 0.0
  %5400 = vmatprep.subr.mxu0 0.0
  %5401 = vmatpush1.msra.mxu0 0.0
  %5402 = vmatprep.subr.mxu0 0.0
  %5403 = vmatpush1.msra.mxu0 0.0
  %5404 = vmatprep.subr.mxu0 0.0
  %5405 = vmatpush1.msra.mxu0 0.0
  %5406 = vmatprep.mubr.f32.mxu0 0.0
  %5407 = vmatmul.mubr.f32.gmra.mrb[0].mxu0 %v5267
  %v5408 = vpop.f32.mrb[0].mxu0
  %v5409 = vadd.f32 %v3237, %v5408
  %v5410 = vpop.f32.mrb[0].mxu0
  %5411 = vdwg.mxu0
  %v5412 = vadd.f32 %v2494, %v5409
  %v5413 = vtanh.pop %v5412
  %v5414 = vmul.f32 %v5413, %v3318
  %v5415 = vsel %vm354, %v5414, 0.0
  %5416 = vadd.xlane.f32.xlu0 %v5415
  %v5417 = vpop.xlane.xlu0 %5416
  %v5418 = vadd.f32 %v5417, %v3224
  %v5419 = vadd.f32 %v2499, %v5409
  %v5420 = vtanh.pop %v5419
  %v5421 = vmul.f32 %v5420, %v3318
  %v5422 = vsel %vm354, %v5421, 0.0
  %5423 = vadd.xlane.f32.xlu0 %v5422
  %v5424 = vpop.xlane.xlu0 %5423
  %v5425 = vadd.f32 %v5424, %v3225
  %v5426 = vadd.f32 %v2504, %v5409
  %v5427 = vtanh.pop %v5426
  %v5428 = vmul.f32 %v5427, %v3318
  %v5429 = vsel %vm354, %v5428, 0.0
  %5430 = vadd.xlane.f32.xlu0 %v5429
  %v5431 = vpop.xlane.xlu0 %5430
  %v5432 = vadd.f32 %v5431, %v3226
  %v5433 = vadd.f32 %v2509, %v5409
  %v5434 = vtanh.pop %v5433
  %v5435 = vmul.f32 %v5434, %v3318
  %v5436 = vsel %vm354, %v5435, 0.0
  %5437 = vadd.xlane.f32.xlu0 %v5436
  %v5438 = vpop.xlane.xlu0 %5437
  %v5439 = vadd.f32 %v5438, %v3227
  %v5440 = vadd.f32 %v2514, %v5409
  %v5441 = vtanh.pop %v5440
  %v5442 = vmul.f32 %v5441, %v3318
  %v5443 = vsel %vm354, %v5442, 0.0
  %5444 = vadd.xlane.f32.xlu0 %v5443
  %v5445 = vpop.xlane.xlu0 %5444
  %v5446 = vadd.f32 %v5445, %v3228
  %v5447 = vadd.f32 %v2519, %v5409
  %v5448 = vtanh.pop %v5447
  %v5449 = vmul.f32 %v5448, %v3318
  %v5450 = vsel %vm354, %v5449, 0.0
  %5451 = vadd.xlane.f32.xlu0 %v5450
  %v5452 = vpop.xlane.xlu0 %5451
  %v5453 = vadd.f32 %v5452, %v3229
  %v5454 = vadd.f32 %v2524, %v5409
  %v5455 = vtanh.pop %v5454
  %v5456 = vmul.f32 %v5455, %v3318
  %v5457 = vsel %vm354, %v5456, 0.0
  %5458 = vadd.xlane.f32.xlu0 %v5457
  %v5459 = vpop.xlane.xlu0 %5458
  %v5460 = vadd.f32 %v5459, %v3230
  %v5461 = vadd.f32 %v2529, %v5409
  %v5462 = vtanh.pop %v5461
  %v5463 = vmul.f32 %v5462, %v3318
  %v5464 = vsel %vm354, %v5463, 0.0
  %5465 = vadd.xlane.f32.xlu0 %v5464
  %v5466 = vpop.xlane.xlu0 %5465
  %v5467 = vadd.f32 %v5466, %v3231
  %v5468 = vmax.f32 %v5418, %v5425
  %v5469 = vmax.f32 %v5468, %v5432
  %v5470 = vmax.f32 %v5469, %v5439
  %v5471 = vmax.f32 %v5470, %v5446
  %v5472 = vmax.f32 %v5471, %v5453
  %v5473 = vmax.f32 %v5472, %v5460
  %v5474 = vmax.f32 %v5473, %v5467
  %v5475 = vsub.f32 %v5418, %v5474
  %v5476 = vmul.f32 %v5475, 1.442695
  %v5477 = vpow.pop %v5476
  %v5478 = vsub.f32 %v5425, %v5474
  %v5479 = vmul.f32 %v5478, 1.442695
  %v5480 = vpow.pop %v5479
  %v5481 = vsub.f32 %v5432, %v5474
  %v5482 = vmul.f32 %v5481, 1.442695
  %v5483 = vpow.pop %v5482
  %v5484 = vsub.f32 %v5439, %v5474
  %v5485 = vmul.f32 %v5484, 1.442695
  %v5486 = vpow.pop %v5485
  %v5487 = vsub.f32 %v5446, %v5474
  %v5488 = vmul.f32 %v5487, 1.442695
  %v5489 = vpow.pop %v5488
  %v5490 = vsub.f32 %v5453, %v5474
  %v5491 = vmul.f32 %v5490, 1.442695
  %v5492 = vpow.pop %v5491
  %v5493 = vsub.f32 %v5460, %v5474
  %v5494 = vmul.f32 %v5493, 1.442695
  %v5495 = vpow.pop %v5494
  %v5496 = vsub.f32 %v5467, %v5474
  %v5497 = vmul.f32 %v5496, 1.442695
  %v5498 = vpow.pop %v5497
  %v5499 = vadd.f32 %v5477, %v5480
  %v5500 = vadd.f32 %v5499, %v5483
  %v5501 = vadd.f32 %v5500, %v5486
  %v5502 = vadd.f32 %v5501, %v5489
  %v5503 = vadd.f32 %v5502, %v5492
  %v5504 = vadd.f32 %v5503, %v5495
  %v5505 = vadd.f32 %v5504, %v5498
  %v5506 = vrcp.pop %v5505
  %5508 = vset.pattern.permute.xlu0 0
  %5509 = vperm.xlu0 %5508, %v5477
  %v5510 = vpop.permute.xlu0 %5509
  %v5512 = vmul.f32 %v5510, %v2704
  %v5513 = vmul.f32 %v5510, %v2914
  %5515 = vset.pattern.permute.xlu0 0
  %5516 = vperm.xlu0 %5515, %v5480
  %v5517 = vpop.permute.xlu0 %5516
  %v5519 = vmul.f32 %v5517, %v2709
  %v5520 = vadd.f32 %v5512, %v5519
  %v5521 = vmul.f32 %v5517, %v2919
  %v5522 = vadd.f32 %v5513, %v5521
  %5524 = vset.pattern.permute.xlu0 0
  %5525 = vperm.xlu0 %5524, %v5483
  %v5526 = vpop.permute.xlu0 %5525
  %v5528 = vmul.f32 %v5526, %v2714
  %v5529 = vadd.f32 %v5520, %v5528
  %v5530 = vmul.f32 %v5526, %v2924
  %v5531 = vadd.f32 %v5522, %v5530
  %5533 = vset.pattern.permute.xlu0 0
  %5534 = vperm.xlu0 %5533, %v5486
  %v5535 = vpop.permute.xlu0 %5534
  %v5537 = vmul.f32 %v5535, %v2719
  %v5538 = vadd.f32 %v5529, %v5537
  %v5539 = vmul.f32 %v5535, %v2929
  %v5540 = vadd.f32 %v5531, %v5539
  %5542 = vset.pattern.permute.xlu0 0
  %5543 = vperm.xlu0 %5542, %v5489
  %v5544 = vpop.permute.xlu0 %5543
  %v5546 = vmul.f32 %v5544, %v2724
  %v5547 = vadd.f32 %v5538, %v5546
  %v5548 = vmul.f32 %v5544, %v2934
  %v5549 = vadd.f32 %v5540, %v5548
  %5551 = vset.pattern.permute.xlu0 0
  %5552 = vperm.xlu0 %5551, %v5492
  %v5553 = vpop.permute.xlu0 %5552
  %v5555 = vmul.f32 %v5553, %v2729
  %v5556 = vadd.f32 %v5547, %v5555
  %v5557 = vmul.f32 %v5553, %v2939
  %v5558 = vadd.f32 %v5549, %v5557
  %5560 = vset.pattern.permute.xlu0 0
  %5561 = vperm.xlu0 %5560, %v5495
  %v5562 = vpop.permute.xlu0 %5561
  %v5564 = vmul.f32 %v5562, %v2734
  %v5565 = vadd.f32 %v5556, %v5564
  %v5566 = vmul.f32 %v5562, %v2944
  %v5567 = vadd.f32 %v5558, %v5566
  %5569 = vset.pattern.permute.xlu0 0
  %5570 = vperm.xlu0 %5569, %v5498
  %v5571 = vpop.permute.xlu0 %5570
  %v5573 = vmul.f32 %v5571, %v2739
  %v5574 = vadd.f32 %v5565, %v5573
  %v5575 = vmul.f32 %v5571, %v2949
  %v5576 = vadd.f32 %v5567, %v5575
  %5578 = vset.pattern.permute.xlu0 0
  %5579 = vperm.xlu0 %5578, %v5506
  %v5580 = vpop.permute.xlu0 %5579
  %v5582 = vmul.f32 %v5574, %v5580
  %v5583 = vadd.f32 %v3085, %v5582
  %5584 = vmatprep.subr.mxu0 0.0
  %5585 = vmatpush1.msra.mxu0 %v3216
  %5586 = vmatprep.subr.mxu0 0.0
  %5587 = vmatpush1.msra.mxu0 %v3217
  %5588 = vmatprep.subr.mxu0 0.0
  %5589 = vmatpush1.msra.mxu0 %v3218
  %5590 = vmatprep.subr.mxu0 0.0
  %5591 = vmatpush1.msra.mxu0 %v3219
  %5592 = vmatprep.subr.mxu0 0.0
  %5593 = vmatpush1.msra.mxu0 0.0
  %5594 = vmatprep.subr.mxu0 0.0
  %5595 = vmatpush1.msra.mxu0 0.0
  %5596 = vmatprep.subr.mxu0 0.0
  %5597 = vmatpush1.msra.mxu0 0.0
  %5598 = vmatprep.subr.mxu0 0.0
  %5599 = vmatpush1.msra.mxu0 0.0
  %5600 = vmatprep.subr.mxu0 0.0
  %5601 = vmatpush1.msra.mxu0 0.0
  %5602 = vmatprep.subr.mxu0 0.0
  %5603 = vmatpush1.msra.mxu0 0.0
  %5604 = vmatprep.subr.mxu0 0.0
  %5605 = vmatpush1.msra.mxu0 0.0
  %5606 = vmatprep.subr.mxu0 0.0
  %5607 = vmatpush1.msra.mxu0 0.0
  %5608 = vmatprep.subr.mxu0 0.0
  %5609 = vmatpush1.msra.mxu0 0.0
  %5610 = vmatprep.subr.mxu0 0.0
  %5611 = vmatpush1.msra.mxu0 0.0
  %5612 = vmatprep.subr.mxu0 0.0
  %5613 = vmatpush1.msra.mxu0 0.0
  %5614 = vmatprep.subr.mxu0 0.0
  %5615 = vmatpush1.msra.mxu0 0.0
  %5616 = vmatprep.subr.mxu0 0.0
  %5617 = vmatpush1.msra.mxu0 0.0
  %5618 = vmatprep.subr.mxu0 0.0
  %5619 = vmatpush1.msra.mxu0 0.0
  %5620 = vmatprep.subr.mxu0 0.0
  %5621 = vmatpush1.msra.mxu0 0.0
  %5622 = vmatprep.subr.mxu0 0.0
  %5623 = vmatpush1.msra.mxu0 0.0
  %5624 = vmatprep.subr.mxu0 0.0
  %5625 = vmatpush1.msra.mxu0 0.0
  %5626 = vmatprep.subr.mxu0 0.0
  %5627 = vmatpush1.msra.mxu0 0.0
  %5628 = vmatprep.subr.mxu0 0.0
  %5629 = vmatpush1.msra.mxu0 0.0
  %5630 = vmatprep.subr.mxu0 0.0
  %5631 = vmatpush1.msra.mxu0 0.0
  %5632 = vmatprep.subr.mxu0 0.0
  %5633 = vmatpush1.msra.mxu0 0.0
  %5634 = vmatprep.subr.mxu0 0.0
  %5635 = vmatpush1.msra.mxu0 0.0
  %5636 = vmatprep.subr.mxu0 0.0
  %5637 = vmatpush1.msra.mxu0 0.0
  %5638 = vmatprep.subr.mxu0 0.0
  %5639 = vmatpush1.msra.mxu0 0.0
  %5640 = vmatprep.subr.mxu0 0.0
  %5641 = vmatpush1.msra.mxu0 0.0
  %5642 = vmatprep.subr.mxu0 0.0
  %5643 = vmatpush1.msra.mxu0 0.0
  %5644 = vmatprep.subr.mxu0 0.0
  %5645 = vmatpush1.msra.mxu0 0.0
  %5646 = vmatprep.subr.mxu0 0.0
  %5647 = vmatpush1.msra.mxu0 0.0
  %5648 = vmatprep.mubr.f32.mxu0 0.0
  %5649 = vmatmul.mubr.f32.gmra.mrb[0].mxu0 %v5267
  %v5650 = vpop.f32.mrb[0].mxu0
  %v5651 = vadd.f32 0.0, %v5650
  %v5652 = vpop.f32.mrb[0].mxu0
  %5653 = vdwg.mxu0
  %v5654 = vadd.f32 %v5583, %v5651
  %v5655 = vtanh.pop %v5654
  %v5656 = vxor.u32 %v5654, 2147483648
  %v5657 = vmul.f32 %v5656, 1.442695
  %v5658 = vpow.pop %v5657
  %v5659 = vadd.f32 %v5658, 1.0
  %v5660 = vrcp.pop %v5659
  %v5661 = vmul.f32 1.0, %v5660
  %v5662 = vsel %vm353, %v5655, %v5661
  %v5663 = vmul.f32 %v5662, %v5255
  %5665 = vrot.lane.b32.xlu0 %v5662, 64
  %v5666 = vpop.permute.xlu0 %5665
  %v5668 = vmul.f32 %v5662, %v5666
  %5670 = vrot.lane.b32.xlu0 %v5668, 32
  %v5671 = vpop.permute.xlu0 %5670
  %v5673 = vadd.f32 %v5663, %v5671
  %v5674 = vtanh.pop %v5673
  %5676 = vrot.lane.b32.xlu0 %v5674, 64
  %v5677 = vpop.permute.xlu0 %5676
  %v5679 = vmul.f32 %v5662, %v5677
  %v5680 = vmul.f32 %v5576, %v5580
  %v5681 = vadd.f32 %v3198, %v5680
  %5683 = vrot.lane.b32.xlu0 %v5679, 32
  %v5684 = vpop.permute.xlu0 %5683
  %v5685 = vsel %vm354, %v5684, 0
  %5687 = vmatprep.subr.mxu0 0.0
  %5688 = vmatpush1.msra.mxu0 %v3220
  %5689 = vmatprep.subr.mxu0 0.0
  %5690 = vmatpush1.msra.mxu0 %v3221
  %5691 = vmatprep.subr.mxu0 0.0
  %5692 = vmatpush1.msra.mxu0 %v3222
  %5693 = vmatprep.subr.mxu0 0.0
  %5694 = vmatpush1.msra.mxu0 %v3223
  %5695 = vmatprep.subr.mxu0 0.0
  %5696 = vmatpush1.msra.mxu0 0.0
  %5697 = vmatprep.subr.mxu0 0.0
  %5698 = vmatpush1.msra.mxu0 0.0
  %5699 = vmatprep.subr.mxu0 0.0
  %5700 = vmatpush1.msra.mxu0 0.0
  %5701 = vmatprep.subr.mxu0 0.0
  %5702 = vmatpush1.msra.mxu0 0.0
  %5703 = vmatprep.subr.mxu0 0.0
  %5704 = vmatpush1.msra.mxu0 0.0
  %5705 = vmatprep.subr.mxu0 0.0
  %5706 = vmatpush1.msra.mxu0 0.0
  %5707 = vmatprep.subr.mxu0 0.0
  %5708 = vmatpush1.msra.mxu0 0.0
  %5709 = vmatprep.subr.mxu0 0.0
  %5710 = vmatpush1.msra.mxu0 0.0
  %5711 = vmatprep.subr.mxu0 0.0
  %5712 = vmatpush1.msra.mxu0 0.0
  %5713 = vmatprep.subr.mxu0 0.0
  %5714 = vmatpush1.msra.mxu0 0.0
  %5715 = vmatprep.subr.mxu0 0.0
  %5716 = vmatpush1.msra.mxu0 0.0
  %5717 = vmatprep.subr.mxu0 0.0
  %5718 = vmatpush1.msra.mxu0 0.0
  %5719 = vmatprep.subr.mxu0 0.0
  %5720 = vmatpush1.msra.mxu0 0.0
  %5721 = vmatprep.subr.mxu0 0.0
  %5722 = vmatpush1.msra.mxu0 0.0
  %5723 = vmatprep.subr.mxu0 0.0
  %5724 = vmatpush1.msra.mxu0 0.0
  %5725 = vmatprep.subr.mxu0 0.0
  %5726 = vmatpush1.msra.mxu0 0.0
  %5727 = vmatprep.subr.mxu0 0.0
  %5728 = vmatpush1.msra.mxu0 0.0
  %5729 = vmatprep.subr.mxu0 0.0
  %5730 = vmatpush1.msra.mxu0 0.0
  %5731 = vmatprep.subr.mxu0 0.0
  %5732 = vmatpush1.msra.mxu0 0.0
  %5733 = vmatprep.subr.mxu0 0.0
  %5734 = vmatpush1.msra.mxu0 0.0
  %5735 = vmatprep.subr.mxu0 0.0
  %5736 = vmatpush1.msra.mxu0 0.0
  %5737 = vmatprep.subr.mxu0 0.0
  %5738 = vmatpush1.msra.mxu0 0.0
  %5739 = vmatprep.subr.mxu0 0.0
  %5740 = vmatpush1.msra.mxu0 0.0
  %5741 = vmatprep.subr.mxu0 0.0
  %5742 = vmatpush1.msra.mxu0 0.0
  %5743 = vmatprep.subr.mxu0 0.0
  %5744 = vmatpush1.msra.mxu0 0.0
  %5745 = vmatprep.subr.mxu0 0.0
  %5746 = vmatpush1.msra.mxu0 0.0
  %5747 = vmatprep.subr.mxu0 0.0
  %5748 = vmatpush1.msra.mxu0 0.0
  %5749 = vmatprep.subr.mxu0 0.0
  %5750 = vmatpush1.msra.mxu0 0.0
  %5751 = vmatprep.mubr.f32.mxu0 0.0
  %5752 = vmatmul.mubr.f32.gmra.mrb[0].mxu0 %v5685
  %v5753 = vpop.f32.mrb[0].mxu0
  %v5754 = vadd.f32 0.0, %v5753
  %v5755 = vpop.f32.mrb[0].mxu0
  %5756 = vdwg.mxu0
  %v5757 = vadd.f32 %v5681, %v5754
  %s5758 = scalar_lea.vmem %s25, 48
  %5759 = vst [vmem:[%s5758] sm:$0xff] %v5757
  %5760 = vmatprep.subr.mxu0 0.0
  %5761 = vmatpush1.msra.mxu0 %v3210
  %5762 = vmatprep.subr.mxu0 0.0
  %5763 = vmatpush1.msra.mxu0 %v3211
  %5764 = vmatprep.subr.mxu0 0.0
  %5765 = vmatpush1.msra.mxu0 %v3212
  %5766 = vmatprep.subr.mxu0 0.0
  %5767 = vmatpush1.msra.mxu0 %v3213
  %5768 = vmatprep.subr.mxu0 0.0
  %5769 = vmatpush1.msra.mxu0 0.0
  %5770 = vmatprep.subr.mxu0 0.0
  %5771 = vmatpush1.msra.mxu0 0.0
  %5772 = vmatprep.subr.mxu0 0.0
  %5773 = vmatpush1.msra.mxu0 0.0
  %5774 = vmatprep.subr.mxu0 0.0
  %5775 = vmatpush1.msra.mxu0 0.0
  %5776 = vmatprep.subr.mxu0 0.0
  %5777 = vmatpush1.msra.mxu0 0.0
  %5778 = vmatprep.subr.mxu0 0.0
  %5779 = vmatpush1.msra.mxu0 0.0
  %5780 = vmatprep.subr.mxu0 0.0
  %5781 = vmatpush1.msra.mxu0 0.0
  %5782 = vmatprep.subr.mxu0 0.0
  %5783 = vmatpush1.msra.mxu0 0.0
  %5784 = vmatprep.subr.mxu0 0.0
  %5785 = vmatpush1.msra.mxu0 0.0
  %5786 = vmatprep.subr.mxu0 0.0
  %5787 = vmatpush1.msra.mxu0 0.0
  %5788 = vmatprep.subr.mxu0 0.0
  %5789 = vmatpush1.msra.mxu0 0.0
  %5790 = vmatprep.subr.mxu0 0.0
  %5791 = vmatpush1.msra.mxu0 0.0
  %5792 = vmatprep.subr.mxu0 0.0
  %5793 = vmatpush1.msra.mxu0 0.0
  %5794 = vmatprep.subr.mxu0 0.0
  %5795 = vmatpush1.msra.mxu0 0.0
  %5796 = vmatprep.subr.mxu0 0.0
  %5797 = vmatpush1.msra.mxu0 0.0
  %5798 = vmatprep.subr.mxu0 0.0
  %5799 = vmatpush1.msra.mxu0 0.0
  %5800 = vmatprep.subr.mxu0 0.0
  %5801 = vmatpush1.msra.mxu0 0.0
  %5802 = vmatprep.subr.mxu0 0.0
  %5803 = vmatpush1.msra.mxu0 0.0
  %5804 = vmatprep.subr.mxu0 0.0
  %5805 = vmatpush1.msra.mxu0 0.0
  %5806 = vmatprep.subr.mxu0 0.0
  %5807 = vmatpush1.msra.mxu0 0.0
  %5808 = vmatprep.subr.mxu0 0.0
  %5809 = vmatpush1.msra.mxu0 0.0
  %5810 = vmatprep.subr.mxu0 0.0
  %5811 = vmatpush1.msra.mxu0 0.0
  %5812 = vmatprep.subr.mxu0 0.0
  %5813 = vmatpush1.msra.mxu0 0.0
  %5814 = vmatprep.subr.mxu0 0.0
  %5815 = vmatpush1.msra.mxu0 0.0
  %5816 = vmatprep.subr.mxu0 0.0
  %5817 = vmatpush1.msra.mxu0 0.0
  %5818 = vmatprep.subr.mxu0 0.0
  %5819 = vmatpush1.msra.mxu0 0.0
  %5820 = vmatprep.subr.mxu0 0.0
  %5821 = vmatpush1.msra.mxu0 0.0
  %5822 = vmatprep.subr.mxu0 0.0
  %5823 = vmatpush1.msra.mxu0 0.0
  %5824 = vmatprep.mubr.f32.mxu0 0.0
  %5825 = vmatmul.mubr.f32.gmra.mrb[0].mxu0 %v5685
  %v5826 = vpop.f32.mrb[0].mxu0
  %v5827 = vadd.f32 %v3237, %v5826
  %v5828 = vpop.f32.mrb[0].mxu0
  %5829 = vdwg.mxu0
  %v5830 = vadd.f32 %v2494, %v5827
  %v5831 = vtanh.pop %v5830
  %v5832 = vmul.f32 %v5831, %v3318
  %v5833 = vsel %vm354, %v5832, 0.0
  %5834 = vadd.xlane.f32.xlu0 %v5833
  %v5835 = vpop.xlane.xlu0 %5834
  %v5836 = vadd.f32 %v5835, %v3224
  %v5837 = vadd.f32 %v2499, %v5827
  %v5838 = vtanh.pop %v5837
  %v5839 = vmul.f32 %v5838, %v3318
  %v5840 = vsel %vm354, %v5839, 0.0
  %5841 = vadd.xlane.f32.xlu0 %v5840
  %v5842 = vpop.xlane.xlu0 %5841
  %v5843 = vadd.f32 %v5842, %v3225
  %v5844 = vadd.f32 %v2504, %v5827
  %v5845 = vtanh.pop %v5844
  %v5846 = vmul.f32 %v5845, %v3318
  %v5847 = vsel %vm354, %v5846, 0.0
  %5848 = vadd.xlane.f32.xlu0 %v5847
  %v5849 = vpop.xlane.xlu0 %5848
  %v5850 = vadd.f32 %v5849, %v3226
  %v5851 = vadd.f32 %v2509, %v5827
  %v5852 = vtanh.pop %v5851
  %v5853 = vmul.f32 %v5852, %v3318
  %v5854 = vsel %vm354, %v5853, 0.0
  %5855 = vadd.xlane.f32.xlu0 %v5854
  %v5856 = vpop.xlane.xlu0 %5855
  %v5857 = vadd.f32 %v5856, %v3227
  %v5858 = vadd.f32 %v2514, %v5827
  %v5859 = vtanh.pop %v5858
  %v5860 = vmul.f32 %v5859, %v3318
  %v5861 = vsel %vm354, %v5860, 0.0
  %5862 = vadd.xlane.f32.xlu0 %v5861
  %v5863 = vpop.xlane.xlu0 %5862
  %v5864 = vadd.f32 %v5863, %v3228
  %v5865 = vadd.f32 %v2519, %v5827
  %v5866 = vtanh.pop %v5865
  %v5867 = vmul.f32 %v5866, %v3318
  %v5868 = vsel %vm354, %v5867, 0.0
  %5869 = vadd.xlane.f32.xlu0 %v5868
  %v5870 = vpop.xlane.xlu0 %5869
  %v5871 = vadd.f32 %v5870, %v3229
  %v5872 = vadd.f32 %v2524, %v5827
  %v5873 = vtanh.pop %v5872
  %v5874 = vmul.f32 %v5873, %v3318
  %v5875 = vsel %vm354, %v5874, 0.0
  %5876 = vadd.xlane.f32.xlu0 %v5875
  %v5877 = vpop.xlane.xlu0 %5876
  %v5878 = vadd.f32 %v5877, %v3230
  %v5879 = vadd.f32 %v2529, %v5827
  %v5880 = vtanh.pop %v5879
  %v5881 = vmul.f32 %v5880, %v3318
  %v5882 = vsel %vm354, %v5881, 0.0
  %5883 = vadd.xlane.f32.xlu0 %v5882
  %v5884 = vpop.xlane.xlu0 %5883
  %v5885 = vadd.f32 %v5884, %v3231
  %v5886 = vmax.f32 %v5836, %v5843
  %v5887 = vmax.f32 %v5886, %v5850
  %v5888 = vmax.f32 %v5887, %v5857
  %v5889 = vmax.f32 %v5888, %v5864
  %v5890 = vmax.f32 %v5889, %v5871
  %v5891 = vmax.f32 %v5890, %v5878
  %v5892 = vmax.f32 %v5891, %v5885
  %v5893 = vsub.f32 %v5836, %v5892
  %v5894 = vmul.f32 %v5893, 1.442695
  %v5895 = vpow.pop %v5894
  %v5896 = vsub.f32 %v5843, %v5892
  %v5897 = vmul.f32 %v5896, 1.442695
  %v5898 = vpow.pop %v5897
  %v5899 = vsub.f32 %v5850, %v5892
  %v5900 = vmul.f32 %v5899, 1.442695
  %v5901 = vpow.pop %v5900
  %v5902 = vsub.f32 %v5857, %v5892
  %v5903 = vmul.f32 %v5902, 1.442695
  %v5904 = vpow.pop %v5903
  %v5905 = vsub.f32 %v5864, %v5892
  %v5906 = vmul.f32 %v5905, 1.442695
  %v5907 = vpow.pop %v5906
  %v5908 = vsub.f32 %v5871, %v5892
  %v5909 = vmul.f32 %v5908, 1.442695
  %v5910 = vpow.pop %v5909
  %v5911 = vsub.f32 %v5878, %v5892
  %v5912 = vmul.f32 %v5911, 1.442695
  %v5913 = vpow.pop %v5912
  %v5914 = vsub.f32 %v5885, %v5892
  %v5915 = vmul.f32 %v5914, 1.442695
  %v5916 = vpow.pop %v5915
  %v5917 = vadd.f32 %v5895, %v5898
  %v5918 = vadd.f32 %v5917, %v5901
  %v5919 = vadd.f32 %v5918, %v5904
  %v5920 = vadd.f32 %v5919, %v5907
  %v5921 = vadd.f32 %v5920, %v5910
  %v5922 = vadd.f32 %v5921, %v5913
  %v5923 = vadd.f32 %v5922, %v5916
  %v5924 = vrcp.pop %v5923
  %5926 = vset.pattern.permute.xlu0 0
  %5927 = vperm.xlu0 %5926, %v5895
  %v5928 = vpop.permute.xlu0 %5927
  %v5930 = vmul.f32 %v5928, %v2704
  %v5931 = vmul.f32 %v5928, %v2914
  %5933 = vset.pattern.permute.xlu0 0
  %5934 = vperm.xlu0 %5933, %v5898
  %v5935 = vpop.permute.xlu0 %5934
  %v5937 = vmul.f32 %v5935, %v2709
  %v5938 = vadd.f32 %v5930, %v5937
  %v5939 = vmul.f32 %v5935, %v2919
  %v5940 = vadd.f32 %v5931, %v5939
  %5942 = vset.pattern.permute.xlu0 0
  %5943 = vperm.xlu0 %5942, %v5901
  %v5944 = vpop.permute.xlu0 %5943
  %v5946 = vmul.f32 %v5944, %v2714
  %v5947 = vadd.f32 %v5938, %v5946
  %v5948 = vmul.f32 %v5944, %v2924
  %v5949 = vadd.f32 %v5940, %v5948
  %5951 = vset.pattern.permute.xlu0 0
  %5952 = vperm.xlu0 %5951, %v5904
  %v5953 = vpop.permute.xlu0 %5952
  %v5955 = vmul.f32 %v5953, %v2719
  %v5956 = vadd.f32 %v5947, %v5955
  %v5957 = vmul.f32 %v5953, %v2929
  %v5958 = vadd.f32 %v5949, %v5957
  %5960 = vset.pattern.permute.xlu0 0
  %5961 = vperm.xlu0 %5960, %v5907
  %v5962 = vpop.permute.xlu0 %5961
  %v5964 = vmul.f32 %v5962, %v2724
  %v5965 = vadd.f32 %v5956, %v5964
  %v5966 = vmul.f32 %v5962, %v2934
  %v5967 = vadd.f32 %v5958, %v5966
  %5969 = vset.pattern.permute.xlu0 0
  %5970 = vperm.xlu0 %5969, %v5910
  %v5971 = vpop.permute.xlu0 %5970
  %v5973 = vmul.f32 %v5971, %v2729
  %v5974 = vadd.f32 %v5965, %v5973
  %v5975 = vmul.f32 %v5971, %v2939
  %v5976 = vadd.f32 %v5967, %v5975
  %5978 = vset.pattern.permute.xlu0 0
  %5979 = vperm.xlu0 %5978, %v5913
  %v5980 = vpop.permute.xlu0 %5979
  %v5982 = vmul.f32 %v5980, %v2734
  %v5983 = vadd.f32 %v5974, %v5982
  %v5984 = vmul.f32 %v5980, %v2944
  %v5985 = vadd.f32 %v5976, %v5984
  %5987 = vset.pattern.permute.xlu0 0
  %5988 = vperm.xlu0 %5987, %v5916
  %v5989 = vpop.permute.xlu0 %5988
  %v5991 = vmul.f32 %v5989, %v2739
  %v5992 = vadd.f32 %v5983, %v5991
  %v5993 = vmul.f32 %v5989, %v2949
  %v5994 = vadd.f32 %v5985, %v5993
  %5996 = vset.pattern.permute.xlu0 0
  %5997 = vperm.xlu0 %5996, %v5924
  %v5998 = vpop.permute.xlu0 %5997
  %v6000 = vmul.f32 %v5992, %v5998
  %v6001 = vadd.f32 %v3090, %v6000
  %6002 = vmatprep.subr.mxu0 0.0
  %6003 = vmatpush1.msra.mxu0 %v3216
  %6004 = vmatprep.subr.mxu0 0.0
  %6005 = vmatpush1.msra.mxu0 %v3217
  %6006 = vmatprep.subr.mxu0 0.0
  %6007 = vmatpush1.msra.mxu0 %v3218
  %6008 = vmatprep.subr.mxu0 0.0
  %6009 = vmatpush1.msra.mxu0 %v3219
  %6010 = vmatprep.subr.mxu0 0.0
  %6011 = vmatpush1.msra.mxu0 0.0
  %6012 = vmatprep.subr.mxu0 0.0
  %6013 = vmatpush1.msra.mxu0 0.0
  %6014 = vmatprep.subr.mxu0 0.0
  %6015 = vmatpush1.msra.mxu0 0.0
  %6016 = vmatprep.subr.mxu0 0.0
  %6017 = vmatpush1.msra.mxu0 0.0
  %6018 = vmatprep.subr.mxu0 0.0
  %6019 = vmatpush1.msra.mxu0 0.0
  %6020 = vmatprep.subr.mxu0 0.0
  %6021 = vmatpush1.msra.mxu0 0.0
  %6022 = vmatprep.subr.mxu0 0.0
  %6023 = vmatpush1.msra.mxu0 0.0
  %6024 = vmatprep.subr.mxu0 0.0
  %6025 = vmatpush1.msra.mxu0 0.0
  %6026 = vmatprep.subr.mxu0 0.0
  %6027 = vmatpush1.msra.mxu0 0.0
  %6028 = vmatprep.subr.mxu0 0.0
  %6029 = vmatpush1.msra.mxu0 0.0
  %6030 = vmatprep.subr.mxu0 0.0
  %6031 = vmatpush1.msra.mxu0 0.0
  %6032 = vmatprep.subr.mxu0 0.0
  %6033 = vmatpush1.msra.mxu0 0.0
  %6034 = vmatprep.subr.mxu0 0.0
  %6035 = vmatpush1.msra.mxu0 0.0
  %6036 = vmatprep.subr.mxu0 0.0
  %6037 = vmatpush1.msra.mxu0 0.0
  %6038 = vmatprep.subr.mxu0 0.0
  %6039 = vmatpush1.msra.mxu0 0.0
  %6040 = vmatprep.subr.mxu0 0.0
  %6041 = vmatpush1.msra.mxu0 0.0
  %6042 = vmatprep.subr.mxu0 0.0
  %6043 = vmatpush1.msra.mxu0 0.0
  %6044 = vmatprep.subr.mxu0 0.0
  %6045 = vmatpush1.msra.mxu0 0.0
  %6046 = vmatprep.subr.mxu0 0.0
  %6047 = vmatpush1.msra.mxu0 0.0
  %6048 = vmatprep.subr.mxu0 0.0
  %6049 = vmatpush1.msra.mxu0 0.0
  %6050 = vmatprep.subr.mxu0 0.0
  %6051 = vmatpush1.msra.mxu0 0.0
  %6052 = vmatprep.subr.mxu0 0.0
  %6053 = vmatpush1.msra.mxu0 0.0
  %6054 = vmatprep.subr.mxu0 0.0
  %6055 = vmatpush1.msra.mxu0 0.0
  %6056 = vmatprep.subr.mxu0 0.0
  %6057 = vmatpush1.msra.mxu0 0.0
  %6058 = vmatprep.subr.mxu0 0.0
  %6059 = vmatpush1.msra.mxu0 0.0
  %6060 = vmatprep.subr.mxu0 0.0
  %6061 = vmatpush1.msra.mxu0 0.0
  %6062 = vmatprep.subr.mxu0 0.0
  %6063 = vmatpush1.msra.mxu0 0.0
  %6064 = vmatprep.subr.mxu0 0.0
  %6065 = vmatpush1.msra.mxu0 0.0
  %6066 = vmatprep.mubr.f32.mxu0 0.0
  %6067 = vmatmul.mubr.f32.gmra.mrb[0].mxu0 %v5685
  %v6068 = vpop.f32.mrb[0].mxu0
  %v6069 = vadd.f32 0.0, %v6068
  %v6070 = vpop.f32.mrb[0].mxu0
  %6071 = vdwg.mxu0
  %v6072 = vadd.f32 %v6001, %v6069
  %v6073 = vtanh.pop %v6072
  %v6074 = vxor.u32 %v6072, 2147483648
  %v6075 = vmul.f32 %v6074, 1.442695
  %v6076 = vpow.pop %v6075
  %v6077 = vadd.f32 %v6076, 1.0
  %v6078 = vrcp.pop %v6077
  %v6079 = vmul.f32 1.0, %v6078
  %v6080 = vsel %vm353, %v6073, %v6079
  %v6081 = vmul.f32 %v6080, %v5673
  %6083 = vrot.lane.b32.xlu0 %v6080, 64
  %v6084 = vpop.permute.xlu0 %6083
  %v6086 = vmul.f32 %v6080, %v6084
  %6088 = vrot.lane.b32.xlu0 %v6086, 32
  %v6089 = vpop.permute.xlu0 %6088
  %v6091 = vadd.f32 %v6081, %v6089
  %v6092 = vtanh.pop %v6091
  %6094 = vrot.lane.b32.xlu0 %v6092, 64
  %v6095 = vpop.permute.xlu0 %6094
  %v6097 = vmul.f32 %v6080, %v6095
  %v6098 = vmul.f32 %v5994, %v5998
  %v6099 = vadd.f32 %v3203, %v6098
  %6101 = vrot.lane.b32.xlu0 %v6097, 32
  %v6102 = vpop.permute.xlu0 %6101
  %v6103 = vsel %vm354, %v6102, 0
  %6105 = vmatprep.subr.mxu0 0.0
  %6106 = vmatpush1.msra.mxu0 %v3220
  %6107 = vmatprep.subr.mxu0 0.0
  %6108 = vmatpush1.msra.mxu0 %v3221
  %6109 = vmatprep.subr.mxu0 0.0
  %6110 = vmatpush1.msra.mxu0 %v3222
  %6111 = vmatprep.subr.mxu0 0.0
  %6112 = vmatpush1.msra.mxu0 %v3223
  %6113 = vmatprep.subr.mxu0 0.0
  %6114 = vmatpush1.msra.mxu0 0.0
  %6115 = vmatprep.subr.mxu0 0.0
  %6116 = vmatpush1.msra.mxu0 0.0
  %6117 = vmatprep.subr.mxu0 0.0
  %6118 = vmatpush1.msra.mxu0 0.0
  %6119 = vmatprep.subr.mxu0 0.0
  %6120 = vmatpush1.msra.mxu0 0.0
  %6121 = vmatprep.subr.mxu0 0.0
  %6122 = vmatpush1.msra.mxu0 0.0
  %6123 = vmatprep.subr.mxu0 0.0
  %6124 = vmatpush1.msra.mxu0 0.0
  %6125 = vmatprep.subr.mxu0 0.0
  %6126 = vmatpush1.msra.mxu0 0.0
  %6127 = vmatprep.subr.mxu0 0.0
  %6128 = vmatpush1.msra.mxu0 0.0
  %6129 = vmatprep.subr.mxu0 0.0
  %6130 = vmatpush1.msra.mxu0 0.0
  %6131 = vmatprep.subr.mxu0 0.0
  %6132 = vmatpush1.msra.mxu0 0.0
  %6133 = vmatprep.subr.mxu0 0.0
  %6134 = vmatpush1.msra.mxu0 0.0
  %6135 = vmatprep.subr.mxu0 0.0
  %6136 = vmatpush1.msra.mxu0 0.0
  %6137 = vmatprep.subr.mxu0 0.0
  %6138 = vmatpush1.msra.mxu0 0.0
  %6139 = vmatprep.subr.mxu0 0.0
  %6140 = vmatpush1.msra.mxu0 0.0
  %6141 = vmatprep.subr.mxu0 0.0
  %6142 = vmatpush1.msra.mxu0 0.0
  %6143 = vmatprep.subr.mxu0 0.0
  %6144 = vmatpush1.msra.mxu0 0.0
  %6145 = vmatprep.subr.mxu0 0.0
  %6146 = vmatpush1.msra.mxu0 0.0
  %6147 = vmatprep.subr.mxu0 0.0
  %6148 = vmatpush1.msra.mxu0 0.0
  %6149 = vmatprep.subr.mxu0 0.0
  %6150 = vmatpush1.msra.mxu0 0.0
  %6151 = vmatprep.subr.mxu0 0.0
  %6152 = vmatpush1.msra.mxu0 0.0
  %6153 = vmatprep.subr.mxu0 0.0
  %6154 = vmatpush1.msra.mxu0 0.0
  %6155 = vmatprep.subr.mxu0 0.0
  %6156 = vmatpush1.msra.mxu0 0.0
  %6157 = vmatprep.subr.mxu0 0.0
  %6158 = vmatpush1.msra.mxu0 0.0
  %6159 = vmatprep.subr.mxu0 0.0
  %6160 = vmatpush1.msra.mxu0 0.0
  %6161 = vmatprep.subr.mxu0 0.0
  %6162 = vmatpush1.msra.mxu0 0.0
  %6163 = vmatprep.subr.mxu0 0.0
  %6164 = vmatpush1.msra.mxu0 0.0
  %6165 = vmatprep.subr.mxu0 0.0
  %6166 = vmatpush1.msra.mxu0 0.0
  %6167 = vmatprep.subr.mxu0 0.0
  %6168 = vmatpush1.msra.mxu0 0.0
  %6169 = vmatprep.mubr.f32.mxu0 0.0
  %6170 = vmatmul.mubr.f32.gmra.mrb[0].mxu0 %v6103
  %v6171 = vpop.f32.mrb[0].mxu0
  %v6172 = vadd.f32 0.0, %v6171
  %v6173 = vpop.f32.mrb[0].mxu0
  %6174 = vdwg.mxu0
  %v6175 = vadd.f32 %v6099, %v6172
  %s6176 = scalar_lea.vmem %s25, 56
  %6177 = vst [vmem:[%s6176] sm:$0xff] %v6175
  // Predicated region
  $region102: #{seq2seq_forward.1} parent=0 // pred_check
    _
  $region103: #{seq2seq_forward.1} parent=0 // pred_check_branch
    %6179 = sbr.rel (0) target = $region105
  $region104: #{seq2seq_forward.1} parent=0 // pred_region
    _
  $region105: #{seq2seq_forward.1} parent=0 // pred_fallthru
    _
  // Predicated region
  $region106: #{seq2seq_forward.1} parent=0 // pred_check
    _
  $region107: #{seq2seq_forward.1} parent=0 // pred_check_branch
    %6181 = sbr.rel (0) target = $region109
  $region108: #{seq2seq_forward.1} parent=0 // pred_region
    _
  $region109: #{seq2seq_forward.1} parent=0 // pred_fallthru
    _

</llo_original>
